<compile_context>
chip_gen: v7x
topology: tpu7x:2x2x1
jax: 0.10.0
libtpu: 0.0.40
codegen_flags: <defaults>
</compile_context>

<pallas_src>
import numpy as np
import jax
import jax.numpy as jnp
from jax import lax
from jax.experimental import pallas as pl
from jax.experimental.pallas import tpu as pltpu

LRELU = 0.1


def _make_hfab_kernel(H, W, layer_cfgs):
    """Build the fused HFAB kernel for a static list of layer configs.

    layer_cfgs: list of dicts {cin, cout, gate, n_act}; the last layer has
    gate=True (sigmoid(conv) * skip), all others are conv -> LeakyReLU^n_act.
    """
    HW = H * W
    L = len(layer_cfgs)
    TAPS = [(dy, dx) for dy in (-1, 0, 1) for dx in (-1, 0, 1)]
    # rolled[i] = act[(i + dy*W + dx) % HW]  (jnp.roll semantics, non-negative shift)
    SHIFTS = [(-(dy * W + dx)) % HW for dy, dx in TAPS]
    CENTER = TAPS.index((0, 0))

    def kernel(*refs):
        x_ref = refs[0]                     # (1, C, HW) VMEM, lane-dense input
        m_ref = refs[1]                     # (9, HW)   VMEM, 0/1 per-tap boundary masks
        wb = refs[2:2 + 2 * L]              # per-layer (w_flat, b) SMEM refs
        o_ref = refs[2 + 2 * L]             # (1, C, HW) VMEM, lane-dense output

        cin0 = layer_cfgs[0]["cin"]
        # Original input rows (one (1, HW) slab per channel); reused by the gate.
        x_rows = [x_ref[0, c:c + 1, :].astype(jnp.float32) for c in range(cin0)]

        act = x_rows
        for l, cfg in enumerate(layer_cfgs):
            w_ref, b_ref = wb[2 * l], wb[2 * l + 1]
            cin, cout = cfg["cin"], cfg["cout"]

            # Hoist all SMEM scalar reads for this layer above the vector MAC stream.
            wv = [w_ref[k] for k in range(9 * cin * cout)]
            bv = [b_ref[c] for c in range(cout)]

            # 3x3 SAME conv: per tap, roll the flattened row on the XLU, kill the
            # wrapped/boundary lanes with the precomputed mask, then VPU MACs with
            # scalar weights (shared rolled row across all output channels).
            accs = [None] * cout
            for t, (dy, dx) in enumerate(TAPS):
                mask = None if t == CENTER else m_ref[t:t + 1, :]
                for ci in range(cin):
                    r = act[ci] if SHIFTS[t] == 0 else pltpu.roll(act[ci], SHIFTS[t], axis=1)
                    if mask is not None:
                        r = r * mask
                    base = t * cin * cout + ci * cout
                    for co in range(cout):
                        term = wv[base + co] * r
                        if accs[co] is None:
                            accs[co] = term + bv[co]   # fold bias into the init
                        else:
                            accs[co] = accs[co] + term

            if cfg["gate"]:
                # excitate: sigmoid(conv + b) * x; direct lane-dense row stores.
                for co in range(cout):
                    z = accs[co]
                    g = pl.reciprocal(1.0 + jnp.exp(-z), approx=False)  # exact sigmoid
                    o_ref[0, co:co + 1, :] = (g * x_rows[co]).astype(o_ref.dtype)
            else:
                new_act = []
                for co in range(cout):
                    z = accs[co]
                    for _ in range(cfg["n_act"]):
                        z = jnp.where(z >= 0, z, LRELU * z)
                    new_act.append(z)
                act = new_act

    return kernel


def hfab_forward(x_nchw, params):
    """HFAB forward, matching the PyTorch module semantics exactly (NCHW in/out)."""
    N, C, H, W = x_nchw.shape
    HW = H * W
    n_erb = len(params["erb"])

    layer_cfgs = []
    flat_args = []

    def add_layer(w, b, gate, n_act):
        cin, cout = w.shape[2], w.shape[3]           # weights stored HWIO
        layer_cfgs.append(dict(cin=cin, cout=cout, gate=gate, n_act=n_act))
        flat_args.append(jnp.asarray(w, jnp.float32).reshape(-1))
        flat_args.append(jnp.asarray(b, jnp.float32).reshape(-1))

    w, b = params["squeeze"]
    # act(squeeze(x)); with no ERB blocks the trailing act() applies directly on
    # top of this one (double LeakyReLU).
    add_layer(w, b, gate=False, n_act=2 if n_erb == 0 else 1)
    for i, (w, b) in enumerate(params["erb"]):
        # each ERB is conv -> act; the last one absorbs the extra act() from
        # `out = act(self.convs(out))`.
        add_layer(w, b, gate=False, n_act=2 if i == n_erb - 1 else 1)
    w, b = params["excitate"]
    add_layer(w, b, gate=True, n_act=0)              # sigmoid(excitate(out)) * x

    # Host-precomputed 0/1 boundary masks for the 9 taps of a 3x3 SAME conv on the
    # flattened row-major (H*W,) lane axis (also kills the roll wrap-around lanes).
    yy, xx = np.meshgrid(np.arange(H), np.arange(W), indexing="ij")
    yy = yy.reshape(-1)
    xx = xx.reshape(-1)
    masks = np.ones((9, HW), np.float32)
    t = 0
    for dy in (-1, 0, 1):
        for dx in (-1, 0, 1):
            valid = (yy + dy >= 0) & (yy + dy < H) & (xx + dx >= 0) & (xx + dx < W)
            masks[t] = valid.astype(np.float32)
            t += 1
    masks = jnp.asarray(masks)

    kernel = _make_hfab_kernel(H, W, layer_cfgs)

    x_flat = x_nchw.reshape(N, C, HW)     # layout-preserving (free) reshape

    smem = pltpu.MemorySpace.SMEM
    in_specs = [
        pl.BlockSpec((1, C, HW), lambda n: (n, 0, 0)),   # one image per grid step
        pl.BlockSpec((9, HW), lambda n: (0, 0)),         # masks (same block every step)
    ]
    in_specs += [pl.BlockSpec(memory_space=smem) for _ in flat_args]

    out = pl.pallas_call(
        kernel,
        out_shape=jax.ShapeDtypeStruct((N, C, HW), x_nchw.dtype),
        grid_spec=pltpu.PrefetchScalarGridSpec(
            num_scalar_prefetch=0,
            grid=(N,),                                   # N=2 -> 2 parallel blocks (v7x: both TCs)
            in_specs=in_specs,
            out_specs=pl.BlockSpec((1, C, HW), lambda n: (n, 0, 0)),
        ),
        compiler_params=pltpu.CompilerParams(
            dimension_semantics=("parallel",)),
    )(x_flat, masks, *flat_args)

    return out.reshape(N, C, H, W)


def init_hfab_params(key, n_feats, up_blocks, mid_feats):
    """Deterministic synthetic params. Weights stored as HWIO (3,3,Cin,Cout)."""
    keys = jax.random.split(key, 2 * (up_blocks + 2))
    ki = iter(range(len(keys)))

    def conv_p(cin, cout):
        w = 0.1 * jax.random.normal(keys[next(ki)], (3, 3, cin, cout), jnp.float32)
        bb = 0.05 * jax.random.normal(keys[next(ki)], (cout,), jnp.float32)
        return w, bb

    params = {
        "squeeze": conv_p(n_feats, mid_feats),
        "erb": [conv_p(mid_feats, mid_feats) for _ in range(up_blocks)],
        "excitate": conv_p(mid_feats, n_feats),
    }
    return params


def hfab_reference(x_nchw, params):
    """Pure-JAX reference (lax.conv) for correctness checking."""
    x = jnp.transpose(x_nchw, (0, 2, 3, 1))
    dn = ("NHWC", "HWIO", "NHWC")

    def conv(inp, w, b):
        y = lax.conv_general_dilated(inp, w, (1, 1), "SAME",
                                     dimension_numbers=dn)
        return y + b.reshape(1, 1, 1, -1)

    w, b = params["squeeze"]
    out = jax.nn.leaky_relu(conv(x, w, b), LRELU)
    for w, b in params["erb"]:
        out = jax.nn.leaky_relu(conv(out, w, b), LRELU)
    out = jax.nn.leaky_relu(out, LRELU)          # the extra act()
    w, b = params["excitate"]
    out = jax.nn.sigmoid(conv(out, w, b)) * x
    return jnp.transpose(out, (0, 3, 1, 2))


if __name__ == "__main__":
    n_feats, up_blocks, mid_feats = 4, 2, 4
    N, H, W = 2, 16, 16

    key = jax.random.PRNGKey(0)
    kx, kp = jax.random.split(key)
    x = jax.random.normal(kx, (N, n_feats, H, W), jnp.float32)
    params = init_hfab_params(kp, n_feats, up_blocks, mid_feats)

    out = jax.block_until_ready(hfab_forward(x, params))
    ref = jax.block_until_ready(hfab_reference(x, params))

    assert out.shape == (N, n_feats, H, W)
    assert jnp.allclose(out, ref, atol=1e-4, rtol=1e-4), "mismatch vs reference"
    print("KERNEL_OK")
</pallas_src>

<mosaic_0001>
module attributes {stable_mosaic.version = 11 : i64} {
  func.func @kernel(%arg0: i32, %arg1: memref<1x4x256xf32, #tpu.memory_space<vmem>>, %arg2: memref<9x256xf32, #tpu.memory_space<vmem>>, %arg3: memref<144xf32, #tpu.memory_space<smem>>, %arg4: memref<4xf32, #tpu.memory_space<smem>>, %arg5: memref<144xf32, #tpu.memory_space<smem>>, %arg6: memref<4xf32, #tpu.memory_space<smem>>, %arg7: memref<144xf32, #tpu.memory_space<smem>>, %arg8: memref<4xf32, #tpu.memory_space<smem>>, %arg9: memref<144xf32, #tpu.memory_space<smem>>, %arg10: memref<4xf32, #tpu.memory_space<smem>>, %arg11: memref<1x4x256xf32, #tpu.memory_space<vmem>>) attributes {dimension_semantics = [#tpu.dimension_semantics<parallel>], iteration_bounds = array<i64: 2>, scalar_prefetch = 0 : i64, scratch_operands = 0 : i64, tpu.core_type = #tpu.core_type<tc>, window_params = [{transform_indices = @transform_0, window_bounds = array<i64: 1, 4, 256>}, {pipeline_mode = #tpu.pipeline_mode<synchronous>, transform_indices = @transform_1, window_bounds = array<i64: 9, 256>}, {transform_indices = @transform_2, window_bounds = array<i64: 144>}, {transform_indices = @transform_3, window_bounds = array<i64: 4>}, {transform_indices = @transform_4, window_bounds = array<i64: 144>}, {transform_indices = @transform_5, window_bounds = array<i64: 4>}, {transform_indices = @transform_6, window_bounds = array<i64: 144>}, {transform_indices = @transform_7, window_bounds = array<i64: 4>}, {transform_indices = @transform_8, window_bounds = array<i64: 144>}, {transform_indices = @transform_9, window_bounds = array<i64: 4>}, {transform_indices = @transform_10, window_bounds = array<i64: 1, 4, 256>}]} {
    %c0 = arith.constant 0 : index
    %c0_0 = arith.constant 0 : index
    %c0_1 = arith.constant 0 : index
    %0 = vector.load %arg1[%c0, %c0_0, %c0_1] : memref<1x4x256xf32, #tpu.memory_space<vmem>>, vector<1x1x256xf32>
    %1 = vector.shape_cast %0 : vector<1x1x256xf32> to vector<1x256xf32>
    %c0_2 = arith.constant 0 : index
    %c1 = arith.constant 1 : index
    %c0_3 = arith.constant 0 : index
    %2 = vector.load %arg1[%c0_2, %c1, %c0_3] : memref<1x4x256xf32, #tpu.memory_space<vmem>>, vector<1x1x256xf32>
    %3 = vector.shape_cast %2 : vector<1x1x256xf32> to vector<1x256xf32>
    %c0_4 = arith.constant 0 : index
    %c2 = arith.constant 2 : index
    %c0_5 = arith.constant 0 : index
    %4 = vector.load %arg1[%c0_4, %c2, %c0_5] : memref<1x4x256xf32, #tpu.memory_space<vmem>>, vector<1x1x256xf32>
    %5 = vector.shape_cast %4 : vector<1x1x256xf32> to vector<1x256xf32>
    %c0_6 = arith.constant 0 : index
    %c3 = arith.constant 3 : index
    %c0_7 = arith.constant 0 : index
    %6 = vector.load %arg1[%c0_6, %c3, %c0_7] : memref<1x4x256xf32, #tpu.memory_space<vmem>>, vector<1x1x256xf32>
    %7 = vector.shape_cast %6 : vector<1x1x256xf32> to vector<1x256xf32>
    %c0_8 = arith.constant 0 : index
    %8 = memref.load %arg3[%c0_8] : memref<144xf32, #tpu.memory_space<smem>>
    %c1_9 = arith.constant 1 : index
    %9 = memref.load %arg3[%c1_9] : memref<144xf32, #tpu.memory_space<smem>>
    %c2_10 = arith.constant 2 : index
    %10 = memref.load %arg3[%c2_10] : memref<144xf32, #tpu.memory_space<smem>>
    %c3_11 = arith.constant 3 : index
    %11 = memref.load %arg3[%c3_11] : memref<144xf32, #tpu.memory_space<smem>>
    %c4 = arith.constant 4 : index
    %12 = memref.load %arg3[%c4] : memref<144xf32, #tpu.memory_space<smem>>
    %c5 = arith.constant 5 : index
    %13 = memref.load %arg3[%c5] : memref<144xf32, #tpu.memory_space<smem>>
    %c6 = arith.constant 6 : index
    %14 = memref.load %arg3[%c6] : memref<144xf32, #tpu.memory_space<smem>>
    %c7 = arith.constant 7 : index
    %15 = memref.load %arg3[%c7] : memref<144xf32, #tpu.memory_space<smem>>
    %c8 = arith.constant 8 : index
    %16 = memref.load %arg3[%c8] : memref<144xf32, #tpu.memory_space<smem>>
    %c9 = arith.constant 9 : index
    %17 = memref.load %arg3[%c9] : memref<144xf32, #tpu.memory_space<smem>>
    %c10 = arith.constant 10 : index
    %18 = memref.load %arg3[%c10] : memref<144xf32, #tpu.memory_space<smem>>
    %c11 = arith.constant 11 : index
    %19 = memref.load %arg3[%c11] : memref<144xf32, #tpu.memory_space<smem>>
    %c12 = arith.constant 12 : index
    %20 = memref.load %arg3[%c12] : memref<144xf32, #tpu.memory_space<smem>>
    %c13 = arith.constant 13 : index
    %21 = memref.load %arg3[%c13] : memref<144xf32, #tpu.memory_space<smem>>
    %c14 = arith.constant 14 : index
    %22 = memref.load %arg3[%c14] : memref<144xf32, #tpu.memory_space<smem>>
    %c15 = arith.constant 15 : index
    %23 = memref.load %arg3[%c15] : memref<144xf32, #tpu.memory_space<smem>>
    %c16 = arith.constant 16 : index
    %24 = memref.load %arg3[%c16] : memref<144xf32, #tpu.memory_space<smem>>
    %c17 = arith.constant 17 : index
    %25 = memref.load %arg3[%c17] : memref<144xf32, #tpu.memory_space<smem>>
    %c18 = arith.constant 18 : index
    %26 = memref.load %arg3[%c18] : memref<144xf32, #tpu.memory_space<smem>>
    %c19 = arith.constant 19 : index
    %27 = memref.load %arg3[%c19] : memref<144xf32, #tpu.memory_space<smem>>
    %c20 = arith.constant 20 : index
    %28 = memref.load %arg3[%c20] : memref<144xf32, #tpu.memory_space<smem>>
    %c21 = arith.constant 21 : index
    %29 = memref.load %arg3[%c21] : memref<144xf32, #tpu.memory_space<smem>>
    %c22 = arith.constant 22 : index
    %30 = memref.load %arg3[%c22] : memref<144xf32, #tpu.memory_space<smem>>
    %c23 = arith.constant 23 : index
    %31 = memref.load %arg3[%c23] : memref<144xf32, #tpu.memory_space<smem>>
    %c24 = arith.constant 24 : index
    %32 = memref.load %arg3[%c24] : memref<144xf32, #tpu.memory_space<smem>>
    %c25 = arith.constant 25 : index
    %33 = memref.load %arg3[%c25] : memref<144xf32, #tpu.memory_space<smem>>
    %c26 = arith.constant 26 : index
    %34 = memref.load %arg3[%c26] : memref<144xf32, #tpu.memory_space<smem>>
    %c27 = arith.constant 27 : index
    %35 = memref.load %arg3[%c27] : memref<144xf32, #tpu.memory_space<smem>>
    %c28 = arith.constant 28 : index
    %36 = memref.load %arg3[%c28] : memref<144xf32, #tpu.memory_space<smem>>
    %c29 = arith.constant 29 : index
    %37 = memref.load %arg3[%c29] : memref<144xf32, #tpu.memory_space<smem>>
    %c30 = arith.constant 30 : index
    %38 = memref.load %arg3[%c30] : memref<144xf32, #tpu.memory_space<smem>>
    %c31 = arith.constant 31 : index
    %39 = memref.load %arg3[%c31] : memref<144xf32, #tpu.memory_space<smem>>
    %c32 = arith.constant 32 : index
    %40 = memref.load %arg3[%c32] : memref<144xf32, #tpu.memory_space<smem>>
    %c33 = arith.constant 33 : index
    %41 = memref.load %arg3[%c33] : memref<144xf32, #tpu.memory_space<smem>>
    %c34 = arith.constant 34 : index
    %42 = memref.load %arg3[%c34] : memref<144xf32, #tpu.memory_space<smem>>
    %c35 = arith.constant 35 : index
    %43 = memref.load %arg3[%c35] : memref<144xf32, #tpu.memory_space<smem>>
    %c36 = arith.constant 36 : index
    %44 = memref.load %arg3[%c36] : memref<144xf32, #tpu.memory_space<smem>>
    %c37 = arith.constant 37 : index
    %45 = memref.load %arg3[%c37] : memref<144xf32, #tpu.memory_space<smem>>
    %c38 = arith.constant 38 : index
    %46 = memref.load %arg3[%c38] : memref<144xf32, #tpu.memory_space<smem>>
    %c39 = arith.constant 39 : index
    %47 = memref.load %arg3[%c39] : memref<144xf32, #tpu.memory_space<smem>>
    %c40 = arith.constant 40 : index
    %48 = memref.load %arg3[%c40] : memref<144xf32, #tpu.memory_space<smem>>
    %c41 = arith.constant 41 : index
    %49 = memref.load %arg3[%c41] : memref<144xf32, #tpu.memory_space<smem>>
    %c42 = arith.constant 42 : index
    %50 = memref.load %arg3[%c42] : memref<144xf32, #tpu.memory_space<smem>>
    %c43 = arith.constant 43 : index
    %51 = memref.load %arg3[%c43] : memref<144xf32, #tpu.memory_space<smem>>
    %c44 = arith.constant 44 : index
    %52 = memref.load %arg3[%c44] : memref<144xf32, #tpu.memory_space<smem>>
    %c45 = arith.constant 45 : index
    %53 = memref.load %arg3[%c45] : memref<144xf32, #tpu.memory_space<smem>>
    %c46 = arith.constant 46 : index
    %54 = memref.load %arg3[%c46] : memref<144xf32, #tpu.memory_space<smem>>
    %c47 = arith.constant 47 : index
    %55 = memref.load %arg3[%c47] : memref<144xf32, #tpu.memory_space<smem>>
    %c48 = arith.constant 48 : index
    %56 = memref.load %arg3[%c48] : memref<144xf32, #tpu.memory_space<smem>>
    %c49 = arith.constant 49 : index
    %57 = memref.load %arg3[%c49] : memref<144xf32, #tpu.memory_space<smem>>
    %c50 = arith.constant 50 : index
    %58 = memref.load %arg3[%c50] : memref<144xf32, #tpu.memory_space<smem>>
    %c51 = arith.constant 51 : index
    %59 = memref.load %arg3[%c51] : memref<144xf32, #tpu.memory_space<smem>>
    %c52 = arith.constant 52 : index
    %60 = memref.load %arg3[%c52] : memref<144xf32, #tpu.memory_space<smem>>
    %c53 = arith.constant 53 : index
    %61 = memref.load %arg3[%c53] : memref<144xf32, #tpu.memory_space<smem>>
    %c54 = arith.constant 54 : index
    %62 = memref.load %arg3[%c54] : memref<144xf32, #tpu.memory_space<smem>>
    %c55 = arith.constant 55 : index
    %63 = memref.load %arg3[%c55] : memref<144xf32, #tpu.memory_space<smem>>
    %c56 = arith.constant 56 : index
    %64 = memref.load %arg3[%c56] : memref<144xf32, #tpu.memory_space<smem>>
    %c57 = arith.constant 57 : index
    %65 = memref.load %arg3[%c57] : memref<144xf32, #tpu.memory_space<smem>>
    %c58 = arith.constant 58 : index
    %66 = memref.load %arg3[%c58] : memref<144xf32, #tpu.memory_space<smem>>
    %c59 = arith.constant 59 : index
    %67 = memref.load %arg3[%c59] : memref<144xf32, #tpu.memory_space<smem>>
    %c60 = arith.constant 60 : index
    %68 = memref.load %arg3[%c60] : memref<144xf32, #tpu.memory_space<smem>>
    %c61 = arith.constant 61 : index
    %69 = memref.load %arg3[%c61] : memref<144xf32, #tpu.memory_space<smem>>
    %c62 = arith.constant 62 : index
    %70 = memref.load %arg3[%c62] : memref<144xf32, #tpu.memory_space<smem>>
    %c63 = arith.constant 63 : index
    %71 = memref.load %arg3[%c63] : memref<144xf32, #tpu.memory_space<smem>>
    %c64 = arith.constant 64 : index
    %72 = memref.load %arg3[%c64] : memref<144xf32, #tpu.memory_space<smem>>
    %c65 = arith.constant 65 : index
    %73 = memref.load %arg3[%c65] : memref<144xf32, #tpu.memory_space<smem>>
    %c66 = arith.constant 66 : index
    %74 = memref.load %arg3[%c66] : memref<144xf32, #tpu.memory_space<smem>>
    %c67 = arith.constant 67 : index
    %75 = memref.load %arg3[%c67] : memref<144xf32, #tpu.memory_space<smem>>
    %c68 = arith.constant 68 : index
    %76 = memref.load %arg3[%c68] : memref<144xf32, #tpu.memory_space<smem>>
    %c69 = arith.constant 69 : index
    %77 = memref.load %arg3[%c69] : memref<144xf32, #tpu.memory_space<smem>>
    %c70 = arith.constant 70 : index
    %78 = memref.load %arg3[%c70] : memref<144xf32, #tpu.memory_space<smem>>
    %c71 = arith.constant 71 : index
    %79 = memref.load %arg3[%c71] : memref<144xf32, #tpu.memory_space<smem>>
    %c72 = arith.constant 72 : index
    %80 = memref.load %arg3[%c72] : memref<144xf32, #tpu.memory_space<smem>>
    %c73 = arith.constant 73 : index
    %81 = memref.load %arg3[%c73] : memref<144xf32, #tpu.memory_space<smem>>
    %c74 = arith.constant 74 : index
    %82 = memref.load %arg3[%c74] : memref<144xf32, #tpu.memory_space<smem>>
    %c75 = arith.constant 75 : index
    %83 = memref.load %arg3[%c75] : memref<144xf32, #tpu.memory_space<smem>>
    %c76 = arith.constant 76 : index
    %84 = memref.load %arg3[%c76] : memref<144xf32, #tpu.memory_space<smem>>
    %c77 = arith.constant 77 : index
    %85 = memref.load %arg3[%c77] : memref<144xf32, #tpu.memory_space<smem>>
    %c78 = arith.constant 78 : index
    %86 = memref.load %arg3[%c78] : memref<144xf32, #tpu.memory_space<smem>>
    %c79 = arith.constant 79 : index
    %87 = memref.load %arg3[%c79] : memref<144xf32, #tpu.memory_space<smem>>
    %c80 = arith.constant 80 : index
    %88 = memref.load %arg3[%c80] : memref<144xf32, #tpu.memory_space<smem>>
    %c81 = arith.constant 81 : index
    %89 = memref.load %arg3[%c81] : memref<144xf32, #tpu.memory_space<smem>>
    %c82 = arith.constant 82 : index
    %90 = memref.load %arg3[%c82] : memref<144xf32, #tpu.memory_space<smem>>
    %c83 = arith.constant 83 : index
    %91 = memref.load %arg3[%c83] : memref<144xf32, #tpu.memory_space<smem>>
    %c84 = arith.constant 84 : index
    %92 = memref.load %arg3[%c84] : memref<144xf32, #tpu.memory_space<smem>>
    %c85 = arith.constant 85 : index
    %93 = memref.load %arg3[%c85] : memref<144xf32, #tpu.memory_space<smem>>
    %c86 = arith.constant 86 : index
    %94 = memref.load %arg3[%c86] : memref<144xf32, #tpu.memory_space<smem>>
    %c87 = arith.constant 87 : index
    %95 = memref.load %arg3[%c87] : memref<144xf32, #tpu.memory_space<smem>>
    %c88 = arith.constant 88 : index
    %96 = memref.load %arg3[%c88] : memref<144xf32, #tpu.memory_space<smem>>
    %c89 = arith.constant 89 : index
    %97 = memref.load %arg3[%c89] : memref<144xf32, #tpu.memory_space<smem>>
    %c90 = arith.constant 90 : index
    %98 = memref.load %arg3[%c90] : memref<144xf32, #tpu.memory_space<smem>>
    %c91 = arith.constant 91 : index
    %99 = memref.load %arg3[%c91] : memref<144xf32, #tpu.memory_space<smem>>
    %c92 = arith.constant 92 : index
    %100 = memref.load %arg3[%c92] : memref<144xf32, #tpu.memory_space<smem>>
    %c93 = arith.constant 93 : index
    %101 = memref.load %arg3[%c93] : memref<144xf32, #tpu.memory_space<smem>>
    %c94 = arith.constant 94 : index
    %102 = memref.load %arg3[%c94] : memref<144xf32, #tpu.memory_space<smem>>
    %c95 = arith.constant 95 : index
    %103 = memref.load %arg3[%c95] : memref<144xf32, #tpu.memory_space<smem>>
    %c96 = arith.constant 96 : index
    %104 = memref.load %arg3[%c96] : memref<144xf32, #tpu.memory_space<smem>>
    %c97 = arith.constant 97 : index
    %105 = memref.load %arg3[%c97] : memref<144xf32, #tpu.memory_space<smem>>
    %c98 = arith.constant 98 : index
    %106 = memref.load %arg3[%c98] : memref<144xf32, #tpu.memory_space<smem>>
    %c99 = arith.constant 99 : index
    %107 = memref.load %arg3[%c99] : memref<144xf32, #tpu.memory_space<smem>>
    %c100 = arith.constant 100 : index
    %108 = memref.load %arg3[%c100] : memref<144xf32, #tpu.memory_space<smem>>
    %c101 = arith.constant 101 : index
    %109 = memref.load %arg3[%c101] : memref<144xf32, #tpu.memory_space<smem>>
    %c102 = arith.constant 102 : index
    %110 = memref.load %arg3[%c102] : memref<144xf32, #tpu.memory_space<smem>>
    %c103 = arith.constant 103 : index
    %111 = memref.load %arg3[%c103] : memref<144xf32, #tpu.memory_space<smem>>
    %c104 = arith.constant 104 : index
    %112 = memref.load %arg3[%c104] : memref<144xf32, #tpu.memory_space<smem>>
    %c105 = arith.constant 105 : index
    %113 = memref.load %arg3[%c105] : memref<144xf32, #tpu.memory_space<smem>>
    %c106 = arith.constant 106 : index
    %114 = memref.load %arg3[%c106] : memref<144xf32, #tpu.memory_space<smem>>
    %c107 = arith.constant 107 : index
    %115 = memref.load %arg3[%c107] : memref<144xf32, #tpu.memory_space<smem>>
    %c108 = arith.constant 108 : index
    %116 = memref.load %arg3[%c108] : memref<144xf32, #tpu.memory_space<smem>>
    %c109 = arith.constant 109 : index
    %117 = memref.load %arg3[%c109] : memref<144xf32, #tpu.memory_space<smem>>
    %c110 = arith.constant 110 : index
    %118 = memref.load %arg3[%c110] : memref<144xf32, #tpu.memory_space<smem>>
    %c111 = arith.constant 111 : index
    %119 = memref.load %arg3[%c111] : memref<144xf32, #tpu.memory_space<smem>>
    %c112 = arith.constant 112 : index
    %120 = memref.load %arg3[%c112] : memref<144xf32, #tpu.memory_space<smem>>
    %c113 = arith.constant 113 : index
    %121 = memref.load %arg3[%c113] : memref<144xf32, #tpu.memory_space<smem>>
    %c114 = arith.constant 114 : index
    %122 = memref.load %arg3[%c114] : memref<144xf32, #tpu.memory_space<smem>>
    %c115 = arith.constant 115 : index
    %123 = memref.load %arg3[%c115] : memref<144xf32, #tpu.memory_space<smem>>
    %c116 = arith.constant 116 : index
    %124 = memref.load %arg3[%c116] : memref<144xf32, #tpu.memory_space<smem>>
    %c117 = arith.constant 117 : index
    %125 = memref.load %arg3[%c117] : memref<144xf32, #tpu.memory_space<smem>>
    %c118 = arith.constant 118 : index
    %126 = memref.load %arg3[%c118] : memref<144xf32, #tpu.memory_space<smem>>
    %c119 = arith.constant 119 : index
    %127 = memref.load %arg3[%c119] : memref<144xf32, #tpu.memory_space<smem>>
    %c120 = arith.constant 120 : index
    %128 = memref.load %arg3[%c120] : memref<144xf32, #tpu.memory_space<smem>>
    %c121 = arith.constant 121 : index
    %129 = memref.load %arg3[%c121] : memref<144xf32, #tpu.memory_space<smem>>
    %c122 = arith.constant 122 : index
    %130 = memref.load %arg3[%c122] : memref<144xf32, #tpu.memory_space<smem>>
    %c123 = arith.constant 123 : index
    %131 = memref.load %arg3[%c123] : memref<144xf32, #tpu.memory_space<smem>>
    %c124 = arith.constant 124 : index
    %132 = memref.load %arg3[%c124] : memref<144xf32, #tpu.memory_space<smem>>
    %c125 = arith.constant 125 : index
    %133 = memref.load %arg3[%c125] : memref<144xf32, #tpu.memory_space<smem>>
    %c126 = arith.constant 126 : index
    %134 = memref.load %arg3[%c126] : memref<144xf32, #tpu.memory_space<smem>>
    %c127 = arith.constant 127 : index
    %135 = memref.load %arg3[%c127] : memref<144xf32, #tpu.memory_space<smem>>
    %c128 = arith.constant 128 : index
    %136 = memref.load %arg3[%c128] : memref<144xf32, #tpu.memory_space<smem>>
    %c129 = arith.constant 129 : index
    %137 = memref.load %arg3[%c129] : memref<144xf32, #tpu.memory_space<smem>>
    %c130 = arith.constant 130 : index
    %138 = memref.load %arg3[%c130] : memref<144xf32, #tpu.memory_space<smem>>
    %c131 = arith.constant 131 : index
    %139 = memref.load %arg3[%c131] : memref<144xf32, #tpu.memory_space<smem>>
    %c132 = arith.constant 132 : index
    %140 = memref.load %arg3[%c132] : memref<144xf32, #tpu.memory_space<smem>>
    %c133 = arith.constant 133 : index
    %141 = memref.load %arg3[%c133] : memref<144xf32, #tpu.memory_space<smem>>
    %c134 = arith.constant 134 : index
    %142 = memref.load %arg3[%c134] : memref<144xf32, #tpu.memory_space<smem>>
    %c135 = arith.constant 135 : index
    %143 = memref.load %arg3[%c135] : memref<144xf32, #tpu.memory_space<smem>>
    %c136 = arith.constant 136 : index
    %144 = memref.load %arg3[%c136] : memref<144xf32, #tpu.memory_space<smem>>
    %c137 = arith.constant 137 : index
    %145 = memref.load %arg3[%c137] : memref<144xf32, #tpu.memory_space<smem>>
    %c138 = arith.constant 138 : index
    %146 = memref.load %arg3[%c138] : memref<144xf32, #tpu.memory_space<smem>>
    %c139 = arith.constant 139 : index
    %147 = memref.load %arg3[%c139] : memref<144xf32, #tpu.memory_space<smem>>
    %c140 = arith.constant 140 : index
    %148 = memref.load %arg3[%c140] : memref<144xf32, #tpu.memory_space<smem>>
    %c141 = arith.constant 141 : index
    %149 = memref.load %arg3[%c141] : memref<144xf32, #tpu.memory_space<smem>>
    %c142 = arith.constant 142 : index
    %150 = memref.load %arg3[%c142] : memref<144xf32, #tpu.memory_space<smem>>
    %c143 = arith.constant 143 : index
    %151 = memref.load %arg3[%c143] : memref<144xf32, #tpu.memory_space<smem>>
    %c0_12 = arith.constant 0 : index
    %152 = memref.load %arg4[%c0_12] : memref<4xf32, #tpu.memory_space<smem>>
    %c1_13 = arith.constant 1 : index
    %153 = memref.load %arg4[%c1_13] : memref<4xf32, #tpu.memory_space<smem>>
    %c2_14 = arith.constant 2 : index
    %154 = memref.load %arg4[%c2_14] : memref<4xf32, #tpu.memory_space<smem>>
    %c3_15 = arith.constant 3 : index
    %155 = memref.load %arg4[%c3_15] : memref<4xf32, #tpu.memory_space<smem>>
    %c0_16 = arith.constant 0 : index
    %c0_17 = arith.constant 0 : index
    %156 = vector.load %arg2[%c0_16, %c0_17] : memref<9x256xf32, #tpu.memory_space<vmem>>, vector<1x256xf32>
    %c17_i32 = arith.constant 17 : i32
    %157 = tpu.dynamic_rotate %1 by %c17_i32 dim 1 : vector<1x256xf32>, i32 -> vector<1x256xf32>
    %158 = arith.mulf %157, %156 : vector<1x256xf32>
    %159 = vector.broadcast %8 : f32 to vector<1x256xf32>
    %160 = arith.mulf %159, %158 : vector<1x256xf32>
    %161 = vector.broadcast %152 : f32 to vector<1x256xf32>
    %162 = arith.addf %160, %161 : vector<1x256xf32>
    %163 = vector.broadcast %9 : f32 to vector<1x256xf32>
    %164 = arith.mulf %163, %158 : vector<1x256xf32>
    %165 = vector.broadcast %153 : f32 to vector<1x256xf32>
    %166 = arith.addf %164, %165 : vector<1x256xf32>
    %167 = vector.broadcast %10 : f32 to vector<1x256xf32>
    %168 = arith.mulf %167, %158 : vector<1x256xf32>
    %169 = vector.broadcast %154 : f32 to vector<1x256xf32>
    %170 = arith.addf %168, %169 : vector<1x256xf32>
    %171 = vector.broadcast %11 : f32 to vector<1x256xf32>
    %172 = arith.mulf %171, %158 : vector<1x256xf32>
    %173 = vector.broadcast %155 : f32 to vector<1x256xf32>
    %174 = arith.addf %172, %173 : vector<1x256xf32>
    %c17_i32_18 = arith.constant 17 : i32
    %175 = tpu.dynamic_rotate %3 by %c17_i32_18 dim 1 : vector<1x256xf32>, i32 -> vector<1x256xf32>
    %176 = arith.mulf %175, %156 : vector<1x256xf32>
    %177 = vector.broadcast %12 : f32 to vector<1x256xf32>
    %178 = arith.mulf %177, %176 : vector<1x256xf32>
    %179 = arith.addf %162, %178 : vector<1x256xf32>
    %180 = vector.broadcast %13 : f32 to vector<1x256xf32>
    %181 = arith.mulf %180, %176 : vector<1x256xf32>
    %182 = arith.addf %166, %181 : vector<1x256xf32>
    %183 = vector.broadcast %14 : f32 to vector<1x256xf32>
    %184 = arith.mulf %183, %176 : vector<1x256xf32>
    %185 = arith.addf %170, %184 : vector<1x256xf32>
    %186 = vector.broadcast %15 : f32 to vector<1x256xf32>
    %187 = arith.mulf %186, %176 : vector<1x256xf32>
    %188 = arith.addf %174, %187 : vector<1x256xf32>
    %c17_i32_19 = arith.constant 17 : i32
    %189 = tpu.dynamic_rotate %5 by %c17_i32_19 dim 1 : vector<1x256xf32>, i32 -> vector<1x256xf32>
    %190 = arith.mulf %189, %156 : vector<1x256xf32>
    %191 = vector.broadcast %16 : f32 to vector<1x256xf32>
    %192 = arith.mulf %191, %190 : vector<1x256xf32>
    %193 = arith.addf %179, %192 : vector<1x256xf32>
    %194 = vector.broadcast %17 : f32 to vector<1x256xf32>
    %195 = arith.mulf %194, %190 : vector<1x256xf32>
    %196 = arith.addf %182, %195 : vector<1x256xf32>
    %197 = vector.broadcast %18 : f32 to vector<1x256xf32>
    %198 = arith.mulf %197, %190 : vector<1x256xf32>
    %199 = arith.addf %185, %198 : vector<1x256xf32>
    %200 = vector.broadcast %19 : f32 to vector<1x256xf32>
    %201 = arith.mulf %200, %190 : vector<1x256xf32>
    %202 = arith.addf %188, %201 : vector<1x256xf32>
    %c17_i32_20 = arith.constant 17 : i32
    %203 = tpu.dynamic_rotate %7 by %c17_i32_20 dim 1 : vector<1x256xf32>, i32 -> vector<1x256xf32>
    %204 = arith.mulf %203, %156 : vector<1x256xf32>
    %205 = vector.broadcast %20 : f32 to vector<1x256xf32>
    %206 = arith.mulf %205, %204 : vector<1x256xf32>
    %207 = arith.addf %193, %206 : vector<1x256xf32>
    %208 = vector.broadcast %21 : f32 to vector<1x256xf32>
    %209 = arith.mulf %208, %204 : vector<1x256xf32>
    %210 = arith.addf %196, %209 : vector<1x256xf32>
    %211 = vector.broadcast %22 : f32 to vector<1x256xf32>
    %212 = arith.mulf %211, %204 : vector<1x256xf32>
    %213 = arith.addf %199, %212 : vector<1x256xf32>
    %214 = vector.broadcast %23 : f32 to vector<1x256xf32>
    %215 = arith.mulf %214, %204 : vector<1x256xf32>
    %216 = arith.addf %202, %215 : vector<1x256xf32>
    %c1_21 = arith.constant 1 : index
    %c0_22 = arith.constant 0 : index
    %217 = vector.load %arg2[%c1_21, %c0_22] : memref<9x256xf32, #tpu.memory_space<vmem>>, vector<1x256xf32>
    %c16_i32 = arith.constant 16 : i32
    %218 = tpu.dynamic_rotate %1 by %c16_i32 dim 1 : vector<1x256xf32>, i32 -> vector<1x256xf32>
    %219 = arith.mulf %218, %217 : vector<1x256xf32>
    %220 = vector.broadcast %24 : f32 to vector<1x256xf32>
    %221 = arith.mulf %220, %219 : vector<1x256xf32>
    %222 = arith.addf %207, %221 : vector<1x256xf32>
    %223 = vector.broadcast %25 : f32 to vector<1x256xf32>
    %224 = arith.mulf %223, %219 : vector<1x256xf32>
    %225 = arith.addf %210, %224 : vector<1x256xf32>
    %226 = vector.broadcast %26 : f32 to vector<1x256xf32>
    %227 = arith.mulf %226, %219 : vector<1x256xf32>
    %228 = arith.addf %213, %227 : vector<1x256xf32>
    %229 = vector.broadcast %27 : f32 to vector<1x256xf32>
    %230 = arith.mulf %229, %219 : vector<1x256xf32>
    %231 = arith.addf %216, %230 : vector<1x256xf32>
    %c16_i32_23 = arith.constant 16 : i32
    %232 = tpu.dynamic_rotate %3 by %c16_i32_23 dim 1 : vector<1x256xf32>, i32 -> vector<1x256xf32>
    %233 = arith.mulf %232, %217 : vector<1x256xf32>
    %234 = vector.broadcast %28 : f32 to vector<1x256xf32>
    %235 = arith.mulf %234, %233 : vector<1x256xf32>
    %236 = arith.addf %222, %235 : vector<1x256xf32>
    %237 = vector.broadcast %29 : f32 to vector<1x256xf32>
    %238 = arith.mulf %237, %233 : vector<1x256xf32>
    %239 = arith.addf %225, %238 : vector<1x256xf32>
    %240 = vector.broadcast %30 : f32 to vector<1x256xf32>
    %241 = arith.mulf %240, %233 : vector<1x256xf32>
    %242 = arith.addf %228, %241 : vector<1x256xf32>
    %243 = vector.broadcast %31 : f32 to vector<1x256xf32>
    %244 = arith.mulf %243, %233 : vector<1x256xf32>
    %245 = arith.addf %231, %244 : vector<1x256xf32>
    %c16_i32_24 = arith.constant 16 : i32
    %246 = tpu.dynamic_rotate %5 by %c16_i32_24 dim 1 : vector<1x256xf32>, i32 -> vector<1x256xf32>
    %247 = arith.mulf %246, %217 : vector<1x256xf32>
    %248 = vector.broadcast %32 : f32 to vector<1x256xf32>
    %249 = arith.mulf %248, %247 : vector<1x256xf32>
    %250 = arith.addf %236, %249 : vector<1x256xf32>
    %251 = vector.broadcast %33 : f32 to vector<1x256xf32>
    %252 = arith.mulf %251, %247 : vector<1x256xf32>
    %253 = arith.addf %239, %252 : vector<1x256xf32>
    %254 = vector.broadcast %34 : f32 to vector<1x256xf32>
    %255 = arith.mulf %254, %247 : vector<1x256xf32>
    %256 = arith.addf %242, %255 : vector<1x256xf32>
    %257 = vector.broadcast %35 : f32 to vector<1x256xf32>
    %258 = arith.mulf %257, %247 : vector<1x256xf32>
    %259 = arith.addf %245, %258 : vector<1x256xf32>
    %c16_i32_25 = arith.constant 16 : i32
    %260 = tpu.dynamic_rotate %7 by %c16_i32_25 dim 1 : vector<1x256xf32>, i32 -> vector<1x256xf32>
    %261 = arith.mulf %260, %217 : vector<1x256xf32>
    %262 = vector.broadcast %36 : f32 to vector<1x256xf32>
    %263 = arith.mulf %262, %261 : vector<1x256xf32>
    %264 = arith.addf %250, %263 : vector<1x256xf32>
    %265 = vector.broadcast %37 : f32 to vector<1x256xf32>
    %266 = arith.mulf %265, %261 : vector<1x256xf32>
    %267 = arith.addf %253, %266 : vector<1x256xf32>
    %268 = vector.broadcast %38 : f32 to vector<1x256xf32>
    %269 = arith.mulf %268, %261 : vector<1x256xf32>
    %270 = arith.addf %256, %269 : vector<1x256xf32>
    %271 = vector.broadcast %39 : f32 to vector<1x256xf32>
    %272 = arith.mulf %271, %261 : vector<1x256xf32>
    %273 = arith.addf %259, %272 : vector<1x256xf32>
    %c2_26 = arith.constant 2 : index
    %c0_27 = arith.constant 0 : index
    %274 = vector.load %arg2[%c2_26, %c0_27] : memref<9x256xf32, #tpu.memory_space<vmem>>, vector<1x256xf32>
    %c15_i32 = arith.constant 15 : i32
    %275 = tpu.dynamic_rotate %1 by %c15_i32 dim 1 : vector<1x256xf32>, i32 -> vector<1x256xf32>
    %276 = arith.mulf %275, %274 : vector<1x256xf32>
    %277 = vector.broadcast %40 : f32 to vector<1x256xf32>
    %278 = arith.mulf %277, %276 : vector<1x256xf32>
    %279 = arith.addf %264, %278 : vector<1x256xf32>
    %280 = vector.broadcast %41 : f32 to vector<1x256xf32>
    %281 = arith.mulf %280, %276 : vector<1x256xf32>
    %282 = arith.addf %267, %281 : vector<1x256xf32>
    %283 = vector.broadcast %42 : f32 to vector<1x256xf32>
    %284 = arith.mulf %283, %276 : vector<1x256xf32>
    %285 = arith.addf %270, %284 : vector<1x256xf32>
    %286 = vector.broadcast %43 : f32 to vector<1x256xf32>
    %287 = arith.mulf %286, %276 : vector<1x256xf32>
    %288 = arith.addf %273, %287 : vector<1x256xf32>
    %c15_i32_28 = arith.constant 15 : i32
    %289 = tpu.dynamic_rotate %3 by %c15_i32_28 dim 1 : vector<1x256xf32>, i32 -> vector<1x256xf32>
    %290 = arith.mulf %289, %274 : vector<1x256xf32>
    %291 = vector.broadcast %44 : f32 to vector<1x256xf32>
    %292 = arith.mulf %291, %290 : vector<1x256xf32>
    %293 = arith.addf %279, %292 : vector<1x256xf32>
    %294 = vector.broadcast %45 : f32 to vector<1x256xf32>
    %295 = arith.mulf %294, %290 : vector<1x256xf32>
    %296 = arith.addf %282, %295 : vector<1x256xf32>
    %297 = vector.broadcast %46 : f32 to vector<1x256xf32>
    %298 = arith.mulf %297, %290 : vector<1x256xf32>
    %299 = arith.addf %285, %298 : vector<1x256xf32>
    %300 = vector.broadcast %47 : f32 to vector<1x256xf32>
    %301 = arith.mulf %300, %290 : vector<1x256xf32>
    %302 = arith.addf %288, %301 : vector<1x256xf32>
    %c15_i32_29 = arith.constant 15 : i32
    %303 = tpu.dynamic_rotate %5 by %c15_i32_29 dim 1 : vector<1x256xf32>, i32 -> vector<1x256xf32>
    %304 = arith.mulf %303, %274 : vector<1x256xf32>
    %305 = vector.broadcast %48 : f32 to vector<1x256xf32>
    %306 = arith.mulf %305, %304 : vector<1x256xf32>
    %307 = arith.addf %293, %306 : vector<1x256xf32>
    %308 = vector.broadcast %49 : f32 to vector<1x256xf32>
    %309 = arith.mulf %308, %304 : vector<1x256xf32>
    %310 = arith.addf %296, %309 : vector<1x256xf32>
    %311 = vector.broadcast %50 : f32 to vector<1x256xf32>
    %312 = arith.mulf %311, %304 : vector<1x256xf32>
    %313 = arith.addf %299, %312 : vector<1x256xf32>
    %314 = vector.broadcast %51 : f32 to vector<1x256xf32>
    %315 = arith.mulf %314, %304 : vector<1x256xf32>
    %316 = arith.addf %302, %315 : vector<1x256xf32>
    %c15_i32_30 = arith.constant 15 : i32
    %317 = tpu.dynamic_rotate %7 by %c15_i32_30 dim 1 : vector<1x256xf32>, i32 -> vector<1x256xf32>
    %318 = arith.mulf %317, %274 : vector<1x256xf32>
    %319 = vector.broadcast %52 : f32 to vector<1x256xf32>
    %320 = arith.mulf %319, %318 : vector<1x256xf32>
    %321 = arith.addf %307, %320 : vector<1x256xf32>
    %322 = vector.broadcast %53 : f32 to vector<1x256xf32>
    %323 = arith.mulf %322, %318 : vector<1x256xf32>
    %324 = arith.addf %310, %323 : vector<1x256xf32>
    %325 = vector.broadcast %54 : f32 to vector<1x256xf32>
    %326 = arith.mulf %325, %318 : vector<1x256xf32>
    %327 = arith.addf %313, %326 : vector<1x256xf32>
    %328 = vector.broadcast %55 : f32 to vector<1x256xf32>
    %329 = arith.mulf %328, %318 : vector<1x256xf32>
    %330 = arith.addf %316, %329 : vector<1x256xf32>
    %c3_31 = arith.constant 3 : index
    %c0_32 = arith.constant 0 : index
    %331 = vector.load %arg2[%c3_31, %c0_32] : memref<9x256xf32, #tpu.memory_space<vmem>>, vector<1x256xf32>
    %c1_i32 = arith.constant 1 : i32
    %332 = tpu.dynamic_rotate %1 by %c1_i32 dim 1 : vector<1x256xf32>, i32 -> vector<1x256xf32>
    %333 = arith.mulf %332, %331 : vector<1x256xf32>
    %334 = vector.broadcast %56 : f32 to vector<1x256xf32>
    %335 = arith.mulf %334, %333 : vector<1x256xf32>
    %336 = arith.addf %321, %335 : vector<1x256xf32>
    %337 = vector.broadcast %57 : f32 to vector<1x256xf32>
    %338 = arith.mulf %337, %333 : vector<1x256xf32>
    %339 = arith.addf %324, %338 : vector<1x256xf32>
    %340 = vector.broadcast %58 : f32 to vector<1x256xf32>
    %341 = arith.mulf %340, %333 : vector<1x256xf32>
    %342 = arith.addf %327, %341 : vector<1x256xf32>
    %343 = vector.broadcast %59 : f32 to vector<1x256xf32>
    %344 = arith.mulf %343, %333 : vector<1x256xf32>
    %345 = arith.addf %330, %344 : vector<1x256xf32>
    %c1_i32_33 = arith.constant 1 : i32
    %346 = tpu.dynamic_rotate %3 by %c1_i32_33 dim 1 : vector<1x256xf32>, i32 -> vector<1x256xf32>
    %347 = arith.mulf %346, %331 : vector<1x256xf32>
    %348 = vector.broadcast %60 : f32 to vector<1x256xf32>
    %349 = arith.mulf %348, %347 : vector<1x256xf32>
    %350 = arith.addf %336, %349 : vector<1x256xf32>
    %351 = vector.broadcast %61 : f32 to vector<1x256xf32>
    %352 = arith.mulf %351, %347 : vector<1x256xf32>
    %353 = arith.addf %339, %352 : vector<1x256xf32>
    %354 = vector.broadcast %62 : f32 to vector<1x256xf32>
    %355 = arith.mulf %354, %347 : vector<1x256xf32>
    %356 = arith.addf %342, %355 : vector<1x256xf32>
    %357 = vector.broadcast %63 : f32 to vector<1x256xf32>
    %358 = arith.mulf %357, %347 : vector<1x256xf32>
    %359 = arith.addf %345, %358 : vector<1x256xf32>
    %c1_i32_34 = arith.constant 1 : i32
    %360 = tpu.dynamic_rotate %5 by %c1_i32_34 dim 1 : vector<1x256xf32>, i32 -> vector<1x256xf32>
    %361 = arith.mulf %360, %331 : vector<1x256xf32>
    %362 = vector.broadcast %64 : f32 to vector<1x256xf32>
    %363 = arith.mulf %362, %361 : vector<1x256xf32>
    %364 = arith.addf %350, %363 : vector<1x256xf32>
    %365 = vector.broadcast %65 : f32 to vector<1x256xf32>
    %366 = arith.mulf %365, %361 : vector<1x256xf32>
    %367 = arith.addf %353, %366 : vector<1x256xf32>
    %368 = vector.broadcast %66 : f32 to vector<1x256xf32>
    %369 = arith.mulf %368, %361 : vector<1x256xf32>
    %370 = arith.addf %356, %369 : vector<1x256xf32>
    %371 = vector.broadcast %67 : f32 to vector<1x256xf32>
    %372 = arith.mulf %371, %361 : vector<1x256xf32>
    %373 = arith.addf %359, %372 : vector<1x256xf32>
    %c1_i32_35 = arith.constant 1 : i32
    %374 = tpu.dynamic_rotate %7 by %c1_i32_35 dim 1 : vector<1x256xf32>, i32 -> vector<1x256xf32>
    %375 = arith.mulf %374, %331 : vector<1x256xf32>
    %376 = vector.broadcast %68 : f32 to vector<1x256xf32>
    %377 = arith.mulf %376, %375 : vector<1x256xf32>
    %378 = arith.addf %364, %377 : vector<1x256xf32>
    %379 = vector.broadcast %69 : f32 to vector<1x256xf32>
    %380 = arith.mulf %379, %375 : vector<1x256xf32>
    %381 = arith.addf %367, %380 : vector<1x256xf32>
    %382 = vector.broadcast %70 : f32 to vector<1x256xf32>
    %383 = arith.mulf %382, %375 : vector<1x256xf32>
    %384 = arith.addf %370, %383 : vector<1x256xf32>
    %385 = vector.broadcast %71 : f32 to vector<1x256xf32>
    %386 = arith.mulf %385, %375 : vector<1x256xf32>
    %387 = arith.addf %373, %386 : vector<1x256xf32>
    %388 = vector.broadcast %72 : f32 to vector<1x256xf32>
    %389 = arith.mulf %388, %1 : vector<1x256xf32>
    %390 = arith.addf %378, %389 : vector<1x256xf32>
    %391 = vector.broadcast %73 : f32 to vector<1x256xf32>
    %392 = arith.mulf %391, %1 : vector<1x256xf32>
    %393 = arith.addf %381, %392 : vector<1x256xf32>
    %394 = vector.broadcast %74 : f32 to vector<1x256xf32>
    %395 = arith.mulf %394, %1 : vector<1x256xf32>
    %396 = arith.addf %384, %395 : vector<1x256xf32>
    %397 = vector.broadcast %75 : f32 to vector<1x256xf32>
    %398 = arith.mulf %397, %1 : vector<1x256xf32>
    %399 = arith.addf %387, %398 : vector<1x256xf32>
    %400 = vector.broadcast %76 : f32 to vector<1x256xf32>
    %401 = arith.mulf %400, %3 : vector<1x256xf32>
    %402 = arith.addf %390, %401 : vector<1x256xf32>
    %403 = vector.broadcast %77 : f32 to vector<1x256xf32>
    %404 = arith.mulf %403, %3 : vector<1x256xf32>
    %405 = arith.addf %393, %404 : vector<1x256xf32>
    %406 = vector.broadcast %78 : f32 to vector<1x256xf32>
    %407 = arith.mulf %406, %3 : vector<1x256xf32>
    %408 = arith.addf %396, %407 : vector<1x256xf32>
    %409 = vector.broadcast %79 : f32 to vector<1x256xf32>
    %410 = arith.mulf %409, %3 : vector<1x256xf32>
    %411 = arith.addf %399, %410 : vector<1x256xf32>
    %412 = vector.broadcast %80 : f32 to vector<1x256xf32>
    %413 = arith.mulf %412, %5 : vector<1x256xf32>
    %414 = arith.addf %402, %413 : vector<1x256xf32>
    %415 = vector.broadcast %81 : f32 to vector<1x256xf32>
    %416 = arith.mulf %415, %5 : vector<1x256xf32>
    %417 = arith.addf %405, %416 : vector<1x256xf32>
    %418 = vector.broadcast %82 : f32 to vector<1x256xf32>
    %419 = arith.mulf %418, %5 : vector<1x256xf32>
    %420 = arith.addf %408, %419 : vector<1x256xf32>
    %421 = vector.broadcast %83 : f32 to vector<1x256xf32>
    %422 = arith.mulf %421, %5 : vector<1x256xf32>
    %423 = arith.addf %411, %422 : vector<1x256xf32>
    %424 = vector.broadcast %84 : f32 to vector<1x256xf32>
    %425 = arith.mulf %424, %7 : vector<1x256xf32>
    %426 = arith.addf %414, %425 : vector<1x256xf32>
    %427 = vector.broadcast %85 : f32 to vector<1x256xf32>
    %428 = arith.mulf %427, %7 : vector<1x256xf32>
    %429 = arith.addf %417, %428 : vector<1x256xf32>
    %430 = vector.broadcast %86 : f32 to vector<1x256xf32>
    %431 = arith.mulf %430, %7 : vector<1x256xf32>
    %432 = arith.addf %420, %431 : vector<1x256xf32>
    %433 = vector.broadcast %87 : f32 to vector<1x256xf32>
    %434 = arith.mulf %433, %7 : vector<1x256xf32>
    %435 = arith.addf %423, %434 : vector<1x256xf32>
    %c5_36 = arith.constant 5 : index
    %c0_37 = arith.constant 0 : index
    %436 = vector.load %arg2[%c5_36, %c0_37] : memref<9x256xf32, #tpu.memory_space<vmem>>, vector<1x256xf32>
    %c255_i32 = arith.constant 255 : i32
    %437 = tpu.dynamic_rotate %1 by %c255_i32 dim 1 : vector<1x256xf32>, i32 -> vector<1x256xf32>
    %438 = arith.mulf %437, %436 : vector<1x256xf32>
    %439 = vector.broadcast %88 : f32 to vector<1x256xf32>
    %440 = arith.mulf %439, %438 : vector<1x256xf32>
    %441 = arith.addf %426, %440 : vector<1x256xf32>
    %442 = vector.broadcast %89 : f32 to vector<1x256xf32>
    %443 = arith.mulf %442, %438 : vector<1x256xf32>
    %444 = arith.addf %429, %443 : vector<1x256xf32>
    %445 = vector.broadcast %90 : f32 to vector<1x256xf32>
    %446 = arith.mulf %445, %438 : vector<1x256xf32>
    %447 = arith.addf %432, %446 : vector<1x256xf32>
    %448 = vector.broadcast %91 : f32 to vector<1x256xf32>
    %449 = arith.mulf %448, %438 : vector<1x256xf32>
    %450 = arith.addf %435, %449 : vector<1x256xf32>
    %c255_i32_38 = arith.constant 255 : i32
    %451 = tpu.dynamic_rotate %3 by %c255_i32_38 dim 1 : vector<1x256xf32>, i32 -> vector<1x256xf32>
    %452 = arith.mulf %451, %436 : vector<1x256xf32>
    %453 = vector.broadcast %92 : f32 to vector<1x256xf32>
    %454 = arith.mulf %453, %452 : vector<1x256xf32>
    %455 = arith.addf %441, %454 : vector<1x256xf32>
    %456 = vector.broadcast %93 : f32 to vector<1x256xf32>
    %457 = arith.mulf %456, %452 : vector<1x256xf32>
    %458 = arith.addf %444, %457 : vector<1x256xf32>
    %459 = vector.broadcast %94 : f32 to vector<1x256xf32>
    %460 = arith.mulf %459, %452 : vector<1x256xf32>
    %461 = arith.addf %447, %460 : vector<1x256xf32>
    %462 = vector.broadcast %95 : f32 to vector<1x256xf32>
    %463 = arith.mulf %462, %452 : vector<1x256xf32>
    %464 = arith.addf %450, %463 : vector<1x256xf32>
    %c255_i32_39 = arith.constant 255 : i32
    %465 = tpu.dynamic_rotate %5 by %c255_i32_39 dim 1 : vector<1x256xf32>, i32 -> vector<1x256xf32>
    %466 = arith.mulf %465, %436 : vector<1x256xf32>
    %467 = vector.broadcast %96 : f32 to vector<1x256xf32>
    %468 = arith.mulf %467, %466 : vector<1x256xf32>
    %469 = arith.addf %455, %468 : vector<1x256xf32>
    %470 = vector.broadcast %97 : f32 to vector<1x256xf32>
    %471 = arith.mulf %470, %466 : vector<1x256xf32>
    %472 = arith.addf %458, %471 : vector<1x256xf32>
    %473 = vector.broadcast %98 : f32 to vector<1x256xf32>
    %474 = arith.mulf %473, %466 : vector<1x256xf32>
    %475 = arith.addf %461, %474 : vector<1x256xf32>
    %476 = vector.broadcast %99 : f32 to vector<1x256xf32>
    %477 = arith.mulf %476, %466 : vector<1x256xf32>
    %478 = arith.addf %464, %477 : vector<1x256xf32>
    %c255_i32_40 = arith.constant 255 : i32
    %479 = tpu.dynamic_rotate %7 by %c255_i32_40 dim 1 : vector<1x256xf32>, i32 -> vector<1x256xf32>
    %480 = arith.mulf %479, %436 : vector<1x256xf32>
    %481 = vector.broadcast %100 : f32 to vector<1x256xf32>
    %482 = arith.mulf %481, %480 : vector<1x256xf32>
    %483 = arith.addf %469, %482 : vector<1x256xf32>
    %484 = vector.broadcast %101 : f32 to vector<1x256xf32>
    %485 = arith.mulf %484, %480 : vector<1x256xf32>
    %486 = arith.addf %472, %485 : vector<1x256xf32>
    %487 = vector.broadcast %102 : f32 to vector<1x256xf32>
    %488 = arith.mulf %487, %480 : vector<1x256xf32>
    %489 = arith.addf %475, %488 : vector<1x256xf32>
    %490 = vector.broadcast %103 : f32 to vector<1x256xf32>
    %491 = arith.mulf %490, %480 : vector<1x256xf32>
    %492 = arith.addf %478, %491 : vector<1x256xf32>
    %c6_41 = arith.constant 6 : index
    %c0_42 = arith.constant 0 : index
    %493 = vector.load %arg2[%c6_41, %c0_42] : memref<9x256xf32, #tpu.memory_space<vmem>>, vector<1x256xf32>
    %c241_i32 = arith.constant 241 : i32
    %494 = tpu.dynamic_rotate %1 by %c241_i32 dim 1 : vector<1x256xf32>, i32 -> vector<1x256xf32>
    %495 = arith.mulf %494, %493 : vector<1x256xf32>
    %496 = vector.broadcast %104 : f32 to vector<1x256xf32>
    %497 = arith.mulf %496, %495 : vector<1x256xf32>
    %498 = arith.addf %483, %497 : vector<1x256xf32>
    %499 = vector.broadcast %105 : f32 to vector<1x256xf32>
    %500 = arith.mulf %499, %495 : vector<1x256xf32>
    %501 = arith.addf %486, %500 : vector<1x256xf32>
    %502 = vector.broadcast %106 : f32 to vector<1x256xf32>
    %503 = arith.mulf %502, %495 : vector<1x256xf32>
    %504 = arith.addf %489, %503 : vector<1x256xf32>
    %505 = vector.broadcast %107 : f32 to vector<1x256xf32>
    %506 = arith.mulf %505, %495 : vector<1x256xf32>
    %507 = arith.addf %492, %506 : vector<1x256xf32>
    %c241_i32_43 = arith.constant 241 : i32
    %508 = tpu.dynamic_rotate %3 by %c241_i32_43 dim 1 : vector<1x256xf32>, i32 -> vector<1x256xf32>
    %509 = arith.mulf %508, %493 : vector<1x256xf32>
    %510 = vector.broadcast %108 : f32 to vector<1x256xf32>
    %511 = arith.mulf %510, %509 : vector<1x256xf32>
    %512 = arith.addf %498, %511 : vector<1x256xf32>
    %513 = vector.broadcast %109 : f32 to vector<1x256xf32>
    %514 = arith.mulf %513, %509 : vector<1x256xf32>
    %515 = arith.addf %501, %514 : vector<1x256xf32>
    %516 = vector.broadcast %110 : f32 to vector<1x256xf32>
    %517 = arith.mulf %516, %509 : vector<1x256xf32>
    %518 = arith.addf %504, %517 : vector<1x256xf32>
    %519 = vector.broadcast %111 : f32 to vector<1x256xf32>
    %520 = arith.mulf %519, %509 : vector<1x256xf32>
    %521 = arith.addf %507, %520 : vector<1x256xf32>
    %c241_i32_44 = arith.constant 241 : i32
    %522 = tpu.dynamic_rotate %5 by %c241_i32_44 dim 1 : vector<1x256xf32>, i32 -> vector<1x256xf32>
    %523 = arith.mulf %522, %493 : vector<1x256xf32>
    %524 = vector.broadcast %112 : f32 to vector<1x256xf32>
    %525 = arith.mulf %524, %523 : vector<1x256xf32>
    %526 = arith.addf %512, %525 : vector<1x256xf32>
    %527 = vector.broadcast %113 : f32 to vector<1x256xf32>
    %528 = arith.mulf %527, %523 : vector<1x256xf32>
    %529 = arith.addf %515, %528 : vector<1x256xf32>
    %530 = vector.broadcast %114 : f32 to vector<1x256xf32>
    %531 = arith.mulf %530, %523 : vector<1x256xf32>
    %532 = arith.addf %518, %531 : vector<1x256xf32>
    %533 = vector.broadcast %115 : f32 to vector<1x256xf32>
    %534 = arith.mulf %533, %523 : vector<1x256xf32>
    %535 = arith.addf %521, %534 : vector<1x256xf32>
    %c241_i32_45 = arith.constant 241 : i32
    %536 = tpu.dynamic_rotate %7 by %c241_i32_45 dim 1 : vector<1x256xf32>, i32 -> vector<1x256xf32>
    %537 = arith.mulf %536, %493 : vector<1x256xf32>
    %538 = vector.broadcast %116 : f32 to vector<1x256xf32>
    %539 = arith.mulf %538, %537 : vector<1x256xf32>
    %540 = arith.addf %526, %539 : vector<1x256xf32>
    %541 = vector.broadcast %117 : f32 to vector<1x256xf32>
    %542 = arith.mulf %541, %537 : vector<1x256xf32>
    %543 = arith.addf %529, %542 : vector<1x256xf32>
    %544 = vector.broadcast %118 : f32 to vector<1x256xf32>
    %545 = arith.mulf %544, %537 : vector<1x256xf32>
    %546 = arith.addf %532, %545 : vector<1x256xf32>
    %547 = vector.broadcast %119 : f32 to vector<1x256xf32>
    %548 = arith.mulf %547, %537 : vector<1x256xf32>
    %549 = arith.addf %535, %548 : vector<1x256xf32>
    %c7_46 = arith.constant 7 : index
    %c0_47 = arith.constant 0 : index
    %550 = vector.load %arg2[%c7_46, %c0_47] : memref<9x256xf32, #tpu.memory_space<vmem>>, vector<1x256xf32>
    %c240_i32 = arith.constant 240 : i32
    %551 = tpu.dynamic_rotate %1 by %c240_i32 dim 1 : vector<1x256xf32>, i32 -> vector<1x256xf32>
    %552 = arith.mulf %551, %550 : vector<1x256xf32>
    %553 = vector.broadcast %120 : f32 to vector<1x256xf32>
    %554 = arith.mulf %553, %552 : vector<1x256xf32>
    %555 = arith.addf %540, %554 : vector<1x256xf32>
    %556 = vector.broadcast %121 : f32 to vector<1x256xf32>
    %557 = arith.mulf %556, %552 : vector<1x256xf32>
    %558 = arith.addf %543, %557 : vector<1x256xf32>
    %559 = vector.broadcast %122 : f32 to vector<1x256xf32>
    %560 = arith.mulf %559, %552 : vector<1x256xf32>
    %561 = arith.addf %546, %560 : vector<1x256xf32>
    %562 = vector.broadcast %123 : f32 to vector<1x256xf32>
    %563 = arith.mulf %562, %552 : vector<1x256xf32>
    %564 = arith.addf %549, %563 : vector<1x256xf32>
    %c240_i32_48 = arith.constant 240 : i32
    %565 = tpu.dynamic_rotate %3 by %c240_i32_48 dim 1 : vector<1x256xf32>, i32 -> vector<1x256xf32>
    %566 = arith.mulf %565, %550 : vector<1x256xf32>
    %567 = vector.broadcast %124 : f32 to vector<1x256xf32>
    %568 = arith.mulf %567, %566 : vector<1x256xf32>
    %569 = arith.addf %555, %568 : vector<1x256xf32>
    %570 = vector.broadcast %125 : f32 to vector<1x256xf32>
    %571 = arith.mulf %570, %566 : vector<1x256xf32>
    %572 = arith.addf %558, %571 : vector<1x256xf32>
    %573 = vector.broadcast %126 : f32 to vector<1x256xf32>
    %574 = arith.mulf %573, %566 : vector<1x256xf32>
    %575 = arith.addf %561, %574 : vector<1x256xf32>
    %576 = vector.broadcast %127 : f32 to vector<1x256xf32>
    %577 = arith.mulf %576, %566 : vector<1x256xf32>
    %578 = arith.addf %564, %577 : vector<1x256xf32>
    %c240_i32_49 = arith.constant 240 : i32
    %579 = tpu.dynamic_rotate %5 by %c240_i32_49 dim 1 : vector<1x256xf32>, i32 -> vector<1x256xf32>
    %580 = arith.mulf %579, %550 : vector<1x256xf32>
    %581 = vector.broadcast %128 : f32 to vector<1x256xf32>
    %582 = arith.mulf %581, %580 : vector<1x256xf32>
    %583 = arith.addf %569, %582 : vector<1x256xf32>
    %584 = vector.broadcast %129 : f32 to vector<1x256xf32>
    %585 = arith.mulf %584, %580 : vector<1x256xf32>
    %586 = arith.addf %572, %585 : vector<1x256xf32>
    %587 = vector.broadcast %130 : f32 to vector<1x256xf32>
    %588 = arith.mulf %587, %580 : vector<1x256xf32>
    %589 = arith.addf %575, %588 : vector<1x256xf32>
    %590 = vector.broadcast %131 : f32 to vector<1x256xf32>
    %591 = arith.mulf %590, %580 : vector<1x256xf32>
    %592 = arith.addf %578, %591 : vector<1x256xf32>
    %c240_i32_50 = arith.constant 240 : i32
    %593 = tpu.dynamic_rotate %7 by %c240_i32_50 dim 1 : vector<1x256xf32>, i32 -> vector<1x256xf32>
    %594 = arith.mulf %593, %550 : vector<1x256xf32>
    %595 = vector.broadcast %132 : f32 to vector<1x256xf32>
    %596 = arith.mulf %595, %594 : vector<1x256xf32>
    %597 = arith.addf %583, %596 : vector<1x256xf32>
    %598 = vector.broadcast %133 : f32 to vector<1x256xf32>
    %599 = arith.mulf %598, %594 : vector<1x256xf32>
    %600 = arith.addf %586, %599 : vector<1x256xf32>
    %601 = vector.broadcast %134 : f32 to vector<1x256xf32>
    %602 = arith.mulf %601, %594 : vector<1x256xf32>
    %603 = arith.addf %589, %602 : vector<1x256xf32>
    %604 = vector.broadcast %135 : f32 to vector<1x256xf32>
    %605 = arith.mulf %604, %594 : vector<1x256xf32>
    %606 = arith.addf %592, %605 : vector<1x256xf32>
    %c8_51 = arith.constant 8 : index
    %c0_52 = arith.constant 0 : index
    %607 = vector.load %arg2[%c8_51, %c0_52] : memref<9x256xf32, #tpu.memory_space<vmem>>, vector<1x256xf32>
    %c239_i32 = arith.constant 239 : i32
    %608 = tpu.dynamic_rotate %1 by %c239_i32 dim 1 : vector<1x256xf32>, i32 -> vector<1x256xf32>
    %609 = arith.mulf %608, %607 : vector<1x256xf32>
    %610 = vector.broadcast %136 : f32 to vector<1x256xf32>
    %611 = arith.mulf %610, %609 : vector<1x256xf32>
    %612 = arith.addf %597, %611 : vector<1x256xf32>
    %613 = vector.broadcast %137 : f32 to vector<1x256xf32>
    %614 = arith.mulf %613, %609 : vector<1x256xf32>
    %615 = arith.addf %600, %614 : vector<1x256xf32>
    %616 = vector.broadcast %138 : f32 to vector<1x256xf32>
    %617 = arith.mulf %616, %609 : vector<1x256xf32>
    %618 = arith.addf %603, %617 : vector<1x256xf32>
    %619 = vector.broadcast %139 : f32 to vector<1x256xf32>
    %620 = arith.mulf %619, %609 : vector<1x256xf32>
    %621 = arith.addf %606, %620 : vector<1x256xf32>
    %c239_i32_53 = arith.constant 239 : i32
    %622 = tpu.dynamic_rotate %3 by %c239_i32_53 dim 1 : vector<1x256xf32>, i32 -> vector<1x256xf32>
    %623 = arith.mulf %622, %607 : vector<1x256xf32>
    %624 = vector.broadcast %140 : f32 to vector<1x256xf32>
    %625 = arith.mulf %624, %623 : vector<1x256xf32>
    %626 = arith.addf %612, %625 : vector<1x256xf32>
    %627 = vector.broadcast %141 : f32 to vector<1x256xf32>
    %628 = arith.mulf %627, %623 : vector<1x256xf32>
    %629 = arith.addf %615, %628 : vector<1x256xf32>
    %630 = vector.broadcast %142 : f32 to vector<1x256xf32>
    %631 = arith.mulf %630, %623 : vector<1x256xf32>
    %632 = arith.addf %618, %631 : vector<1x256xf32>
    %633 = vector.broadcast %143 : f32 to vector<1x256xf32>
    %634 = arith.mulf %633, %623 : vector<1x256xf32>
    %635 = arith.addf %621, %634 : vector<1x256xf32>
    %c239_i32_54 = arith.constant 239 : i32
    %636 = tpu.dynamic_rotate %5 by %c239_i32_54 dim 1 : vector<1x256xf32>, i32 -> vector<1x256xf32>
    %637 = arith.mulf %636, %607 : vector<1x256xf32>
    %638 = vector.broadcast %144 : f32 to vector<1x256xf32>
    %639 = arith.mulf %638, %637 : vector<1x256xf32>
    %640 = arith.addf %626, %639 : vector<1x256xf32>
    %641 = vector.broadcast %145 : f32 to vector<1x256xf32>
    %642 = arith.mulf %641, %637 : vector<1x256xf32>
    %643 = arith.addf %629, %642 : vector<1x256xf32>
    %644 = vector.broadcast %146 : f32 to vector<1x256xf32>
    %645 = arith.mulf %644, %637 : vector<1x256xf32>
    %646 = arith.addf %632, %645 : vector<1x256xf32>
    %647 = vector.broadcast %147 : f32 to vector<1x256xf32>
    %648 = arith.mulf %647, %637 : vector<1x256xf32>
    %649 = arith.addf %635, %648 : vector<1x256xf32>
    %c239_i32_55 = arith.constant 239 : i32
    %650 = tpu.dynamic_rotate %7 by %c239_i32_55 dim 1 : vector<1x256xf32>, i32 -> vector<1x256xf32>
    %651 = arith.mulf %650, %607 : vector<1x256xf32>
    %652 = vector.broadcast %148 : f32 to vector<1x256xf32>
    %653 = arith.mulf %652, %651 : vector<1x256xf32>
    %654 = arith.addf %640, %653 : vector<1x256xf32>
    %655 = vector.broadcast %149 : f32 to vector<1x256xf32>
    %656 = arith.mulf %655, %651 : vector<1x256xf32>
    %657 = arith.addf %643, %656 : vector<1x256xf32>
    %658 = vector.broadcast %150 : f32 to vector<1x256xf32>
    %659 = arith.mulf %658, %651 : vector<1x256xf32>
    %660 = arith.addf %646, %659 : vector<1x256xf32>
    %661 = vector.broadcast %151 : f32 to vector<1x256xf32>
    %662 = arith.mulf %661, %651 : vector<1x256xf32>
    %663 = arith.addf %649, %662 : vector<1x256xf32>
    %cst = arith.constant 0.000000e+00 : f32
    %664 = vector.broadcast %cst : f32 to vector<1x256xf32>
    %665 = arith.cmpf oge, %654, %664 : vector<1x256xf32>
    %cst_56 = arith.constant 1.000000e-01 : f32
    %666 = vector.broadcast %cst_56 : f32 to vector<1x256xf32>
    %667 = arith.mulf %666, %654 : vector<1x256xf32>
    %668 = arith.select %665, %654, %667 : vector<1x256xi1>, vector<1x256xf32>
    %cst_57 = arith.constant 0.000000e+00 : f32
    %669 = vector.broadcast %cst_57 : f32 to vector<1x256xf32>
    %670 = arith.cmpf oge, %657, %669 : vector<1x256xf32>
    %cst_58 = arith.constant 1.000000e-01 : f32
    %671 = vector.broadcast %cst_58 : f32 to vector<1x256xf32>
    %672 = arith.mulf %671, %657 : vector<1x256xf32>
    %673 = arith.select %670, %657, %672 : vector<1x256xi1>, vector<1x256xf32>
    %cst_59 = arith.constant 0.000000e+00 : f32
    %674 = vector.broadcast %cst_59 : f32 to vector<1x256xf32>
    %675 = arith.cmpf oge, %660, %674 : vector<1x256xf32>
    %cst_60 = arith.constant 1.000000e-01 : f32
    %676 = vector.broadcast %cst_60 : f32 to vector<1x256xf32>
    %677 = arith.mulf %676, %660 : vector<1x256xf32>
    %678 = arith.select %675, %660, %677 : vector<1x256xi1>, vector<1x256xf32>
    %cst_61 = arith.constant 0.000000e+00 : f32
    %679 = vector.broadcast %cst_61 : f32 to vector<1x256xf32>
    %680 = arith.cmpf oge, %663, %679 : vector<1x256xf32>
    %cst_62 = arith.constant 1.000000e-01 : f32
    %681 = vector.broadcast %cst_62 : f32 to vector<1x256xf32>
    %682 = arith.mulf %681, %663 : vector<1x256xf32>
    %683 = arith.select %680, %663, %682 : vector<1x256xi1>, vector<1x256xf32>
    %c0_63 = arith.constant 0 : index
    %684 = memref.load %arg5[%c0_63] : memref<144xf32, #tpu.memory_space<smem>>
    %c1_64 = arith.constant 1 : index
    %685 = memref.load %arg5[%c1_64] : memref<144xf32, #tpu.memory_space<smem>>
    %c2_65 = arith.constant 2 : index
    %686 = memref.load %arg5[%c2_65] : memref<144xf32, #tpu.memory_space<smem>>
    %c3_66 = arith.constant 3 : index
    %687 = memref.load %arg5[%c3_66] : memref<144xf32, #tpu.memory_space<smem>>
    %c4_67 = arith.constant 4 : index
    %688 = memref.load %arg5[%c4_67] : memref<144xf32, #tpu.memory_space<smem>>
    %c5_68 = arith.constant 5 : index
    %689 = memref.load %arg5[%c5_68] : memref<144xf32, #tpu.memory_space<smem>>
    %c6_69 = arith.constant 6 : index
    %690 = memref.load %arg5[%c6_69] : memref<144xf32, #tpu.memory_space<smem>>
    %c7_70 = arith.constant 7 : index
    %691 = memref.load %arg5[%c7_70] : memref<144xf32, #tpu.memory_space<smem>>
    %c8_71 = arith.constant 8 : index
    %692 = memref.load %arg5[%c8_71] : memref<144xf32, #tpu.memory_space<smem>>
    %c9_72 = arith.constant 9 : index
    %693 = memref.load %arg5[%c9_72] : memref<144xf32, #tpu.memory_space<smem>>
    %c10_73 = arith.constant 10 : index
    %694 = memref.load %arg5[%c10_73] : memref<144xf32, #tpu.memory_space<smem>>
    %c11_74 = arith.constant 11 : index
    %695 = memref.load %arg5[%c11_74] : memref<144xf32, #tpu.memory_space<smem>>
    %c12_75 = arith.constant 12 : index
    %696 = memref.load %arg5[%c12_75] : memref<144xf32, #tpu.memory_space<smem>>
    %c13_76 = arith.constant 13 : index
    %697 = memref.load %arg5[%c13_76] : memref<144xf32, #tpu.memory_space<smem>>
    %c14_77 = arith.constant 14 : index
    %698 = memref.load %arg5[%c14_77] : memref<144xf32, #tpu.memory_space<smem>>
    %c15_78 = arith.constant 15 : index
    %699 = memref.load %arg5[%c15_78] : memref<144xf32, #tpu.memory_space<smem>>
    %c16_79 = arith.constant 16 : index
    %700 = memref.load %arg5[%c16_79] : memref<144xf32, #tpu.memory_space<smem>>
    %c17_80 = arith.constant 17 : index
    %701 = memref.load %arg5[%c17_80] : memref<144xf32, #tpu.memory_space<smem>>
    %c18_81 = arith.constant 18 : index
    %702 = memref.load %arg5[%c18_81] : memref<144xf32, #tpu.memory_space<smem>>
    %c19_82 = arith.constant 19 : index
    %703 = memref.load %arg5[%c19_82] : memref<144xf32, #tpu.memory_space<smem>>
    %c20_83 = arith.constant 20 : index
    %704 = memref.load %arg5[%c20_83] : memref<144xf32, #tpu.memory_space<smem>>
    %c21_84 = arith.constant 21 : index
    %705 = memref.load %arg5[%c21_84] : memref<144xf32, #tpu.memory_space<smem>>
    %c22_85 = arith.constant 22 : index
    %706 = memref.load %arg5[%c22_85] : memref<144xf32, #tpu.memory_space<smem>>
    %c23_86 = arith.constant 23 : index
    %707 = memref.load %arg5[%c23_86] : memref<144xf32, #tpu.memory_space<smem>>
    %c24_87 = arith.constant 24 : index
    %708 = memref.load %arg5[%c24_87] : memref<144xf32, #tpu.memory_space<smem>>
    %c25_88 = arith.constant 25 : index
    %709 = memref.load %arg5[%c25_88] : memref<144xf32, #tpu.memory_space<smem>>
    %c26_89 = arith.constant 26 : index
    %710 = memref.load %arg5[%c26_89] : memref<144xf32, #tpu.memory_space<smem>>
    %c27_90 = arith.constant 27 : index
    %711 = memref.load %arg5[%c27_90] : memref<144xf32, #tpu.memory_space<smem>>
    %c28_91 = arith.constant 28 : index
    %712 = memref.load %arg5[%c28_91] : memref<144xf32, #tpu.memory_space<smem>>
    %c29_92 = arith.constant 29 : index
    %713 = memref.load %arg5[%c29_92] : memref<144xf32, #tpu.memory_space<smem>>
    %c30_93 = arith.constant 30 : index
    %714 = memref.load %arg5[%c30_93] : memref<144xf32, #tpu.memory_space<smem>>
    %c31_94 = arith.constant 31 : index
    %715 = memref.load %arg5[%c31_94] : memref<144xf32, #tpu.memory_space<smem>>
    %c32_95 = arith.constant 32 : index
    %716 = memref.load %arg5[%c32_95] : memref<144xf32, #tpu.memory_space<smem>>
    %c33_96 = arith.constant 33 : index
    %717 = memref.load %arg5[%c33_96] : memref<144xf32, #tpu.memory_space<smem>>
    %c34_97 = arith.constant 34 : index
    %718 = memref.load %arg5[%c34_97] : memref<144xf32, #tpu.memory_space<smem>>
    %c35_98 = arith.constant 35 : index
    %719 = memref.load %arg5[%c35_98] : memref<144xf32, #tpu.memory_space<smem>>
    %c36_99 = arith.constant 36 : index
    %720 = memref.load %arg5[%c36_99] : memref<144xf32, #tpu.memory_space<smem>>
    %c37_100 = arith.constant 37 : index
    %721 = memref.load %arg5[%c37_100] : memref<144xf32, #tpu.memory_space<smem>>
    %c38_101 = arith.constant 38 : index
    %722 = memref.load %arg5[%c38_101] : memref<144xf32, #tpu.memory_space<smem>>
    %c39_102 = arith.constant 39 : index
    %723 = memref.load %arg5[%c39_102] : memref<144xf32, #tpu.memory_space<smem>>
    %c40_103 = arith.constant 40 : index
    %724 = memref.load %arg5[%c40_103] : memref<144xf32, #tpu.memory_space<smem>>
    %c41_104 = arith.constant 41 : index
    %725 = memref.load %arg5[%c41_104] : memref<144xf32, #tpu.memory_space<smem>>
    %c42_105 = arith.constant 42 : index
    %726 = memref.load %arg5[%c42_105] : memref<144xf32, #tpu.memory_space<smem>>
    %c43_106 = arith.constant 43 : index
    %727 = memref.load %arg5[%c43_106] : memref<144xf32, #tpu.memory_space<smem>>
    %c44_107 = arith.constant 44 : index
    %728 = memref.load %arg5[%c44_107] : memref<144xf32, #tpu.memory_space<smem>>
    %c45_108 = arith.constant 45 : index
    %729 = memref.load %arg5[%c45_108] : memref<144xf32, #tpu.memory_space<smem>>
    %c46_109 = arith.constant 46 : index
    %730 = memref.load %arg5[%c46_109] : memref<144xf32, #tpu.memory_space<smem>>
    %c47_110 = arith.constant 47 : index
    %731 = memref.load %arg5[%c47_110] : memref<144xf32, #tpu.memory_space<smem>>
    %c48_111 = arith.constant 48 : index
    %732 = memref.load %arg5[%c48_111] : memref<144xf32, #tpu.memory_space<smem>>
    %c49_112 = arith.constant 49 : index
    %733 = memref.load %arg5[%c49_112] : memref<144xf32, #tpu.memory_space<smem>>
    %c50_113 = arith.constant 50 : index
    %734 = memref.load %arg5[%c50_113] : memref<144xf32, #tpu.memory_space<smem>>
    %c51_114 = arith.constant 51 : index
    %735 = memref.load %arg5[%c51_114] : memref<144xf32, #tpu.memory_space<smem>>
    %c52_115 = arith.constant 52 : index
    %736 = memref.load %arg5[%c52_115] : memref<144xf32, #tpu.memory_space<smem>>
    %c53_116 = arith.constant 53 : index
    %737 = memref.load %arg5[%c53_116] : memref<144xf32, #tpu.memory_space<smem>>
    %c54_117 = arith.constant 54 : index
    %738 = memref.load %arg5[%c54_117] : memref<144xf32, #tpu.memory_space<smem>>
    %c55_118 = arith.constant 55 : index
    %739 = memref.load %arg5[%c55_118] : memref<144xf32, #tpu.memory_space<smem>>
    %c56_119 = arith.constant 56 : index
    %740 = memref.load %arg5[%c56_119] : memref<144xf32, #tpu.memory_space<smem>>
    %c57_120 = arith.constant 57 : index
    %741 = memref.load %arg5[%c57_120] : memref<144xf32, #tpu.memory_space<smem>>
    %c58_121 = arith.constant 58 : index
    %742 = memref.load %arg5[%c58_121] : memref<144xf32, #tpu.memory_space<smem>>
    %c59_122 = arith.constant 59 : index
    %743 = memref.load %arg5[%c59_122] : memref<144xf32, #tpu.memory_space<smem>>
    %c60_123 = arith.constant 60 : index
    %744 = memref.load %arg5[%c60_123] : memref<144xf32, #tpu.memory_space<smem>>
    %c61_124 = arith.constant 61 : index
    %745 = memref.load %arg5[%c61_124] : memref<144xf32, #tpu.memory_space<smem>>
    %c62_125 = arith.constant 62 : index
    %746 = memref.load %arg5[%c62_125] : memref<144xf32, #tpu.memory_space<smem>>
    %c63_126 = arith.constant 63 : index
    %747 = memref.load %arg5[%c63_126] : memref<144xf32, #tpu.memory_space<smem>>
    %c64_127 = arith.constant 64 : index
    %748 = memref.load %arg5[%c64_127] : memref<144xf32, #tpu.memory_space<smem>>
    %c65_128 = arith.constant 65 : index
    %749 = memref.load %arg5[%c65_128] : memref<144xf32, #tpu.memory_space<smem>>
    %c66_129 = arith.constant 66 : index
    %750 = memref.load %arg5[%c66_129] : memref<144xf32, #tpu.memory_space<smem>>
    %c67_130 = arith.constant 67 : index
    %751 = memref.load %arg5[%c67_130] : memref<144xf32, #tpu.memory_space<smem>>
    %c68_131 = arith.constant 68 : index
    %752 = memref.load %arg5[%c68_131] : memref<144xf32, #tpu.memory_space<smem>>
    %c69_132 = arith.constant 69 : index
    %753 = memref.load %arg5[%c69_132] : memref<144xf32, #tpu.memory_space<smem>>
    %c70_133 = arith.constant 70 : index
    %754 = memref.load %arg5[%c70_133] : memref<144xf32, #tpu.memory_space<smem>>
    %c71_134 = arith.constant 71 : index
    %755 = memref.load %arg5[%c71_134] : memref<144xf32, #tpu.memory_space<smem>>
    %c72_135 = arith.constant 72 : index
    %756 = memref.load %arg5[%c72_135] : memref<144xf32, #tpu.memory_space<smem>>
    %c73_136 = arith.constant 73 : index
    %757 = memref.load %arg5[%c73_136] : memref<144xf32, #tpu.memory_space<smem>>
    %c74_137 = arith.constant 74 : index
    %758 = memref.load %arg5[%c74_137] : memref<144xf32, #tpu.memory_space<smem>>
    %c75_138 = arith.constant 75 : index
    %759 = memref.load %arg5[%c75_138] : memref<144xf32, #tpu.memory_space<smem>>
    %c76_139 = arith.constant 76 : index
    %760 = memref.load %arg5[%c76_139] : memref<144xf32, #tpu.memory_space<smem>>
    %c77_140 = arith.constant 77 : index
    %761 = memref.load %arg5[%c77_140] : memref<144xf32, #tpu.memory_space<smem>>
    %c78_141 = arith.constant 78 : index
    %762 = memref.load %arg5[%c78_141] : memref<144xf32, #tpu.memory_space<smem>>
    %c79_142 = arith.constant 79 : index
    %763 = memref.load %arg5[%c79_142] : memref<144xf32, #tpu.memory_space<smem>>
    %c80_143 = arith.constant 80 : index
    %764 = memref.load %arg5[%c80_143] : memref<144xf32, #tpu.memory_space<smem>>
    %c81_144 = arith.constant 81 : index
    %765 = memref.load %arg5[%c81_144] : memref<144xf32, #tpu.memory_space<smem>>
    %c82_145 = arith.constant 82 : index
    %766 = memref.load %arg5[%c82_145] : memref<144xf32, #tpu.memory_space<smem>>
    %c83_146 = arith.constant 83 : index
    %767 = memref.load %arg5[%c83_146] : memref<144xf32, #tpu.memory_space<smem>>
    %c84_147 = arith.constant 84 : index
    %768 = memref.load %arg5[%c84_147] : memref<144xf32, #tpu.memory_space<smem>>
    %c85_148 = arith.constant 85 : index
    %769 = memref.load %arg5[%c85_148] : memref<144xf32, #tpu.memory_space<smem>>
    %c86_149 = arith.constant 86 : index
    %770 = memref.load %arg5[%c86_149] : memref<144xf32, #tpu.memory_space<smem>>
    %c87_150 = arith.constant 87 : index
    %771 = memref.load %arg5[%c87_150] : memref<144xf32, #tpu.memory_space<smem>>
    %c88_151 = arith.constant 88 : index
    %772 = memref.load %arg5[%c88_151] : memref<144xf32, #tpu.memory_space<smem>>
    %c89_152 = arith.constant 89 : index
    %773 = memref.load %arg5[%c89_152] : memref<144xf32, #tpu.memory_space<smem>>
    %c90_153 = arith.constant 90 : index
    %774 = memref.load %arg5[%c90_153] : memref<144xf32, #tpu.memory_space<smem>>
    %c91_154 = arith.constant 91 : index
    %775 = memref.load %arg5[%c91_154] : memref<144xf32, #tpu.memory_space<smem>>
    %c92_155 = arith.constant 92 : index
    %776 = memref.load %arg5[%c92_155] : memref<144xf32, #tpu.memory_space<smem>>
    %c93_156 = arith.constant 93 : index
    %777 = memref.load %arg5[%c93_156] : memref<144xf32, #tpu.memory_space<smem>>
    %c94_157 = arith.constant 94 : index
    %778 = memref.load %arg5[%c94_157] : memref<144xf32, #tpu.memory_space<smem>>
    %c95_158 = arith.constant 95 : index
    %779 = memref.load %arg5[%c95_158] : memref<144xf32, #tpu.memory_space<smem>>
    %c96_159 = arith.constant 96 : index
    %780 = memref.load %arg5[%c96_159] : memref<144xf32, #tpu.memory_space<smem>>
    %c97_160 = arith.constant 97 : index
    %781 = memref.load %arg5[%c97_160] : memref<144xf32, #tpu.memory_space<smem>>
    %c98_161 = arith.constant 98 : index
    %782 = memref.load %arg5[%c98_161] : memref<144xf32, #tpu.memory_space<smem>>
    %c99_162 = arith.constant 99 : index
    %783 = memref.load %arg5[%c99_162] : memref<144xf32, #tpu.memory_space<smem>>
    %c100_163 = arith.constant 100 : index
    %784 = memref.load %arg5[%c100_163] : memref<144xf32, #tpu.memory_space<smem>>
    %c101_164 = arith.constant 101 : index
    %785 = memref.load %arg5[%c101_164] : memref<144xf32, #tpu.memory_space<smem>>
    %c102_165 = arith.constant 102 : index
    %786 = memref.load %arg5[%c102_165] : memref<144xf32, #tpu.memory_space<smem>>
    %c103_166 = arith.constant 103 : index
    %787 = memref.load %arg5[%c103_166] : memref<144xf32, #tpu.memory_space<smem>>
    %c104_167 = arith.constant 104 : index
    %788 = memref.load %arg5[%c104_167] : memref<144xf32, #tpu.memory_space<smem>>
    %c105_168 = arith.constant 105 : index
    %789 = memref.load %arg5[%c105_168] : memref<144xf32, #tpu.memory_space<smem>>
    %c106_169 = arith.constant 106 : index
    %790 = memref.load %arg5[%c106_169] : memref<144xf32, #tpu.memory_space<smem>>
    %c107_170 = arith.constant 107 : index
    %791 = memref.load %arg5[%c107_170] : memref<144xf32, #tpu.memory_space<smem>>
    %c108_171 = arith.constant 108 : index
    %792 = memref.load %arg5[%c108_171] : memref<144xf32, #tpu.memory_space<smem>>
    %c109_172 = arith.constant 109 : index
    %793 = memref.load %arg5[%c109_172] : memref<144xf32, #tpu.memory_space<smem>>
    %c110_173 = arith.constant 110 : index
    %794 = memref.load %arg5[%c110_173] : memref<144xf32, #tpu.memory_space<smem>>
    %c111_174 = arith.constant 111 : index
    %795 = memref.load %arg5[%c111_174] : memref<144xf32, #tpu.memory_space<smem>>
    %c112_175 = arith.constant 112 : index
    %796 = memref.load %arg5[%c112_175] : memref<144xf32, #tpu.memory_space<smem>>
    %c113_176 = arith.constant 113 : index
    %797 = memref.load %arg5[%c113_176] : memref<144xf32, #tpu.memory_space<smem>>
    %c114_177 = arith.constant 114 : index
    %798 = memref.load %arg5[%c114_177] : memref<144xf32, #tpu.memory_space<smem>>
    %c115_178 = arith.constant 115 : index
    %799 = memref.load %arg5[%c115_178] : memref<144xf32, #tpu.memory_space<smem>>
    %c116_179 = arith.constant 116 : index
    %800 = memref.load %arg5[%c116_179] : memref<144xf32, #tpu.memory_space<smem>>
    %c117_180 = arith.constant 117 : index
    %801 = memref.load %arg5[%c117_180] : memref<144xf32, #tpu.memory_space<smem>>
    %c118_181 = arith.constant 118 : index
    %802 = memref.load %arg5[%c118_181] : memref<144xf32, #tpu.memory_space<smem>>
    %c119_182 = arith.constant 119 : index
    %803 = memref.load %arg5[%c119_182] : memref<144xf32, #tpu.memory_space<smem>>
    %c120_183 = arith.constant 120 : index
    %804 = memref.load %arg5[%c120_183] : memref<144xf32, #tpu.memory_space<smem>>
    %c121_184 = arith.constant 121 : index
    %805 = memref.load %arg5[%c121_184] : memref<144xf32, #tpu.memory_space<smem>>
    %c122_185 = arith.constant 122 : index
    %806 = memref.load %arg5[%c122_185] : memref<144xf32, #tpu.memory_space<smem>>
    %c123_186 = arith.constant 123 : index
    %807 = memref.load %arg5[%c123_186] : memref<144xf32, #tpu.memory_space<smem>>
    %c124_187 = arith.constant 124 : index
    %808 = memref.load %arg5[%c124_187] : memref<144xf32, #tpu.memory_space<smem>>
    %c125_188 = arith.constant 125 : index
    %809 = memref.load %arg5[%c125_188] : memref<144xf32, #tpu.memory_space<smem>>
    %c126_189 = arith.constant 126 : index
    %810 = memref.load %arg5[%c126_189] : memref<144xf32, #tpu.memory_space<smem>>
    %c127_190 = arith.constant 127 : index
    %811 = memref.load %arg5[%c127_190] : memref<144xf32, #tpu.memory_space<smem>>
    %c128_191 = arith.constant 128 : index
    %812 = memref.load %arg5[%c128_191] : memref<144xf32, #tpu.memory_space<smem>>
    %c129_192 = arith.constant 129 : index
    %813 = memref.load %arg5[%c129_192] : memref<144xf32, #tpu.memory_space<smem>>
    %c130_193 = arith.constant 130 : index
    %814 = memref.load %arg5[%c130_193] : memref<144xf32, #tpu.memory_space<smem>>
    %c131_194 = arith.constant 131 : index
    %815 = memref.load %arg5[%c131_194] : memref<144xf32, #tpu.memory_space<smem>>
    %c132_195 = arith.constant 132 : index
    %816 = memref.load %arg5[%c132_195] : memref<144xf32, #tpu.memory_space<smem>>
    %c133_196 = arith.constant 133 : index
    %817 = memref.load %arg5[%c133_196] : memref<144xf32, #tpu.memory_space<smem>>
    %c134_197 = arith.constant 134 : index
    %818 = memref.load %arg5[%c134_197] : memref<144xf32, #tpu.memory_space<smem>>
    %c135_198 = arith.constant 135 : index
    %819 = memref.load %arg5[%c135_198] : memref<144xf32, #tpu.memory_space<smem>>
    %c136_199 = arith.constant 136 : index
    %820 = memref.load %arg5[%c136_199] : memref<144xf32, #tpu.memory_space<smem>>
    %c137_200 = arith.constant 137 : index
    %821 = memref.load %arg5[%c137_200] : memref<144xf32, #tpu.memory_space<smem>>
    %c138_201 = arith.constant 138 : index
    %822 = memref.load %arg5[%c138_201] : memref<144xf32, #tpu.memory_space<smem>>
    %c139_202 = arith.constant 139 : index
    %823 = memref.load %arg5[%c139_202] : memref<144xf32, #tpu.memory_space<smem>>
    %c140_203 = arith.constant 140 : index
    %824 = memref.load %arg5[%c140_203] : memref<144xf32, #tpu.memory_space<smem>>
    %c141_204 = arith.constant 141 : index
    %825 = memref.load %arg5[%c141_204] : memref<144xf32, #tpu.memory_space<smem>>
    %c142_205 = arith.constant 142 : index
    %826 = memref.load %arg5[%c142_205] : memref<144xf32, #tpu.memory_space<smem>>
    %c143_206 = arith.constant 143 : index
    %827 = memref.load %arg5[%c143_206] : memref<144xf32, #tpu.memory_space<smem>>
    %c0_207 = arith.constant 0 : index
    %828 = memref.load %arg6[%c0_207] : memref<4xf32, #tpu.memory_space<smem>>
    %c1_208 = arith.constant 1 : index
    %829 = memref.load %arg6[%c1_208] : memref<4xf32, #tpu.memory_space<smem>>
    %c2_209 = arith.constant 2 : index
    %830 = memref.load %arg6[%c2_209] : memref<4xf32, #tpu.memory_space<smem>>
    %c3_210 = arith.constant 3 : index
    %831 = memref.load %arg6[%c3_210] : memref<4xf32, #tpu.memory_space<smem>>
    %c0_211 = arith.constant 0 : index
    %c0_212 = arith.constant 0 : index
    %832 = vector.load %arg2[%c0_211, %c0_212] : memref<9x256xf32, #tpu.memory_space<vmem>>, vector<1x256xf32>
    %c17_i32_213 = arith.constant 17 : i32
    %833 = tpu.dynamic_rotate %668 by %c17_i32_213 dim 1 : vector<1x256xf32>, i32 -> vector<1x256xf32>
    %834 = arith.mulf %833, %832 : vector<1x256xf32>
    %835 = vector.broadcast %684 : f32 to vector<1x256xf32>
    %836 = arith.mulf %835, %834 : vector<1x256xf32>
    %837 = vector.broadcast %828 : f32 to vector<1x256xf32>
    %838 = arith.addf %836, %837 : vector<1x256xf32>
    %839 = vector.broadcast %685 : f32 to vector<1x256xf32>
    %840 = arith.mulf %839, %834 : vector<1x256xf32>
    %841 = vector.broadcast %829 : f32 to vector<1x256xf32>
    %842 = arith.addf %840, %841 : vector<1x256xf32>
    %843 = vector.broadcast %686 : f32 to vector<1x256xf32>
    %844 = arith.mulf %843, %834 : vector<1x256xf32>
    %845 = vector.broadcast %830 : f32 to vector<1x256xf32>
    %846 = arith.addf %844, %845 : vector<1x256xf32>
    %847 = vector.broadcast %687 : f32 to vector<1x256xf32>
    %848 = arith.mulf %847, %834 : vector<1x256xf32>
    %849 = vector.broadcast %831 : f32 to vector<1x256xf32>
    %850 = arith.addf %848, %849 : vector<1x256xf32>
    %c17_i32_214 = arith.constant 17 : i32
    %851 = tpu.dynamic_rotate %673 by %c17_i32_214 dim 1 : vector<1x256xf32>, i32 -> vector<1x256xf32>
    %852 = arith.mulf %851, %832 : vector<1x256xf32>
    %853 = vector.broadcast %688 : f32 to vector<1x256xf32>
    %854 = arith.mulf %853, %852 : vector<1x256xf32>
    %855 = arith.addf %838, %854 : vector<1x256xf32>
    %856 = vector.broadcast %689 : f32 to vector<1x256xf32>
    %857 = arith.mulf %856, %852 : vector<1x256xf32>
    %858 = arith.addf %842, %857 : vector<1x256xf32>
    %859 = vector.broadcast %690 : f32 to vector<1x256xf32>
    %860 = arith.mulf %859, %852 : vector<1x256xf32>
    %861 = arith.addf %846, %860 : vector<1x256xf32>
    %862 = vector.broadcast %691 : f32 to vector<1x256xf32>
    %863 = arith.mulf %862, %852 : vector<1x256xf32>
    %864 = arith.addf %850, %863 : vector<1x256xf32>
    %c17_i32_215 = arith.constant 17 : i32
    %865 = tpu.dynamic_rotate %678 by %c17_i32_215 dim 1 : vector<1x256xf32>, i32 -> vector<1x256xf32>
    %866 = arith.mulf %865, %832 : vector<1x256xf32>
    %867 = vector.broadcast %692 : f32 to vector<1x256xf32>
    %868 = arith.mulf %867, %866 : vector<1x256xf32>
    %869 = arith.addf %855, %868 : vector<1x256xf32>
    %870 = vector.broadcast %693 : f32 to vector<1x256xf32>
    %871 = arith.mulf %870, %866 : vector<1x256xf32>
    %872 = arith.addf %858, %871 : vector<1x256xf32>
    %873 = vector.broadcast %694 : f32 to vector<1x256xf32>
    %874 = arith.mulf %873, %866 : vector<1x256xf32>
    %875 = arith.addf %861, %874 : vector<1x256xf32>
    %876 = vector.broadcast %695 : f32 to vector<1x256xf32>
    %877 = arith.mulf %876, %866 : vector<1x256xf32>
    %878 = arith.addf %864, %877 : vector<1x256xf32>
    %c17_i32_216 = arith.constant 17 : i32
    %879 = tpu.dynamic_rotate %683 by %c17_i32_216 dim 1 : vector<1x256xf32>, i32 -> vector<1x256xf32>
    %880 = arith.mulf %879, %832 : vector<1x256xf32>
    %881 = vector.broadcast %696 : f32 to vector<1x256xf32>
    %882 = arith.mulf %881, %880 : vector<1x256xf32>
    %883 = arith.addf %869, %882 : vector<1x256xf32>
    %884 = vector.broadcast %697 : f32 to vector<1x256xf32>
    %885 = arith.mulf %884, %880 : vector<1x256xf32>
    %886 = arith.addf %872, %885 : vector<1x256xf32>
    %887 = vector.broadcast %698 : f32 to vector<1x256xf32>
    %888 = arith.mulf %887, %880 : vector<1x256xf32>
    %889 = arith.addf %875, %888 : vector<1x256xf32>
    %890 = vector.broadcast %699 : f32 to vector<1x256xf32>
    %891 = arith.mulf %890, %880 : vector<1x256xf32>
    %892 = arith.addf %878, %891 : vector<1x256xf32>
    %c1_217 = arith.constant 1 : index
    %c0_218 = arith.constant 0 : index
    %893 = vector.load %arg2[%c1_217, %c0_218] : memref<9x256xf32, #tpu.memory_space<vmem>>, vector<1x256xf32>
    %c16_i32_219 = arith.constant 16 : i32
    %894 = tpu.dynamic_rotate %668 by %c16_i32_219 dim 1 : vector<1x256xf32>, i32 -> vector<1x256xf32>
    %895 = arith.mulf %894, %893 : vector<1x256xf32>
    %896 = vector.broadcast %700 : f32 to vector<1x256xf32>
    %897 = arith.mulf %896, %895 : vector<1x256xf32>
    %898 = arith.addf %883, %897 : vector<1x256xf32>
    %899 = vector.broadcast %701 : f32 to vector<1x256xf32>
    %900 = arith.mulf %899, %895 : vector<1x256xf32>
    %901 = arith.addf %886, %900 : vector<1x256xf32>
    %902 = vector.broadcast %702 : f32 to vector<1x256xf32>
    %903 = arith.mulf %902, %895 : vector<1x256xf32>
    %904 = arith.addf %889, %903 : vector<1x256xf32>
    %905 = vector.broadcast %703 : f32 to vector<1x256xf32>
    %906 = arith.mulf %905, %895 : vector<1x256xf32>
    %907 = arith.addf %892, %906 : vector<1x256xf32>
    %c16_i32_220 = arith.constant 16 : i32
    %908 = tpu.dynamic_rotate %673 by %c16_i32_220 dim 1 : vector<1x256xf32>, i32 -> vector<1x256xf32>
    %909 = arith.mulf %908, %893 : vector<1x256xf32>
    %910 = vector.broadcast %704 : f32 to vector<1x256xf32>
    %911 = arith.mulf %910, %909 : vector<1x256xf32>
    %912 = arith.addf %898, %911 : vector<1x256xf32>
    %913 = vector.broadcast %705 : f32 to vector<1x256xf32>
    %914 = arith.mulf %913, %909 : vector<1x256xf32>
    %915 = arith.addf %901, %914 : vector<1x256xf32>
    %916 = vector.broadcast %706 : f32 to vector<1x256xf32>
    %917 = arith.mulf %916, %909 : vector<1x256xf32>
    %918 = arith.addf %904, %917 : vector<1x256xf32>
    %919 = vector.broadcast %707 : f32 to vector<1x256xf32>
    %920 = arith.mulf %919, %909 : vector<1x256xf32>
    %921 = arith.addf %907, %920 : vector<1x256xf32>
    %c16_i32_221 = arith.constant 16 : i32
    %922 = tpu.dynamic_rotate %678 by %c16_i32_221 dim 1 : vector<1x256xf32>, i32 -> vector<1x256xf32>
    %923 = arith.mulf %922, %893 : vector<1x256xf32>
    %924 = vector.broadcast %708 : f32 to vector<1x256xf32>
    %925 = arith.mulf %924, %923 : vector<1x256xf32>
    %926 = arith.addf %912, %925 : vector<1x256xf32>
    %927 = vector.broadcast %709 : f32 to vector<1x256xf32>
    %928 = arith.mulf %927, %923 : vector<1x256xf32>
    %929 = arith.addf %915, %928 : vector<1x256xf32>
    %930 = vector.broadcast %710 : f32 to vector<1x256xf32>
    %931 = arith.mulf %930, %923 : vector<1x256xf32>
    %932 = arith.addf %918, %931 : vector<1x256xf32>
    %933 = vector.broadcast %711 : f32 to vector<1x256xf32>
    %934 = arith.mulf %933, %923 : vector<1x256xf32>
    %935 = arith.addf %921, %934 : vector<1x256xf32>
    %c16_i32_222 = arith.constant 16 : i32
    %936 = tpu.dynamic_rotate %683 by %c16_i32_222 dim 1 : vector<1x256xf32>, i32 -> vector<1x256xf32>
    %937 = arith.mulf %936, %893 : vector<1x256xf32>
    %938 = vector.broadcast %712 : f32 to vector<1x256xf32>
    %939 = arith.mulf %938, %937 : vector<1x256xf32>
    %940 = arith.addf %926, %939 : vector<1x256xf32>
    %941 = vector.broadcast %713 : f32 to vector<1x256xf32>
    %942 = arith.mulf %941, %937 : vector<1x256xf32>
    %943 = arith.addf %929, %942 : vector<1x256xf32>
    %944 = vector.broadcast %714 : f32 to vector<1x256xf32>
    %945 = arith.mulf %944, %937 : vector<1x256xf32>
    %946 = arith.addf %932, %945 : vector<1x256xf32>
    %947 = vector.broadcast %715 : f32 to vector<1x256xf32>
    %948 = arith.mulf %947, %937 : vector<1x256xf32>
    %949 = arith.addf %935, %948 : vector<1x256xf32>
    %c2_223 = arith.constant 2 : index
    %c0_224 = arith.constant 0 : index
    %950 = vector.load %arg2[%c2_223, %c0_224] : memref<9x256xf32, #tpu.memory_space<vmem>>, vector<1x256xf32>
    %c15_i32_225 = arith.constant 15 : i32
    %951 = tpu.dynamic_rotate %668 by %c15_i32_225 dim 1 : vector<1x256xf32>, i32 -> vector<1x256xf32>
    %952 = arith.mulf %951, %950 : vector<1x256xf32>
    %953 = vector.broadcast %716 : f32 to vector<1x256xf32>
    %954 = arith.mulf %953, %952 : vector<1x256xf32>
    %955 = arith.addf %940, %954 : vector<1x256xf32>
    %956 = vector.broadcast %717 : f32 to vector<1x256xf32>
    %957 = arith.mulf %956, %952 : vector<1x256xf32>
    %958 = arith.addf %943, %957 : vector<1x256xf32>
    %959 = vector.broadcast %718 : f32 to vector<1x256xf32>
    %960 = arith.mulf %959, %952 : vector<1x256xf32>
    %961 = arith.addf %946, %960 : vector<1x256xf32>
    %962 = vector.broadcast %719 : f32 to vector<1x256xf32>
    %963 = arith.mulf %962, %952 : vector<1x256xf32>
    %964 = arith.addf %949, %963 : vector<1x256xf32>
    %c15_i32_226 = arith.constant 15 : i32
    %965 = tpu.dynamic_rotate %673 by %c15_i32_226 dim 1 : vector<1x256xf32>, i32 -> vector<1x256xf32>
    %966 = arith.mulf %965, %950 : vector<1x256xf32>
    %967 = vector.broadcast %720 : f32 to vector<1x256xf32>
    %968 = arith.mulf %967, %966 : vector<1x256xf32>
    %969 = arith.addf %955, %968 : vector<1x256xf32>
    %970 = vector.broadcast %721 : f32 to vector<1x256xf32>
    %971 = arith.mulf %970, %966 : vector<1x256xf32>
    %972 = arith.addf %958, %971 : vector<1x256xf32>
    %973 = vector.broadcast %722 : f32 to vector<1x256xf32>
    %974 = arith.mulf %973, %966 : vector<1x256xf32>
    %975 = arith.addf %961, %974 : vector<1x256xf32>
    %976 = vector.broadcast %723 : f32 to vector<1x256xf32>
    %977 = arith.mulf %976, %966 : vector<1x256xf32>
    %978 = arith.addf %964, %977 : vector<1x256xf32>
    %c15_i32_227 = arith.constant 15 : i32
    %979 = tpu.dynamic_rotate %678 by %c15_i32_227 dim 1 : vector<1x256xf32>, i32 -> vector<1x256xf32>
    %980 = arith.mulf %979, %950 : vector<1x256xf32>
    %981 = vector.broadcast %724 : f32 to vector<1x256xf32>
    %982 = arith.mulf %981, %980 : vector<1x256xf32>
    %983 = arith.addf %969, %982 : vector<1x256xf32>
    %984 = vector.broadcast %725 : f32 to vector<1x256xf32>
    %985 = arith.mulf %984, %980 : vector<1x256xf32>
    %986 = arith.addf %972, %985 : vector<1x256xf32>
    %987 = vector.broadcast %726 : f32 to vector<1x256xf32>
    %988 = arith.mulf %987, %980 : vector<1x256xf32>
    %989 = arith.addf %975, %988 : vector<1x256xf32>
    %990 = vector.broadcast %727 : f32 to vector<1x256xf32>
    %991 = arith.mulf %990, %980 : vector<1x256xf32>
    %992 = arith.addf %978, %991 : vector<1x256xf32>
    %c15_i32_228 = arith.constant 15 : i32
    %993 = tpu.dynamic_rotate %683 by %c15_i32_228 dim 1 : vector<1x256xf32>, i32 -> vector<1x256xf32>
    %994 = arith.mulf %993, %950 : vector<1x256xf32>
    %995 = vector.broadcast %728 : f32 to vector<1x256xf32>
    %996 = arith.mulf %995, %994 : vector<1x256xf32>
    %997 = arith.addf %983, %996 : vector<1x256xf32>
    %998 = vector.broadcast %729 : f32 to vector<1x256xf32>
    %999 = arith.mulf %998, %994 : vector<1x256xf32>
    %1000 = arith.addf %986, %999 : vector<1x256xf32>
    %1001 = vector.broadcast %730 : f32 to vector<1x256xf32>
    %1002 = arith.mulf %1001, %994 : vector<1x256xf32>
    %1003 = arith.addf %989, %1002 : vector<1x256xf32>
    %1004 = vector.broadcast %731 : f32 to vector<1x256xf32>
    %1005 = arith.mulf %1004, %994 : vector<1x256xf32>
    %1006 = arith.addf %992, %1005 : vector<1x256xf32>
    %c3_229 = arith.constant 3 : index
    %c0_230 = arith.constant 0 : index
    %1007 = vector.load %arg2[%c3_229, %c0_230] : memref<9x256xf32, #tpu.memory_space<vmem>>, vector<1x256xf32>
    %c1_i32_231 = arith.constant 1 : i32
    %1008 = tpu.dynamic_rotate %668 by %c1_i32_231 dim 1 : vector<1x256xf32>, i32 -> vector<1x256xf32>
    %1009 = arith.mulf %1008, %1007 : vector<1x256xf32>
    %1010 = vector.broadcast %732 : f32 to vector<1x256xf32>
    %1011 = arith.mulf %1010, %1009 : vector<1x256xf32>
    %1012 = arith.addf %997, %1011 : vector<1x256xf32>
    %1013 = vector.broadcast %733 : f32 to vector<1x256xf32>
    %1014 = arith.mulf %1013, %1009 : vector<1x256xf32>
    %1015 = arith.addf %1000, %1014 : vector<1x256xf32>
    %1016 = vector.broadcast %734 : f32 to vector<1x256xf32>
    %1017 = arith.mulf %1016, %1009 : vector<1x256xf32>
    %1018 = arith.addf %1003, %1017 : vector<1x256xf32>
    %1019 = vector.broadcast %735 : f32 to vector<1x256xf32>
    %1020 = arith.mulf %1019, %1009 : vector<1x256xf32>
    %1021 = arith.addf %1006, %1020 : vector<1x256xf32>
    %c1_i32_232 = arith.constant 1 : i32
    %1022 = tpu.dynamic_rotate %673 by %c1_i32_232 dim 1 : vector<1x256xf32>, i32 -> vector<1x256xf32>
    %1023 = arith.mulf %1022, %1007 : vector<1x256xf32>
    %1024 = vector.broadcast %736 : f32 to vector<1x256xf32>
    %1025 = arith.mulf %1024, %1023 : vector<1x256xf32>
    %1026 = arith.addf %1012, %1025 : vector<1x256xf32>
    %1027 = vector.broadcast %737 : f32 to vector<1x256xf32>
    %1028 = arith.mulf %1027, %1023 : vector<1x256xf32>
    %1029 = arith.addf %1015, %1028 : vector<1x256xf32>
    %1030 = vector.broadcast %738 : f32 to vector<1x256xf32>
    %1031 = arith.mulf %1030, %1023 : vector<1x256xf32>
    %1032 = arith.addf %1018, %1031 : vector<1x256xf32>
    %1033 = vector.broadcast %739 : f32 to vector<1x256xf32>
    %1034 = arith.mulf %1033, %1023 : vector<1x256xf32>
    %1035 = arith.addf %1021, %1034 : vector<1x256xf32>
    %c1_i32_233 = arith.constant 1 : i32
    %1036 = tpu.dynamic_rotate %678 by %c1_i32_233 dim 1 : vector<1x256xf32>, i32 -> vector<1x256xf32>
    %1037 = arith.mulf %1036, %1007 : vector<1x256xf32>
    %1038 = vector.broadcast %740 : f32 to vector<1x256xf32>
    %1039 = arith.mulf %1038, %1037 : vector<1x256xf32>
    %1040 = arith.addf %1026, %1039 : vector<1x256xf32>
    %1041 = vector.broadcast %741 : f32 to vector<1x256xf32>
    %1042 = arith.mulf %1041, %1037 : vector<1x256xf32>
    %1043 = arith.addf %1029, %1042 : vector<1x256xf32>
    %1044 = vector.broadcast %742 : f32 to vector<1x256xf32>
    %1045 = arith.mulf %1044, %1037 : vector<1x256xf32>
    %1046 = arith.addf %1032, %1045 : vector<1x256xf32>
    %1047 = vector.broadcast %743 : f32 to vector<1x256xf32>
    %1048 = arith.mulf %1047, %1037 : vector<1x256xf32>
    %1049 = arith.addf %1035, %1048 : vector<1x256xf32>
    %c1_i32_234 = arith.constant 1 : i32
    %1050 = tpu.dynamic_rotate %683 by %c1_i32_234 dim 1 : vector<1x256xf32>, i32 -> vector<1x256xf32>
    %1051 = arith.mulf %1050, %1007 : vector<1x256xf32>
    %1052 = vector.broadcast %744 : f32 to vector<1x256xf32>
    %1053 = arith.mulf %1052, %1051 : vector<1x256xf32>
    %1054 = arith.addf %1040, %1053 : vector<1x256xf32>
    %1055 = vector.broadcast %745 : f32 to vector<1x256xf32>
    %1056 = arith.mulf %1055, %1051 : vector<1x256xf32>
    %1057 = arith.addf %1043, %1056 : vector<1x256xf32>
    %1058 = vector.broadcast %746 : f32 to vector<1x256xf32>
    %1059 = arith.mulf %1058, %1051 : vector<1x256xf32>
    %1060 = arith.addf %1046, %1059 : vector<1x256xf32>
    %1061 = vector.broadcast %747 : f32 to vector<1x256xf32>
    %1062 = arith.mulf %1061, %1051 : vector<1x256xf32>
    %1063 = arith.addf %1049, %1062 : vector<1x256xf32>
    %1064 = vector.broadcast %748 : f32 to vector<1x256xf32>
    %1065 = arith.mulf %1064, %668 : vector<1x256xf32>
    %1066 = arith.addf %1054, %1065 : vector<1x256xf32>
    %1067 = vector.broadcast %749 : f32 to vector<1x256xf32>
    %1068 = arith.mulf %1067, %668 : vector<1x256xf32>
    %1069 = arith.addf %1057, %1068 : vector<1x256xf32>
    %1070 = vector.broadcast %750 : f32 to vector<1x256xf32>
    %1071 = arith.mulf %1070, %668 : vector<1x256xf32>
    %1072 = arith.addf %1060, %1071 : vector<1x256xf32>
    %1073 = vector.broadcast %751 : f32 to vector<1x256xf32>
    %1074 = arith.mulf %1073, %668 : vector<1x256xf32>
    %1075 = arith.addf %1063, %1074 : vector<1x256xf32>
    %1076 = vector.broadcast %752 : f32 to vector<1x256xf32>
    %1077 = arith.mulf %1076, %673 : vector<1x256xf32>
    %1078 = arith.addf %1066, %1077 : vector<1x256xf32>
    %1079 = vector.broadcast %753 : f32 to vector<1x256xf32>
    %1080 = arith.mulf %1079, %673 : vector<1x256xf32>
    %1081 = arith.addf %1069, %1080 : vector<1x256xf32>
    %1082 = vector.broadcast %754 : f32 to vector<1x256xf32>
    %1083 = arith.mulf %1082, %673 : vector<1x256xf32>
    %1084 = arith.addf %1072, %1083 : vector<1x256xf32>
    %1085 = vector.broadcast %755 : f32 to vector<1x256xf32>
    %1086 = arith.mulf %1085, %673 : vector<1x256xf32>
    %1087 = arith.addf %1075, %1086 : vector<1x256xf32>
    %1088 = vector.broadcast %756 : f32 to vector<1x256xf32>
    %1089 = arith.mulf %1088, %678 : vector<1x256xf32>
    %1090 = arith.addf %1078, %1089 : vector<1x256xf32>
    %1091 = vector.broadcast %757 : f32 to vector<1x256xf32>
    %1092 = arith.mulf %1091, %678 : vector<1x256xf32>
    %1093 = arith.addf %1081, %1092 : vector<1x256xf32>
    %1094 = vector.broadcast %758 : f32 to vector<1x256xf32>
    %1095 = arith.mulf %1094, %678 : vector<1x256xf32>
    %1096 = arith.addf %1084, %1095 : vector<1x256xf32>
    %1097 = vector.broadcast %759 : f32 to vector<1x256xf32>
    %1098 = arith.mulf %1097, %678 : vector<1x256xf32>
    %1099 = arith.addf %1087, %1098 : vector<1x256xf32>
    %1100 = vector.broadcast %760 : f32 to vector<1x256xf32>
    %1101 = arith.mulf %1100, %683 : vector<1x256xf32>
    %1102 = arith.addf %1090, %1101 : vector<1x256xf32>
    %1103 = vector.broadcast %761 : f32 to vector<1x256xf32>
    %1104 = arith.mulf %1103, %683 : vector<1x256xf32>
    %1105 = arith.addf %1093, %1104 : vector<1x256xf32>
    %1106 = vector.broadcast %762 : f32 to vector<1x256xf32>
    %1107 = arith.mulf %1106, %683 : vector<1x256xf32>
    %1108 = arith.addf %1096, %1107 : vector<1x256xf32>
    %1109 = vector.broadcast %763 : f32 to vector<1x256xf32>
    %1110 = arith.mulf %1109, %683 : vector<1x256xf32>
    %1111 = arith.addf %1099, %1110 : vector<1x256xf32>
    %c5_235 = arith.constant 5 : index
    %c0_236 = arith.constant 0 : index
    %1112 = vector.load %arg2[%c5_235, %c0_236] : memref<9x256xf32, #tpu.memory_space<vmem>>, vector<1x256xf32>
    %c255_i32_237 = arith.constant 255 : i32
    %1113 = tpu.dynamic_rotate %668 by %c255_i32_237 dim 1 : vector<1x256xf32>, i32 -> vector<1x256xf32>
    %1114 = arith.mulf %1113, %1112 : vector<1x256xf32>
    %1115 = vector.broadcast %764 : f32 to vector<1x256xf32>
    %1116 = arith.mulf %1115, %1114 : vector<1x256xf32>
    %1117 = arith.addf %1102, %1116 : vector<1x256xf32>
    %1118 = vector.broadcast %765 : f32 to vector<1x256xf32>
    %1119 = arith.mulf %1118, %1114 : vector<1x256xf32>
    %1120 = arith.addf %1105, %1119 : vector<1x256xf32>
    %1121 = vector.broadcast %766 : f32 to vector<1x256xf32>
    %1122 = arith.mulf %1121, %1114 : vector<1x256xf32>
    %1123 = arith.addf %1108, %1122 : vector<1x256xf32>
    %1124 = vector.broadcast %767 : f32 to vector<1x256xf32>
    %1125 = arith.mulf %1124, %1114 : vector<1x256xf32>
    %1126 = arith.addf %1111, %1125 : vector<1x256xf32>
    %c255_i32_238 = arith.constant 255 : i32
    %1127 = tpu.dynamic_rotate %673 by %c255_i32_238 dim 1 : vector<1x256xf32>, i32 -> vector<1x256xf32>
    %1128 = arith.mulf %1127, %1112 : vector<1x256xf32>
    %1129 = vector.broadcast %768 : f32 to vector<1x256xf32>
    %1130 = arith.mulf %1129, %1128 : vector<1x256xf32>
    %1131 = arith.addf %1117, %1130 : vector<1x256xf32>
    %1132 = vector.broadcast %769 : f32 to vector<1x256xf32>
    %1133 = arith.mulf %1132, %1128 : vector<1x256xf32>
    %1134 = arith.addf %1120, %1133 : vector<1x256xf32>
    %1135 = vector.broadcast %770 : f32 to vector<1x256xf32>
    %1136 = arith.mulf %1135, %1128 : vector<1x256xf32>
    %1137 = arith.addf %1123, %1136 : vector<1x256xf32>
    %1138 = vector.broadcast %771 : f32 to vector<1x256xf32>
    %1139 = arith.mulf %1138, %1128 : vector<1x256xf32>
    %1140 = arith.addf %1126, %1139 : vector<1x256xf32>
    %c255_i32_239 = arith.constant 255 : i32
    %1141 = tpu.dynamic_rotate %678 by %c255_i32_239 dim 1 : vector<1x256xf32>, i32 -> vector<1x256xf32>
    %1142 = arith.mulf %1141, %1112 : vector<1x256xf32>
    %1143 = vector.broadcast %772 : f32 to vector<1x256xf32>
    %1144 = arith.mulf %1143, %1142 : vector<1x256xf32>
    %1145 = arith.addf %1131, %1144 : vector<1x256xf32>
    %1146 = vector.broadcast %773 : f32 to vector<1x256xf32>
    %1147 = arith.mulf %1146, %1142 : vector<1x256xf32>
    %1148 = arith.addf %1134, %1147 : vector<1x256xf32>
    %1149 = vector.broadcast %774 : f32 to vector<1x256xf32>
    %1150 = arith.mulf %1149, %1142 : vector<1x256xf32>
    %1151 = arith.addf %1137, %1150 : vector<1x256xf32>
    %1152 = vector.broadcast %775 : f32 to vector<1x256xf32>
    %1153 = arith.mulf %1152, %1142 : vector<1x256xf32>
    %1154 = arith.addf %1140, %1153 : vector<1x256xf32>
    %c255_i32_240 = arith.constant 255 : i32
    %1155 = tpu.dynamic_rotate %683 by %c255_i32_240 dim 1 : vector<1x256xf32>, i32 -> vector<1x256xf32>
    %1156 = arith.mulf %1155, %1112 : vector<1x256xf32>
    %1157 = vector.broadcast %776 : f32 to vector<1x256xf32>
    %1158 = arith.mulf %1157, %1156 : vector<1x256xf32>
    %1159 = arith.addf %1145, %1158 : vector<1x256xf32>
    %1160 = vector.broadcast %777 : f32 to vector<1x256xf32>
    %1161 = arith.mulf %1160, %1156 : vector<1x256xf32>
    %1162 = arith.addf %1148, %1161 : vector<1x256xf32>
    %1163 = vector.broadcast %778 : f32 to vector<1x256xf32>
    %1164 = arith.mulf %1163, %1156 : vector<1x256xf32>
    %1165 = arith.addf %1151, %1164 : vector<1x256xf32>
    %1166 = vector.broadcast %779 : f32 to vector<1x256xf32>
    %1167 = arith.mulf %1166, %1156 : vector<1x256xf32>
    %1168 = arith.addf %1154, %1167 : vector<1x256xf32>
    %c6_241 = arith.constant 6 : index
    %c0_242 = arith.constant 0 : index
    %1169 = vector.load %arg2[%c6_241, %c0_242] : memref<9x256xf32, #tpu.memory_space<vmem>>, vector<1x256xf32>
    %c241_i32_243 = arith.constant 241 : i32
    %1170 = tpu.dynamic_rotate %668 by %c241_i32_243 dim 1 : vector<1x256xf32>, i32 -> vector<1x256xf32>
    %1171 = arith.mulf %1170, %1169 : vector<1x256xf32>
    %1172 = vector.broadcast %780 : f32 to vector<1x256xf32>
    %1173 = arith.mulf %1172, %1171 : vector<1x256xf32>
    %1174 = arith.addf %1159, %1173 : vector<1x256xf32>
    %1175 = vector.broadcast %781 : f32 to vector<1x256xf32>
    %1176 = arith.mulf %1175, %1171 : vector<1x256xf32>
    %1177 = arith.addf %1162, %1176 : vector<1x256xf32>
    %1178 = vector.broadcast %782 : f32 to vector<1x256xf32>
    %1179 = arith.mulf %1178, %1171 : vector<1x256xf32>
    %1180 = arith.addf %1165, %1179 : vector<1x256xf32>
    %1181 = vector.broadcast %783 : f32 to vector<1x256xf32>
    %1182 = arith.mulf %1181, %1171 : vector<1x256xf32>
    %1183 = arith.addf %1168, %1182 : vector<1x256xf32>
    %c241_i32_244 = arith.constant 241 : i32
    %1184 = tpu.dynamic_rotate %673 by %c241_i32_244 dim 1 : vector<1x256xf32>, i32 -> vector<1x256xf32>
    %1185 = arith.mulf %1184, %1169 : vector<1x256xf32>
    %1186 = vector.broadcast %784 : f32 to vector<1x256xf32>
    %1187 = arith.mulf %1186, %1185 : vector<1x256xf32>
    %1188 = arith.addf %1174, %1187 : vector<1x256xf32>
    %1189 = vector.broadcast %785 : f32 to vector<1x256xf32>
    %1190 = arith.mulf %1189, %1185 : vector<1x256xf32>
    %1191 = arith.addf %1177, %1190 : vector<1x256xf32>
    %1192 = vector.broadcast %786 : f32 to vector<1x256xf32>
    %1193 = arith.mulf %1192, %1185 : vector<1x256xf32>
    %1194 = arith.addf %1180, %1193 : vector<1x256xf32>
    %1195 = vector.broadcast %787 : f32 to vector<1x256xf32>
    %1196 = arith.mulf %1195, %1185 : vector<1x256xf32>
    %1197 = arith.addf %1183, %1196 : vector<1x256xf32>
    %c241_i32_245 = arith.constant 241 : i32
    %1198 = tpu.dynamic_rotate %678 by %c241_i32_245 dim 1 : vector<1x256xf32>, i32 -> vector<1x256xf32>
    %1199 = arith.mulf %1198, %1169 : vector<1x256xf32>
    %1200 = vector.broadcast %788 : f32 to vector<1x256xf32>
    %1201 = arith.mulf %1200, %1199 : vector<1x256xf32>
    %1202 = arith.addf %1188, %1201 : vector<1x256xf32>
    %1203 = vector.broadcast %789 : f32 to vector<1x256xf32>
    %1204 = arith.mulf %1203, %1199 : vector<1x256xf32>
    %1205 = arith.addf %1191, %1204 : vector<1x256xf32>
    %1206 = vector.broadcast %790 : f32 to vector<1x256xf32>
    %1207 = arith.mulf %1206, %1199 : vector<1x256xf32>
    %1208 = arith.addf %1194, %1207 : vector<1x256xf32>
    %1209 = vector.broadcast %791 : f32 to vector<1x256xf32>
    %1210 = arith.mulf %1209, %1199 : vector<1x256xf32>
    %1211 = arith.addf %1197, %1210 : vector<1x256xf32>
    %c241_i32_246 = arith.constant 241 : i32
    %1212 = tpu.dynamic_rotate %683 by %c241_i32_246 dim 1 : vector<1x256xf32>, i32 -> vector<1x256xf32>
    %1213 = arith.mulf %1212, %1169 : vector<1x256xf32>
    %1214 = vector.broadcast %792 : f32 to vector<1x256xf32>
    %1215 = arith.mulf %1214, %1213 : vector<1x256xf32>
    %1216 = arith.addf %1202, %1215 : vector<1x256xf32>
    %1217 = vector.broadcast %793 : f32 to vector<1x256xf32>
    %1218 = arith.mulf %1217, %1213 : vector<1x256xf32>
    %1219 = arith.addf %1205, %1218 : vector<1x256xf32>
    %1220 = vector.broadcast %794 : f32 to vector<1x256xf32>
    %1221 = arith.mulf %1220, %1213 : vector<1x256xf32>
    %1222 = arith.addf %1208, %1221 : vector<1x256xf32>
    %1223 = vector.broadcast %795 : f32 to vector<1x256xf32>
    %1224 = arith.mulf %1223, %1213 : vector<1x256xf32>
    %1225 = arith.addf %1211, %1224 : vector<1x256xf32>
    %c7_247 = arith.constant 7 : index
    %c0_248 = arith.constant 0 : index
    %1226 = vector.load %arg2[%c7_247, %c0_248] : memref<9x256xf32, #tpu.memory_space<vmem>>, vector<1x256xf32>
    %c240_i32_249 = arith.constant 240 : i32
    %1227 = tpu.dynamic_rotate %668 by %c240_i32_249 dim 1 : vector<1x256xf32>, i32 -> vector<1x256xf32>
    %1228 = arith.mulf %1227, %1226 : vector<1x256xf32>
    %1229 = vector.broadcast %796 : f32 to vector<1x256xf32>
    %1230 = arith.mulf %1229, %1228 : vector<1x256xf32>
    %1231 = arith.addf %1216, %1230 : vector<1x256xf32>
    %1232 = vector.broadcast %797 : f32 to vector<1x256xf32>
    %1233 = arith.mulf %1232, %1228 : vector<1x256xf32>
    %1234 = arith.addf %1219, %1233 : vector<1x256xf32>
    %1235 = vector.broadcast %798 : f32 to vector<1x256xf32>
    %1236 = arith.mulf %1235, %1228 : vector<1x256xf32>
    %1237 = arith.addf %1222, %1236 : vector<1x256xf32>
    %1238 = vector.broadcast %799 : f32 to vector<1x256xf32>
    %1239 = arith.mulf %1238, %1228 : vector<1x256xf32>
    %1240 = arith.addf %1225, %1239 : vector<1x256xf32>
    %c240_i32_250 = arith.constant 240 : i32
    %1241 = tpu.dynamic_rotate %673 by %c240_i32_250 dim 1 : vector<1x256xf32>, i32 -> vector<1x256xf32>
    %1242 = arith.mulf %1241, %1226 : vector<1x256xf32>
    %1243 = vector.broadcast %800 : f32 to vector<1x256xf32>
    %1244 = arith.mulf %1243, %1242 : vector<1x256xf32>
    %1245 = arith.addf %1231, %1244 : vector<1x256xf32>
    %1246 = vector.broadcast %801 : f32 to vector<1x256xf32>
    %1247 = arith.mulf %1246, %1242 : vector<1x256xf32>
    %1248 = arith.addf %1234, %1247 : vector<1x256xf32>
    %1249 = vector.broadcast %802 : f32 to vector<1x256xf32>
    %1250 = arith.mulf %1249, %1242 : vector<1x256xf32>
    %1251 = arith.addf %1237, %1250 : vector<1x256xf32>
    %1252 = vector.broadcast %803 : f32 to vector<1x256xf32>
    %1253 = arith.mulf %1252, %1242 : vector<1x256xf32>
    %1254 = arith.addf %1240, %1253 : vector<1x256xf32>
    %c240_i32_251 = arith.constant 240 : i32
    %1255 = tpu.dynamic_rotate %678 by %c240_i32_251 dim 1 : vector<1x256xf32>, i32 -> vector<1x256xf32>
    %1256 = arith.mulf %1255, %1226 : vector<1x256xf32>
    %1257 = vector.broadcast %804 : f32 to vector<1x256xf32>
    %1258 = arith.mulf %1257, %1256 : vector<1x256xf32>
    %1259 = arith.addf %1245, %1258 : vector<1x256xf32>
    %1260 = vector.broadcast %805 : f32 to vector<1x256xf32>
    %1261 = arith.mulf %1260, %1256 : vector<1x256xf32>
    %1262 = arith.addf %1248, %1261 : vector<1x256xf32>
    %1263 = vector.broadcast %806 : f32 to vector<1x256xf32>
    %1264 = arith.mulf %1263, %1256 : vector<1x256xf32>
    %1265 = arith.addf %1251, %1264 : vector<1x256xf32>
    %1266 = vector.broadcast %807 : f32 to vector<1x256xf32>
    %1267 = arith.mulf %1266, %1256 : vector<1x256xf32>
    %1268 = arith.addf %1254, %1267 : vector<1x256xf32>
    %c240_i32_252 = arith.constant 240 : i32
    %1269 = tpu.dynamic_rotate %683 by %c240_i32_252 dim 1 : vector<1x256xf32>, i32 -> vector<1x256xf32>
    %1270 = arith.mulf %1269, %1226 : vector<1x256xf32>
    %1271 = vector.broadcast %808 : f32 to vector<1x256xf32>
    %1272 = arith.mulf %1271, %1270 : vector<1x256xf32>
    %1273 = arith.addf %1259, %1272 : vector<1x256xf32>
    %1274 = vector.broadcast %809 : f32 to vector<1x256xf32>
    %1275 = arith.mulf %1274, %1270 : vector<1x256xf32>
    %1276 = arith.addf %1262, %1275 : vector<1x256xf32>
    %1277 = vector.broadcast %810 : f32 to vector<1x256xf32>
    %1278 = arith.mulf %1277, %1270 : vector<1x256xf32>
    %1279 = arith.addf %1265, %1278 : vector<1x256xf32>
    %1280 = vector.broadcast %811 : f32 to vector<1x256xf32>
    %1281 = arith.mulf %1280, %1270 : vector<1x256xf32>
    %1282 = arith.addf %1268, %1281 : vector<1x256xf32>
    %c8_253 = arith.constant 8 : index
    %c0_254 = arith.constant 0 : index
    %1283 = vector.load %arg2[%c8_253, %c0_254] : memref<9x256xf32, #tpu.memory_space<vmem>>, vector<1x256xf32>
    %c239_i32_255 = arith.constant 239 : i32
    %1284 = tpu.dynamic_rotate %668 by %c239_i32_255 dim 1 : vector<1x256xf32>, i32 -> vector<1x256xf32>
    %1285 = arith.mulf %1284, %1283 : vector<1x256xf32>
    %1286 = vector.broadcast %812 : f32 to vector<1x256xf32>
    %1287 = arith.mulf %1286, %1285 : vector<1x256xf32>
    %1288 = arith.addf %1273, %1287 : vector<1x256xf32>
    %1289 = vector.broadcast %813 : f32 to vector<1x256xf32>
    %1290 = arith.mulf %1289, %1285 : vector<1x256xf32>
    %1291 = arith.addf %1276, %1290 : vector<1x256xf32>
    %1292 = vector.broadcast %814 : f32 to vector<1x256xf32>
    %1293 = arith.mulf %1292, %1285 : vector<1x256xf32>
    %1294 = arith.addf %1279, %1293 : vector<1x256xf32>
    %1295 = vector.broadcast %815 : f32 to vector<1x256xf32>
    %1296 = arith.mulf %1295, %1285 : vector<1x256xf32>
    %1297 = arith.addf %1282, %1296 : vector<1x256xf32>
    %c239_i32_256 = arith.constant 239 : i32
    %1298 = tpu.dynamic_rotate %673 by %c239_i32_256 dim 1 : vector<1x256xf32>, i32 -> vector<1x256xf32>
    %1299 = arith.mulf %1298, %1283 : vector<1x256xf32>
    %1300 = vector.broadcast %816 : f32 to vector<1x256xf32>
    %1301 = arith.mulf %1300, %1299 : vector<1x256xf32>
    %1302 = arith.addf %1288, %1301 : vector<1x256xf32>
    %1303 = vector.broadcast %817 : f32 to vector<1x256xf32>
    %1304 = arith.mulf %1303, %1299 : vector<1x256xf32>
    %1305 = arith.addf %1291, %1304 : vector<1x256xf32>
    %1306 = vector.broadcast %818 : f32 to vector<1x256xf32>
    %1307 = arith.mulf %1306, %1299 : vector<1x256xf32>
    %1308 = arith.addf %1294, %1307 : vector<1x256xf32>
    %1309 = vector.broadcast %819 : f32 to vector<1x256xf32>
    %1310 = arith.mulf %1309, %1299 : vector<1x256xf32>
    %1311 = arith.addf %1297, %1310 : vector<1x256xf32>
    %c239_i32_257 = arith.constant 239 : i32
    %1312 = tpu.dynamic_rotate %678 by %c239_i32_257 dim 1 : vector<1x256xf32>, i32 -> vector<1x256xf32>
    %1313 = arith.mulf %1312, %1283 : vector<1x256xf32>
    %1314 = vector.broadcast %820 : f32 to vector<1x256xf32>
    %1315 = arith.mulf %1314, %1313 : vector<1x256xf32>
    %1316 = arith.addf %1302, %1315 : vector<1x256xf32>
    %1317 = vector.broadcast %821 : f32 to vector<1x256xf32>
    %1318 = arith.mulf %1317, %1313 : vector<1x256xf32>
    %1319 = arith.addf %1305, %1318 : vector<1x256xf32>
    %1320 = vector.broadcast %822 : f32 to vector<1x256xf32>
    %1321 = arith.mulf %1320, %1313 : vector<1x256xf32>
    %1322 = arith.addf %1308, %1321 : vector<1x256xf32>
    %1323 = vector.broadcast %823 : f32 to vector<1x256xf32>
    %1324 = arith.mulf %1323, %1313 : vector<1x256xf32>
    %1325 = arith.addf %1311, %1324 : vector<1x256xf32>
    %c239_i32_258 = arith.constant 239 : i32
    %1326 = tpu.dynamic_rotate %683 by %c239_i32_258 dim 1 : vector<1x256xf32>, i32 -> vector<1x256xf32>
    %1327 = arith.mulf %1326, %1283 : vector<1x256xf32>
    %1328 = vector.broadcast %824 : f32 to vector<1x256xf32>
    %1329 = arith.mulf %1328, %1327 : vector<1x256xf32>
    %1330 = arith.addf %1316, %1329 : vector<1x256xf32>
    %1331 = vector.broadcast %825 : f32 to vector<1x256xf32>
    %1332 = arith.mulf %1331, %1327 : vector<1x256xf32>
    %1333 = arith.addf %1319, %1332 : vector<1x256xf32>
    %1334 = vector.broadcast %826 : f32 to vector<1x256xf32>
    %1335 = arith.mulf %1334, %1327 : vector<1x256xf32>
    %1336 = arith.addf %1322, %1335 : vector<1x256xf32>
    %1337 = vector.broadcast %827 : f32 to vector<1x256xf32>
    %1338 = arith.mulf %1337, %1327 : vector<1x256xf32>
    %1339 = arith.addf %1325, %1338 : vector<1x256xf32>
    %cst_259 = arith.constant 0.000000e+00 : f32
    %1340 = vector.broadcast %cst_259 : f32 to vector<1x256xf32>
    %1341 = arith.cmpf oge, %1330, %1340 : vector<1x256xf32>
    %cst_260 = arith.constant 1.000000e-01 : f32
    %1342 = vector.broadcast %cst_260 : f32 to vector<1x256xf32>
    %1343 = arith.mulf %1342, %1330 : vector<1x256xf32>
    %1344 = arith.select %1341, %1330, %1343 : vector<1x256xi1>, vector<1x256xf32>
    %cst_261 = arith.constant 0.000000e+00 : f32
    %1345 = vector.broadcast %cst_261 : f32 to vector<1x256xf32>
    %1346 = arith.cmpf oge, %1333, %1345 : vector<1x256xf32>
    %cst_262 = arith.constant 1.000000e-01 : f32
    %1347 = vector.broadcast %cst_262 : f32 to vector<1x256xf32>
    %1348 = arith.mulf %1347, %1333 : vector<1x256xf32>
    %1349 = arith.select %1346, %1333, %1348 : vector<1x256xi1>, vector<1x256xf32>
    %cst_263 = arith.constant 0.000000e+00 : f32
    %1350 = vector.broadcast %cst_263 : f32 to vector<1x256xf32>
    %1351 = arith.cmpf oge, %1336, %1350 : vector<1x256xf32>
    %cst_264 = arith.constant 1.000000e-01 : f32
    %1352 = vector.broadcast %cst_264 : f32 to vector<1x256xf32>
    %1353 = arith.mulf %1352, %1336 : vector<1x256xf32>
    %1354 = arith.select %1351, %1336, %1353 : vector<1x256xi1>, vector<1x256xf32>
    %cst_265 = arith.constant 0.000000e+00 : f32
    %1355 = vector.broadcast %cst_265 : f32 to vector<1x256xf32>
    %1356 = arith.cmpf oge, %1339, %1355 : vector<1x256xf32>
    %cst_266 = arith.constant 1.000000e-01 : f32
    %1357 = vector.broadcast %cst_266 : f32 to vector<1x256xf32>
    %1358 = arith.mulf %1357, %1339 : vector<1x256xf32>
    %1359 = arith.select %1356, %1339, %1358 : vector<1x256xi1>, vector<1x256xf32>
    %c0_267 = arith.constant 0 : index
    %1360 = memref.load %arg7[%c0_267] : memref<144xf32, #tpu.memory_space<smem>>
    %c1_268 = arith.constant 1 : index
    %1361 = memref.load %arg7[%c1_268] : memref<144xf32, #tpu.memory_space<smem>>
    %c2_269 = arith.constant 2 : index
    %1362 = memref.load %arg7[%c2_269] : memref<144xf32, #tpu.memory_space<smem>>
    %c3_270 = arith.constant 3 : index
    %1363 = memref.load %arg7[%c3_270] : memref<144xf32, #tpu.memory_space<smem>>
    %c4_271 = arith.constant 4 : index
    %1364 = memref.load %arg7[%c4_271] : memref<144xf32, #tpu.memory_space<smem>>
    %c5_272 = arith.constant 5 : index
    %1365 = memref.load %arg7[%c5_272] : memref<144xf32, #tpu.memory_space<smem>>
    %c6_273 = arith.constant 6 : index
    %1366 = memref.load %arg7[%c6_273] : memref<144xf32, #tpu.memory_space<smem>>
    %c7_274 = arith.constant 7 : index
    %1367 = memref.load %arg7[%c7_274] : memref<144xf32, #tpu.memory_space<smem>>
    %c8_275 = arith.constant 8 : index
    %1368 = memref.load %arg7[%c8_275] : memref<144xf32, #tpu.memory_space<smem>>
    %c9_276 = arith.constant 9 : index
    %1369 = memref.load %arg7[%c9_276] : memref<144xf32, #tpu.memory_space<smem>>
    %c10_277 = arith.constant 10 : index
    %1370 = memref.load %arg7[%c10_277] : memref<144xf32, #tpu.memory_space<smem>>
    %c11_278 = arith.constant 11 : index
    %1371 = memref.load %arg7[%c11_278] : memref<144xf32, #tpu.memory_space<smem>>
    %c12_279 = arith.constant 12 : index
    %1372 = memref.load %arg7[%c12_279] : memref<144xf32, #tpu.memory_space<smem>>
    %c13_280 = arith.constant 13 : index
    %1373 = memref.load %arg7[%c13_280] : memref<144xf32, #tpu.memory_space<smem>>
    %c14_281 = arith.constant 14 : index
    %1374 = memref.load %arg7[%c14_281] : memref<144xf32, #tpu.memory_space<smem>>
    %c15_282 = arith.constant 15 : index
    %1375 = memref.load %arg7[%c15_282] : memref<144xf32, #tpu.memory_space<smem>>
    %c16_283 = arith.constant 16 : index
    %1376 = memref.load %arg7[%c16_283] : memref<144xf32, #tpu.memory_space<smem>>
    %c17_284 = arith.constant 17 : index
    %1377 = memref.load %arg7[%c17_284] : memref<144xf32, #tpu.memory_space<smem>>
    %c18_285 = arith.constant 18 : index
    %1378 = memref.load %arg7[%c18_285] : memref<144xf32, #tpu.memory_space<smem>>
    %c19_286 = arith.constant 19 : index
    %1379 = memref.load %arg7[%c19_286] : memref<144xf32, #tpu.memory_space<smem>>
    %c20_287 = arith.constant 20 : index
    %1380 = memref.load %arg7[%c20_287] : memref<144xf32, #tpu.memory_space<smem>>
    %c21_288 = arith.constant 21 : index
    %1381 = memref.load %arg7[%c21_288] : memref<144xf32, #tpu.memory_space<smem>>
    %c22_289 = arith.constant 22 : index
    %1382 = memref.load %arg7[%c22_289] : memref<144xf32, #tpu.memory_space<smem>>
    %c23_290 = arith.constant 23 : index
    %1383 = memref.load %arg7[%c23_290] : memref<144xf32, #tpu.memory_space<smem>>
    %c24_291 = arith.constant 24 : index
    %1384 = memref.load %arg7[%c24_291] : memref<144xf32, #tpu.memory_space<smem>>
    %c25_292 = arith.constant 25 : index
    %1385 = memref.load %arg7[%c25_292] : memref<144xf32, #tpu.memory_space<smem>>
    %c26_293 = arith.constant 26 : index
    %1386 = memref.load %arg7[%c26_293] : memref<144xf32, #tpu.memory_space<smem>>
    %c27_294 = arith.constant 27 : index
    %1387 = memref.load %arg7[%c27_294] : memref<144xf32, #tpu.memory_space<smem>>
    %c28_295 = arith.constant 28 : index
    %1388 = memref.load %arg7[%c28_295] : memref<144xf32, #tpu.memory_space<smem>>
    %c29_296 = arith.constant 29 : index
    %1389 = memref.load %arg7[%c29_296] : memref<144xf32, #tpu.memory_space<smem>>
    %c30_297 = arith.constant 30 : index
    %1390 = memref.load %arg7[%c30_297] : memref<144xf32, #tpu.memory_space<smem>>
    %c31_298 = arith.constant 31 : index
    %1391 = memref.load %arg7[%c31_298] : memref<144xf32, #tpu.memory_space<smem>>
    %c32_299 = arith.constant 32 : index
    %1392 = memref.load %arg7[%c32_299] : memref<144xf32, #tpu.memory_space<smem>>
    %c33_300 = arith.constant 33 : index
    %1393 = memref.load %arg7[%c33_300] : memref<144xf32, #tpu.memory_space<smem>>
    %c34_301 = arith.constant 34 : index
    %1394 = memref.load %arg7[%c34_301] : memref<144xf32, #tpu.memory_space<smem>>
    %c35_302 = arith.constant 35 : index
    %1395 = memref.load %arg7[%c35_302] : memref<144xf32, #tpu.memory_space<smem>>
    %c36_303 = arith.constant 36 : index
    %1396 = memref.load %arg7[%c36_303] : memref<144xf32, #tpu.memory_space<smem>>
    %c37_304 = arith.constant 37 : index
    %1397 = memref.load %arg7[%c37_304] : memref<144xf32, #tpu.memory_space<smem>>
    %c38_305 = arith.constant 38 : index
    %1398 = memref.load %arg7[%c38_305] : memref<144xf32, #tpu.memory_space<smem>>
    %c39_306 = arith.constant 39 : index
    %1399 = memref.load %arg7[%c39_306] : memref<144xf32, #tpu.memory_space<smem>>
    %c40_307 = arith.constant 40 : index
    %1400 = memref.load %arg7[%c40_307] : memref<144xf32, #tpu.memory_space<smem>>
    %c41_308 = arith.constant 41 : index
    %1401 = memref.load %arg7[%c41_308] : memref<144xf32, #tpu.memory_space<smem>>
    %c42_309 = arith.constant 42 : index
    %1402 = memref.load %arg7[%c42_309] : memref<144xf32, #tpu.memory_space<smem>>
    %c43_310 = arith.constant 43 : index
    %1403 = memref.load %arg7[%c43_310] : memref<144xf32, #tpu.memory_space<smem>>
    %c44_311 = arith.constant 44 : index
    %1404 = memref.load %arg7[%c44_311] : memref<144xf32, #tpu.memory_space<smem>>
    %c45_312 = arith.constant 45 : index
    %1405 = memref.load %arg7[%c45_312] : memref<144xf32, #tpu.memory_space<smem>>
    %c46_313 = arith.constant 46 : index
    %1406 = memref.load %arg7[%c46_313] : memref<144xf32, #tpu.memory_space<smem>>
    %c47_314 = arith.constant 47 : index
    %1407 = memref.load %arg7[%c47_314] : memref<144xf32, #tpu.memory_space<smem>>
    %c48_315 = arith.constant 48 : index
    %1408 = memref.load %arg7[%c48_315] : memref<144xf32, #tpu.memory_space<smem>>
    %c49_316 = arith.constant 49 : index
    %1409 = memref.load %arg7[%c49_316] : memref<144xf32, #tpu.memory_space<smem>>
    %c50_317 = arith.constant 50 : index
    %1410 = memref.load %arg7[%c50_317] : memref<144xf32, #tpu.memory_space<smem>>
    %c51_318 = arith.constant 51 : index
    %1411 = memref.load %arg7[%c51_318] : memref<144xf32, #tpu.memory_space<smem>>
    %c52_319 = arith.constant 52 : index
    %1412 = memref.load %arg7[%c52_319] : memref<144xf32, #tpu.memory_space<smem>>
    %c53_320 = arith.constant 53 : index
    %1413 = memref.load %arg7[%c53_320] : memref<144xf32, #tpu.memory_space<smem>>
    %c54_321 = arith.constant 54 : index
    %1414 = memref.load %arg7[%c54_321] : memref<144xf32, #tpu.memory_space<smem>>
    %c55_322 = arith.constant 55 : index
    %1415 = memref.load %arg7[%c55_322] : memref<144xf32, #tpu.memory_space<smem>>
    %c56_323 = arith.constant 56 : index
    %1416 = memref.load %arg7[%c56_323] : memref<144xf32, #tpu.memory_space<smem>>
    %c57_324 = arith.constant 57 : index
    %1417 = memref.load %arg7[%c57_324] : memref<144xf32, #tpu.memory_space<smem>>
    %c58_325 = arith.constant 58 : index
    %1418 = memref.load %arg7[%c58_325] : memref<144xf32, #tpu.memory_space<smem>>
    %c59_326 = arith.constant 59 : index
    %1419 = memref.load %arg7[%c59_326] : memref<144xf32, #tpu.memory_space<smem>>
    %c60_327 = arith.constant 60 : index
    %1420 = memref.load %arg7[%c60_327] : memref<144xf32, #tpu.memory_space<smem>>
    %c61_328 = arith.constant 61 : index
    %1421 = memref.load %arg7[%c61_328] : memref<144xf32, #tpu.memory_space<smem>>
    %c62_329 = arith.constant 62 : index
    %1422 = memref.load %arg7[%c62_329] : memref<144xf32, #tpu.memory_space<smem>>
    %c63_330 = arith.constant 63 : index
    %1423 = memref.load %arg7[%c63_330] : memref<144xf32, #tpu.memory_space<smem>>
    %c64_331 = arith.constant 64 : index
    %1424 = memref.load %arg7[%c64_331] : memref<144xf32, #tpu.memory_space<smem>>
    %c65_332 = arith.constant 65 : index
    %1425 = memref.load %arg7[%c65_332] : memref<144xf32, #tpu.memory_space<smem>>
    %c66_333 = arith.constant 66 : index
    %1426 = memref.load %arg7[%c66_333] : memref<144xf32, #tpu.memory_space<smem>>
    %c67_334 = arith.constant 67 : index
    %1427 = memref.load %arg7[%c67_334] : memref<144xf32, #tpu.memory_space<smem>>
    %c68_335 = arith.constant 68 : index
    %1428 = memref.load %arg7[%c68_335] : memref<144xf32, #tpu.memory_space<smem>>
    %c69_336 = arith.constant 69 : index
    %1429 = memref.load %arg7[%c69_336] : memref<144xf32, #tpu.memory_space<smem>>
    %c70_337 = arith.constant 70 : index
    %1430 = memref.load %arg7[%c70_337] : memref<144xf32, #tpu.memory_space<smem>>
    %c71_338 = arith.constant 71 : index
    %1431 = memref.load %arg7[%c71_338] : memref<144xf32, #tpu.memory_space<smem>>
    %c72_339 = arith.constant 72 : index
    %1432 = memref.load %arg7[%c72_339] : memref<144xf32, #tpu.memory_space<smem>>
    %c73_340 = arith.constant 73 : index
    %1433 = memref.load %arg7[%c73_340] : memref<144xf32, #tpu.memory_space<smem>>
    %c74_341 = arith.constant 74 : index
    %1434 = memref.load %arg7[%c74_341] : memref<144xf32, #tpu.memory_space<smem>>
    %c75_342 = arith.constant 75 : index
    %1435 = memref.load %arg7[%c75_342] : memref<144xf32, #tpu.memory_space<smem>>
    %c76_343 = arith.constant 76 : index
    %1436 = memref.load %arg7[%c76_343] : memref<144xf32, #tpu.memory_space<smem>>
    %c77_344 = arith.constant 77 : index
    %1437 = memref.load %arg7[%c77_344] : memref<144xf32, #tpu.memory_space<smem>>
    %c78_345 = arith.constant 78 : index
    %1438 = memref.load %arg7[%c78_345] : memref<144xf32, #tpu.memory_space<smem>>
    %c79_346 = arith.constant 79 : index
    %1439 = memref.load %arg7[%c79_346] : memref<144xf32, #tpu.memory_space<smem>>
    %c80_347 = arith.constant 80 : index
    %1440 = memref.load %arg7[%c80_347] : memref<144xf32, #tpu.memory_space<smem>>
    %c81_348 = arith.constant 81 : index
    %1441 = memref.load %arg7[%c81_348] : memref<144xf32, #tpu.memory_space<smem>>
    %c82_349 = arith.constant 82 : index
    %1442 = memref.load %arg7[%c82_349] : memref<144xf32, #tpu.memory_space<smem>>
    %c83_350 = arith.constant 83 : index
    %1443 = memref.load %arg7[%c83_350] : memref<144xf32, #tpu.memory_space<smem>>
    %c84_351 = arith.constant 84 : index
    %1444 = memref.load %arg7[%c84_351] : memref<144xf32, #tpu.memory_space<smem>>
    %c85_352 = arith.constant 85 : index
    %1445 = memref.load %arg7[%c85_352] : memref<144xf32, #tpu.memory_space<smem>>
    %c86_353 = arith.constant 86 : index
    %1446 = memref.load %arg7[%c86_353] : memref<144xf32, #tpu.memory_space<smem>>
    %c87_354 = arith.constant 87 : index
    %1447 = memref.load %arg7[%c87_354] : memref<144xf32, #tpu.memory_space<smem>>
    %c88_355 = arith.constant 88 : index
    %1448 = memref.load %arg7[%c88_355] : memref<144xf32, #tpu.memory_space<smem>>
    %c89_356 = arith.constant 89 : index
    %1449 = memref.load %arg7[%c89_356] : memref<144xf32, #tpu.memory_space<smem>>
    %c90_357 = arith.constant 90 : index
    %1450 = memref.load %arg7[%c90_357] : memref<144xf32, #tpu.memory_space<smem>>
    %c91_358 = arith.constant 91 : index
    %1451 = memref.load %arg7[%c91_358] : memref<144xf32, #tpu.memory_space<smem>>
    %c92_359 = arith.constant 92 : index
    %1452 = memref.load %arg7[%c92_359] : memref<144xf32, #tpu.memory_space<smem>>
    %c93_360 = arith.constant 93 : index
    %1453 = memref.load %arg7[%c93_360] : memref<144xf32, #tpu.memory_space<smem>>
    %c94_361 = arith.constant 94 : index
    %1454 = memref.load %arg7[%c94_361] : memref<144xf32, #tpu.memory_space<smem>>
    %c95_362 = arith.constant 95 : index
    %1455 = memref.load %arg7[%c95_362] : memref<144xf32, #tpu.memory_space<smem>>
    %c96_363 = arith.constant 96 : index
    %1456 = memref.load %arg7[%c96_363] : memref<144xf32, #tpu.memory_space<smem>>
    %c97_364 = arith.constant 97 : index
    %1457 = memref.load %arg7[%c97_364] : memref<144xf32, #tpu.memory_space<smem>>
    %c98_365 = arith.constant 98 : index
    %1458 = memref.load %arg7[%c98_365] : memref<144xf32, #tpu.memory_space<smem>>
    %c99_366 = arith.constant 99 : index
    %1459 = memref.load %arg7[%c99_366] : memref<144xf32, #tpu.memory_space<smem>>
    %c100_367 = arith.constant 100 : index
    %1460 = memref.load %arg7[%c100_367] : memref<144xf32, #tpu.memory_space<smem>>
    %c101_368 = arith.constant 101 : index
    %1461 = memref.load %arg7[%c101_368] : memref<144xf32, #tpu.memory_space<smem>>
    %c102_369 = arith.constant 102 : index
    %1462 = memref.load %arg7[%c102_369] : memref<144xf32, #tpu.memory_space<smem>>
    %c103_370 = arith.constant 103 : index
    %1463 = memref.load %arg7[%c103_370] : memref<144xf32, #tpu.memory_space<smem>>
    %c104_371 = arith.constant 104 : index
    %1464 = memref.load %arg7[%c104_371] : memref<144xf32, #tpu.memory_space<smem>>
    %c105_372 = arith.constant 105 : index
    %1465 = memref.load %arg7[%c105_372] : memref<144xf32, #tpu.memory_space<smem>>
    %c106_373 = arith.constant 106 : index
    %1466 = memref.load %arg7[%c106_373] : memref<144xf32, #tpu.memory_space<smem>>
    %c107_374 = arith.constant 107 : index
    %1467 = memref.load %arg7[%c107_374] : memref<144xf32, #tpu.memory_space<smem>>
    %c108_375 = arith.constant 108 : index
    %1468 = memref.load %arg7[%c108_375] : memref<144xf32, #tpu.memory_space<smem>>
    %c109_376 = arith.constant 109 : index
    %1469 = memref.load %arg7[%c109_376] : memref<144xf32, #tpu.memory_space<smem>>
    %c110_377 = arith.constant 110 : index
    %1470 = memref.load %arg7[%c110_377] : memref<144xf32, #tpu.memory_space<smem>>
    %c111_378 = arith.constant 111 : index
    %1471 = memref.load %arg7[%c111_378] : memref<144xf32, #tpu.memory_space<smem>>
    %c112_379 = arith.constant 112 : index
    %1472 = memref.load %arg7[%c112_379] : memref<144xf32, #tpu.memory_space<smem>>
    %c113_380 = arith.constant 113 : index
    %1473 = memref.load %arg7[%c113_380] : memref<144xf32, #tpu.memory_space<smem>>
    %c114_381 = arith.constant 114 : index
    %1474 = memref.load %arg7[%c114_381] : memref<144xf32, #tpu.memory_space<smem>>
    %c115_382 = arith.constant 115 : index
    %1475 = memref.load %arg7[%c115_382] : memref<144xf32, #tpu.memory_space<smem>>
    %c116_383 = arith.constant 116 : index
    %1476 = memref.load %arg7[%c116_383] : memref<144xf32, #tpu.memory_space<smem>>
    %c117_384 = arith.constant 117 : index
    %1477 = memref.load %arg7[%c117_384] : memref<144xf32, #tpu.memory_space<smem>>
    %c118_385 = arith.constant 118 : index
    %1478 = memref.load %arg7[%c118_385] : memref<144xf32, #tpu.memory_space<smem>>
    %c119_386 = arith.constant 119 : index
    %1479 = memref.load %arg7[%c119_386] : memref<144xf32, #tpu.memory_space<smem>>
    %c120_387 = arith.constant 120 : index
    %1480 = memref.load %arg7[%c120_387] : memref<144xf32, #tpu.memory_space<smem>>
    %c121_388 = arith.constant 121 : index
    %1481 = memref.load %arg7[%c121_388] : memref<144xf32, #tpu.memory_space<smem>>
    %c122_389 = arith.constant 122 : index
    %1482 = memref.load %arg7[%c122_389] : memref<144xf32, #tpu.memory_space<smem>>
    %c123_390 = arith.constant 123 : index
    %1483 = memref.load %arg7[%c123_390] : memref<144xf32, #tpu.memory_space<smem>>
    %c124_391 = arith.constant 124 : index
    %1484 = memref.load %arg7[%c124_391] : memref<144xf32, #tpu.memory_space<smem>>
    %c125_392 = arith.constant 125 : index
    %1485 = memref.load %arg7[%c125_392] : memref<144xf32, #tpu.memory_space<smem>>
    %c126_393 = arith.constant 126 : index
    %1486 = memref.load %arg7[%c126_393] : memref<144xf32, #tpu.memory_space<smem>>
    %c127_394 = arith.constant 127 : index
    %1487 = memref.load %arg7[%c127_394] : memref<144xf32, #tpu.memory_space<smem>>
    %c128_395 = arith.constant 128 : index
    %1488 = memref.load %arg7[%c128_395] : memref<144xf32, #tpu.memory_space<smem>>
    %c129_396 = arith.constant 129 : index
    %1489 = memref.load %arg7[%c129_396] : memref<144xf32, #tpu.memory_space<smem>>
    %c130_397 = arith.constant 130 : index
    %1490 = memref.load %arg7[%c130_397] : memref<144xf32, #tpu.memory_space<smem>>
    %c131_398 = arith.constant 131 : index
    %1491 = memref.load %arg7[%c131_398] : memref<144xf32, #tpu.memory_space<smem>>
    %c132_399 = arith.constant 132 : index
    %1492 = memref.load %arg7[%c132_399] : memref<144xf32, #tpu.memory_space<smem>>
    %c133_400 = arith.constant 133 : index
    %1493 = memref.load %arg7[%c133_400] : memref<144xf32, #tpu.memory_space<smem>>
    %c134_401 = arith.constant 134 : index
    %1494 = memref.load %arg7[%c134_401] : memref<144xf32, #tpu.memory_space<smem>>
    %c135_402 = arith.constant 135 : index
    %1495 = memref.load %arg7[%c135_402] : memref<144xf32, #tpu.memory_space<smem>>
    %c136_403 = arith.constant 136 : index
    %1496 = memref.load %arg7[%c136_403] : memref<144xf32, #tpu.memory_space<smem>>
    %c137_404 = arith.constant 137 : index
    %1497 = memref.load %arg7[%c137_404] : memref<144xf32, #tpu.memory_space<smem>>
    %c138_405 = arith.constant 138 : index
    %1498 = memref.load %arg7[%c138_405] : memref<144xf32, #tpu.memory_space<smem>>
    %c139_406 = arith.constant 139 : index
    %1499 = memref.load %arg7[%c139_406] : memref<144xf32, #tpu.memory_space<smem>>
    %c140_407 = arith.constant 140 : index
    %1500 = memref.load %arg7[%c140_407] : memref<144xf32, #tpu.memory_space<smem>>
    %c141_408 = arith.constant 141 : index
    %1501 = memref.load %arg7[%c141_408] : memref<144xf32, #tpu.memory_space<smem>>
    %c142_409 = arith.constant 142 : index
    %1502 = memref.load %arg7[%c142_409] : memref<144xf32, #tpu.memory_space<smem>>
    %c143_410 = arith.constant 143 : index
    %1503 = memref.load %arg7[%c143_410] : memref<144xf32, #tpu.memory_space<smem>>
    %c0_411 = arith.constant 0 : index
    %1504 = memref.load %arg8[%c0_411] : memref<4xf32, #tpu.memory_space<smem>>
    %c1_412 = arith.constant 1 : index
    %1505 = memref.load %arg8[%c1_412] : memref<4xf32, #tpu.memory_space<smem>>
    %c2_413 = arith.constant 2 : index
    %1506 = memref.load %arg8[%c2_413] : memref<4xf32, #tpu.memory_space<smem>>
    %c3_414 = arith.constant 3 : index
    %1507 = memref.load %arg8[%c3_414] : memref<4xf32, #tpu.memory_space<smem>>
    %c0_415 = arith.constant 0 : index
    %c0_416 = arith.constant 0 : index
    %1508 = vector.load %arg2[%c0_415, %c0_416] : memref<9x256xf32, #tpu.memory_space<vmem>>, vector<1x256xf32>
    %c17_i32_417 = arith.constant 17 : i32
    %1509 = tpu.dynamic_rotate %1344 by %c17_i32_417 dim 1 : vector<1x256xf32>, i32 -> vector<1x256xf32>
    %1510 = arith.mulf %1509, %1508 : vector<1x256xf32>
    %1511 = vector.broadcast %1360 : f32 to vector<1x256xf32>
    %1512 = arith.mulf %1511, %1510 : vector<1x256xf32>
    %1513 = vector.broadcast %1504 : f32 to vector<1x256xf32>
    %1514 = arith.addf %1512, %1513 : vector<1x256xf32>
    %1515 = vector.broadcast %1361 : f32 to vector<1x256xf32>
    %1516 = arith.mulf %1515, %1510 : vector<1x256xf32>
    %1517 = vector.broadcast %1505 : f32 to vector<1x256xf32>
    %1518 = arith.addf %1516, %1517 : vector<1x256xf32>
    %1519 = vector.broadcast %1362 : f32 to vector<1x256xf32>
    %1520 = arith.mulf %1519, %1510 : vector<1x256xf32>
    %1521 = vector.broadcast %1506 : f32 to vector<1x256xf32>
    %1522 = arith.addf %1520, %1521 : vector<1x256xf32>
    %1523 = vector.broadcast %1363 : f32 to vector<1x256xf32>
    %1524 = arith.mulf %1523, %1510 : vector<1x256xf32>
    %1525 = vector.broadcast %1507 : f32 to vector<1x256xf32>
    %1526 = arith.addf %1524, %1525 : vector<1x256xf32>
    %c17_i32_418 = arith.constant 17 : i32
    %1527 = tpu.dynamic_rotate %1349 by %c17_i32_418 dim 1 : vector<1x256xf32>, i32 -> vector<1x256xf32>
    %1528 = arith.mulf %1527, %1508 : vector<1x256xf32>
    %1529 = vector.broadcast %1364 : f32 to vector<1x256xf32>
    %1530 = arith.mulf %1529, %1528 : vector<1x256xf32>
    %1531 = arith.addf %1514, %1530 : vector<1x256xf32>
    %1532 = vector.broadcast %1365 : f32 to vector<1x256xf32>
    %1533 = arith.mulf %1532, %1528 : vector<1x256xf32>
    %1534 = arith.addf %1518, %1533 : vector<1x256xf32>
    %1535 = vector.broadcast %1366 : f32 to vector<1x256xf32>
    %1536 = arith.mulf %1535, %1528 : vector<1x256xf32>
    %1537 = arith.addf %1522, %1536 : vector<1x256xf32>
    %1538 = vector.broadcast %1367 : f32 to vector<1x256xf32>
    %1539 = arith.mulf %1538, %1528 : vector<1x256xf32>
    %1540 = arith.addf %1526, %1539 : vector<1x256xf32>
    %c17_i32_419 = arith.constant 17 : i32
    %1541 = tpu.dynamic_rotate %1354 by %c17_i32_419 dim 1 : vector<1x256xf32>, i32 -> vector<1x256xf32>
    %1542 = arith.mulf %1541, %1508 : vector<1x256xf32>
    %1543 = vector.broadcast %1368 : f32 to vector<1x256xf32>
    %1544 = arith.mulf %1543, %1542 : vector<1x256xf32>
    %1545 = arith.addf %1531, %1544 : vector<1x256xf32>
    %1546 = vector.broadcast %1369 : f32 to vector<1x256xf32>
    %1547 = arith.mulf %1546, %1542 : vector<1x256xf32>
    %1548 = arith.addf %1534, %1547 : vector<1x256xf32>
    %1549 = vector.broadcast %1370 : f32 to vector<1x256xf32>
    %1550 = arith.mulf %1549, %1542 : vector<1x256xf32>
    %1551 = arith.addf %1537, %1550 : vector<1x256xf32>
    %1552 = vector.broadcast %1371 : f32 to vector<1x256xf32>
    %1553 = arith.mulf %1552, %1542 : vector<1x256xf32>
    %1554 = arith.addf %1540, %1553 : vector<1x256xf32>
    %c17_i32_420 = arith.constant 17 : i32
    %1555 = tpu.dynamic_rotate %1359 by %c17_i32_420 dim 1 : vector<1x256xf32>, i32 -> vector<1x256xf32>
    %1556 = arith.mulf %1555, %1508 : vector<1x256xf32>
    %1557 = vector.broadcast %1372 : f32 to vector<1x256xf32>
    %1558 = arith.mulf %1557, %1556 : vector<1x256xf32>
    %1559 = arith.addf %1545, %1558 : vector<1x256xf32>
    %1560 = vector.broadcast %1373 : f32 to vector<1x256xf32>
    %1561 = arith.mulf %1560, %1556 : vector<1x256xf32>
    %1562 = arith.addf %1548, %1561 : vector<1x256xf32>
    %1563 = vector.broadcast %1374 : f32 to vector<1x256xf32>
    %1564 = arith.mulf %1563, %1556 : vector<1x256xf32>
    %1565 = arith.addf %1551, %1564 : vector<1x256xf32>
    %1566 = vector.broadcast %1375 : f32 to vector<1x256xf32>
    %1567 = arith.mulf %1566, %1556 : vector<1x256xf32>
    %1568 = arith.addf %1554, %1567 : vector<1x256xf32>
    %c1_421 = arith.constant 1 : index
    %c0_422 = arith.constant 0 : index
    %1569 = vector.load %arg2[%c1_421, %c0_422] : memref<9x256xf32, #tpu.memory_space<vmem>>, vector<1x256xf32>
    %c16_i32_423 = arith.constant 16 : i32
    %1570 = tpu.dynamic_rotate %1344 by %c16_i32_423 dim 1 : vector<1x256xf32>, i32 -> vector<1x256xf32>
    %1571 = arith.mulf %1570, %1569 : vector<1x256xf32>
    %1572 = vector.broadcast %1376 : f32 to vector<1x256xf32>
    %1573 = arith.mulf %1572, %1571 : vector<1x256xf32>
    %1574 = arith.addf %1559, %1573 : vector<1x256xf32>
    %1575 = vector.broadcast %1377 : f32 to vector<1x256xf32>
    %1576 = arith.mulf %1575, %1571 : vector<1x256xf32>
    %1577 = arith.addf %1562, %1576 : vector<1x256xf32>
    %1578 = vector.broadcast %1378 : f32 to vector<1x256xf32>
    %1579 = arith.mulf %1578, %1571 : vector<1x256xf32>
    %1580 = arith.addf %1565, %1579 : vector<1x256xf32>
    %1581 = vector.broadcast %1379 : f32 to vector<1x256xf32>
    %1582 = arith.mulf %1581, %1571 : vector<1x256xf32>
    %1583 = arith.addf %1568, %1582 : vector<1x256xf32>
    %c16_i32_424 = arith.constant 16 : i32
    %1584 = tpu.dynamic_rotate %1349 by %c16_i32_424 dim 1 : vector<1x256xf32>, i32 -> vector<1x256xf32>
    %1585 = arith.mulf %1584, %1569 : vector<1x256xf32>
    %1586 = vector.broadcast %1380 : f32 to vector<1x256xf32>
    %1587 = arith.mulf %1586, %1585 : vector<1x256xf32>
    %1588 = arith.addf %1574, %1587 : vector<1x256xf32>
    %1589 = vector.broadcast %1381 : f32 to vector<1x256xf32>
    %1590 = arith.mulf %1589, %1585 : vector<1x256xf32>
    %1591 = arith.addf %1577, %1590 : vector<1x256xf32>
    %1592 = vector.broadcast %1382 : f32 to vector<1x256xf32>
    %1593 = arith.mulf %1592, %1585 : vector<1x256xf32>
    %1594 = arith.addf %1580, %1593 : vector<1x256xf32>
    %1595 = vector.broadcast %1383 : f32 to vector<1x256xf32>
    %1596 = arith.mulf %1595, %1585 : vector<1x256xf32>
    %1597 = arith.addf %1583, %1596 : vector<1x256xf32>
    %c16_i32_425 = arith.constant 16 : i32
    %1598 = tpu.dynamic_rotate %1354 by %c16_i32_425 dim 1 : vector<1x256xf32>, i32 -> vector<1x256xf32>
    %1599 = arith.mulf %1598, %1569 : vector<1x256xf32>
    %1600 = vector.broadcast %1384 : f32 to vector<1x256xf32>
    %1601 = arith.mulf %1600, %1599 : vector<1x256xf32>
    %1602 = arith.addf %1588, %1601 : vector<1x256xf32>
    %1603 = vector.broadcast %1385 : f32 to vector<1x256xf32>
    %1604 = arith.mulf %1603, %1599 : vector<1x256xf32>
    %1605 = arith.addf %1591, %1604 : vector<1x256xf32>
    %1606 = vector.broadcast %1386 : f32 to vector<1x256xf32>
    %1607 = arith.mulf %1606, %1599 : vector<1x256xf32>
    %1608 = arith.addf %1594, %1607 : vector<1x256xf32>
    %1609 = vector.broadcast %1387 : f32 to vector<1x256xf32>
    %1610 = arith.mulf %1609, %1599 : vector<1x256xf32>
    %1611 = arith.addf %1597, %1610 : vector<1x256xf32>
    %c16_i32_426 = arith.constant 16 : i32
    %1612 = tpu.dynamic_rotate %1359 by %c16_i32_426 dim 1 : vector<1x256xf32>, i32 -> vector<1x256xf32>
    %1613 = arith.mulf %1612, %1569 : vector<1x256xf32>
    %1614 = vector.broadcast %1388 : f32 to vector<1x256xf32>
    %1615 = arith.mulf %1614, %1613 : vector<1x256xf32>
    %1616 = arith.addf %1602, %1615 : vector<1x256xf32>
    %1617 = vector.broadcast %1389 : f32 to vector<1x256xf32>
    %1618 = arith.mulf %1617, %1613 : vector<1x256xf32>
    %1619 = arith.addf %1605, %1618 : vector<1x256xf32>
    %1620 = vector.broadcast %1390 : f32 to vector<1x256xf32>
    %1621 = arith.mulf %1620, %1613 : vector<1x256xf32>
    %1622 = arith.addf %1608, %1621 : vector<1x256xf32>
    %1623 = vector.broadcast %1391 : f32 to vector<1x256xf32>
    %1624 = arith.mulf %1623, %1613 : vector<1x256xf32>
    %1625 = arith.addf %1611, %1624 : vector<1x256xf32>
    %c2_427 = arith.constant 2 : index
    %c0_428 = arith.constant 0 : index
    %1626 = vector.load %arg2[%c2_427, %c0_428] : memref<9x256xf32, #tpu.memory_space<vmem>>, vector<1x256xf32>
    %c15_i32_429 = arith.constant 15 : i32
    %1627 = tpu.dynamic_rotate %1344 by %c15_i32_429 dim 1 : vector<1x256xf32>, i32 -> vector<1x256xf32>
    %1628 = arith.mulf %1627, %1626 : vector<1x256xf32>
    %1629 = vector.broadcast %1392 : f32 to vector<1x256xf32>
    %1630 = arith.mulf %1629, %1628 : vector<1x256xf32>
    %1631 = arith.addf %1616, %1630 : vector<1x256xf32>
    %1632 = vector.broadcast %1393 : f32 to vector<1x256xf32>
    %1633 = arith.mulf %1632, %1628 : vector<1x256xf32>
    %1634 = arith.addf %1619, %1633 : vector<1x256xf32>
    %1635 = vector.broadcast %1394 : f32 to vector<1x256xf32>
    %1636 = arith.mulf %1635, %1628 : vector<1x256xf32>
    %1637 = arith.addf %1622, %1636 : vector<1x256xf32>
    %1638 = vector.broadcast %1395 : f32 to vector<1x256xf32>
    %1639 = arith.mulf %1638, %1628 : vector<1x256xf32>
    %1640 = arith.addf %1625, %1639 : vector<1x256xf32>
    %c15_i32_430 = arith.constant 15 : i32
    %1641 = tpu.dynamic_rotate %1349 by %c15_i32_430 dim 1 : vector<1x256xf32>, i32 -> vector<1x256xf32>
    %1642 = arith.mulf %1641, %1626 : vector<1x256xf32>
    %1643 = vector.broadcast %1396 : f32 to vector<1x256xf32>
    %1644 = arith.mulf %1643, %1642 : vector<1x256xf32>
    %1645 = arith.addf %1631, %1644 : vector<1x256xf32>
    %1646 = vector.broadcast %1397 : f32 to vector<1x256xf32>
    %1647 = arith.mulf %1646, %1642 : vector<1x256xf32>
    %1648 = arith.addf %1634, %1647 : vector<1x256xf32>
    %1649 = vector.broadcast %1398 : f32 to vector<1x256xf32>
    %1650 = arith.mulf %1649, %1642 : vector<1x256xf32>
    %1651 = arith.addf %1637, %1650 : vector<1x256xf32>
    %1652 = vector.broadcast %1399 : f32 to vector<1x256xf32>
    %1653 = arith.mulf %1652, %1642 : vector<1x256xf32>
    %1654 = arith.addf %1640, %1653 : vector<1x256xf32>
    %c15_i32_431 = arith.constant 15 : i32
    %1655 = tpu.dynamic_rotate %1354 by %c15_i32_431 dim 1 : vector<1x256xf32>, i32 -> vector<1x256xf32>
    %1656 = arith.mulf %1655, %1626 : vector<1x256xf32>
    %1657 = vector.broadcast %1400 : f32 to vector<1x256xf32>
    %1658 = arith.mulf %1657, %1656 : vector<1x256xf32>
    %1659 = arith.addf %1645, %1658 : vector<1x256xf32>
    %1660 = vector.broadcast %1401 : f32 to vector<1x256xf32>
    %1661 = arith.mulf %1660, %1656 : vector<1x256xf32>
    %1662 = arith.addf %1648, %1661 : vector<1x256xf32>
    %1663 = vector.broadcast %1402 : f32 to vector<1x256xf32>
    %1664 = arith.mulf %1663, %1656 : vector<1x256xf32>
    %1665 = arith.addf %1651, %1664 : vector<1x256xf32>
    %1666 = vector.broadcast %1403 : f32 to vector<1x256xf32>
    %1667 = arith.mulf %1666, %1656 : vector<1x256xf32>
    %1668 = arith.addf %1654, %1667 : vector<1x256xf32>
    %c15_i32_432 = arith.constant 15 : i32
    %1669 = tpu.dynamic_rotate %1359 by %c15_i32_432 dim 1 : vector<1x256xf32>, i32 -> vector<1x256xf32>
    %1670 = arith.mulf %1669, %1626 : vector<1x256xf32>
    %1671 = vector.broadcast %1404 : f32 to vector<1x256xf32>
    %1672 = arith.mulf %1671, %1670 : vector<1x256xf32>
    %1673 = arith.addf %1659, %1672 : vector<1x256xf32>
    %1674 = vector.broadcast %1405 : f32 to vector<1x256xf32>
    %1675 = arith.mulf %1674, %1670 : vector<1x256xf32>
    %1676 = arith.addf %1662, %1675 : vector<1x256xf32>
    %1677 = vector.broadcast %1406 : f32 to vector<1x256xf32>
    %1678 = arith.mulf %1677, %1670 : vector<1x256xf32>
    %1679 = arith.addf %1665, %1678 : vector<1x256xf32>
    %1680 = vector.broadcast %1407 : f32 to vector<1x256xf32>
    %1681 = arith.mulf %1680, %1670 : vector<1x256xf32>
    %1682 = arith.addf %1668, %1681 : vector<1x256xf32>
    %c3_433 = arith.constant 3 : index
    %c0_434 = arith.constant 0 : index
    %1683 = vector.load %arg2[%c3_433, %c0_434] : memref<9x256xf32, #tpu.memory_space<vmem>>, vector<1x256xf32>
    %c1_i32_435 = arith.constant 1 : i32
    %1684 = tpu.dynamic_rotate %1344 by %c1_i32_435 dim 1 : vector<1x256xf32>, i32 -> vector<1x256xf32>
    %1685 = arith.mulf %1684, %1683 : vector<1x256xf32>
    %1686 = vector.broadcast %1408 : f32 to vector<1x256xf32>
    %1687 = arith.mulf %1686, %1685 : vector<1x256xf32>
    %1688 = arith.addf %1673, %1687 : vector<1x256xf32>
    %1689 = vector.broadcast %1409 : f32 to vector<1x256xf32>
    %1690 = arith.mulf %1689, %1685 : vector<1x256xf32>
    %1691 = arith.addf %1676, %1690 : vector<1x256xf32>
    %1692 = vector.broadcast %1410 : f32 to vector<1x256xf32>
    %1693 = arith.mulf %1692, %1685 : vector<1x256xf32>
    %1694 = arith.addf %1679, %1693 : vector<1x256xf32>
    %1695 = vector.broadcast %1411 : f32 to vector<1x256xf32>
    %1696 = arith.mulf %1695, %1685 : vector<1x256xf32>
    %1697 = arith.addf %1682, %1696 : vector<1x256xf32>
    %c1_i32_436 = arith.constant 1 : i32
    %1698 = tpu.dynamic_rotate %1349 by %c1_i32_436 dim 1 : vector<1x256xf32>, i32 -> vector<1x256xf32>
    %1699 = arith.mulf %1698, %1683 : vector<1x256xf32>
    %1700 = vector.broadcast %1412 : f32 to vector<1x256xf32>
    %1701 = arith.mulf %1700, %1699 : vector<1x256xf32>
    %1702 = arith.addf %1688, %1701 : vector<1x256xf32>
    %1703 = vector.broadcast %1413 : f32 to vector<1x256xf32>
    %1704 = arith.mulf %1703, %1699 : vector<1x256xf32>
    %1705 = arith.addf %1691, %1704 : vector<1x256xf32>
    %1706 = vector.broadcast %1414 : f32 to vector<1x256xf32>
    %1707 = arith.mulf %1706, %1699 : vector<1x256xf32>
    %1708 = arith.addf %1694, %1707 : vector<1x256xf32>
    %1709 = vector.broadcast %1415 : f32 to vector<1x256xf32>
    %1710 = arith.mulf %1709, %1699 : vector<1x256xf32>
    %1711 = arith.addf %1697, %1710 : vector<1x256xf32>
    %c1_i32_437 = arith.constant 1 : i32
    %1712 = tpu.dynamic_rotate %1354 by %c1_i32_437 dim 1 : vector<1x256xf32>, i32 -> vector<1x256xf32>
    %1713 = arith.mulf %1712, %1683 : vector<1x256xf32>
    %1714 = vector.broadcast %1416 : f32 to vector<1x256xf32>
    %1715 = arith.mulf %1714, %1713 : vector<1x256xf32>
    %1716 = arith.addf %1702, %1715 : vector<1x256xf32>
    %1717 = vector.broadcast %1417 : f32 to vector<1x256xf32>
    %1718 = arith.mulf %1717, %1713 : vector<1x256xf32>
    %1719 = arith.addf %1705, %1718 : vector<1x256xf32>
    %1720 = vector.broadcast %1418 : f32 to vector<1x256xf32>
    %1721 = arith.mulf %1720, %1713 : vector<1x256xf32>
    %1722 = arith.addf %1708, %1721 : vector<1x256xf32>
    %1723 = vector.broadcast %1419 : f32 to vector<1x256xf32>
    %1724 = arith.mulf %1723, %1713 : vector<1x256xf32>
    %1725 = arith.addf %1711, %1724 : vector<1x256xf32>
    %c1_i32_438 = arith.constant 1 : i32
    %1726 = tpu.dynamic_rotate %1359 by %c1_i32_438 dim 1 : vector<1x256xf32>, i32 -> vector<1x256xf32>
    %1727 = arith.mulf %1726, %1683 : vector<1x256xf32>
    %1728 = vector.broadcast %1420 : f32 to vector<1x256xf32>
    %1729 = arith.mulf %1728, %1727 : vector<1x256xf32>
    %1730 = arith.addf %1716, %1729 : vector<1x256xf32>
    %1731 = vector.broadcast %1421 : f32 to vector<1x256xf32>
    %1732 = arith.mulf %1731, %1727 : vector<1x256xf32>
    %1733 = arith.addf %1719, %1732 : vector<1x256xf32>
    %1734 = vector.broadcast %1422 : f32 to vector<1x256xf32>
    %1735 = arith.mulf %1734, %1727 : vector<1x256xf32>
    %1736 = arith.addf %1722, %1735 : vector<1x256xf32>
    %1737 = vector.broadcast %1423 : f32 to vector<1x256xf32>
    %1738 = arith.mulf %1737, %1727 : vector<1x256xf32>
    %1739 = arith.addf %1725, %1738 : vector<1x256xf32>
    %1740 = vector.broadcast %1424 : f32 to vector<1x256xf32>
    %1741 = arith.mulf %1740, %1344 : vector<1x256xf32>
    %1742 = arith.addf %1730, %1741 : vector<1x256xf32>
    %1743 = vector.broadcast %1425 : f32 to vector<1x256xf32>
    %1744 = arith.mulf %1743, %1344 : vector<1x256xf32>
    %1745 = arith.addf %1733, %1744 : vector<1x256xf32>
    %1746 = vector.broadcast %1426 : f32 to vector<1x256xf32>
    %1747 = arith.mulf %1746, %1344 : vector<1x256xf32>
    %1748 = arith.addf %1736, %1747 : vector<1x256xf32>
    %1749 = vector.broadcast %1427 : f32 to vector<1x256xf32>
    %1750 = arith.mulf %1749, %1344 : vector<1x256xf32>
    %1751 = arith.addf %1739, %1750 : vector<1x256xf32>
    %1752 = vector.broadcast %1428 : f32 to vector<1x256xf32>
    %1753 = arith.mulf %1752, %1349 : vector<1x256xf32>
    %1754 = arith.addf %1742, %1753 : vector<1x256xf32>
    %1755 = vector.broadcast %1429 : f32 to vector<1x256xf32>
    %1756 = arith.mulf %1755, %1349 : vector<1x256xf32>
    %1757 = arith.addf %1745, %1756 : vector<1x256xf32>
    %1758 = vector.broadcast %1430 : f32 to vector<1x256xf32>
    %1759 = arith.mulf %1758, %1349 : vector<1x256xf32>
    %1760 = arith.addf %1748, %1759 : vector<1x256xf32>
    %1761 = vector.broadcast %1431 : f32 to vector<1x256xf32>
    %1762 = arith.mulf %1761, %1349 : vector<1x256xf32>
    %1763 = arith.addf %1751, %1762 : vector<1x256xf32>
    %1764 = vector.broadcast %1432 : f32 to vector<1x256xf32>
    %1765 = arith.mulf %1764, %1354 : vector<1x256xf32>
    %1766 = arith.addf %1754, %1765 : vector<1x256xf32>
    %1767 = vector.broadcast %1433 : f32 to vector<1x256xf32>
    %1768 = arith.mulf %1767, %1354 : vector<1x256xf32>
    %1769 = arith.addf %1757, %1768 : vector<1x256xf32>
    %1770 = vector.broadcast %1434 : f32 to vector<1x256xf32>
    %1771 = arith.mulf %1770, %1354 : vector<1x256xf32>
    %1772 = arith.addf %1760, %1771 : vector<1x256xf32>
    %1773 = vector.broadcast %1435 : f32 to vector<1x256xf32>
    %1774 = arith.mulf %1773, %1354 : vector<1x256xf32>
    %1775 = arith.addf %1763, %1774 : vector<1x256xf32>
    %1776 = vector.broadcast %1436 : f32 to vector<1x256xf32>
    %1777 = arith.mulf %1776, %1359 : vector<1x256xf32>
    %1778 = arith.addf %1766, %1777 : vector<1x256xf32>
    %1779 = vector.broadcast %1437 : f32 to vector<1x256xf32>
    %1780 = arith.mulf %1779, %1359 : vector<1x256xf32>
    %1781 = arith.addf %1769, %1780 : vector<1x256xf32>
    %1782 = vector.broadcast %1438 : f32 to vector<1x256xf32>
    %1783 = arith.mulf %1782, %1359 : vector<1x256xf32>
    %1784 = arith.addf %1772, %1783 : vector<1x256xf32>
    %1785 = vector.broadcast %1439 : f32 to vector<1x256xf32>
    %1786 = arith.mulf %1785, %1359 : vector<1x256xf32>
    %1787 = arith.addf %1775, %1786 : vector<1x256xf32>
    %c5_439 = arith.constant 5 : index
    %c0_440 = arith.constant 0 : index
    %1788 = vector.load %arg2[%c5_439, %c0_440] : memref<9x256xf32, #tpu.memory_space<vmem>>, vector<1x256xf32>
    %c255_i32_441 = arith.constant 255 : i32
    %1789 = tpu.dynamic_rotate %1344 by %c255_i32_441 dim 1 : vector<1x256xf32>, i32 -> vector<1x256xf32>
    %1790 = arith.mulf %1789, %1788 : vector<1x256xf32>
    %1791 = vector.broadcast %1440 : f32 to vector<1x256xf32>
    %1792 = arith.mulf %1791, %1790 : vector<1x256xf32>
    %1793 = arith.addf %1778, %1792 : vector<1x256xf32>
    %1794 = vector.broadcast %1441 : f32 to vector<1x256xf32>
    %1795 = arith.mulf %1794, %1790 : vector<1x256xf32>
    %1796 = arith.addf %1781, %1795 : vector<1x256xf32>
    %1797 = vector.broadcast %1442 : f32 to vector<1x256xf32>
    %1798 = arith.mulf %1797, %1790 : vector<1x256xf32>
    %1799 = arith.addf %1784, %1798 : vector<1x256xf32>
    %1800 = vector.broadcast %1443 : f32 to vector<1x256xf32>
    %1801 = arith.mulf %1800, %1790 : vector<1x256xf32>
    %1802 = arith.addf %1787, %1801 : vector<1x256xf32>
    %c255_i32_442 = arith.constant 255 : i32
    %1803 = tpu.dynamic_rotate %1349 by %c255_i32_442 dim 1 : vector<1x256xf32>, i32 -> vector<1x256xf32>
    %1804 = arith.mulf %1803, %1788 : vector<1x256xf32>
    %1805 = vector.broadcast %1444 : f32 to vector<1x256xf32>
    %1806 = arith.mulf %1805, %1804 : vector<1x256xf32>
    %1807 = arith.addf %1793, %1806 : vector<1x256xf32>
    %1808 = vector.broadcast %1445 : f32 to vector<1x256xf32>
    %1809 = arith.mulf %1808, %1804 : vector<1x256xf32>
    %1810 = arith.addf %1796, %1809 : vector<1x256xf32>
    %1811 = vector.broadcast %1446 : f32 to vector<1x256xf32>
    %1812 = arith.mulf %1811, %1804 : vector<1x256xf32>
    %1813 = arith.addf %1799, %1812 : vector<1x256xf32>
    %1814 = vector.broadcast %1447 : f32 to vector<1x256xf32>
    %1815 = arith.mulf %1814, %1804 : vector<1x256xf32>
    %1816 = arith.addf %1802, %1815 : vector<1x256xf32>
    %c255_i32_443 = arith.constant 255 : i32
    %1817 = tpu.dynamic_rotate %1354 by %c255_i32_443 dim 1 : vector<1x256xf32>, i32 -> vector<1x256xf32>
    %1818 = arith.mulf %1817, %1788 : vector<1x256xf32>
    %1819 = vector.broadcast %1448 : f32 to vector<1x256xf32>
    %1820 = arith.mulf %1819, %1818 : vector<1x256xf32>
    %1821 = arith.addf %1807, %1820 : vector<1x256xf32>
    %1822 = vector.broadcast %1449 : f32 to vector<1x256xf32>
    %1823 = arith.mulf %1822, %1818 : vector<1x256xf32>
    %1824 = arith.addf %1810, %1823 : vector<1x256xf32>
    %1825 = vector.broadcast %1450 : f32 to vector<1x256xf32>
    %1826 = arith.mulf %1825, %1818 : vector<1x256xf32>
    %1827 = arith.addf %1813, %1826 : vector<1x256xf32>
    %1828 = vector.broadcast %1451 : f32 to vector<1x256xf32>
    %1829 = arith.mulf %1828, %1818 : vector<1x256xf32>
    %1830 = arith.addf %1816, %1829 : vector<1x256xf32>
    %c255_i32_444 = arith.constant 255 : i32
    %1831 = tpu.dynamic_rotate %1359 by %c255_i32_444 dim 1 : vector<1x256xf32>, i32 -> vector<1x256xf32>
    %1832 = arith.mulf %1831, %1788 : vector<1x256xf32>
    %1833 = vector.broadcast %1452 : f32 to vector<1x256xf32>
    %1834 = arith.mulf %1833, %1832 : vector<1x256xf32>
    %1835 = arith.addf %1821, %1834 : vector<1x256xf32>
    %1836 = vector.broadcast %1453 : f32 to vector<1x256xf32>
    %1837 = arith.mulf %1836, %1832 : vector<1x256xf32>
    %1838 = arith.addf %1824, %1837 : vector<1x256xf32>
    %1839 = vector.broadcast %1454 : f32 to vector<1x256xf32>
    %1840 = arith.mulf %1839, %1832 : vector<1x256xf32>
    %1841 = arith.addf %1827, %1840 : vector<1x256xf32>
    %1842 = vector.broadcast %1455 : f32 to vector<1x256xf32>
    %1843 = arith.mulf %1842, %1832 : vector<1x256xf32>
    %1844 = arith.addf %1830, %1843 : vector<1x256xf32>
    %c6_445 = arith.constant 6 : index
    %c0_446 = arith.constant 0 : index
    %1845 = vector.load %arg2[%c6_445, %c0_446] : memref<9x256xf32, #tpu.memory_space<vmem>>, vector<1x256xf32>
    %c241_i32_447 = arith.constant 241 : i32
    %1846 = tpu.dynamic_rotate %1344 by %c241_i32_447 dim 1 : vector<1x256xf32>, i32 -> vector<1x256xf32>
    %1847 = arith.mulf %1846, %1845 : vector<1x256xf32>
    %1848 = vector.broadcast %1456 : f32 to vector<1x256xf32>
    %1849 = arith.mulf %1848, %1847 : vector<1x256xf32>
    %1850 = arith.addf %1835, %1849 : vector<1x256xf32>
    %1851 = vector.broadcast %1457 : f32 to vector<1x256xf32>
    %1852 = arith.mulf %1851, %1847 : vector<1x256xf32>
    %1853 = arith.addf %1838, %1852 : vector<1x256xf32>
    %1854 = vector.broadcast %1458 : f32 to vector<1x256xf32>
    %1855 = arith.mulf %1854, %1847 : vector<1x256xf32>
    %1856 = arith.addf %1841, %1855 : vector<1x256xf32>
    %1857 = vector.broadcast %1459 : f32 to vector<1x256xf32>
    %1858 = arith.mulf %1857, %1847 : vector<1x256xf32>
    %1859 = arith.addf %1844, %1858 : vector<1x256xf32>
    %c241_i32_448 = arith.constant 241 : i32
    %1860 = tpu.dynamic_rotate %1349 by %c241_i32_448 dim 1 : vector<1x256xf32>, i32 -> vector<1x256xf32>
    %1861 = arith.mulf %1860, %1845 : vector<1x256xf32>
    %1862 = vector.broadcast %1460 : f32 to vector<1x256xf32>
    %1863 = arith.mulf %1862, %1861 : vector<1x256xf32>
    %1864 = arith.addf %1850, %1863 : vector<1x256xf32>
    %1865 = vector.broadcast %1461 : f32 to vector<1x256xf32>
    %1866 = arith.mulf %1865, %1861 : vector<1x256xf32>
    %1867 = arith.addf %1853, %1866 : vector<1x256xf32>
    %1868 = vector.broadcast %1462 : f32 to vector<1x256xf32>
    %1869 = arith.mulf %1868, %1861 : vector<1x256xf32>
    %1870 = arith.addf %1856, %1869 : vector<1x256xf32>
    %1871 = vector.broadcast %1463 : f32 to vector<1x256xf32>
    %1872 = arith.mulf %1871, %1861 : vector<1x256xf32>
    %1873 = arith.addf %1859, %1872 : vector<1x256xf32>
    %c241_i32_449 = arith.constant 241 : i32
    %1874 = tpu.dynamic_rotate %1354 by %c241_i32_449 dim 1 : vector<1x256xf32>, i32 -> vector<1x256xf32>
    %1875 = arith.mulf %1874, %1845 : vector<1x256xf32>
    %1876 = vector.broadcast %1464 : f32 to vector<1x256xf32>
    %1877 = arith.mulf %1876, %1875 : vector<1x256xf32>
    %1878 = arith.addf %1864, %1877 : vector<1x256xf32>
    %1879 = vector.broadcast %1465 : f32 to vector<1x256xf32>
    %1880 = arith.mulf %1879, %1875 : vector<1x256xf32>
    %1881 = arith.addf %1867, %1880 : vector<1x256xf32>
    %1882 = vector.broadcast %1466 : f32 to vector<1x256xf32>
    %1883 = arith.mulf %1882, %1875 : vector<1x256xf32>
    %1884 = arith.addf %1870, %1883 : vector<1x256xf32>
    %1885 = vector.broadcast %1467 : f32 to vector<1x256xf32>
    %1886 = arith.mulf %1885, %1875 : vector<1x256xf32>
    %1887 = arith.addf %1873, %1886 : vector<1x256xf32>
    %c241_i32_450 = arith.constant 241 : i32
    %1888 = tpu.dynamic_rotate %1359 by %c241_i32_450 dim 1 : vector<1x256xf32>, i32 -> vector<1x256xf32>
    %1889 = arith.mulf %1888, %1845 : vector<1x256xf32>
    %1890 = vector.broadcast %1468 : f32 to vector<1x256xf32>
    %1891 = arith.mulf %1890, %1889 : vector<1x256xf32>
    %1892 = arith.addf %1878, %1891 : vector<1x256xf32>
    %1893 = vector.broadcast %1469 : f32 to vector<1x256xf32>
    %1894 = arith.mulf %1893, %1889 : vector<1x256xf32>
    %1895 = arith.addf %1881, %1894 : vector<1x256xf32>
    %1896 = vector.broadcast %1470 : f32 to vector<1x256xf32>
    %1897 = arith.mulf %1896, %1889 : vector<1x256xf32>
    %1898 = arith.addf %1884, %1897 : vector<1x256xf32>
    %1899 = vector.broadcast %1471 : f32 to vector<1x256xf32>
    %1900 = arith.mulf %1899, %1889 : vector<1x256xf32>
    %1901 = arith.addf %1887, %1900 : vector<1x256xf32>
    %c7_451 = arith.constant 7 : index
    %c0_452 = arith.constant 0 : index
    %1902 = vector.load %arg2[%c7_451, %c0_452] : memref<9x256xf32, #tpu.memory_space<vmem>>, vector<1x256xf32>
    %c240_i32_453 = arith.constant 240 : i32
    %1903 = tpu.dynamic_rotate %1344 by %c240_i32_453 dim 1 : vector<1x256xf32>, i32 -> vector<1x256xf32>
    %1904 = arith.mulf %1903, %1902 : vector<1x256xf32>
    %1905 = vector.broadcast %1472 : f32 to vector<1x256xf32>
    %1906 = arith.mulf %1905, %1904 : vector<1x256xf32>
    %1907 = arith.addf %1892, %1906 : vector<1x256xf32>
    %1908 = vector.broadcast %1473 : f32 to vector<1x256xf32>
    %1909 = arith.mulf %1908, %1904 : vector<1x256xf32>
    %1910 = arith.addf %1895, %1909 : vector<1x256xf32>
    %1911 = vector.broadcast %1474 : f32 to vector<1x256xf32>
    %1912 = arith.mulf %1911, %1904 : vector<1x256xf32>
    %1913 = arith.addf %1898, %1912 : vector<1x256xf32>
    %1914 = vector.broadcast %1475 : f32 to vector<1x256xf32>
    %1915 = arith.mulf %1914, %1904 : vector<1x256xf32>
    %1916 = arith.addf %1901, %1915 : vector<1x256xf32>
    %c240_i32_454 = arith.constant 240 : i32
    %1917 = tpu.dynamic_rotate %1349 by %c240_i32_454 dim 1 : vector<1x256xf32>, i32 -> vector<1x256xf32>
    %1918 = arith.mulf %1917, %1902 : vector<1x256xf32>
    %1919 = vector.broadcast %1476 : f32 to vector<1x256xf32>
    %1920 = arith.mulf %1919, %1918 : vector<1x256xf32>
    %1921 = arith.addf %1907, %1920 : vector<1x256xf32>
    %1922 = vector.broadcast %1477 : f32 to vector<1x256xf32>
    %1923 = arith.mulf %1922, %1918 : vector<1x256xf32>
    %1924 = arith.addf %1910, %1923 : vector<1x256xf32>
    %1925 = vector.broadcast %1478 : f32 to vector<1x256xf32>
    %1926 = arith.mulf %1925, %1918 : vector<1x256xf32>
    %1927 = arith.addf %1913, %1926 : vector<1x256xf32>
    %1928 = vector.broadcast %1479 : f32 to vector<1x256xf32>
    %1929 = arith.mulf %1928, %1918 : vector<1x256xf32>
    %1930 = arith.addf %1916, %1929 : vector<1x256xf32>
    %c240_i32_455 = arith.constant 240 : i32
    %1931 = tpu.dynamic_rotate %1354 by %c240_i32_455 dim 1 : vector<1x256xf32>, i32 -> vector<1x256xf32>
    %1932 = arith.mulf %1931, %1902 : vector<1x256xf32>
    %1933 = vector.broadcast %1480 : f32 to vector<1x256xf32>
    %1934 = arith.mulf %1933, %1932 : vector<1x256xf32>
    %1935 = arith.addf %1921, %1934 : vector<1x256xf32>
    %1936 = vector.broadcast %1481 : f32 to vector<1x256xf32>
    %1937 = arith.mulf %1936, %1932 : vector<1x256xf32>
    %1938 = arith.addf %1924, %1937 : vector<1x256xf32>
    %1939 = vector.broadcast %1482 : f32 to vector<1x256xf32>
    %1940 = arith.mulf %1939, %1932 : vector<1x256xf32>
    %1941 = arith.addf %1927, %1940 : vector<1x256xf32>
    %1942 = vector.broadcast %1483 : f32 to vector<1x256xf32>
    %1943 = arith.mulf %1942, %1932 : vector<1x256xf32>
    %1944 = arith.addf %1930, %1943 : vector<1x256xf32>
    %c240_i32_456 = arith.constant 240 : i32
    %1945 = tpu.dynamic_rotate %1359 by %c240_i32_456 dim 1 : vector<1x256xf32>, i32 -> vector<1x256xf32>
    %1946 = arith.mulf %1945, %1902 : vector<1x256xf32>
    %1947 = vector.broadcast %1484 : f32 to vector<1x256xf32>
    %1948 = arith.mulf %1947, %1946 : vector<1x256xf32>
    %1949 = arith.addf %1935, %1948 : vector<1x256xf32>
    %1950 = vector.broadcast %1485 : f32 to vector<1x256xf32>
    %1951 = arith.mulf %1950, %1946 : vector<1x256xf32>
    %1952 = arith.addf %1938, %1951 : vector<1x256xf32>
    %1953 = vector.broadcast %1486 : f32 to vector<1x256xf32>
    %1954 = arith.mulf %1953, %1946 : vector<1x256xf32>
    %1955 = arith.addf %1941, %1954 : vector<1x256xf32>
    %1956 = vector.broadcast %1487 : f32 to vector<1x256xf32>
    %1957 = arith.mulf %1956, %1946 : vector<1x256xf32>
    %1958 = arith.addf %1944, %1957 : vector<1x256xf32>
    %c8_457 = arith.constant 8 : index
    %c0_458 = arith.constant 0 : index
    %1959 = vector.load %arg2[%c8_457, %c0_458] : memref<9x256xf32, #tpu.memory_space<vmem>>, vector<1x256xf32>
    %c239_i32_459 = arith.constant 239 : i32
    %1960 = tpu.dynamic_rotate %1344 by %c239_i32_459 dim 1 : vector<1x256xf32>, i32 -> vector<1x256xf32>
    %1961 = arith.mulf %1960, %1959 : vector<1x256xf32>
    %1962 = vector.broadcast %1488 : f32 to vector<1x256xf32>
    %1963 = arith.mulf %1962, %1961 : vector<1x256xf32>
    %1964 = arith.addf %1949, %1963 : vector<1x256xf32>
    %1965 = vector.broadcast %1489 : f32 to vector<1x256xf32>
    %1966 = arith.mulf %1965, %1961 : vector<1x256xf32>
    %1967 = arith.addf %1952, %1966 : vector<1x256xf32>
    %1968 = vector.broadcast %1490 : f32 to vector<1x256xf32>
    %1969 = arith.mulf %1968, %1961 : vector<1x256xf32>
    %1970 = arith.addf %1955, %1969 : vector<1x256xf32>
    %1971 = vector.broadcast %1491 : f32 to vector<1x256xf32>
    %1972 = arith.mulf %1971, %1961 : vector<1x256xf32>
    %1973 = arith.addf %1958, %1972 : vector<1x256xf32>
    %c239_i32_460 = arith.constant 239 : i32
    %1974 = tpu.dynamic_rotate %1349 by %c239_i32_460 dim 1 : vector<1x256xf32>, i32 -> vector<1x256xf32>
    %1975 = arith.mulf %1974, %1959 : vector<1x256xf32>
    %1976 = vector.broadcast %1492 : f32 to vector<1x256xf32>
    %1977 = arith.mulf %1976, %1975 : vector<1x256xf32>
    %1978 = arith.addf %1964, %1977 : vector<1x256xf32>
    %1979 = vector.broadcast %1493 : f32 to vector<1x256xf32>
    %1980 = arith.mulf %1979, %1975 : vector<1x256xf32>
    %1981 = arith.addf %1967, %1980 : vector<1x256xf32>
    %1982 = vector.broadcast %1494 : f32 to vector<1x256xf32>
    %1983 = arith.mulf %1982, %1975 : vector<1x256xf32>
    %1984 = arith.addf %1970, %1983 : vector<1x256xf32>
    %1985 = vector.broadcast %1495 : f32 to vector<1x256xf32>
    %1986 = arith.mulf %1985, %1975 : vector<1x256xf32>
    %1987 = arith.addf %1973, %1986 : vector<1x256xf32>
    %c239_i32_461 = arith.constant 239 : i32
    %1988 = tpu.dynamic_rotate %1354 by %c239_i32_461 dim 1 : vector<1x256xf32>, i32 -> vector<1x256xf32>
    %1989 = arith.mulf %1988, %1959 : vector<1x256xf32>
    %1990 = vector.broadcast %1496 : f32 to vector<1x256xf32>
    %1991 = arith.mulf %1990, %1989 : vector<1x256xf32>
    %1992 = arith.addf %1978, %1991 : vector<1x256xf32>
    %1993 = vector.broadcast %1497 : f32 to vector<1x256xf32>
    %1994 = arith.mulf %1993, %1989 : vector<1x256xf32>
    %1995 = arith.addf %1981, %1994 : vector<1x256xf32>
    %1996 = vector.broadcast %1498 : f32 to vector<1x256xf32>
    %1997 = arith.mulf %1996, %1989 : vector<1x256xf32>
    %1998 = arith.addf %1984, %1997 : vector<1x256xf32>
    %1999 = vector.broadcast %1499 : f32 to vector<1x256xf32>
    %2000 = arith.mulf %1999, %1989 : vector<1x256xf32>
    %2001 = arith.addf %1987, %2000 : vector<1x256xf32>
    %c239_i32_462 = arith.constant 239 : i32
    %2002 = tpu.dynamic_rotate %1359 by %c239_i32_462 dim 1 : vector<1x256xf32>, i32 -> vector<1x256xf32>
    %2003 = arith.mulf %2002, %1959 : vector<1x256xf32>
    %2004 = vector.broadcast %1500 : f32 to vector<1x256xf32>
    %2005 = arith.mulf %2004, %2003 : vector<1x256xf32>
    %2006 = arith.addf %1992, %2005 : vector<1x256xf32>
    %2007 = vector.broadcast %1501 : f32 to vector<1x256xf32>
    %2008 = arith.mulf %2007, %2003 : vector<1x256xf32>
    %2009 = arith.addf %1995, %2008 : vector<1x256xf32>
    %2010 = vector.broadcast %1502 : f32 to vector<1x256xf32>
    %2011 = arith.mulf %2010, %2003 : vector<1x256xf32>
    %2012 = arith.addf %1998, %2011 : vector<1x256xf32>
    %2013 = vector.broadcast %1503 : f32 to vector<1x256xf32>
    %2014 = arith.mulf %2013, %2003 : vector<1x256xf32>
    %2015 = arith.addf %2001, %2014 : vector<1x256xf32>
    %cst_463 = arith.constant 0.000000e+00 : f32
    %2016 = vector.broadcast %cst_463 : f32 to vector<1x256xf32>
    %2017 = arith.cmpf oge, %2006, %2016 : vector<1x256xf32>
    %cst_464 = arith.constant 1.000000e-01 : f32
    %2018 = vector.broadcast %cst_464 : f32 to vector<1x256xf32>
    %2019 = arith.mulf %2018, %2006 : vector<1x256xf32>
    %2020 = arith.select %2017, %2006, %2019 : vector<1x256xi1>, vector<1x256xf32>
    %cst_465 = arith.constant 0.000000e+00 : f32
    %2021 = vector.broadcast %cst_465 : f32 to vector<1x256xf32>
    %2022 = arith.cmpf oge, %2020, %2021 : vector<1x256xf32>
    %cst_466 = arith.constant 1.000000e-01 : f32
    %2023 = vector.broadcast %cst_466 : f32 to vector<1x256xf32>
    %2024 = arith.mulf %2023, %2020 : vector<1x256xf32>
    %2025 = arith.select %2022, %2020, %2024 : vector<1x256xi1>, vector<1x256xf32>
    %cst_467 = arith.constant 0.000000e+00 : f32
    %2026 = vector.broadcast %cst_467 : f32 to vector<1x256xf32>
    %2027 = arith.cmpf oge, %2009, %2026 : vector<1x256xf32>
    %cst_468 = arith.constant 1.000000e-01 : f32
    %2028 = vector.broadcast %cst_468 : f32 to vector<1x256xf32>
    %2029 = arith.mulf %2028, %2009 : vector<1x256xf32>
    %2030 = arith.select %2027, %2009, %2029 : vector<1x256xi1>, vector<1x256xf32>
    %cst_469 = arith.constant 0.000000e+00 : f32
    %2031 = vector.broadcast %cst_469 : f32 to vector<1x256xf32>
    %2032 = arith.cmpf oge, %2030, %2031 : vector<1x256xf32>
    %cst_470 = arith.constant 1.000000e-01 : f32
    %2033 = vector.broadcast %cst_470 : f32 to vector<1x256xf32>
    %2034 = arith.mulf %2033, %2030 : vector<1x256xf32>
    %2035 = arith.select %2032, %2030, %2034 : vector<1x256xi1>, vector<1x256xf32>
    %cst_471 = arith.constant 0.000000e+00 : f32
    %2036 = vector.broadcast %cst_471 : f32 to vector<1x256xf32>
    %2037 = arith.cmpf oge, %2012, %2036 : vector<1x256xf32>
    %cst_472 = arith.constant 1.000000e-01 : f32
    %2038 = vector.broadcast %cst_472 : f32 to vector<1x256xf32>
    %2039 = arith.mulf %2038, %2012 : vector<1x256xf32>
    %2040 = arith.select %2037, %2012, %2039 : vector<1x256xi1>, vector<1x256xf32>
    %cst_473 = arith.constant 0.000000e+00 : f32
    %2041 = vector.broadcast %cst_473 : f32 to vector<1x256xf32>
    %2042 = arith.cmpf oge, %2040, %2041 : vector<1x256xf32>
    %cst_474 = arith.constant 1.000000e-01 : f32
    %2043 = vector.broadcast %cst_474 : f32 to vector<1x256xf32>
    %2044 = arith.mulf %2043, %2040 : vector<1x256xf32>
    %2045 = arith.select %2042, %2040, %2044 : vector<1x256xi1>, vector<1x256xf32>
    %cst_475 = arith.constant 0.000000e+00 : f32
    %2046 = vector.broadcast %cst_475 : f32 to vector<1x256xf32>
    %2047 = arith.cmpf oge, %2015, %2046 : vector<1x256xf32>
    %cst_476 = arith.constant 1.000000e-01 : f32
    %2048 = vector.broadcast %cst_476 : f32 to vector<1x256xf32>
    %2049 = arith.mulf %2048, %2015 : vector<1x256xf32>
    %2050 = arith.select %2047, %2015, %2049 : vector<1x256xi1>, vector<1x256xf32>
    %cst_477 = arith.constant 0.000000e+00 : f32
    %2051 = vector.broadcast %cst_477 : f32 to vector<1x256xf32>
    %2052 = arith.cmpf oge, %2050, %2051 : vector<1x256xf32>
    %cst_478 = arith.constant 1.000000e-01 : f32
    %2053 = vector.broadcast %cst_478 : f32 to vector<1x256xf32>
    %2054 = arith.mulf %2053, %2050 : vector<1x256xf32>
    %2055 = arith.select %2052, %2050, %2054 : vector<1x256xi1>, vector<1x256xf32>
    %c0_479 = arith.constant 0 : index
    %2056 = memref.load %arg9[%c0_479] : memref<144xf32, #tpu.memory_space<smem>>
    %c1_480 = arith.constant 1 : index
    %2057 = memref.load %arg9[%c1_480] : memref<144xf32, #tpu.memory_space<smem>>
    %c2_481 = arith.constant 2 : index
    %2058 = memref.load %arg9[%c2_481] : memref<144xf32, #tpu.memory_space<smem>>
    %c3_482 = arith.constant 3 : index
    %2059 = memref.load %arg9[%c3_482] : memref<144xf32, #tpu.memory_space<smem>>
    %c4_483 = arith.constant 4 : index
    %2060 = memref.load %arg9[%c4_483] : memref<144xf32, #tpu.memory_space<smem>>
    %c5_484 = arith.constant 5 : index
    %2061 = memref.load %arg9[%c5_484] : memref<144xf32, #tpu.memory_space<smem>>
    %c6_485 = arith.constant 6 : index
    %2062 = memref.load %arg9[%c6_485] : memref<144xf32, #tpu.memory_space<smem>>
    %c7_486 = arith.constant 7 : index
    %2063 = memref.load %arg9[%c7_486] : memref<144xf32, #tpu.memory_space<smem>>
    %c8_487 = arith.constant 8 : index
    %2064 = memref.load %arg9[%c8_487] : memref<144xf32, #tpu.memory_space<smem>>
    %c9_488 = arith.constant 9 : index
    %2065 = memref.load %arg9[%c9_488] : memref<144xf32, #tpu.memory_space<smem>>
    %c10_489 = arith.constant 10 : index
    %2066 = memref.load %arg9[%c10_489] : memref<144xf32, #tpu.memory_space<smem>>
    %c11_490 = arith.constant 11 : index
    %2067 = memref.load %arg9[%c11_490] : memref<144xf32, #tpu.memory_space<smem>>
    %c12_491 = arith.constant 12 : index
    %2068 = memref.load %arg9[%c12_491] : memref<144xf32, #tpu.memory_space<smem>>
    %c13_492 = arith.constant 13 : index
    %2069 = memref.load %arg9[%c13_492] : memref<144xf32, #tpu.memory_space<smem>>
    %c14_493 = arith.constant 14 : index
    %2070 = memref.load %arg9[%c14_493] : memref<144xf32, #tpu.memory_space<smem>>
    %c15_494 = arith.constant 15 : index
    %2071 = memref.load %arg9[%c15_494] : memref<144xf32, #tpu.memory_space<smem>>
    %c16_495 = arith.constant 16 : index
    %2072 = memref.load %arg9[%c16_495] : memref<144xf32, #tpu.memory_space<smem>>
    %c17_496 = arith.constant 17 : index
    %2073 = memref.load %arg9[%c17_496] : memref<144xf32, #tpu.memory_space<smem>>
    %c18_497 = arith.constant 18 : index
    %2074 = memref.load %arg9[%c18_497] : memref<144xf32, #tpu.memory_space<smem>>
    %c19_498 = arith.constant 19 : index
    %2075 = memref.load %arg9[%c19_498] : memref<144xf32, #tpu.memory_space<smem>>
    %c20_499 = arith.constant 20 : index
    %2076 = memref.load %arg9[%c20_499] : memref<144xf32, #tpu.memory_space<smem>>
    %c21_500 = arith.constant 21 : index
    %2077 = memref.load %arg9[%c21_500] : memref<144xf32, #tpu.memory_space<smem>>
    %c22_501 = arith.constant 22 : index
    %2078 = memref.load %arg9[%c22_501] : memref<144xf32, #tpu.memory_space<smem>>
    %c23_502 = arith.constant 23 : index
    %2079 = memref.load %arg9[%c23_502] : memref<144xf32, #tpu.memory_space<smem>>
    %c24_503 = arith.constant 24 : index
    %2080 = memref.load %arg9[%c24_503] : memref<144xf32, #tpu.memory_space<smem>>
    %c25_504 = arith.constant 25 : index
    %2081 = memref.load %arg9[%c25_504] : memref<144xf32, #tpu.memory_space<smem>>
    %c26_505 = arith.constant 26 : index
    %2082 = memref.load %arg9[%c26_505] : memref<144xf32, #tpu.memory_space<smem>>
    %c27_506 = arith.constant 27 : index
    %2083 = memref.load %arg9[%c27_506] : memref<144xf32, #tpu.memory_space<smem>>
    %c28_507 = arith.constant 28 : index
    %2084 = memref.load %arg9[%c28_507] : memref<144xf32, #tpu.memory_space<smem>>
    %c29_508 = arith.constant 29 : index
    %2085 = memref.load %arg9[%c29_508] : memref<144xf32, #tpu.memory_space<smem>>
    %c30_509 = arith.constant 30 : index
    %2086 = memref.load %arg9[%c30_509] : memref<144xf32, #tpu.memory_space<smem>>
    %c31_510 = arith.constant 31 : index
    %2087 = memref.load %arg9[%c31_510] : memref<144xf32, #tpu.memory_space<smem>>
    %c32_511 = arith.constant 32 : index
    %2088 = memref.load %arg9[%c32_511] : memref<144xf32, #tpu.memory_space<smem>>
    %c33_512 = arith.constant 33 : index
    %2089 = memref.load %arg9[%c33_512] : memref<144xf32, #tpu.memory_space<smem>>
    %c34_513 = arith.constant 34 : index
    %2090 = memref.load %arg9[%c34_513] : memref<144xf32, #tpu.memory_space<smem>>
    %c35_514 = arith.constant 35 : index
    %2091 = memref.load %arg9[%c35_514] : memref<144xf32, #tpu.memory_space<smem>>
    %c36_515 = arith.constant 36 : index
    %2092 = memref.load %arg9[%c36_515] : memref<144xf32, #tpu.memory_space<smem>>
    %c37_516 = arith.constant 37 : index
    %2093 = memref.load %arg9[%c37_516] : memref<144xf32, #tpu.memory_space<smem>>
    %c38_517 = arith.constant 38 : index
    %2094 = memref.load %arg9[%c38_517] : memref<144xf32, #tpu.memory_space<smem>>
    %c39_518 = arith.constant 39 : index
    %2095 = memref.load %arg9[%c39_518] : memref<144xf32, #tpu.memory_space<smem>>
    %c40_519 = arith.constant 40 : index
    %2096 = memref.load %arg9[%c40_519] : memref<144xf32, #tpu.memory_space<smem>>
    %c41_520 = arith.constant 41 : index
    %2097 = memref.load %arg9[%c41_520] : memref<144xf32, #tpu.memory_space<smem>>
    %c42_521 = arith.constant 42 : index
    %2098 = memref.load %arg9[%c42_521] : memref<144xf32, #tpu.memory_space<smem>>
    %c43_522 = arith.constant 43 : index
    %2099 = memref.load %arg9[%c43_522] : memref<144xf32, #tpu.memory_space<smem>>
    %c44_523 = arith.constant 44 : index
    %2100 = memref.load %arg9[%c44_523] : memref<144xf32, #tpu.memory_space<smem>>
    %c45_524 = arith.constant 45 : index
    %2101 = memref.load %arg9[%c45_524] : memref<144xf32, #tpu.memory_space<smem>>
    %c46_525 = arith.constant 46 : index
    %2102 = memref.load %arg9[%c46_525] : memref<144xf32, #tpu.memory_space<smem>>
    %c47_526 = arith.constant 47 : index
    %2103 = memref.load %arg9[%c47_526] : memref<144xf32, #tpu.memory_space<smem>>
    %c48_527 = arith.constant 48 : index
    %2104 = memref.load %arg9[%c48_527] : memref<144xf32, #tpu.memory_space<smem>>
    %c49_528 = arith.constant 49 : index
    %2105 = memref.load %arg9[%c49_528] : memref<144xf32, #tpu.memory_space<smem>>
    %c50_529 = arith.constant 50 : index
    %2106 = memref.load %arg9[%c50_529] : memref<144xf32, #tpu.memory_space<smem>>
    %c51_530 = arith.constant 51 : index
    %2107 = memref.load %arg9[%c51_530] : memref<144xf32, #tpu.memory_space<smem>>
    %c52_531 = arith.constant 52 : index
    %2108 = memref.load %arg9[%c52_531] : memref<144xf32, #tpu.memory_space<smem>>
    %c53_532 = arith.constant 53 : index
    %2109 = memref.load %arg9[%c53_532] : memref<144xf32, #tpu.memory_space<smem>>
    %c54_533 = arith.constant 54 : index
    %2110 = memref.load %arg9[%c54_533] : memref<144xf32, #tpu.memory_space<smem>>
    %c55_534 = arith.constant 55 : index
    %2111 = memref.load %arg9[%c55_534] : memref<144xf32, #tpu.memory_space<smem>>
    %c56_535 = arith.constant 56 : index
    %2112 = memref.load %arg9[%c56_535] : memref<144xf32, #tpu.memory_space<smem>>
    %c57_536 = arith.constant 57 : index
    %2113 = memref.load %arg9[%c57_536] : memref<144xf32, #tpu.memory_space<smem>>
    %c58_537 = arith.constant 58 : index
    %2114 = memref.load %arg9[%c58_537] : memref<144xf32, #tpu.memory_space<smem>>
    %c59_538 = arith.constant 59 : index
    %2115 = memref.load %arg9[%c59_538] : memref<144xf32, #tpu.memory_space<smem>>
    %c60_539 = arith.constant 60 : index
    %2116 = memref.load %arg9[%c60_539] : memref<144xf32, #tpu.memory_space<smem>>
    %c61_540 = arith.constant 61 : index
    %2117 = memref.load %arg9[%c61_540] : memref<144xf32, #tpu.memory_space<smem>>
    %c62_541 = arith.constant 62 : index
    %2118 = memref.load %arg9[%c62_541] : memref<144xf32, #tpu.memory_space<smem>>
    %c63_542 = arith.constant 63 : index
    %2119 = memref.load %arg9[%c63_542] : memref<144xf32, #tpu.memory_space<smem>>
    %c64_543 = arith.constant 64 : index
    %2120 = memref.load %arg9[%c64_543] : memref<144xf32, #tpu.memory_space<smem>>
    %c65_544 = arith.constant 65 : index
    %2121 = memref.load %arg9[%c65_544] : memref<144xf32, #tpu.memory_space<smem>>
    %c66_545 = arith.constant 66 : index
    %2122 = memref.load %arg9[%c66_545] : memref<144xf32, #tpu.memory_space<smem>>
    %c67_546 = arith.constant 67 : index
    %2123 = memref.load %arg9[%c67_546] : memref<144xf32, #tpu.memory_space<smem>>
    %c68_547 = arith.constant 68 : index
    %2124 = memref.load %arg9[%c68_547] : memref<144xf32, #tpu.memory_space<smem>>
    %c69_548 = arith.constant 69 : index
    %2125 = memref.load %arg9[%c69_548] : memref<144xf32, #tpu.memory_space<smem>>
    %c70_549 = arith.constant 70 : index
    %2126 = memref.load %arg9[%c70_549] : memref<144xf32, #tpu.memory_space<smem>>
    %c71_550 = arith.constant 71 : index
    %2127 = memref.load %arg9[%c71_550] : memref<144xf32, #tpu.memory_space<smem>>
    %c72_551 = arith.constant 72 : index
    %2128 = memref.load %arg9[%c72_551] : memref<144xf32, #tpu.memory_space<smem>>
    %c73_552 = arith.constant 73 : index
    %2129 = memref.load %arg9[%c73_552] : memref<144xf32, #tpu.memory_space<smem>>
    %c74_553 = arith.constant 74 : index
    %2130 = memref.load %arg9[%c74_553] : memref<144xf32, #tpu.memory_space<smem>>
    %c75_554 = arith.constant 75 : index
    %2131 = memref.load %arg9[%c75_554] : memref<144xf32, #tpu.memory_space<smem>>
    %c76_555 = arith.constant 76 : index
    %2132 = memref.load %arg9[%c76_555] : memref<144xf32, #tpu.memory_space<smem>>
    %c77_556 = arith.constant 77 : index
    %2133 = memref.load %arg9[%c77_556] : memref<144xf32, #tpu.memory_space<smem>>
    %c78_557 = arith.constant 78 : index
    %2134 = memref.load %arg9[%c78_557] : memref<144xf32, #tpu.memory_space<smem>>
    %c79_558 = arith.constant 79 : index
    %2135 = memref.load %arg9[%c79_558] : memref<144xf32, #tpu.memory_space<smem>>
    %c80_559 = arith.constant 80 : index
    %2136 = memref.load %arg9[%c80_559] : memref<144xf32, #tpu.memory_space<smem>>
    %c81_560 = arith.constant 81 : index
    %2137 = memref.load %arg9[%c81_560] : memref<144xf32, #tpu.memory_space<smem>>
    %c82_561 = arith.constant 82 : index
    %2138 = memref.load %arg9[%c82_561] : memref<144xf32, #tpu.memory_space<smem>>
    %c83_562 = arith.constant 83 : index
    %2139 = memref.load %arg9[%c83_562] : memref<144xf32, #tpu.memory_space<smem>>
    %c84_563 = arith.constant 84 : index
    %2140 = memref.load %arg9[%c84_563] : memref<144xf32, #tpu.memory_space<smem>>
    %c85_564 = arith.constant 85 : index
    %2141 = memref.load %arg9[%c85_564] : memref<144xf32, #tpu.memory_space<smem>>
    %c86_565 = arith.constant 86 : index
    %2142 = memref.load %arg9[%c86_565] : memref<144xf32, #tpu.memory_space<smem>>
    %c87_566 = arith.constant 87 : index
    %2143 = memref.load %arg9[%c87_566] : memref<144xf32, #tpu.memory_space<smem>>
    %c88_567 = arith.constant 88 : index
    %2144 = memref.load %arg9[%c88_567] : memref<144xf32, #tpu.memory_space<smem>>
    %c89_568 = arith.constant 89 : index
    %2145 = memref.load %arg9[%c89_568] : memref<144xf32, #tpu.memory_space<smem>>
    %c90_569 = arith.constant 90 : index
    %2146 = memref.load %arg9[%c90_569] : memref<144xf32, #tpu.memory_space<smem>>
    %c91_570 = arith.constant 91 : index
    %2147 = memref.load %arg9[%c91_570] : memref<144xf32, #tpu.memory_space<smem>>
    %c92_571 = arith.constant 92 : index
    %2148 = memref.load %arg9[%c92_571] : memref<144xf32, #tpu.memory_space<smem>>
    %c93_572 = arith.constant 93 : index
    %2149 = memref.load %arg9[%c93_572] : memref<144xf32, #tpu.memory_space<smem>>
    %c94_573 = arith.constant 94 : index
    %2150 = memref.load %arg9[%c94_573] : memref<144xf32, #tpu.memory_space<smem>>
    %c95_574 = arith.constant 95 : index
    %2151 = memref.load %arg9[%c95_574] : memref<144xf32, #tpu.memory_space<smem>>
    %c96_575 = arith.constant 96 : index
    %2152 = memref.load %arg9[%c96_575] : memref<144xf32, #tpu.memory_space<smem>>
    %c97_576 = arith.constant 97 : index
    %2153 = memref.load %arg9[%c97_576] : memref<144xf32, #tpu.memory_space<smem>>
    %c98_577 = arith.constant 98 : index
    %2154 = memref.load %arg9[%c98_577] : memref<144xf32, #tpu.memory_space<smem>>
    %c99_578 = arith.constant 99 : index
    %2155 = memref.load %arg9[%c99_578] : memref<144xf32, #tpu.memory_space<smem>>
    %c100_579 = arith.constant 100 : index
    %2156 = memref.load %arg9[%c100_579] : memref<144xf32, #tpu.memory_space<smem>>
    %c101_580 = arith.constant 101 : index
    %2157 = memref.load %arg9[%c101_580] : memref<144xf32, #tpu.memory_space<smem>>
    %c102_581 = arith.constant 102 : index
    %2158 = memref.load %arg9[%c102_581] : memref<144xf32, #tpu.memory_space<smem>>
    %c103_582 = arith.constant 103 : index
    %2159 = memref.load %arg9[%c103_582] : memref<144xf32, #tpu.memory_space<smem>>
    %c104_583 = arith.constant 104 : index
    %2160 = memref.load %arg9[%c104_583] : memref<144xf32, #tpu.memory_space<smem>>
    %c105_584 = arith.constant 105 : index
    %2161 = memref.load %arg9[%c105_584] : memref<144xf32, #tpu.memory_space<smem>>
    %c106_585 = arith.constant 106 : index
    %2162 = memref.load %arg9[%c106_585] : memref<144xf32, #tpu.memory_space<smem>>
    %c107_586 = arith.constant 107 : index
    %2163 = memref.load %arg9[%c107_586] : memref<144xf32, #tpu.memory_space<smem>>
    %c108_587 = arith.constant 108 : index
    %2164 = memref.load %arg9[%c108_587] : memref<144xf32, #tpu.memory_space<smem>>
    %c109_588 = arith.constant 109 : index
    %2165 = memref.load %arg9[%c109_588] : memref<144xf32, #tpu.memory_space<smem>>
    %c110_589 = arith.constant 110 : index
    %2166 = memref.load %arg9[%c110_589] : memref<144xf32, #tpu.memory_space<smem>>
    %c111_590 = arith.constant 111 : index
    %2167 = memref.load %arg9[%c111_590] : memref<144xf32, #tpu.memory_space<smem>>
    %c112_591 = arith.constant 112 : index
    %2168 = memref.load %arg9[%c112_591] : memref<144xf32, #tpu.memory_space<smem>>
    %c113_592 = arith.constant 113 : index
    %2169 = memref.load %arg9[%c113_592] : memref<144xf32, #tpu.memory_space<smem>>
    %c114_593 = arith.constant 114 : index
    %2170 = memref.load %arg9[%c114_593] : memref<144xf32, #tpu.memory_space<smem>>
    %c115_594 = arith.constant 115 : index
    %2171 = memref.load %arg9[%c115_594] : memref<144xf32, #tpu.memory_space<smem>>
    %c116_595 = arith.constant 116 : index
    %2172 = memref.load %arg9[%c116_595] : memref<144xf32, #tpu.memory_space<smem>>
    %c117_596 = arith.constant 117 : index
    %2173 = memref.load %arg9[%c117_596] : memref<144xf32, #tpu.memory_space<smem>>
    %c118_597 = arith.constant 118 : index
    %2174 = memref.load %arg9[%c118_597] : memref<144xf32, #tpu.memory_space<smem>>
    %c119_598 = arith.constant 119 : index
    %2175 = memref.load %arg9[%c119_598] : memref<144xf32, #tpu.memory_space<smem>>
    %c120_599 = arith.constant 120 : index
    %2176 = memref.load %arg9[%c120_599] : memref<144xf32, #tpu.memory_space<smem>>
    %c121_600 = arith.constant 121 : index
    %2177 = memref.load %arg9[%c121_600] : memref<144xf32, #tpu.memory_space<smem>>
    %c122_601 = arith.constant 122 : index
    %2178 = memref.load %arg9[%c122_601] : memref<144xf32, #tpu.memory_space<smem>>
    %c123_602 = arith.constant 123 : index
    %2179 = memref.load %arg9[%c123_602] : memref<144xf32, #tpu.memory_space<smem>>
    %c124_603 = arith.constant 124 : index
    %2180 = memref.load %arg9[%c124_603] : memref<144xf32, #tpu.memory_space<smem>>
    %c125_604 = arith.constant 125 : index
    %2181 = memref.load %arg9[%c125_604] : memref<144xf32, #tpu.memory_space<smem>>
    %c126_605 = arith.constant 126 : index
    %2182 = memref.load %arg9[%c126_605] : memref<144xf32, #tpu.memory_space<smem>>
    %c127_606 = arith.constant 127 : index
    %2183 = memref.load %arg9[%c127_606] : memref<144xf32, #tpu.memory_space<smem>>
    %c128_607 = arith.constant 128 : index
    %2184 = memref.load %arg9[%c128_607] : memref<144xf32, #tpu.memory_space<smem>>
    %c129_608 = arith.constant 129 : index
    %2185 = memref.load %arg9[%c129_608] : memref<144xf32, #tpu.memory_space<smem>>
    %c130_609 = arith.constant 130 : index
    %2186 = memref.load %arg9[%c130_609] : memref<144xf32, #tpu.memory_space<smem>>
    %c131_610 = arith.constant 131 : index
    %2187 = memref.load %arg9[%c131_610] : memref<144xf32, #tpu.memory_space<smem>>
    %c132_611 = arith.constant 132 : index
    %2188 = memref.load %arg9[%c132_611] : memref<144xf32, #tpu.memory_space<smem>>
    %c133_612 = arith.constant 133 : index
    %2189 = memref.load %arg9[%c133_612] : memref<144xf32, #tpu.memory_space<smem>>
    %c134_613 = arith.constant 134 : index
    %2190 = memref.load %arg9[%c134_613] : memref<144xf32, #tpu.memory_space<smem>>
    %c135_614 = arith.constant 135 : index
    %2191 = memref.load %arg9[%c135_614] : memref<144xf32, #tpu.memory_space<smem>>
    %c136_615 = arith.constant 136 : index
    %2192 = memref.load %arg9[%c136_615] : memref<144xf32, #tpu.memory_space<smem>>
    %c137_616 = arith.constant 137 : index
    %2193 = memref.load %arg9[%c137_616] : memref<144xf32, #tpu.memory_space<smem>>
    %c138_617 = arith.constant 138 : index
    %2194 = memref.load %arg9[%c138_617] : memref<144xf32, #tpu.memory_space<smem>>
    %c139_618 = arith.constant 139 : index
    %2195 = memref.load %arg9[%c139_618] : memref<144xf32, #tpu.memory_space<smem>>
    %c140_619 = arith.constant 140 : index
    %2196 = memref.load %arg9[%c140_619] : memref<144xf32, #tpu.memory_space<smem>>
    %c141_620 = arith.constant 141 : index
    %2197 = memref.load %arg9[%c141_620] : memref<144xf32, #tpu.memory_space<smem>>
    %c142_621 = arith.constant 142 : index
    %2198 = memref.load %arg9[%c142_621] : memref<144xf32, #tpu.memory_space<smem>>
    %c143_622 = arith.constant 143 : index
    %2199 = memref.load %arg9[%c143_622] : memref<144xf32, #tpu.memory_space<smem>>
    %c0_623 = arith.constant 0 : index
    %2200 = memref.load %arg10[%c0_623] : memref<4xf32, #tpu.memory_space<smem>>
    %c1_624 = arith.constant 1 : index
    %2201 = memref.load %arg10[%c1_624] : memref<4xf32, #tpu.memory_space<smem>>
    %c2_625 = arith.constant 2 : index
    %2202 = memref.load %arg10[%c2_625] : memref<4xf32, #tpu.memory_space<smem>>
    %c3_626 = arith.constant 3 : index
    %2203 = memref.load %arg10[%c3_626] : memref<4xf32, #tpu.memory_space<smem>>
    %c0_627 = arith.constant 0 : index
    %c0_628 = arith.constant 0 : index
    %2204 = vector.load %arg2[%c0_627, %c0_628] : memref<9x256xf32, #tpu.memory_space<vmem>>, vector<1x256xf32>
    %c17_i32_629 = arith.constant 17 : i32
    %2205 = tpu.dynamic_rotate %2025 by %c17_i32_629 dim 1 : vector<1x256xf32>, i32 -> vector<1x256xf32>
    %2206 = arith.mulf %2205, %2204 : vector<1x256xf32>
    %2207 = vector.broadcast %2056 : f32 to vector<1x256xf32>
    %2208 = arith.mulf %2207, %2206 : vector<1x256xf32>
    %2209 = vector.broadcast %2200 : f32 to vector<1x256xf32>
    %2210 = arith.addf %2208, %2209 : vector<1x256xf32>
    %2211 = vector.broadcast %2057 : f32 to vector<1x256xf32>
    %2212 = arith.mulf %2211, %2206 : vector<1x256xf32>
    %2213 = vector.broadcast %2201 : f32 to vector<1x256xf32>
    %2214 = arith.addf %2212, %2213 : vector<1x256xf32>
    %2215 = vector.broadcast %2058 : f32 to vector<1x256xf32>
    %2216 = arith.mulf %2215, %2206 : vector<1x256xf32>
    %2217 = vector.broadcast %2202 : f32 to vector<1x256xf32>
    %2218 = arith.addf %2216, %2217 : vector<1x256xf32>
    %2219 = vector.broadcast %2059 : f32 to vector<1x256xf32>
    %2220 = arith.mulf %2219, %2206 : vector<1x256xf32>
    %2221 = vector.broadcast %2203 : f32 to vector<1x256xf32>
    %2222 = arith.addf %2220, %2221 : vector<1x256xf32>
    %c17_i32_630 = arith.constant 17 : i32
    %2223 = tpu.dynamic_rotate %2035 by %c17_i32_630 dim 1 : vector<1x256xf32>, i32 -> vector<1x256xf32>
    %2224 = arith.mulf %2223, %2204 : vector<1x256xf32>
    %2225 = vector.broadcast %2060 : f32 to vector<1x256xf32>
    %2226 = arith.mulf %2225, %2224 : vector<1x256xf32>
    %2227 = arith.addf %2210, %2226 : vector<1x256xf32>
    %2228 = vector.broadcast %2061 : f32 to vector<1x256xf32>
    %2229 = arith.mulf %2228, %2224 : vector<1x256xf32>
    %2230 = arith.addf %2214, %2229 : vector<1x256xf32>
    %2231 = vector.broadcast %2062 : f32 to vector<1x256xf32>
    %2232 = arith.mulf %2231, %2224 : vector<1x256xf32>
    %2233 = arith.addf %2218, %2232 : vector<1x256xf32>
    %2234 = vector.broadcast %2063 : f32 to vector<1x256xf32>
    %2235 = arith.mulf %2234, %2224 : vector<1x256xf32>
    %2236 = arith.addf %2222, %2235 : vector<1x256xf32>
    %c17_i32_631 = arith.constant 17 : i32
    %2237 = tpu.dynamic_rotate %2045 by %c17_i32_631 dim 1 : vector<1x256xf32>, i32 -> vector<1x256xf32>
    %2238 = arith.mulf %2237, %2204 : vector<1x256xf32>
    %2239 = vector.broadcast %2064 : f32 to vector<1x256xf32>
    %2240 = arith.mulf %2239, %2238 : vector<1x256xf32>
    %2241 = arith.addf %2227, %2240 : vector<1x256xf32>
    %2242 = vector.broadcast %2065 : f32 to vector<1x256xf32>
    %2243 = arith.mulf %2242, %2238 : vector<1x256xf32>
    %2244 = arith.addf %2230, %2243 : vector<1x256xf32>
    %2245 = vector.broadcast %2066 : f32 to vector<1x256xf32>
    %2246 = arith.mulf %2245, %2238 : vector<1x256xf32>
    %2247 = arith.addf %2233, %2246 : vector<1x256xf32>
    %2248 = vector.broadcast %2067 : f32 to vector<1x256xf32>
    %2249 = arith.mulf %2248, %2238 : vector<1x256xf32>
    %2250 = arith.addf %2236, %2249 : vector<1x256xf32>
    %c17_i32_632 = arith.constant 17 : i32
    %2251 = tpu.dynamic_rotate %2055 by %c17_i32_632 dim 1 : vector<1x256xf32>, i32 -> vector<1x256xf32>
    %2252 = arith.mulf %2251, %2204 : vector<1x256xf32>
    %2253 = vector.broadcast %2068 : f32 to vector<1x256xf32>
    %2254 = arith.mulf %2253, %2252 : vector<1x256xf32>
    %2255 = arith.addf %2241, %2254 : vector<1x256xf32>
    %2256 = vector.broadcast %2069 : f32 to vector<1x256xf32>
    %2257 = arith.mulf %2256, %2252 : vector<1x256xf32>
    %2258 = arith.addf %2244, %2257 : vector<1x256xf32>
    %2259 = vector.broadcast %2070 : f32 to vector<1x256xf32>
    %2260 = arith.mulf %2259, %2252 : vector<1x256xf32>
    %2261 = arith.addf %2247, %2260 : vector<1x256xf32>
    %2262 = vector.broadcast %2071 : f32 to vector<1x256xf32>
    %2263 = arith.mulf %2262, %2252 : vector<1x256xf32>
    %2264 = arith.addf %2250, %2263 : vector<1x256xf32>
    %c1_633 = arith.constant 1 : index
    %c0_634 = arith.constant 0 : index
    %2265 = vector.load %arg2[%c1_633, %c0_634] : memref<9x256xf32, #tpu.memory_space<vmem>>, vector<1x256xf32>
    %c16_i32_635 = arith.constant 16 : i32
    %2266 = tpu.dynamic_rotate %2025 by %c16_i32_635 dim 1 : vector<1x256xf32>, i32 -> vector<1x256xf32>
    %2267 = arith.mulf %2266, %2265 : vector<1x256xf32>
    %2268 = vector.broadcast %2072 : f32 to vector<1x256xf32>
    %2269 = arith.mulf %2268, %2267 : vector<1x256xf32>
    %2270 = arith.addf %2255, %2269 : vector<1x256xf32>
    %2271 = vector.broadcast %2073 : f32 to vector<1x256xf32>
    %2272 = arith.mulf %2271, %2267 : vector<1x256xf32>
    %2273 = arith.addf %2258, %2272 : vector<1x256xf32>
    %2274 = vector.broadcast %2074 : f32 to vector<1x256xf32>
    %2275 = arith.mulf %2274, %2267 : vector<1x256xf32>
    %2276 = arith.addf %2261, %2275 : vector<1x256xf32>
    %2277 = vector.broadcast %2075 : f32 to vector<1x256xf32>
    %2278 = arith.mulf %2277, %2267 : vector<1x256xf32>
    %2279 = arith.addf %2264, %2278 : vector<1x256xf32>
    %c16_i32_636 = arith.constant 16 : i32
    %2280 = tpu.dynamic_rotate %2035 by %c16_i32_636 dim 1 : vector<1x256xf32>, i32 -> vector<1x256xf32>
    %2281 = arith.mulf %2280, %2265 : vector<1x256xf32>
    %2282 = vector.broadcast %2076 : f32 to vector<1x256xf32>
    %2283 = arith.mulf %2282, %2281 : vector<1x256xf32>
    %2284 = arith.addf %2270, %2283 : vector<1x256xf32>
    %2285 = vector.broadcast %2077 : f32 to vector<1x256xf32>
    %2286 = arith.mulf %2285, %2281 : vector<1x256xf32>
    %2287 = arith.addf %2273, %2286 : vector<1x256xf32>
    %2288 = vector.broadcast %2078 : f32 to vector<1x256xf32>
    %2289 = arith.mulf %2288, %2281 : vector<1x256xf32>
    %2290 = arith.addf %2276, %2289 : vector<1x256xf32>
    %2291 = vector.broadcast %2079 : f32 to vector<1x256xf32>
    %2292 = arith.mulf %2291, %2281 : vector<1x256xf32>
    %2293 = arith.addf %2279, %2292 : vector<1x256xf32>
    %c16_i32_637 = arith.constant 16 : i32
    %2294 = tpu.dynamic_rotate %2045 by %c16_i32_637 dim 1 : vector<1x256xf32>, i32 -> vector<1x256xf32>
    %2295 = arith.mulf %2294, %2265 : vector<1x256xf32>
    %2296 = vector.broadcast %2080 : f32 to vector<1x256xf32>
    %2297 = arith.mulf %2296, %2295 : vector<1x256xf32>
    %2298 = arith.addf %2284, %2297 : vector<1x256xf32>
    %2299 = vector.broadcast %2081 : f32 to vector<1x256xf32>
    %2300 = arith.mulf %2299, %2295 : vector<1x256xf32>
    %2301 = arith.addf %2287, %2300 : vector<1x256xf32>
    %2302 = vector.broadcast %2082 : f32 to vector<1x256xf32>
    %2303 = arith.mulf %2302, %2295 : vector<1x256xf32>
    %2304 = arith.addf %2290, %2303 : vector<1x256xf32>
    %2305 = vector.broadcast %2083 : f32 to vector<1x256xf32>
    %2306 = arith.mulf %2305, %2295 : vector<1x256xf32>
    %2307 = arith.addf %2293, %2306 : vector<1x256xf32>
    %c16_i32_638 = arith.constant 16 : i32
    %2308 = tpu.dynamic_rotate %2055 by %c16_i32_638 dim 1 : vector<1x256xf32>, i32 -> vector<1x256xf32>
    %2309 = arith.mulf %2308, %2265 : vector<1x256xf32>
    %2310 = vector.broadcast %2084 : f32 to vector<1x256xf32>
    %2311 = arith.mulf %2310, %2309 : vector<1x256xf32>
    %2312 = arith.addf %2298, %2311 : vector<1x256xf32>
    %2313 = vector.broadcast %2085 : f32 to vector<1x256xf32>
    %2314 = arith.mulf %2313, %2309 : vector<1x256xf32>
    %2315 = arith.addf %2301, %2314 : vector<1x256xf32>
    %2316 = vector.broadcast %2086 : f32 to vector<1x256xf32>
    %2317 = arith.mulf %2316, %2309 : vector<1x256xf32>
    %2318 = arith.addf %2304, %2317 : vector<1x256xf32>
    %2319 = vector.broadcast %2087 : f32 to vector<1x256xf32>
    %2320 = arith.mulf %2319, %2309 : vector<1x256xf32>
    %2321 = arith.addf %2307, %2320 : vector<1x256xf32>
    %c2_639 = arith.constant 2 : index
    %c0_640 = arith.constant 0 : index
    %2322 = vector.load %arg2[%c2_639, %c0_640] : memref<9x256xf32, #tpu.memory_space<vmem>>, vector<1x256xf32>
    %c15_i32_641 = arith.constant 15 : i32
    %2323 = tpu.dynamic_rotate %2025 by %c15_i32_641 dim 1 : vector<1x256xf32>, i32 -> vector<1x256xf32>
    %2324 = arith.mulf %2323, %2322 : vector<1x256xf32>
    %2325 = vector.broadcast %2088 : f32 to vector<1x256xf32>
    %2326 = arith.mulf %2325, %2324 : vector<1x256xf32>
    %2327 = arith.addf %2312, %2326 : vector<1x256xf32>
    %2328 = vector.broadcast %2089 : f32 to vector<1x256xf32>
    %2329 = arith.mulf %2328, %2324 : vector<1x256xf32>
    %2330 = arith.addf %2315, %2329 : vector<1x256xf32>
    %2331 = vector.broadcast %2090 : f32 to vector<1x256xf32>
    %2332 = arith.mulf %2331, %2324 : vector<1x256xf32>
    %2333 = arith.addf %2318, %2332 : vector<1x256xf32>
    %2334 = vector.broadcast %2091 : f32 to vector<1x256xf32>
    %2335 = arith.mulf %2334, %2324 : vector<1x256xf32>
    %2336 = arith.addf %2321, %2335 : vector<1x256xf32>
    %c15_i32_642 = arith.constant 15 : i32
    %2337 = tpu.dynamic_rotate %2035 by %c15_i32_642 dim 1 : vector<1x256xf32>, i32 -> vector<1x256xf32>
    %2338 = arith.mulf %2337, %2322 : vector<1x256xf32>
    %2339 = vector.broadcast %2092 : f32 to vector<1x256xf32>
    %2340 = arith.mulf %2339, %2338 : vector<1x256xf32>
    %2341 = arith.addf %2327, %2340 : vector<1x256xf32>
    %2342 = vector.broadcast %2093 : f32 to vector<1x256xf32>
    %2343 = arith.mulf %2342, %2338 : vector<1x256xf32>
    %2344 = arith.addf %2330, %2343 : vector<1x256xf32>
    %2345 = vector.broadcast %2094 : f32 to vector<1x256xf32>
    %2346 = arith.mulf %2345, %2338 : vector<1x256xf32>
    %2347 = arith.addf %2333, %2346 : vector<1x256xf32>
    %2348 = vector.broadcast %2095 : f32 to vector<1x256xf32>
    %2349 = arith.mulf %2348, %2338 : vector<1x256xf32>
    %2350 = arith.addf %2336, %2349 : vector<1x256xf32>
    %c15_i32_643 = arith.constant 15 : i32
    %2351 = tpu.dynamic_rotate %2045 by %c15_i32_643 dim 1 : vector<1x256xf32>, i32 -> vector<1x256xf32>
    %2352 = arith.mulf %2351, %2322 : vector<1x256xf32>
    %2353 = vector.broadcast %2096 : f32 to vector<1x256xf32>
    %2354 = arith.mulf %2353, %2352 : vector<1x256xf32>
    %2355 = arith.addf %2341, %2354 : vector<1x256xf32>
    %2356 = vector.broadcast %2097 : f32 to vector<1x256xf32>
    %2357 = arith.mulf %2356, %2352 : vector<1x256xf32>
    %2358 = arith.addf %2344, %2357 : vector<1x256xf32>
    %2359 = vector.broadcast %2098 : f32 to vector<1x256xf32>
    %2360 = arith.mulf %2359, %2352 : vector<1x256xf32>
    %2361 = arith.addf %2347, %2360 : vector<1x256xf32>
    %2362 = vector.broadcast %2099 : f32 to vector<1x256xf32>
    %2363 = arith.mulf %2362, %2352 : vector<1x256xf32>
    %2364 = arith.addf %2350, %2363 : vector<1x256xf32>
    %c15_i32_644 = arith.constant 15 : i32
    %2365 = tpu.dynamic_rotate %2055 by %c15_i32_644 dim 1 : vector<1x256xf32>, i32 -> vector<1x256xf32>
    %2366 = arith.mulf %2365, %2322 : vector<1x256xf32>
    %2367 = vector.broadcast %2100 : f32 to vector<1x256xf32>
    %2368 = arith.mulf %2367, %2366 : vector<1x256xf32>
    %2369 = arith.addf %2355, %2368 : vector<1x256xf32>
    %2370 = vector.broadcast %2101 : f32 to vector<1x256xf32>
    %2371 = arith.mulf %2370, %2366 : vector<1x256xf32>
    %2372 = arith.addf %2358, %2371 : vector<1x256xf32>
    %2373 = vector.broadcast %2102 : f32 to vector<1x256xf32>
    %2374 = arith.mulf %2373, %2366 : vector<1x256xf32>
    %2375 = arith.addf %2361, %2374 : vector<1x256xf32>
    %2376 = vector.broadcast %2103 : f32 to vector<1x256xf32>
    %2377 = arith.mulf %2376, %2366 : vector<1x256xf32>
    %2378 = arith.addf %2364, %2377 : vector<1x256xf32>
    %c3_645 = arith.constant 3 : index
    %c0_646 = arith.constant 0 : index
    %2379 = vector.load %arg2[%c3_645, %c0_646] : memref<9x256xf32, #tpu.memory_space<vmem>>, vector<1x256xf32>
    %c1_i32_647 = arith.constant 1 : i32
    %2380 = tpu.dynamic_rotate %2025 by %c1_i32_647 dim 1 : vector<1x256xf32>, i32 -> vector<1x256xf32>
    %2381 = arith.mulf %2380, %2379 : vector<1x256xf32>
    %2382 = vector.broadcast %2104 : f32 to vector<1x256xf32>
    %2383 = arith.mulf %2382, %2381 : vector<1x256xf32>
    %2384 = arith.addf %2369, %2383 : vector<1x256xf32>
    %2385 = vector.broadcast %2105 : f32 to vector<1x256xf32>
    %2386 = arith.mulf %2385, %2381 : vector<1x256xf32>
    %2387 = arith.addf %2372, %2386 : vector<1x256xf32>
    %2388 = vector.broadcast %2106 : f32 to vector<1x256xf32>
    %2389 = arith.mulf %2388, %2381 : vector<1x256xf32>
    %2390 = arith.addf %2375, %2389 : vector<1x256xf32>
    %2391 = vector.broadcast %2107 : f32 to vector<1x256xf32>
    %2392 = arith.mulf %2391, %2381 : vector<1x256xf32>
    %2393 = arith.addf %2378, %2392 : vector<1x256xf32>
    %c1_i32_648 = arith.constant 1 : i32
    %2394 = tpu.dynamic_rotate %2035 by %c1_i32_648 dim 1 : vector<1x256xf32>, i32 -> vector<1x256xf32>
    %2395 = arith.mulf %2394, %2379 : vector<1x256xf32>
    %2396 = vector.broadcast %2108 : f32 to vector<1x256xf32>
    %2397 = arith.mulf %2396, %2395 : vector<1x256xf32>
    %2398 = arith.addf %2384, %2397 : vector<1x256xf32>
    %2399 = vector.broadcast %2109 : f32 to vector<1x256xf32>
    %2400 = arith.mulf %2399, %2395 : vector<1x256xf32>
    %2401 = arith.addf %2387, %2400 : vector<1x256xf32>
    %2402 = vector.broadcast %2110 : f32 to vector<1x256xf32>
    %2403 = arith.mulf %2402, %2395 : vector<1x256xf32>
    %2404 = arith.addf %2390, %2403 : vector<1x256xf32>
    %2405 = vector.broadcast %2111 : f32 to vector<1x256xf32>
    %2406 = arith.mulf %2405, %2395 : vector<1x256xf32>
    %2407 = arith.addf %2393, %2406 : vector<1x256xf32>
    %c1_i32_649 = arith.constant 1 : i32
    %2408 = tpu.dynamic_rotate %2045 by %c1_i32_649 dim 1 : vector<1x256xf32>, i32 -> vector<1x256xf32>
    %2409 = arith.mulf %2408, %2379 : vector<1x256xf32>
    %2410 = vector.broadcast %2112 : f32 to vector<1x256xf32>
    %2411 = arith.mulf %2410, %2409 : vector<1x256xf32>
    %2412 = arith.addf %2398, %2411 : vector<1x256xf32>
    %2413 = vector.broadcast %2113 : f32 to vector<1x256xf32>
    %2414 = arith.mulf %2413, %2409 : vector<1x256xf32>
    %2415 = arith.addf %2401, %2414 : vector<1x256xf32>
    %2416 = vector.broadcast %2114 : f32 to vector<1x256xf32>
    %2417 = arith.mulf %2416, %2409 : vector<1x256xf32>
    %2418 = arith.addf %2404, %2417 : vector<1x256xf32>
    %2419 = vector.broadcast %2115 : f32 to vector<1x256xf32>
    %2420 = arith.mulf %2419, %2409 : vector<1x256xf32>
    %2421 = arith.addf %2407, %2420 : vector<1x256xf32>
    %c1_i32_650 = arith.constant 1 : i32
    %2422 = tpu.dynamic_rotate %2055 by %c1_i32_650 dim 1 : vector<1x256xf32>, i32 -> vector<1x256xf32>
    %2423 = arith.mulf %2422, %2379 : vector<1x256xf32>
    %2424 = vector.broadcast %2116 : f32 to vector<1x256xf32>
    %2425 = arith.mulf %2424, %2423 : vector<1x256xf32>
    %2426 = arith.addf %2412, %2425 : vector<1x256xf32>
    %2427 = vector.broadcast %2117 : f32 to vector<1x256xf32>
    %2428 = arith.mulf %2427, %2423 : vector<1x256xf32>
    %2429 = arith.addf %2415, %2428 : vector<1x256xf32>
    %2430 = vector.broadcast %2118 : f32 to vector<1x256xf32>
    %2431 = arith.mulf %2430, %2423 : vector<1x256xf32>
    %2432 = arith.addf %2418, %2431 : vector<1x256xf32>
    %2433 = vector.broadcast %2119 : f32 to vector<1x256xf32>
    %2434 = arith.mulf %2433, %2423 : vector<1x256xf32>
    %2435 = arith.addf %2421, %2434 : vector<1x256xf32>
    %2436 = vector.broadcast %2120 : f32 to vector<1x256xf32>
    %2437 = arith.mulf %2436, %2025 : vector<1x256xf32>
    %2438 = arith.addf %2426, %2437 : vector<1x256xf32>
    %2439 = vector.broadcast %2121 : f32 to vector<1x256xf32>
    %2440 = arith.mulf %2439, %2025 : vector<1x256xf32>
    %2441 = arith.addf %2429, %2440 : vector<1x256xf32>
    %2442 = vector.broadcast %2122 : f32 to vector<1x256xf32>
    %2443 = arith.mulf %2442, %2025 : vector<1x256xf32>
    %2444 = arith.addf %2432, %2443 : vector<1x256xf32>
    %2445 = vector.broadcast %2123 : f32 to vector<1x256xf32>
    %2446 = arith.mulf %2445, %2025 : vector<1x256xf32>
    %2447 = arith.addf %2435, %2446 : vector<1x256xf32>
    %2448 = vector.broadcast %2124 : f32 to vector<1x256xf32>
    %2449 = arith.mulf %2448, %2035 : vector<1x256xf32>
    %2450 = arith.addf %2438, %2449 : vector<1x256xf32>
    %2451 = vector.broadcast %2125 : f32 to vector<1x256xf32>
    %2452 = arith.mulf %2451, %2035 : vector<1x256xf32>
    %2453 = arith.addf %2441, %2452 : vector<1x256xf32>
    %2454 = vector.broadcast %2126 : f32 to vector<1x256xf32>
    %2455 = arith.mulf %2454, %2035 : vector<1x256xf32>
    %2456 = arith.addf %2444, %2455 : vector<1x256xf32>
    %2457 = vector.broadcast %2127 : f32 to vector<1x256xf32>
    %2458 = arith.mulf %2457, %2035 : vector<1x256xf32>
    %2459 = arith.addf %2447, %2458 : vector<1x256xf32>
    %2460 = vector.broadcast %2128 : f32 to vector<1x256xf32>
    %2461 = arith.mulf %2460, %2045 : vector<1x256xf32>
    %2462 = arith.addf %2450, %2461 : vector<1x256xf32>
    %2463 = vector.broadcast %2129 : f32 to vector<1x256xf32>
    %2464 = arith.mulf %2463, %2045 : vector<1x256xf32>
    %2465 = arith.addf %2453, %2464 : vector<1x256xf32>
    %2466 = vector.broadcast %2130 : f32 to vector<1x256xf32>
    %2467 = arith.mulf %2466, %2045 : vector<1x256xf32>
    %2468 = arith.addf %2456, %2467 : vector<1x256xf32>
    %2469 = vector.broadcast %2131 : f32 to vector<1x256xf32>
    %2470 = arith.mulf %2469, %2045 : vector<1x256xf32>
    %2471 = arith.addf %2459, %2470 : vector<1x256xf32>
    %2472 = vector.broadcast %2132 : f32 to vector<1x256xf32>
    %2473 = arith.mulf %2472, %2055 : vector<1x256xf32>
    %2474 = arith.addf %2462, %2473 : vector<1x256xf32>
    %2475 = vector.broadcast %2133 : f32 to vector<1x256xf32>
    %2476 = arith.mulf %2475, %2055 : vector<1x256xf32>
    %2477 = arith.addf %2465, %2476 : vector<1x256xf32>
    %2478 = vector.broadcast %2134 : f32 to vector<1x256xf32>
    %2479 = arith.mulf %2478, %2055 : vector<1x256xf32>
    %2480 = arith.addf %2468, %2479 : vector<1x256xf32>
    %2481 = vector.broadcast %2135 : f32 to vector<1x256xf32>
    %2482 = arith.mulf %2481, %2055 : vector<1x256xf32>
    %2483 = arith.addf %2471, %2482 : vector<1x256xf32>
    %c5_651 = arith.constant 5 : index
    %c0_652 = arith.constant 0 : index
    %2484 = vector.load %arg2[%c5_651, %c0_652] : memref<9x256xf32, #tpu.memory_space<vmem>>, vector<1x256xf32>
    %c255_i32_653 = arith.constant 255 : i32
    %2485 = tpu.dynamic_rotate %2025 by %c255_i32_653 dim 1 : vector<1x256xf32>, i32 -> vector<1x256xf32>
    %2486 = arith.mulf %2485, %2484 : vector<1x256xf32>
    %2487 = vector.broadcast %2136 : f32 to vector<1x256xf32>
    %2488 = arith.mulf %2487, %2486 : vector<1x256xf32>
    %2489 = arith.addf %2474, %2488 : vector<1x256xf32>
    %2490 = vector.broadcast %2137 : f32 to vector<1x256xf32>
    %2491 = arith.mulf %2490, %2486 : vector<1x256xf32>
    %2492 = arith.addf %2477, %2491 : vector<1x256xf32>
    %2493 = vector.broadcast %2138 : f32 to vector<1x256xf32>
    %2494 = arith.mulf %2493, %2486 : vector<1x256xf32>
    %2495 = arith.addf %2480, %2494 : vector<1x256xf32>
    %2496 = vector.broadcast %2139 : f32 to vector<1x256xf32>
    %2497 = arith.mulf %2496, %2486 : vector<1x256xf32>
    %2498 = arith.addf %2483, %2497 : vector<1x256xf32>
    %c255_i32_654 = arith.constant 255 : i32
    %2499 = tpu.dynamic_rotate %2035 by %c255_i32_654 dim 1 : vector<1x256xf32>, i32 -> vector<1x256xf32>
    %2500 = arith.mulf %2499, %2484 : vector<1x256xf32>
    %2501 = vector.broadcast %2140 : f32 to vector<1x256xf32>
    %2502 = arith.mulf %2501, %2500 : vector<1x256xf32>
    %2503 = arith.addf %2489, %2502 : vector<1x256xf32>
    %2504 = vector.broadcast %2141 : f32 to vector<1x256xf32>
    %2505 = arith.mulf %2504, %2500 : vector<1x256xf32>
    %2506 = arith.addf %2492, %2505 : vector<1x256xf32>
    %2507 = vector.broadcast %2142 : f32 to vector<1x256xf32>
    %2508 = arith.mulf %2507, %2500 : vector<1x256xf32>
    %2509 = arith.addf %2495, %2508 : vector<1x256xf32>
    %2510 = vector.broadcast %2143 : f32 to vector<1x256xf32>
    %2511 = arith.mulf %2510, %2500 : vector<1x256xf32>
    %2512 = arith.addf %2498, %2511 : vector<1x256xf32>
    %c255_i32_655 = arith.constant 255 : i32
    %2513 = tpu.dynamic_rotate %2045 by %c255_i32_655 dim 1 : vector<1x256xf32>, i32 -> vector<1x256xf32>
    %2514 = arith.mulf %2513, %2484 : vector<1x256xf32>
    %2515 = vector.broadcast %2144 : f32 to vector<1x256xf32>
    %2516 = arith.mulf %2515, %2514 : vector<1x256xf32>
    %2517 = arith.addf %2503, %2516 : vector<1x256xf32>
    %2518 = vector.broadcast %2145 : f32 to vector<1x256xf32>
    %2519 = arith.mulf %2518, %2514 : vector<1x256xf32>
    %2520 = arith.addf %2506, %2519 : vector<1x256xf32>
    %2521 = vector.broadcast %2146 : f32 to vector<1x256xf32>
    %2522 = arith.mulf %2521, %2514 : vector<1x256xf32>
    %2523 = arith.addf %2509, %2522 : vector<1x256xf32>
    %2524 = vector.broadcast %2147 : f32 to vector<1x256xf32>
    %2525 = arith.mulf %2524, %2514 : vector<1x256xf32>
    %2526 = arith.addf %2512, %2525 : vector<1x256xf32>
    %c255_i32_656 = arith.constant 255 : i32
    %2527 = tpu.dynamic_rotate %2055 by %c255_i32_656 dim 1 : vector<1x256xf32>, i32 -> vector<1x256xf32>
    %2528 = arith.mulf %2527, %2484 : vector<1x256xf32>
    %2529 = vector.broadcast %2148 : f32 to vector<1x256xf32>
    %2530 = arith.mulf %2529, %2528 : vector<1x256xf32>
    %2531 = arith.addf %2517, %2530 : vector<1x256xf32>
    %2532 = vector.broadcast %2149 : f32 to vector<1x256xf32>
    %2533 = arith.mulf %2532, %2528 : vector<1x256xf32>
    %2534 = arith.addf %2520, %2533 : vector<1x256xf32>
    %2535 = vector.broadcast %2150 : f32 to vector<1x256xf32>
    %2536 = arith.mulf %2535, %2528 : vector<1x256xf32>
    %2537 = arith.addf %2523, %2536 : vector<1x256xf32>
    %2538 = vector.broadcast %2151 : f32 to vector<1x256xf32>
    %2539 = arith.mulf %2538, %2528 : vector<1x256xf32>
    %2540 = arith.addf %2526, %2539 : vector<1x256xf32>
    %c6_657 = arith.constant 6 : index
    %c0_658 = arith.constant 0 : index
    %2541 = vector.load %arg2[%c6_657, %c0_658] : memref<9x256xf32, #tpu.memory_space<vmem>>, vector<1x256xf32>
    %c241_i32_659 = arith.constant 241 : i32
    %2542 = tpu.dynamic_rotate %2025 by %c241_i32_659 dim 1 : vector<1x256xf32>, i32 -> vector<1x256xf32>
    %2543 = arith.mulf %2542, %2541 : vector<1x256xf32>
    %2544 = vector.broadcast %2152 : f32 to vector<1x256xf32>
    %2545 = arith.mulf %2544, %2543 : vector<1x256xf32>
    %2546 = arith.addf %2531, %2545 : vector<1x256xf32>
    %2547 = vector.broadcast %2153 : f32 to vector<1x256xf32>
    %2548 = arith.mulf %2547, %2543 : vector<1x256xf32>
    %2549 = arith.addf %2534, %2548 : vector<1x256xf32>
    %2550 = vector.broadcast %2154 : f32 to vector<1x256xf32>
    %2551 = arith.mulf %2550, %2543 : vector<1x256xf32>
    %2552 = arith.addf %2537, %2551 : vector<1x256xf32>
    %2553 = vector.broadcast %2155 : f32 to vector<1x256xf32>
    %2554 = arith.mulf %2553, %2543 : vector<1x256xf32>
    %2555 = arith.addf %2540, %2554 : vector<1x256xf32>
    %c241_i32_660 = arith.constant 241 : i32
    %2556 = tpu.dynamic_rotate %2035 by %c241_i32_660 dim 1 : vector<1x256xf32>, i32 -> vector<1x256xf32>
    %2557 = arith.mulf %2556, %2541 : vector<1x256xf32>
    %2558 = vector.broadcast %2156 : f32 to vector<1x256xf32>
    %2559 = arith.mulf %2558, %2557 : vector<1x256xf32>
    %2560 = arith.addf %2546, %2559 : vector<1x256xf32>
    %2561 = vector.broadcast %2157 : f32 to vector<1x256xf32>
    %2562 = arith.mulf %2561, %2557 : vector<1x256xf32>
    %2563 = arith.addf %2549, %2562 : vector<1x256xf32>
    %2564 = vector.broadcast %2158 : f32 to vector<1x256xf32>
    %2565 = arith.mulf %2564, %2557 : vector<1x256xf32>
    %2566 = arith.addf %2552, %2565 : vector<1x256xf32>
    %2567 = vector.broadcast %2159 : f32 to vector<1x256xf32>
    %2568 = arith.mulf %2567, %2557 : vector<1x256xf32>
    %2569 = arith.addf %2555, %2568 : vector<1x256xf32>
    %c241_i32_661 = arith.constant 241 : i32
    %2570 = tpu.dynamic_rotate %2045 by %c241_i32_661 dim 1 : vector<1x256xf32>, i32 -> vector<1x256xf32>
    %2571 = arith.mulf %2570, %2541 : vector<1x256xf32>
    %2572 = vector.broadcast %2160 : f32 to vector<1x256xf32>
    %2573 = arith.mulf %2572, %2571 : vector<1x256xf32>
    %2574 = arith.addf %2560, %2573 : vector<1x256xf32>
    %2575 = vector.broadcast %2161 : f32 to vector<1x256xf32>
    %2576 = arith.mulf %2575, %2571 : vector<1x256xf32>
    %2577 = arith.addf %2563, %2576 : vector<1x256xf32>
    %2578 = vector.broadcast %2162 : f32 to vector<1x256xf32>
    %2579 = arith.mulf %2578, %2571 : vector<1x256xf32>
    %2580 = arith.addf %2566, %2579 : vector<1x256xf32>
    %2581 = vector.broadcast %2163 : f32 to vector<1x256xf32>
    %2582 = arith.mulf %2581, %2571 : vector<1x256xf32>
    %2583 = arith.addf %2569, %2582 : vector<1x256xf32>
    %c241_i32_662 = arith.constant 241 : i32
    %2584 = tpu.dynamic_rotate %2055 by %c241_i32_662 dim 1 : vector<1x256xf32>, i32 -> vector<1x256xf32>
    %2585 = arith.mulf %2584, %2541 : vector<1x256xf32>
    %2586 = vector.broadcast %2164 : f32 to vector<1x256xf32>
    %2587 = arith.mulf %2586, %2585 : vector<1x256xf32>
    %2588 = arith.addf %2574, %2587 : vector<1x256xf32>
    %2589 = vector.broadcast %2165 : f32 to vector<1x256xf32>
    %2590 = arith.mulf %2589, %2585 : vector<1x256xf32>
    %2591 = arith.addf %2577, %2590 : vector<1x256xf32>
    %2592 = vector.broadcast %2166 : f32 to vector<1x256xf32>
    %2593 = arith.mulf %2592, %2585 : vector<1x256xf32>
    %2594 = arith.addf %2580, %2593 : vector<1x256xf32>
    %2595 = vector.broadcast %2167 : f32 to vector<1x256xf32>
    %2596 = arith.mulf %2595, %2585 : vector<1x256xf32>
    %2597 = arith.addf %2583, %2596 : vector<1x256xf32>
    %c7_663 = arith.constant 7 : index
    %c0_664 = arith.constant 0 : index
    %2598 = vector.load %arg2[%c7_663, %c0_664] : memref<9x256xf32, #tpu.memory_space<vmem>>, vector<1x256xf32>
    %c240_i32_665 = arith.constant 240 : i32
    %2599 = tpu.dynamic_rotate %2025 by %c240_i32_665 dim 1 : vector<1x256xf32>, i32 -> vector<1x256xf32>
    %2600 = arith.mulf %2599, %2598 : vector<1x256xf32>
    %2601 = vector.broadcast %2168 : f32 to vector<1x256xf32>
    %2602 = arith.mulf %2601, %2600 : vector<1x256xf32>
    %2603 = arith.addf %2588, %2602 : vector<1x256xf32>
    %2604 = vector.broadcast %2169 : f32 to vector<1x256xf32>
    %2605 = arith.mulf %2604, %2600 : vector<1x256xf32>
    %2606 = arith.addf %2591, %2605 : vector<1x256xf32>
    %2607 = vector.broadcast %2170 : f32 to vector<1x256xf32>
    %2608 = arith.mulf %2607, %2600 : vector<1x256xf32>
    %2609 = arith.addf %2594, %2608 : vector<1x256xf32>
    %2610 = vector.broadcast %2171 : f32 to vector<1x256xf32>
    %2611 = arith.mulf %2610, %2600 : vector<1x256xf32>
    %2612 = arith.addf %2597, %2611 : vector<1x256xf32>
    %c240_i32_666 = arith.constant 240 : i32
    %2613 = tpu.dynamic_rotate %2035 by %c240_i32_666 dim 1 : vector<1x256xf32>, i32 -> vector<1x256xf32>
    %2614 = arith.mulf %2613, %2598 : vector<1x256xf32>
    %2615 = vector.broadcast %2172 : f32 to vector<1x256xf32>
    %2616 = arith.mulf %2615, %2614 : vector<1x256xf32>
    %2617 = arith.addf %2603, %2616 : vector<1x256xf32>
    %2618 = vector.broadcast %2173 : f32 to vector<1x256xf32>
    %2619 = arith.mulf %2618, %2614 : vector<1x256xf32>
    %2620 = arith.addf %2606, %2619 : vector<1x256xf32>
    %2621 = vector.broadcast %2174 : f32 to vector<1x256xf32>
    %2622 = arith.mulf %2621, %2614 : vector<1x256xf32>
    %2623 = arith.addf %2609, %2622 : vector<1x256xf32>
    %2624 = vector.broadcast %2175 : f32 to vector<1x256xf32>
    %2625 = arith.mulf %2624, %2614 : vector<1x256xf32>
    %2626 = arith.addf %2612, %2625 : vector<1x256xf32>
    %c240_i32_667 = arith.constant 240 : i32
    %2627 = tpu.dynamic_rotate %2045 by %c240_i32_667 dim 1 : vector<1x256xf32>, i32 -> vector<1x256xf32>
    %2628 = arith.mulf %2627, %2598 : vector<1x256xf32>
    %2629 = vector.broadcast %2176 : f32 to vector<1x256xf32>
    %2630 = arith.mulf %2629, %2628 : vector<1x256xf32>
    %2631 = arith.addf %2617, %2630 : vector<1x256xf32>
    %2632 = vector.broadcast %2177 : f32 to vector<1x256xf32>
    %2633 = arith.mulf %2632, %2628 : vector<1x256xf32>
    %2634 = arith.addf %2620, %2633 : vector<1x256xf32>
    %2635 = vector.broadcast %2178 : f32 to vector<1x256xf32>
    %2636 = arith.mulf %2635, %2628 : vector<1x256xf32>
    %2637 = arith.addf %2623, %2636 : vector<1x256xf32>
    %2638 = vector.broadcast %2179 : f32 to vector<1x256xf32>
    %2639 = arith.mulf %2638, %2628 : vector<1x256xf32>
    %2640 = arith.addf %2626, %2639 : vector<1x256xf32>
    %c240_i32_668 = arith.constant 240 : i32
    %2641 = tpu.dynamic_rotate %2055 by %c240_i32_668 dim 1 : vector<1x256xf32>, i32 -> vector<1x256xf32>
    %2642 = arith.mulf %2641, %2598 : vector<1x256xf32>
    %2643 = vector.broadcast %2180 : f32 to vector<1x256xf32>
    %2644 = arith.mulf %2643, %2642 : vector<1x256xf32>
    %2645 = arith.addf %2631, %2644 : vector<1x256xf32>
    %2646 = vector.broadcast %2181 : f32 to vector<1x256xf32>
    %2647 = arith.mulf %2646, %2642 : vector<1x256xf32>
    %2648 = arith.addf %2634, %2647 : vector<1x256xf32>
    %2649 = vector.broadcast %2182 : f32 to vector<1x256xf32>
    %2650 = arith.mulf %2649, %2642 : vector<1x256xf32>
    %2651 = arith.addf %2637, %2650 : vector<1x256xf32>
    %2652 = vector.broadcast %2183 : f32 to vector<1x256xf32>
    %2653 = arith.mulf %2652, %2642 : vector<1x256xf32>
    %2654 = arith.addf %2640, %2653 : vector<1x256xf32>
    %c8_669 = arith.constant 8 : index
    %c0_670 = arith.constant 0 : index
    %2655 = vector.load %arg2[%c8_669, %c0_670] : memref<9x256xf32, #tpu.memory_space<vmem>>, vector<1x256xf32>
    %c239_i32_671 = arith.constant 239 : i32
    %2656 = tpu.dynamic_rotate %2025 by %c239_i32_671 dim 1 : vector<1x256xf32>, i32 -> vector<1x256xf32>
    %2657 = arith.mulf %2656, %2655 : vector<1x256xf32>
    %2658 = vector.broadcast %2184 : f32 to vector<1x256xf32>
    %2659 = arith.mulf %2658, %2657 : vector<1x256xf32>
    %2660 = arith.addf %2645, %2659 : vector<1x256xf32>
    %2661 = vector.broadcast %2185 : f32 to vector<1x256xf32>
    %2662 = arith.mulf %2661, %2657 : vector<1x256xf32>
    %2663 = arith.addf %2648, %2662 : vector<1x256xf32>
    %2664 = vector.broadcast %2186 : f32 to vector<1x256xf32>
    %2665 = arith.mulf %2664, %2657 : vector<1x256xf32>
    %2666 = arith.addf %2651, %2665 : vector<1x256xf32>
    %2667 = vector.broadcast %2187 : f32 to vector<1x256xf32>
    %2668 = arith.mulf %2667, %2657 : vector<1x256xf32>
    %2669 = arith.addf %2654, %2668 : vector<1x256xf32>
    %c239_i32_672 = arith.constant 239 : i32
    %2670 = tpu.dynamic_rotate %2035 by %c239_i32_672 dim 1 : vector<1x256xf32>, i32 -> vector<1x256xf32>
    %2671 = arith.mulf %2670, %2655 : vector<1x256xf32>
    %2672 = vector.broadcast %2188 : f32 to vector<1x256xf32>
    %2673 = arith.mulf %2672, %2671 : vector<1x256xf32>
    %2674 = arith.addf %2660, %2673 : vector<1x256xf32>
    %2675 = vector.broadcast %2189 : f32 to vector<1x256xf32>
    %2676 = arith.mulf %2675, %2671 : vector<1x256xf32>
    %2677 = arith.addf %2663, %2676 : vector<1x256xf32>
    %2678 = vector.broadcast %2190 : f32 to vector<1x256xf32>
    %2679 = arith.mulf %2678, %2671 : vector<1x256xf32>
    %2680 = arith.addf %2666, %2679 : vector<1x256xf32>
    %2681 = vector.broadcast %2191 : f32 to vector<1x256xf32>
    %2682 = arith.mulf %2681, %2671 : vector<1x256xf32>
    %2683 = arith.addf %2669, %2682 : vector<1x256xf32>
    %c239_i32_673 = arith.constant 239 : i32
    %2684 = tpu.dynamic_rotate %2045 by %c239_i32_673 dim 1 : vector<1x256xf32>, i32 -> vector<1x256xf32>
    %2685 = arith.mulf %2684, %2655 : vector<1x256xf32>
    %2686 = vector.broadcast %2192 : f32 to vector<1x256xf32>
    %2687 = arith.mulf %2686, %2685 : vector<1x256xf32>
    %2688 = arith.addf %2674, %2687 : vector<1x256xf32>
    %2689 = vector.broadcast %2193 : f32 to vector<1x256xf32>
    %2690 = arith.mulf %2689, %2685 : vector<1x256xf32>
    %2691 = arith.addf %2677, %2690 : vector<1x256xf32>
    %2692 = vector.broadcast %2194 : f32 to vector<1x256xf32>
    %2693 = arith.mulf %2692, %2685 : vector<1x256xf32>
    %2694 = arith.addf %2680, %2693 : vector<1x256xf32>
    %2695 = vector.broadcast %2195 : f32 to vector<1x256xf32>
    %2696 = arith.mulf %2695, %2685 : vector<1x256xf32>
    %2697 = arith.addf %2683, %2696 : vector<1x256xf32>
    %c239_i32_674 = arith.constant 239 : i32
    %2698 = tpu.dynamic_rotate %2055 by %c239_i32_674 dim 1 : vector<1x256xf32>, i32 -> vector<1x256xf32>
    %2699 = arith.mulf %2698, %2655 : vector<1x256xf32>
    %2700 = vector.broadcast %2196 : f32 to vector<1x256xf32>
    %2701 = arith.mulf %2700, %2699 : vector<1x256xf32>
    %2702 = arith.addf %2688, %2701 : vector<1x256xf32>
    %2703 = vector.broadcast %2197 : f32 to vector<1x256xf32>
    %2704 = arith.mulf %2703, %2699 : vector<1x256xf32>
    %2705 = arith.addf %2691, %2704 : vector<1x256xf32>
    %2706 = vector.broadcast %2198 : f32 to vector<1x256xf32>
    %2707 = arith.mulf %2706, %2699 : vector<1x256xf32>
    %2708 = arith.addf %2694, %2707 : vector<1x256xf32>
    %2709 = vector.broadcast %2199 : f32 to vector<1x256xf32>
    %2710 = arith.mulf %2709, %2699 : vector<1x256xf32>
    %2711 = arith.addf %2697, %2710 : vector<1x256xf32>
    %cst_675 = arith.constant 0.000000e+00 : f32
    %2712 = vector.broadcast %cst_675 : f32 to vector<1x256xf32>
    %2713 = arith.subf %2712, %2702 : vector<1x256xf32>
    %2714 = math.exp %2713 : vector<1x256xf32>
    %cst_676 = arith.constant 1.000000e+00 : f32
    %2715 = vector.broadcast %cst_676 : f32 to vector<1x256xf32>
    %2716 = arith.addf %2715, %2714 : vector<1x256xf32>
    %2717 = tpu.reciprocal %2716 : vector<1x256xf32> -> vector<1x256xf32>
    %2718 = arith.mulf %2717, %1 : vector<1x256xf32>
    %c0_677 = arith.constant 0 : index
    %c0_678 = arith.constant 0 : index
    %c0_679 = arith.constant 0 : index
    %2719 = vector.load %arg11[%c0_677, %c0_678, %c0_679] : memref<1x4x256xf32, #tpu.memory_space<vmem>>, vector<1x1x256xf32>
    %2720 = vector.shape_cast %2719 : vector<1x1x256xf32> to vector<1x256xf32>
    %2721 = vector.shape_cast %2718 : vector<1x256xf32> to vector<1x1x256xf32>
    tpu.vector_store %arg11[%c0_677, %c0_678, %c0_679], %2721 {strides = array<i32>} : memref<1x4x256xf32, #tpu.memory_space<vmem>>, vector<1x1x256xf32>,
    %cst_680 = arith.constant 0.000000e+00 : f32
    %2722 = vector.broadcast %cst_680 : f32 to vector<1x256xf32>
    %2723 = arith.subf %2722, %2705 : vector<1x256xf32>
    %2724 = math.exp %2723 : vector<1x256xf32>
    %cst_681 = arith.constant 1.000000e+00 : f32
    %2725 = vector.broadcast %cst_681 : f32 to vector<1x256xf32>
    %2726 = arith.addf %2725, %2724 : vector<1x256xf32>
    %2727 = tpu.reciprocal %2726 : vector<1x256xf32> -> vector<1x256xf32>
    %2728 = arith.mulf %2727, %3 : vector<1x256xf32>
    %c0_682 = arith.constant 0 : index
    %c1_683 = arith.constant 1 : index
    %c0_684 = arith.constant 0 : index
    %2729 = vector.load %arg11[%c0_682, %c1_683, %c0_684] : memref<1x4x256xf32, #tpu.memory_space<vmem>>, vector<1x1x256xf32>
    %2730 = vector.shape_cast %2729 : vector<1x1x256xf32> to vector<1x256xf32>
    %2731 = vector.shape_cast %2728 : vector<1x256xf32> to vector<1x1x256xf32>
    tpu.vector_store %arg11[%c0_682, %c1_683, %c0_684], %2731 {strides = array<i32>} : memref<1x4x256xf32, #tpu.memory_space<vmem>>, vector<1x1x256xf32>,
    %cst_685 = arith.constant 0.000000e+00 : f32
    %2732 = vector.broadcast %cst_685 : f32 to vector<1x256xf32>
    %2733 = arith.subf %2732, %2708 : vector<1x256xf32>
    %2734 = math.exp %2733 : vector<1x256xf32>
    %cst_686 = arith.constant 1.000000e+00 : f32
    %2735 = vector.broadcast %cst_686 : f32 to vector<1x256xf32>
    %2736 = arith.addf %2735, %2734 : vector<1x256xf32>
    %2737 = tpu.reciprocal %2736 : vector<1x256xf32> -> vector<1x256xf32>
    %2738 = arith.mulf %2737, %5 : vector<1x256xf32>
    %c0_687 = arith.constant 0 : index
    %c2_688 = arith.constant 2 : index
    %c0_689 = arith.constant 0 : index
    %2739 = vector.load %arg11[%c0_687, %c2_688, %c0_689] : memref<1x4x256xf32, #tpu.memory_space<vmem>>, vector<1x1x256xf32>
    %2740 = vector.shape_cast %2739 : vector<1x1x256xf32> to vector<1x256xf32>
    %2741 = vector.shape_cast %2738 : vector<1x256xf32> to vector<1x1x256xf32>
    tpu.vector_store %arg11[%c0_687, %c2_688, %c0_689], %2741 {strides = array<i32>} : memref<1x4x256xf32, #tpu.memory_space<vmem>>, vector<1x1x256xf32>,
    %cst_690 = arith.constant 0.000000e+00 : f32
    %2742 = vector.broadcast %cst_690 : f32 to vector<1x256xf32>
    %2743 = arith.subf %2742, %2711 : vector<1x256xf32>
    %2744 = math.exp %2743 : vector<1x256xf32>
    %cst_691 = arith.constant 1.000000e+00 : f32
    %2745 = vector.broadcast %cst_691 : f32 to vector<1x256xf32>
    %2746 = arith.addf %2745, %2744 : vector<1x256xf32>
    %2747 = tpu.reciprocal %2746 : vector<1x256xf32> -> vector<1x256xf32>
    %2748 = arith.mulf %2747, %7 : vector<1x256xf32>
    %c0_692 = arith.constant 0 : index
    %c3_693 = arith.constant 3 : index
    %c0_694 = arith.constant 0 : index
    %2749 = vector.load %arg11[%c0_692, %c3_693, %c0_694] : memref<1x4x256xf32, #tpu.memory_space<vmem>>, vector<1x1x256xf32>
    %2750 = vector.shape_cast %2749 : vector<1x1x256xf32> to vector<1x256xf32>
    %2751 = vector.shape_cast %2748 : vector<1x256xf32> to vector<1x1x256xf32>
    tpu.vector_store %arg11[%c0_692, %c3_693, %c0_694], %2751 {strides = array<i32>} : memref<1x4x256xf32, #tpu.memory_space<vmem>>, vector<1x1x256xf32>,
    return
  }
  func.func @transform_0(%arg0: i32) -> (i32, i32, i32) {
    %c0_i32 = arith.constant 0 : i32
    %c0_i32_0 = arith.constant 0 : i32
    %c0_i32_1 = arith.constant 0 : i32
    return %arg0, %c0_i32, %c0_i32_0 : i32, i32, i32
  }
  func.func @transform_1(%arg0: i32) -> (i32, i32) {
    %c0_i32 = arith.constant 0 : i32
    %c0_i32_0 = arith.constant 0 : i32
    %c0_i32_1 = arith.constant 0 : i32
    return %c0_i32, %c0_i32_0 : i32, i32
  }
  func.func @transform_2(%arg0: i32) -> i32 {
    %c0_i32 = arith.constant 0 : i32
    %c0_i32_0 = arith.constant 0 : i32
    return %c0_i32 : i32
  }
  func.func @transform_3(%arg0: i32) -> i32 {
    %c0_i32 = arith.constant 0 : i32
    %c0_i32_0 = arith.constant 0 : i32
    return %c0_i32 : i32
  }
  func.func @transform_4(%arg0: i32) -> i32 {
    %c0_i32 = arith.constant 0 : i32
    %c0_i32_0 = arith.constant 0 : i32
    return %c0_i32 : i32
  }
  func.func @transform_5(%arg0: i32) -> i32 {
    %c0_i32 = arith.constant 0 : i32
    %c0_i32_0 = arith.constant 0 : i32
    return %c0_i32 : i32
  }
  func.func @transform_6(%arg0: i32) -> i32 {
    %c0_i32 = arith.constant 0 : i32
    %c0_i32_0 = arith.constant 0 : i32
    return %c0_i32 : i32
  }
  func.func @transform_7(%arg0: i32) -> i32 {
    %c0_i32 = arith.constant 0 : i32
    %c0_i32_0 = arith.constant 0 : i32
    return %c0_i32 : i32
  }
  func.func @transform_8(%arg0: i32) -> i32 {
    %c0_i32 = arith.constant 0 : i32
    %c0_i32_0 = arith.constant 0 : i32
    return %c0_i32 : i32
  }
  func.func @transform_9(%arg0: i32) -> i32 {
    %c0_i32 = arith.constant 0 : i32
    %c0_i32_0 = arith.constant 0 : i32
    return %c0_i32 : i32
  }
  func.func @transform_10(%arg0: i32) -> (i32, i32, i32) {
    %c0_i32 = arith.constant 0 : i32
    %c0_i32_0 = arith.constant 0 : i32
    %c0_i32_1 = arith.constant 0 : i32
    return %arg0, %c0_i32, %c0_i32_0 : i32, i32, i32
  }
}

</mosaic_0001>

<llo_original>
// kernel: tpu_custom_call.1
$region0: #{tpu_custom_call.1}
  #allocation0 [shape = 'u32[]', space=smem, size = 0x4, offset = 0x4, fixed_abs, tag = 'smem constant byte address 0x4 - core index']
  #allocation1 [shape = 'u32[144,128]{1,0:T(1,128)}', space=vmem, size = 0x12000, scoped, tag = 'internal scratch']
  %s0 = inlined_call_operand.hbm [shape: f32[2,4,256], index: 0, kind: input, shape index: {}]
  %s1 = inlined_call_operand.hbm [shape: f32[9,256], index: 1, kind: input, shape index: {}]
  %s2 = inlined_call_operand.vmem [shape: f32[144], index: 2, kind: input, shape index: {}]
  %s3 = inlined_call_operand.vmem [shape: f32[4], index: 3, kind: input, shape index: {}]
  %s4 = inlined_call_operand.vmem [shape: f32[144], index: 4, kind: input, shape index: {}]
  %s5 = inlined_call_operand.vmem [shape: f32[4], index: 5, kind: input, shape index: {}]
  %s6 = inlined_call_operand.vmem [shape: f32[144], index: 6, kind: input, shape index: {}]
  %s7 = inlined_call_operand.vmem [shape: f32[4], index: 7, kind: input, shape index: {}]
  %s8 = inlined_call_operand.vmem [shape: f32[144], index: 8, kind: input, shape index: {}]
  %s9 = inlined_call_operand.vmem [shape: f32[4], index: 9, kind: input, shape index: {}]
  %s10 = inlined_call_operand.hbm [shape: f32[2,4,256], index: 10, kind: output, shape index: {}]
  %s11 = sld [smem:[#allocation0]]
  $region113: #{tpu_custom_call.1} parent=0
    _
  %s13 = ssub.s32 1, %s11
  %s14 = scalar_select 0, %s13, %s11
  $region1: #{tpu_custom_call.1} parent=0
    #allocation2 [shape = 'u8[8192]{0}', space=vmem, size = 0x2000, scoped, tag = 'input window, operand 0']
    #allocation3 [shape = 's32[2]{0}', space=sflag, size = 0x8, scoped, tag = 'scoped memory for tpu_custom_call.1']
    #allocation4 [shape = 's32[2]{0}', space=sflag, size = 0x8, scoped, tag = 'scoped memory for tpu_custom_call.1']
    #allocation5 [shape = 's32[2]{0}', space=sflag, size = 0x8, scoped, tag = 'scoped memory for tpu_custom_call.1']
    #allocation6 [shape = 'u8[16384]{0}', space=vmem, size = 0x4000, scoped, tag = 'input window, operand 1, single buffered']
    #allocation7 [shape = 's32[1]{0}', space=sflag, size = 0x4, scoped, tag = 'scoped memory for tpu_custom_call.1']
    #allocation8 [shape = 'u8[1024]{0}', space=smem, size = 0x400, scoped, tag = 'input window, operand 2, single buffered']
    #allocation9 [shape = 'u8[512]{0}', space=smem, size = 0x200, scoped, tag = 'input window, operand 3, single buffered']
    #allocation10 [shape = 's32[1]{0}', space=sflag, size = 0x4, scoped, tag = 'scoped memory for tpu_custom_call.1']
    #allocation11 [shape = 'u8[1024]{0}', space=smem, size = 0x400, scoped, tag = 'input window, operand 4, single buffered']
    #allocation12 [shape = 'u8[512]{0}', space=smem, size = 0x200, scoped, tag = 'input window, operand 5, single buffered']
    #allocation13 [shape = 's32[1]{0}', space=sflag, size = 0x4, scoped, tag = 'scoped memory for tpu_custom_call.1']
    #allocation14 [shape = 'u8[1024]{0}', space=smem, size = 0x400, scoped, tag = 'input window, operand 6, single buffered']
    #allocation15 [shape = 'u8[512]{0}', space=smem, size = 0x200, scoped, tag = 'input window, operand 7, single buffered']
    #allocation16 [shape = 's32[1]{0}', space=sflag, size = 0x4, scoped, tag = 'scoped memory for tpu_custom_call.1']
    #allocation17 [shape = 'u8[1024]{0}', space=smem, size = 0x400, scoped, tag = 'input window, operand 8, single buffered']
    #allocation18 [shape = 'u8[512]{0}', space=smem, size = 0x200, scoped, tag = 'input window, operand 9, single buffered']
    #allocation19 [shape = 's32[1]{0}', space=sflag, size = 0x4, scoped, tag = 'scoped memory for tpu_custom_call.1']
    #allocation20 [shape = 'u8[8192]{0}', space=vmem, size = 0x2000, scoped, tag = 'output window, operand 0']
    %15 = vsyncpa [#allocation3], 0
    %s16 = scalar_lea.sflag [#allocation3], 1
    %17 = vsyncpa %s16, 0
    %18 = vsyncpa [#allocation7], 0
    %19 = vsyncpa [#allocation5], 0
    %20 = vsyncpa [#allocation10], 0
    %21 = vsyncpa [#allocation13], 0
    %22 = vsyncpa [#allocation16], 0
    %23 = vsyncpa [#allocation19], 0
    %24 = vsyncpa [#allocation4], 0
    %s25 = scalar_lea.sflag [#allocation4], 1
    %26 = vsyncpa %s25, 0
    loop: start=0, step=1, limit=4
    $region2: #{tpu_custom_call.1} parent=1 // loop_pre_header
      _
    $region3: #{tpu_custom_call.1} parent=1 // loop_header
      %s28 = sphi 0, %s32
      %p29 = scmp.ge.s32.totalorder %s28, 4
      %s38 = sphi 0, %s40
      %s41 = sphi 0, %s38
      %s42 = sphi 0, %s41
      %s58 = sphi 0, %s42
      %s62 = sphi 0, %s62
      %s64 = sphi 0, %s62
      %s65 = sphi 0, %s64
      %s79 = sphi 0, %s65
      %s83 = sphi 0, %s83
      %s85 = sphi 0, %s83
      %s86 = sphi 0, %s85
      %s100 = sphi 0, %s86
      %s104 = sphi 0, %s104
      %s106 = sphi 0, %s104
      %s107 = sphi 0, %s106
      %s121 = sphi 0, %s107
      %s125 = sphi 0, %s125
      %s127 = sphi 0, %s125
      %s128 = sphi 0, %s127
      %s142 = sphi 0, %s128
      %s146 = sphi 0, %s146
      %s148 = sphi 0, %s146
      %s149 = sphi 0, %s148
      %s163 = sphi 0, %s149
      %s167 = sphi 0, %s167
      %s169 = sphi 0, %s167
      %s170 = sphi 0, %s169
      %s184 = sphi 0, %s170
      %s188 = sphi 0, %s188
      %s190 = sphi 0, %s188
      %s191 = sphi 0, %s190
      %s205 = sphi 0, %s191
      %s209 = sphi 0, %s209
      %s211 = sphi 0, %s209
      %s212 = sphi 0, %s211
      %s226 = sphi 0, %s212
      %s230 = sphi 0, %s230
      %s232 = sphi 0, %s230
      %s233 = sphi 0, %s232
      %s247 = sphi 0, %s233
      %s253 = sphi 0, %s255
      %s256 = sphi 0, %s253
      %s257 = sphi 0, %s256
      %s273 = sphi 0, %s257
    $region4: #{tpu_custom_call.1} parent=1 // loop_header_branch
      %31 = sbr.rel (%p29) target = $region8
    $region5: #{tpu_custom_call.1} parent=1 // loop_body
      %s33 = ssub.s32 %s28, 1
      %s34 = ssub.s32 %s28, 2
      %s35 = sadd.s32 %s28, 1
      %s36 = ssub.s32 %s28, %s35
      %p37 = scmp.eq.s32.totalorder %s36, 0
      %s39 = sadd.s32 %s38, 1
      %s40 = scalar_select %p37, %s38, %s39
      %p43 = pneg %p37
      %p44 = scmp.eq.s32.totalorder %s28, 1
      %p45 = por %p43, %p44
      %p46 = scmp.ne.s32.totalorder %s38, %s41
      %p47 = scmp.eq.s32.totalorder %s28, 0
      %p48 = por %p46, %p47
      %p49 = scmp.ne.s32.totalorder %s38, %s41
      %p50 = scmp.eq.s32.totalorder %s33, 1
      %p51 = por %p49, %p50
      %p52 = scmp.ne.s32.totalorder %s41, %s42
      %p53 = scmp.eq.s32.totalorder %s33, 0
      %p54 = por %p52, %p53
      %p55 = scmp.ne.s32.totalorder %s41, %s42
      %p56 = scmp.eq.s32.totalorder %s34, 1
      %p57 = por %p55, %p56
      %p59 = scmp.ne.s32.totalorder %s42, %s58
      %p60 = scmp.eq.s32.totalorder %s34, 0
      %p61 = por %p59, %p60
      %s63 = sadd.s32 %s62, 1
      %p66 = scmp.eq.s32.totalorder %s28, 1
      %p67 = scmp.ne.s32.totalorder %s62, %s64
      %p68 = scmp.eq.s32.totalorder %s28, 0
      %p69 = por %p67, %p68
      %p70 = scmp.ne.s32.totalorder %s62, %s64
      %p71 = scmp.eq.s32.totalorder %s33, 1
      %p72 = por %p70, %p71
      %p73 = scmp.ne.s32.totalorder %s64, %s65
      %p74 = scmp.eq.s32.totalorder %s33, 0
      %p75 = por %p73, %p74
      %p76 = scmp.ne.s32.totalorder %s64, %s65
      %p77 = scmp.eq.s32.totalorder %s34, 1
      %p78 = por %p76, %p77
      %p80 = scmp.ne.s32.totalorder %s65, %s79
      %p81 = scmp.eq.s32.totalorder %s34, 0
      %p82 = por %p80, %p81
      %s84 = sadd.s32 %s83, 1
      %p87 = scmp.eq.s32.totalorder %s28, 1
      %p88 = scmp.ne.s32.totalorder %s83, %s85
      %p89 = scmp.eq.s32.totalorder %s28, 0
      %p90 = por %p88, %p89
      %p91 = scmp.ne.s32.totalorder %s83, %s85
      %p92 = scmp.eq.s32.totalorder %s33, 1
      %p93 = por %p91, %p92
      %p94 = scmp.ne.s32.totalorder %s85, %s86
      %p95 = scmp.eq.s32.totalorder %s33, 0
      %p96 = por %p94, %p95
      %p97 = scmp.ne.s32.totalorder %s85, %s86
      %p98 = scmp.eq.s32.totalorder %s34, 1
      %p99 = por %p97, %p98
      %p101 = scmp.ne.s32.totalorder %s86, %s100
      %p102 = scmp.eq.s32.totalorder %s34, 0
      %p103 = por %p101, %p102
      %s105 = sadd.s32 %s104, 1
      %p108 = scmp.eq.s32.totalorder %s28, 1
      %p109 = scmp.ne.s32.totalorder %s104, %s106
      %p110 = scmp.eq.s32.totalorder %s28, 0
      %p111 = por %p109, %p110
      %p112 = scmp.ne.s32.totalorder %s104, %s106
      %p113 = scmp.eq.s32.totalorder %s33, 1
      %p114 = por %p112, %p113
      %p115 = scmp.ne.s32.totalorder %s106, %s107
      %p116 = scmp.eq.s32.totalorder %s33, 0
      %p117 = por %p115, %p116
      %p118 = scmp.ne.s32.totalorder %s106, %s107
      %p119 = scmp.eq.s32.totalorder %s34, 1
      %p120 = por %p118, %p119
      %p122 = scmp.ne.s32.totalorder %s107, %s121
      %p123 = scmp.eq.s32.totalorder %s34, 0
      %p124 = por %p122, %p123
      %s126 = sadd.s32 %s125, 1
      %p129 = scmp.eq.s32.totalorder %s28, 1
      %p130 = scmp.ne.s32.totalorder %s125, %s127
      %p131 = scmp.eq.s32.totalorder %s28, 0
      %p132 = por %p130, %p131
      %p133 = scmp.ne.s32.totalorder %s125, %s127
      %p134 = scmp.eq.s32.totalorder %s33, 1
      %p135 = por %p133, %p134
      %p136 = scmp.ne.s32.totalorder %s127, %s128
      %p137 = scmp.eq.s32.totalorder %s33, 0
      %p138 = por %p136, %p137
      %p139 = scmp.ne.s32.totalorder %s127, %s128
      %p140 = scmp.eq.s32.totalorder %s34, 1
      %p141 = por %p139, %p140
      %p143 = scmp.ne.s32.totalorder %s128, %s142
      %p144 = scmp.eq.s32.totalorder %s34, 0
      %p145 = por %p143, %p144
      %s147 = sadd.s32 %s146, 1
      %p150 = scmp.eq.s32.totalorder %s28, 1
      %p151 = scmp.ne.s32.totalorder %s146, %s148
      %p152 = scmp.eq.s32.totalorder %s28, 0
      %p153 = por %p151, %p152
      %p154 = scmp.ne.s32.totalorder %s146, %s148
      %p155 = scmp.eq.s32.totalorder %s33, 1
      %p156 = por %p154, %p155
      %p157 = scmp.ne.s32.totalorder %s148, %s149
      %p158 = scmp.eq.s32.totalorder %s33, 0
      %p159 = por %p157, %p158
      %p160 = scmp.ne.s32.totalorder %s148, %s149
      %p161 = scmp.eq.s32.totalorder %s34, 1
      %p162 = por %p160, %p161
      %p164 = scmp.ne.s32.totalorder %s149, %s163
      %p165 = scmp.eq.s32.totalorder %s34, 0
      %p166 = por %p164, %p165
      %s168 = sadd.s32 %s167, 1
      %p171 = scmp.eq.s32.totalorder %s28, 1
      %p172 = scmp.ne.s32.totalorder %s167, %s169
      %p173 = scmp.eq.s32.totalorder %s28, 0
      %p174 = por %p172, %p173
      %p175 = scmp.ne.s32.totalorder %s167, %s169
      %p176 = scmp.eq.s32.totalorder %s33, 1
      %p177 = por %p175, %p176
      %p178 = scmp.ne.s32.totalorder %s169, %s170
      %p179 = scmp.eq.s32.totalorder %s33, 0
      %p180 = por %p178, %p179
      %p181 = scmp.ne.s32.totalorder %s169, %s170
      %p182 = scmp.eq.s32.totalorder %s34, 1
      %p183 = por %p181, %p182
      %p185 = scmp.ne.s32.totalorder %s170, %s184
      %p186 = scmp.eq.s32.totalorder %s34, 0
      %p187 = por %p185, %p186
      %s189 = sadd.s32 %s188, 1
      %p192 = scmp.eq.s32.totalorder %s28, 1
      %p193 = scmp.ne.s32.totalorder %s188, %s190
      %p194 = scmp.eq.s32.totalorder %s28, 0
      %p195 = por %p193, %p194
      %p196 = scmp.ne.s32.totalorder %s188, %s190
      %p197 = scmp.eq.s32.totalorder %s33, 1
      %p198 = por %p196, %p197
      %p199 = scmp.ne.s32.totalorder %s190, %s191
      %p200 = scmp.eq.s32.totalorder %s33, 0
      %p201 = por %p199, %p200
      %p202 = scmp.ne.s32.totalorder %s190, %s191
      %p203 = scmp.eq.s32.totalorder %s34, 1
      %p204 = por %p202, %p203
      %p206 = scmp.ne.s32.totalorder %s191, %s205
      %p207 = scmp.eq.s32.totalorder %s34, 0
      %p208 = por %p206, %p207
      %s210 = sadd.s32 %s209, 1
      %p213 = scmp.eq.s32.totalorder %s28, 1
      %p214 = scmp.ne.s32.totalorder %s209, %s211
      %p215 = scmp.eq.s32.totalorder %s28, 0
      %p216 = por %p214, %p215
      %p217 = scmp.ne.s32.totalorder %s209, %s211
      %p218 = scmp.eq.s32.totalorder %s33, 1
      %p219 = por %p217, %p218
      %p220 = scmp.ne.s32.totalorder %s211, %s212
      %p221 = scmp.eq.s32.totalorder %s33, 0
      %p222 = por %p220, %p221
      %p223 = scmp.ne.s32.totalorder %s211, %s212
      %p224 = scmp.eq.s32.totalorder %s34, 1
      %p225 = por %p223, %p224
      %p227 = scmp.ne.s32.totalorder %s212, %s226
      %p228 = scmp.eq.s32.totalorder %s34, 0
      %p229 = por %p227, %p228
      %s231 = sadd.s32 %s230, 1
      %p234 = scmp.eq.s32.totalorder %s28, 1
      %p235 = scmp.ne.s32.totalorder %s230, %s232
      %p236 = scmp.eq.s32.totalorder %s28, 0
      %p237 = por %p235, %p236
      %p238 = scmp.ne.s32.totalorder %s230, %s232
      %p239 = scmp.eq.s32.totalorder %s33, 1
      %p240 = por %p238, %p239
      %p241 = scmp.ne.s32.totalorder %s232, %s233
      %p242 = scmp.eq.s32.totalorder %s33, 0
      %p243 = por %p241, %p242
      %p244 = scmp.ne.s32.totalorder %s232, %s233
      %p245 = scmp.eq.s32.totalorder %s34, 1
      %p246 = por %p244, %p245
      %p248 = scmp.ne.s32.totalorder %s233, %s247
      %p249 = scmp.eq.s32.totalorder %s34, 0
      %p250 = por %p248, %p249
      %s251 = ssub.s32 %s28, %s35
      %p252 = scmp.eq.s32.totalorder %s251, 0
      %s254 = sadd.s32 %s253, 1
      %s255 = scalar_select %p252, %s253, %s254
      %p258 = pneg %p252
      %p259 = scmp.eq.s32.totalorder %s28, 1
      %p260 = por %p258, %p259
      %p261 = scmp.ne.s32.totalorder %s253, %s256
      %p262 = scmp.eq.s32.totalorder %s28, 0
      %p263 = por %p261, %p262
      %p264 = scmp.ne.s32.totalorder %s253, %s256
      %p265 = scmp.eq.s32.totalorder %s33, 1
      %p266 = por %p264, %p265
      %p267 = scmp.ne.s32.totalorder %s256, %s257
      %p268 = scmp.eq.s32.totalorder %s33, 0
      %p269 = por %p267, %p268
      %p270 = scmp.ne.s32.totalorder %s256, %s257
      %p271 = scmp.eq.s32.totalorder %s34, 1
      %p272 = por %p270, %p271
      %p274 = scmp.ne.s32.totalorder %s257, %s273
      %p275 = scmp.eq.s32.totalorder %s34, 0
      %p276 = por %p274, %p275
      %p277 = scmp.le.s32.totalorder 1, %s28
      %p278 = scmp.lt.s32.totalorder %s28, 3
      %p279 = pnand %p277, %p278
      %p280 = pneg %p279
      // Predicated region
      $region9: #{tpu_custom_call.1} parent=5 // pred_check
        _
      $region10: #{tpu_custom_call.1} parent=5 // pred_check_branch
        %282 = sbr.rel (%p279) target = $region12
      $region11: #{tpu_custom_call.1} parent=5 // pred_region
        %s283 = ssub.s32 %s28, 1
        // Predicated region
        $region13: #{tpu_custom_call.1} parent=11 // pred_check
          %p284 = pneg %p75
        $region14: #{tpu_custom_call.1} parent=11 // pred_check_branch
          %286 = sbr.rel (%p284) target = $region16
        $region15: #{tpu_custom_call.1} parent=11 // pred_region
          %s288 = ssub.s32 512, 512
          %289 = vsyncadd [#allocation7], %s288
          %s290 = sshll.u32 [#allocation6], 4
          %s291 = int_to_ptr.vmem [resolvable:$true] %s290
          %296 = dma.hbm_to_vmem [thread:$0]  %s1, 512, %s291, [#allocation7], 256, 256, 16
        $region16: #{tpu_custom_call.1} parent=11 // pred_fallthru
          _
        // Predicated region
        $region17: #{tpu_custom_call.1} parent=11 // pred_check
          %p297 = pneg %p96
        $region18: #{tpu_custom_call.1} parent=11 // pred_check_branch
          %299 = sbr.rel (%p297) target = $region20
        $region19: #{tpu_custom_call.1} parent=11 // pred_region
          %s301 = ssub.s32 32, 32
          %302 = vsyncadd [#allocation5], %s301
          %s304 = sshll.u32 %s2, 4
          %s305 = int_to_ptr.vmem [resolvable:$true] %s304
          %307 = dma.vmem_to_smem %s305, 32, [#allocation8], [#allocation5]
        $region20: #{tpu_custom_call.1} parent=11 // pred_fallthru
          _
        // Predicated region
        $region21: #{tpu_custom_call.1} parent=11 // pred_check
          %p308 = pneg %p117
        $region22: #{tpu_custom_call.1} parent=11 // pred_check_branch
          %310 = sbr.rel (%p308) target = $region24
        $region23: #{tpu_custom_call.1} parent=11 // pred_region
          %s312 = ssub.s32 16, 16
          %313 = vsyncadd [#allocation10], %s312
          %s315 = sshll.u32 %s3, 4
          %s316 = int_to_ptr.vmem [resolvable:$true] %s315
          %318 = dma.vmem_to_smem %s316, 16, [#allocation9], [#allocation10]
        $region24: #{tpu_custom_call.1} parent=11 // pred_fallthru
          _
        // Predicated region
        $region25: #{tpu_custom_call.1} parent=11 // pred_check
          %p319 = pneg %p138
        $region26: #{tpu_custom_call.1} parent=11 // pred_check_branch
          %321 = sbr.rel (%p319) target = $region28
        $region27: #{tpu_custom_call.1} parent=11 // pred_region
          %s323 = ssub.s32 32, 32
          %324 = vsyncadd [#allocation10], %s323
          %s326 = sshll.u32 %s4, 4
          %s327 = int_to_ptr.vmem [resolvable:$true] %s326
          %329 = dma.vmem_to_smem %s327, 32, [#allocation11], [#allocation10]
        $region28: #{tpu_custom_call.1} parent=11 // pred_fallthru
          _
        // Predicated region
        $region29: #{tpu_custom_call.1} parent=11 // pred_check
          %p330 = pneg %p159
        $region30: #{tpu_custom_call.1} parent=11 // pred_check_branch
          %332 = sbr.rel (%p330) target = $region32
        $region31: #{tpu_custom_call.1} parent=11 // pred_region
          %s334 = ssub.s32 16, 16
          %335 = vsyncadd [#allocation13], %s334
          %s337 = sshll.u32 %s5, 4
          %s338 = int_to_ptr.vmem [resolvable:$true] %s337
          %340 = dma.vmem_to_smem %s338, 16, [#allocation12], [#allocation13]
        $region32: #{tpu_custom_call.1} parent=11 // pred_fallthru
          _
        // Predicated region
        $region33: #{tpu_custom_call.1} parent=11 // pred_check
          %p341 = pneg %p180
        $region34: #{tpu_custom_call.1} parent=11 // pred_check_branch
          %343 = sbr.rel (%p341) target = $region36
        $region35: #{tpu_custom_call.1} parent=11 // pred_region
          %s345 = ssub.s32 32, 32
          %346 = vsyncadd [#allocation13], %s345
          %s348 = sshll.u32 %s6, 4
          %s349 = int_to_ptr.vmem [resolvable:$true] %s348
          %351 = dma.vmem_to_smem %s349, 32, [#allocation14], [#allocation13]
        $region36: #{tpu_custom_call.1} parent=11 // pred_fallthru
          _
        // Predicated region
        $region37: #{tpu_custom_call.1} parent=11 // pred_check
          %p352 = pneg %p201
        $region38: #{tpu_custom_call.1} parent=11 // pred_check_branch
          %354 = sbr.rel (%p352) target = $region40
        $region39: #{tpu_custom_call.1} parent=11 // pred_region
          %s356 = ssub.s32 16, 16
          %357 = vsyncadd [#allocation16], %s356
          %s359 = sshll.u32 %s7, 4
          %s360 = int_to_ptr.vmem [resolvable:$true] %s359
          %362 = dma.vmem_to_smem %s360, 16, [#allocation15], [#allocation16]
        $region40: #{tpu_custom_call.1} parent=11 // pred_fallthru
          _
        // Predicated region
        $region41: #{tpu_custom_call.1} parent=11 // pred_check
          %p363 = pneg %p222
        $region42: #{tpu_custom_call.1} parent=11 // pred_check_branch
          %365 = sbr.rel (%p363) target = $region44
        $region43: #{tpu_custom_call.1} parent=11 // pred_region
          %s367 = ssub.s32 32, 32
          %368 = vsyncadd [#allocation16], %s367
          %s370 = sshll.u32 %s8, 4
          %s371 = int_to_ptr.vmem [resolvable:$true] %s370
          %373 = dma.vmem_to_smem %s371, 32, [#allocation17], [#allocation16]
        $region44: #{tpu_custom_call.1} parent=11 // pred_fallthru
          _
        // Predicated region
        $region45: #{tpu_custom_call.1} parent=11 // pred_check
          %p374 = pneg %p243
        $region46: #{tpu_custom_call.1} parent=11 // pred_check_branch
          %376 = sbr.rel (%p374) target = $region48
        $region47: #{tpu_custom_call.1} parent=11 // pred_region
          %s378 = ssub.s32 16, 16
          %379 = vsyncadd [#allocation19], %s378
          %s381 = sshll.u32 %s9, 4
          %s382 = int_to_ptr.vmem [resolvable:$true] %s381
          %384 = dma.vmem_to_smem %s382, 16, [#allocation18], [#allocation19]
        $region48: #{tpu_custom_call.1} parent=11 // pred_fallthru
          _
      $region12: #{tpu_custom_call.1} parent=5 // pred_fallthru
        _
      %p385 = scmp.lt.s32.totalorder %s28, 2
      // Predicated region
      $region49: #{tpu_custom_call.1} parent=5 // pred_check
        %p386 = pneg %p385
      $region50: #{tpu_custom_call.1} parent=5 // pred_check_branch
        %388 = sbr.rel (%p386) target = $region52
      $region51: #{tpu_custom_call.1} parent=5 // pred_region
        // Predicated region
        $region53: #{tpu_custom_call.1} parent=51 // pred_check
          %p389 = pneg %p48
        $region54: #{tpu_custom_call.1} parent=51 // pred_check_branch
          %391 = sbr.rel (%p389) target = $region56
        $region55: #{tpu_custom_call.1} parent=51 // pred_region
          %s392 = sand.u32 %s38, 1
          %s393 = scalar_lea.sflag [#allocation3], %s392
          %s394 = sand.u32 %s38, 1
          %s395 = smul.addr %s394, 8
          %s396 = scalar_lea.vmem [#allocation2], %s395
          %s398 = ssub.s32 128, 128
          %399 = vsyncadd %s393, %s398
          %s400 = smul.addr %s28, 2
          %s401 = smul.addr %s400, 64
          %s402 = scalar_lea.hbm %s0, %s401
          %s404 = sshll.u32 %s396, 4
          %s405 = int_to_ptr.vmem [resolvable:$true] %s404
          %407 = dma.hbm_to_vmem [thread:$0]  %s402, 128, %s405, %s393
        $region56: #{tpu_custom_call.1} parent=51 // pred_fallthru
          _
      $region52: #{tpu_custom_call.1} parent=5 // pred_fallthru
        _
      %p408 = scmp.le.s32.totalorder 1, %s28
      %p409 = scmp.lt.s32.totalorder %s28, 3
      %p410 = pnand %p408, %p409
      %p411 = pneg %p410
      // Predicated region
      $region57: #{tpu_custom_call.1} parent=5 // pred_check
        _
      $region58: #{tpu_custom_call.1} parent=5 // pred_check_branch
        %413 = sbr.rel (%p410) target = $region60
      $region59: #{tpu_custom_call.1} parent=5 // pred_region
        %s414 = ssub.s32 %s28, 1
        %s415 = sand.u32 %s41, 1
        %s416 = scalar_lea.sflag [#allocation3], %s415
        %s417 = sand.u32 %s41, 1
        %s418 = smul.addr %s417, 8
        %s419 = scalar_lea.vmem [#allocation2], %s418
        // Predicated region
        $region61: #{tpu_custom_call.1} parent=59 // pred_check
          %p420 = pneg %p54
        $region62: #{tpu_custom_call.1} parent=59 // pred_check_branch
          %422 = sbr.rel (%p420) target = $region64
        $region63: #{tpu_custom_call.1} parent=59 // pred_region
          %423 = dma.done %s416, 128
        $region64: #{tpu_custom_call.1} parent=59 // pred_fallthru
          _
        // Predicated region
        $region65: #{tpu_custom_call.1} parent=59 // pred_check
          %p424 = pneg %p75
        $region66: #{tpu_custom_call.1} parent=59 // pred_check_branch
          %426 = sbr.rel (%p424) target = $region68
        $region67: #{tpu_custom_call.1} parent=59 // pred_region
          %427 = dma.done [#allocation7], 512
        $region68: #{tpu_custom_call.1} parent=59 // pred_fallthru
          _
        // Predicated region
        $region69: #{tpu_custom_call.1} parent=59 // pred_check
          %p428 = pneg %p96
        $region70: #{tpu_custom_call.1} parent=59 // pred_check_branch
          %430 = sbr.rel (%p428) target = $region72
        $region71: #{tpu_custom_call.1} parent=59 // pred_region
          %431 = dma.done [#allocation5], 32
        $region72: #{tpu_custom_call.1} parent=59 // pred_fallthru
          _
        // Predicated region
        $region73: #{tpu_custom_call.1} parent=59 // pred_check
          %p432 = pneg %p117
        $region74: #{tpu_custom_call.1} parent=59 // pred_check_branch
          %434 = sbr.rel (%p432) target = $region76
        $region75: #{tpu_custom_call.1} parent=59 // pred_region
          %435 = dma.done [#allocation10], 16
        $region76: #{tpu_custom_call.1} parent=59 // pred_fallthru
          _
        // Predicated region
        $region77: #{tpu_custom_call.1} parent=59 // pred_check
          %p436 = pneg %p138
        $region78: #{tpu_custom_call.1} parent=59 // pred_check_branch
          %438 = sbr.rel (%p436) target = $region80
        $region79: #{tpu_custom_call.1} parent=59 // pred_region
          %439 = dma.done [#allocation10], 32
        $region80: #{tpu_custom_call.1} parent=59 // pred_fallthru
          _
        // Predicated region
        $region81: #{tpu_custom_call.1} parent=59 // pred_check
          %p440 = pneg %p159
        $region82: #{tpu_custom_call.1} parent=59 // pred_check_branch
          %442 = sbr.rel (%p440) target = $region84
        $region83: #{tpu_custom_call.1} parent=59 // pred_region
          %443 = dma.done [#allocation13], 16
        $region84: #{tpu_custom_call.1} parent=59 // pred_fallthru
          _
        // Predicated region
        $region85: #{tpu_custom_call.1} parent=59 // pred_check
          %p444 = pneg %p180
        $region86: #{tpu_custom_call.1} parent=59 // pred_check_branch
          %446 = sbr.rel (%p444) target = $region88
        $region87: #{tpu_custom_call.1} parent=59 // pred_region
          %447 = dma.done [#allocation13], 32
        $region88: #{tpu_custom_call.1} parent=59 // pred_fallthru
          _
        // Predicated region
        $region89: #{tpu_custom_call.1} parent=59 // pred_check
          %p448 = pneg %p201
        $region90: #{tpu_custom_call.1} parent=59 // pred_check_branch
          %450 = sbr.rel (%p448) target = $region92
        $region91: #{tpu_custom_call.1} parent=59 // pred_region
          %451 = dma.done [#allocation16], 16
        $region92: #{tpu_custom_call.1} parent=59 // pred_fallthru
          _
        // Predicated region
        $region93: #{tpu_custom_call.1} parent=59 // pred_check
          %p452 = pneg %p222
        $region94: #{tpu_custom_call.1} parent=59 // pred_check_branch
          %454 = sbr.rel (%p452) target = $region96
        $region95: #{tpu_custom_call.1} parent=59 // pred_region
          %455 = dma.done [#allocation16], 32
        $region96: #{tpu_custom_call.1} parent=59 // pred_fallthru
          _
        // Predicated region
        $region97: #{tpu_custom_call.1} parent=59 // pred_check
          %p456 = pneg %p243
        $region98: #{tpu_custom_call.1} parent=59 // pred_check_branch
          %458 = sbr.rel (%p456) target = $region100
        $region99: #{tpu_custom_call.1} parent=59 // pred_region
          %459 = dma.done [#allocation19], 16
        $region100: #{tpu_custom_call.1} parent=59 // pred_fallthru
          _
        %460 = sfence
        %s461 = sand.u32 %s41, 1
        %s462 = scalar_lea.sflag [#allocation3], %s461
        %s463 = sand.u32 %s41, 1
        %s464 = smul.addr %s463, 8
        %s465 = scalar_lea.vmem [#allocation2], %s464
        %p466 = pneg %p54
        %p467 = pneg %p51
        %p468 = pneg %p75
        %p469 = pneg %p72
        %p470 = pneg %p96
        %p471 = pneg %p93
        %p472 = pneg %p117
        %p473 = pneg %p114
        %p474 = pneg %p138
        %p475 = pneg %p135
        %p476 = pneg %p159
        %p477 = pneg %p156
        %p478 = pneg %p180
        %p479 = pneg %p177
        %p480 = pneg %p201
        %p481 = pneg %p198
        %p482 = pneg %p222
        %p483 = pneg %p219
        %p484 = pneg %p243
        %p485 = pneg %p240
        %p486 = pneg %p269
        %p487 = pneg %p266
        %s488 = sand.u32 %s256, 1
        %s489 = scalar_lea.sflag [#allocation4], %s488
        %s490 = sand.u32 %s256, 1
        %s491 = smul.addr %s490, 8
        %s492 = scalar_lea.vmem [#allocation20], %s491
        %v493 = vld [vmem:[%s419] ss:$4 sm:$0x3]
        %s494 = scalar_lea.vmem %s419, 1 [#allocation2]
        %v495 = vld [vmem:[%s494] ss:$4 sm:$0x3]
        %s496 = scalar_lea.vmem %s419, 2 [#allocation2]
        %v497 = vld [vmem:[%s496] ss:$4 sm:$0x3]
        %s498 = scalar_lea.vmem %s419, 3 [#allocation2]
        %v499 = vld [vmem:[%s498] ss:$4 sm:$0x3]
        %s500 = sld [smem:[#allocation8]]
        %s501 = sld [smem:[#allocation8 + $0x1]]
        %s502 = sld [smem:[#allocation8 + $0x2]]
        %s503 = sld [smem:[#allocation8 + $0x3]]
        %s504 = sld [smem:[#allocation8 + $0x4]]
        %s505 = sld [smem:[#allocation8 + $0x5]]
        %s506 = sld [smem:[#allocation8 + $0x6]]
        %s507 = sld [smem:[#allocation8 + $0x7]]
        %s508 = sld [smem:[#allocation8 + $0x8]]
        %s509 = sld [smem:[#allocation8 + $0x9]]
        %s510 = sld [smem:[#allocation8 + $0xa]]
        %s511 = sld [smem:[#allocation8 + $0xb]]
        %s512 = sld [smem:[#allocation8 + $0xc]]
        %s513 = sld [smem:[#allocation8 + $0xd]]
        %s514 = sld [smem:[#allocation8 + $0xe]]
        %s515 = sld [smem:[#allocation8 + $0xf]]
        %s516 = sld [smem:[#allocation8 + $0x10]]
        %s517 = sld [smem:[#allocation8 + $0x11]]
        %s518 = sld [smem:[#allocation8 + $0x12]]
        %s519 = sld [smem:[#allocation8 + $0x13]]
        %s520 = sld [smem:[#allocation8 + $0x14]]
        %s521 = sld [smem:[#allocation8 + $0x15]]
        %s522 = sld [smem:[#allocation8 + $0x16]]
        %s523 = sld [smem:[#allocation8 + $0x17]]
        %s524 = sld [smem:[#allocation8 + $0x18]]
        %s525 = sld [smem:[#allocation8 + $0x19]]
        %s526 = sld [smem:[#allocation8 + $0x1a]]
        %s527 = sld [smem:[#allocation8 + $0x1b]]
        %s528 = sld [smem:[#allocation8 + $0x1c]]
        %s529 = sld [smem:[#allocation8 + $0x1d]]
        %s530 = sld [smem:[#allocation8 + $0x1e]]
        %s531 = sld [smem:[#allocation8 + $0x1f]]
        %s532 = sld [smem:[#allocation8 + $0x20]]
        %s533 = sld [smem:[#allocation8 + $0x21]]
        %s534 = sld [smem:[#allocation8 + $0x22]]
        %s535 = sld [smem:[#allocation8 + $0x23]]
        %s536 = sld [smem:[#allocation8 + $0x24]]
        %s537 = sld [smem:[#allocation8 + $0x25]]
        %s538 = sld [smem:[#allocation8 + $0x26]]
        %s539 = sld [smem:[#allocation8 + $0x27]]
        %s540 = sld [smem:[#allocation8 + $0x28]]
        %s541 = sld [smem:[#allocation8 + $0x29]]
        %s542 = sld [smem:[#allocation8 + $0x2a]]
        %s543 = sld [smem:[#allocation8 + $0x2b]]
        %s544 = sld [smem:[#allocation8 + $0x2c]]
        %s545 = sld [smem:[#allocation8 + $0x2d]]
        %s546 = sld [smem:[#allocation8 + $0x2e]]
        %s547 = sld [smem:[#allocation8 + $0x2f]]
        %s548 = sld [smem:[#allocation8 + $0x30]]
        %s549 = sld [smem:[#allocation8 + $0x31]]
        %s550 = sld [smem:[#allocation8 + $0x32]]
        %s551 = sld [smem:[#allocation8 + $0x33]]
        %s552 = sld [smem:[#allocation8 + $0x34]]
        %s553 = sld [smem:[#allocation8 + $0x35]]
        %s554 = sld [smem:[#allocation8 + $0x36]]
        %s555 = sld [smem:[#allocation8 + $0x37]]
        %s556 = sld [smem:[#allocation8 + $0x38]]
        %s557 = sld [smem:[#allocation8 + $0x39]]
        %s558 = sld [smem:[#allocation8 + $0x3a]]
        %s559 = sld [smem:[#allocation8 + $0x3b]]
        %s560 = sld [smem:[#allocation8 + $0x3c]]
        %s561 = sld [smem:[#allocation8 + $0x3d]]
        %s562 = sld [smem:[#allocation8 + $0x3e]]
        %s563 = sld [smem:[#allocation8 + $0x3f]]
        %s564 = sld [smem:[#allocation8 + $0x40]]
        %s565 = sld [smem:[#allocation8 + $0x41]]
        %s566 = sld [smem:[#allocation8 + $0x42]]
        %s567 = sld [smem:[#allocation8 + $0x43]]
        %s568 = sld [smem:[#allocation8 + $0x44]]
        %s569 = sld [smem:[#allocation8 + $0x45]]
        %s570 = sld [smem:[#allocation8 + $0x46]]
        %s571 = sld [smem:[#allocation8 + $0x47]]
        %s572 = sld [smem:[#allocation8 + $0x48]]
        %s573 = sld [smem:[#allocation8 + $0x49]]
        %s574 = sld [smem:[#allocation8 + $0x4a]]
        %s575 = sld [smem:[#allocation8 + $0x4b]]
        %s576 = sld [smem:[#allocation8 + $0x4c]]
        %s577 = sld [smem:[#allocation8 + $0x4d]]
        %s578 = sld [smem:[#allocation8 + $0x4e]]
        %s579 = sld [smem:[#allocation8 + $0x4f]]
        %s580 = sld [smem:[#allocation8 + $0x50]]
        %s581 = sld [smem:[#allocation8 + $0x51]]
        %s582 = sld [smem:[#allocation8 + $0x52]]
        %s583 = sld [smem:[#allocation8 + $0x53]]
        %s584 = sld [smem:[#allocation8 + $0x54]]
        %s585 = sld [smem:[#allocation8 + $0x55]]
        %s586 = sld [smem:[#allocation8 + $0x56]]
        %s587 = sld [smem:[#allocation8 + $0x57]]
        %s588 = sld [smem:[#allocation8 + $0x58]]
        %s589 = sld [smem:[#allocation8 + $0x59]]
        %s590 = sld [smem:[#allocation8 + $0x5a]]
        %s591 = sld [smem:[#allocation8 + $0x5b]]
        %s592 = sld [smem:[#allocation8 + $0x5c]]
        %s593 = sld [smem:[#allocation8 + $0x5d]]
        %s594 = sld [smem:[#allocation8 + $0x5e]]
        %s595 = sld [smem:[#allocation8 + $0x5f]]
        %s596 = sld [smem:[#allocation8 + $0x60]]
        %s597 = sld [smem:[#allocation8 + $0x61]]
        %s598 = sld [smem:[#allocation8 + $0x62]]
        %s599 = sld [smem:[#allocation8 + $0x63]]
        %s600 = sld [smem:[#allocation8 + $0x64]]
        %s601 = sld [smem:[#allocation8 + $0x65]]
        %s602 = sld [smem:[#allocation8 + $0x66]]
        %s603 = sld [smem:[#allocation8 + $0x67]]
        %s604 = sld [smem:[#allocation8 + $0x68]]
        %s605 = sld [smem:[#allocation8 + $0x69]]
        %s606 = sld [smem:[#allocation8 + $0x6a]]
        %s607 = sld [smem:[#allocation8 + $0x6b]]
        %s608 = sld [smem:[#allocation8 + $0x6c]]
        %s609 = sld [smem:[#allocation8 + $0x6d]]
        %s610 = sld [smem:[#allocation8 + $0x6e]]
        %s611 = sld [smem:[#allocation8 + $0x6f]]
        %s612 = sld [smem:[#allocation8 + $0x70]]
        %s613 = sld [smem:[#allocation8 + $0x71]]
        %s614 = sld [smem:[#allocation8 + $0x72]]
        %s615 = sld [smem:[#allocation8 + $0x73]]
        %s616 = sld [smem:[#allocation8 + $0x74]]
        %s617 = sld [smem:[#allocation8 + $0x75]]
        %s618 = sld [smem:[#allocation8 + $0x76]]
        %s619 = sld [smem:[#allocation8 + $0x77]]
        %s620 = sld [smem:[#allocation8 + $0x78]]
        %s621 = sld [smem:[#allocation8 + $0x79]]
        %s622 = sld [smem:[#allocation8 + $0x7a]]
        %s623 = sld [smem:[#allocation8 + $0x7b]]
        %s624 = sld [smem:[#allocation8 + $0x7c]]
        %s625 = sld [smem:[#allocation8 + $0x7d]]
        %s626 = sld [smem:[#allocation8 + $0x7e]]
        %s627 = sld [smem:[#allocation8 + $0x7f]]
        %s628 = sld [smem:[#allocation8 + $0x80]]
        %s629 = sld [smem:[#allocation8 + $0x81]]
        %s630 = sld [smem:[#allocation8 + $0x82]]
        %s631 = sld [smem:[#allocation8 + $0x83]]
        %s632 = sld [smem:[#allocation8 + $0x84]]
        %s633 = sld [smem:[#allocation8 + $0x85]]
        %s634 = sld [smem:[#allocation8 + $0x86]]
        %s635 = sld [smem:[#allocation8 + $0x87]]
        %s636 = sld [smem:[#allocation8 + $0x88]]
        %s637 = sld [smem:[#allocation8 + $0x89]]
        %s638 = sld [smem:[#allocation8 + $0x8a]]
        %s639 = sld [smem:[#allocation8 + $0x8b]]
        %s640 = sld [smem:[#allocation8 + $0x8c]]
        %s641 = sld [smem:[#allocation8 + $0x8d]]
        %s642 = sld [smem:[#allocation8 + $0x8e]]
        %s643 = sld [smem:[#allocation8 + $0x8f]]
        %s644 = sld [smem:[#allocation9]]
        %s645 = sld [smem:[#allocation9 + $0x1]]
        %s646 = sld [smem:[#allocation9 + $0x2]]
        %s647 = sld [smem:[#allocation9 + $0x3]]
        %v648 = vld [vmem:[#allocation6] ss:$8 sm:$0x3]
        %v650 = vlaneseq
        %v651 = vshrl.u32 %v650, 7
        %v652 = vsub.s32 0, %v651
        %v653 = vrot.slane %v493, %v652
        %v654 = vlaneseq
        %v655 = vshrl.u32 %v654, 7
        %v656 = vsub.s32 1, %v655
        %v657 = vrot.slane %v493, %v656
        %660 = vrot.lane.b32.xlu0 %v653, 17
        %v661 = vpop.permute.xlu0 %660
        %662 = vrot.lane.b32.xlu0 %v657, 17
        %v663 = vpop.permute.xlu0 %662
        %v664 = vlaneseq
        %v665 = vand.u32 %v664, 127
        %vm666 = vcmp.lt.s32.totalorder %v665, 17
        %v667 = vsel %vm666, %v661, %v663
        %v668 = vsel %vm666, %v663, %v661
        %v670 = vlaneseq
        %v671 = vshrl.u32 %v670, 7
        %v672 = vsub.s32 0, %v671
        %v673 = vrot.slane %v648, %v672
        %v674 = vlaneseq
        %v675 = vshrl.u32 %v674, 7
        %v676 = vsub.s32 1, %v675
        %v677 = vrot.slane %v648, %v676
        %v680 = vmul.f32 %v668, %v673
        %v681 = vmul.f32 %v667, %v677
        %v682 = vstv %s500
        %v683 = vmul.f32 %v682, %v680
        %v684 = vmul.f32 %v682, %v681
        %v685 = vstv %s644
        %v686 = vadd.f32 %v683, %v685
        %v687 = vadd.f32 %v684, %v685
        %v688 = vstv %s501
        %v689 = vmul.f32 %v688, %v680
        %v690 = vmul.f32 %v688, %v681
        %v691 = vstv %s645
        %v692 = vadd.f32 %v689, %v691
        %v693 = vadd.f32 %v690, %v691
        %v694 = vstv %s502
        %v695 = vmul.f32 %v694, %v680
        %v696 = vmul.f32 %v694, %v681
        %v697 = vstv %s646
        %v698 = vadd.f32 %v695, %v697
        %v699 = vadd.f32 %v696, %v697
        %v700 = vstv %s503
        %v701 = vmul.f32 %v700, %v680
        %v702 = vmul.f32 %v700, %v681
        %v703 = vstv %s647
        %v704 = vadd.f32 %v701, %v703
        %v705 = vadd.f32 %v702, %v703
        %v707 = vlaneseq
        %v708 = vshrl.u32 %v707, 7
        %v709 = vsub.s32 0, %v708
        %v710 = vrot.slane %v495, %v709
        %v711 = vlaneseq
        %v712 = vshrl.u32 %v711, 7
        %v713 = vsub.s32 1, %v712
        %v714 = vrot.slane %v495, %v713
        %717 = vrot.lane.b32.xlu0 %v710, 17
        %v718 = vpop.permute.xlu0 %717
        %719 = vrot.lane.b32.xlu0 %v714, 17
        %v720 = vpop.permute.xlu0 %719
        %v721 = vsel %vm666, %v718, %v720
        %v722 = vsel %vm666, %v720, %v718
        %v723 = vmul.f32 %v722, %v673
        %v724 = vmul.f32 %v721, %v677
        %v725 = vstv %s504
        %v726 = vmul.f32 %v725, %v723
        %v727 = vmul.f32 %v725, %v724
        %v728 = vadd.f32 %v686, %v726
        %v729 = vadd.f32 %v687, %v727
        %v730 = vstv %s505
        %v731 = vmul.f32 %v730, %v723
        %v732 = vmul.f32 %v730, %v724
        %v733 = vadd.f32 %v692, %v731
        %v734 = vadd.f32 %v693, %v732
        %v735 = vstv %s506
        %v736 = vmul.f32 %v735, %v723
        %v737 = vmul.f32 %v735, %v724
        %v738 = vadd.f32 %v698, %v736
        %v739 = vadd.f32 %v699, %v737
        %v740 = vstv %s507
        %v741 = vmul.f32 %v740, %v723
        %v742 = vmul.f32 %v740, %v724
        %v743 = vadd.f32 %v704, %v741
        %v744 = vadd.f32 %v705, %v742
        %v746 = vlaneseq
        %v747 = vshrl.u32 %v746, 7
        %v748 = vsub.s32 0, %v747
        %v749 = vrot.slane %v497, %v748
        %v750 = vlaneseq
        %v751 = vshrl.u32 %v750, 7
        %v752 = vsub.s32 1, %v751
        %v753 = vrot.slane %v497, %v752
        %756 = vrot.lane.b32.xlu0 %v749, 17
        %v757 = vpop.permute.xlu0 %756
        %758 = vrot.lane.b32.xlu0 %v753, 17
        %v759 = vpop.permute.xlu0 %758
        %v760 = vsel %vm666, %v757, %v759
        %v761 = vsel %vm666, %v759, %v757
        %v762 = vmul.f32 %v761, %v673
        %v763 = vmul.f32 %v760, %v677
        %v764 = vstv %s508
        %v765 = vmul.f32 %v764, %v762
        %v766 = vmul.f32 %v764, %v763
        %v767 = vadd.f32 %v728, %v765
        %v768 = vadd.f32 %v729, %v766
        %v769 = vstv %s509
        %v770 = vmul.f32 %v769, %v762
        %v771 = vmul.f32 %v769, %v763
        %v772 = vadd.f32 %v733, %v770
        %v773 = vadd.f32 %v734, %v771
        %v774 = vstv %s510
        %v775 = vmul.f32 %v774, %v762
        %v776 = vmul.f32 %v774, %v763
        %v777 = vadd.f32 %v738, %v775
        %v778 = vadd.f32 %v739, %v776
        %v779 = vstv %s511
        %v780 = vmul.f32 %v779, %v762
        %v781 = vmul.f32 %v779, %v763
        %v782 = vadd.f32 %v743, %v780
        %v783 = vadd.f32 %v744, %v781
        %v785 = vlaneseq
        %v786 = vshrl.u32 %v785, 7
        %v787 = vsub.s32 0, %v786
        %v788 = vrot.slane %v499, %v787
        %v789 = vlaneseq
        %v790 = vshrl.u32 %v789, 7
        %v791 = vsub.s32 1, %v790
        %v792 = vrot.slane %v499, %v791
        %795 = vrot.lane.b32.xlu0 %v788, 17
        %v796 = vpop.permute.xlu0 %795
        %797 = vrot.lane.b32.xlu0 %v792, 17
        %v798 = vpop.permute.xlu0 %797
        %v799 = vsel %vm666, %v796, %v798
        %v800 = vsel %vm666, %v798, %v796
        %v801 = vmul.f32 %v800, %v673
        %v802 = vmul.f32 %v799, %v677
        %v803 = vstv %s512
        %v804 = vmul.f32 %v803, %v801
        %v805 = vmul.f32 %v803, %v802
        %v806 = vadd.f32 %v767, %v804
        %v807 = vadd.f32 %v768, %v805
        %v808 = vstv %s513
        %v809 = vmul.f32 %v808, %v801
        %v810 = vmul.f32 %v808, %v802
        %v811 = vadd.f32 %v772, %v809
        %v812 = vadd.f32 %v773, %v810
        %v813 = vstv %s514
        %v814 = vmul.f32 %v813, %v801
        %v815 = vmul.f32 %v813, %v802
        %v816 = vadd.f32 %v777, %v814
        %v817 = vadd.f32 %v778, %v815
        %v818 = vstv %s515
        %v819 = vmul.f32 %v818, %v801
        %v820 = vmul.f32 %v818, %v802
        %v821 = vadd.f32 %v782, %v819
        %v822 = vadd.f32 %v783, %v820
        %s823 = scalar_lea.vmem [#allocation6], 1
        %v824 = vld [vmem:[%s823] ss:$8 sm:$0x3]
        %825 = vrot.lane.b32.xlu0 %v653, 16
        %v826 = vpop.permute.xlu0 %825
        %827 = vrot.lane.b32.xlu0 %v657, 16
        %v828 = vpop.permute.xlu0 %827
        %vm829 = vcmp.lt.s32.totalorder %v665, 16
        %v830 = vsel %vm829, %v826, %v828
        %v831 = vsel %vm829, %v828, %v826
        %v833 = vlaneseq
        %v834 = vshrl.u32 %v833, 7
        %v835 = vsub.s32 0, %v834
        %v836 = vrot.slane %v824, %v835
        %v837 = vlaneseq
        %v838 = vshrl.u32 %v837, 7
        %v839 = vsub.s32 1, %v838
        %v840 = vrot.slane %v824, %v839
        %v843 = vmul.f32 %v831, %v836
        %v844 = vmul.f32 %v830, %v840
        %v845 = vstv %s516
        %v846 = vmul.f32 %v845, %v843
        %v847 = vmul.f32 %v845, %v844
        %v848 = vadd.f32 %v806, %v846
        %v849 = vadd.f32 %v807, %v847
        %v850 = vstv %s517
        %v851 = vmul.f32 %v850, %v843
        %v852 = vmul.f32 %v850, %v844
        %v853 = vadd.f32 %v811, %v851
        %v854 = vadd.f32 %v812, %v852
        %v855 = vstv %s518
        %v856 = vmul.f32 %v855, %v843
        %v857 = vmul.f32 %v855, %v844
        %v858 = vadd.f32 %v816, %v856
        %v859 = vadd.f32 %v817, %v857
        %v860 = vstv %s519
        %v861 = vmul.f32 %v860, %v843
        %v862 = vmul.f32 %v860, %v844
        %v863 = vadd.f32 %v821, %v861
        %v864 = vadd.f32 %v822, %v862
        %865 = vrot.lane.b32.xlu0 %v710, 16
        %v866 = vpop.permute.xlu0 %865
        %867 = vrot.lane.b32.xlu0 %v714, 16
        %v868 = vpop.permute.xlu0 %867
        %v869 = vsel %vm829, %v866, %v868
        %v870 = vsel %vm829, %v868, %v866
        %v871 = vmul.f32 %v870, %v836
        %v872 = vmul.f32 %v869, %v840
        %v873 = vstv %s520
        %v874 = vmul.f32 %v873, %v871
        %v875 = vmul.f32 %v873, %v872
        %v876 = vadd.f32 %v848, %v874
        %v877 = vadd.f32 %v849, %v875
        %v878 = vstv %s521
        %v879 = vmul.f32 %v878, %v871
        %v880 = vmul.f32 %v878, %v872
        %v881 = vadd.f32 %v853, %v879
        %v882 = vadd.f32 %v854, %v880
        %v883 = vstv %s522
        %v884 = vmul.f32 %v883, %v871
        %v885 = vmul.f32 %v883, %v872
        %v886 = vadd.f32 %v858, %v884
        %v887 = vadd.f32 %v859, %v885
        %v888 = vstv %s523
        %v889 = vmul.f32 %v888, %v871
        %v890 = vmul.f32 %v888, %v872
        %v891 = vadd.f32 %v863, %v889
        %v892 = vadd.f32 %v864, %v890
        %893 = vrot.lane.b32.xlu0 %v749, 16
        %v894 = vpop.permute.xlu0 %893
        %895 = vrot.lane.b32.xlu0 %v753, 16
        %v896 = vpop.permute.xlu0 %895
        %v897 = vsel %vm829, %v894, %v896
        %v898 = vsel %vm829, %v896, %v894
        %v899 = vmul.f32 %v898, %v836
        %v900 = vmul.f32 %v897, %v840
        %v901 = vstv %s524
        %v902 = vmul.f32 %v901, %v899
        %v903 = vmul.f32 %v901, %v900
        %v904 = vadd.f32 %v876, %v902
        %v905 = vadd.f32 %v877, %v903
        %v906 = vstv %s525
        %v907 = vmul.f32 %v906, %v899
        %v908 = vmul.f32 %v906, %v900
        %v909 = vadd.f32 %v881, %v907
        %v910 = vadd.f32 %v882, %v908
        %v911 = vstv %s526
        %v912 = vmul.f32 %v911, %v899
        %v913 = vmul.f32 %v911, %v900
        %v914 = vadd.f32 %v886, %v912
        %v915 = vadd.f32 %v887, %v913
        %v916 = vstv %s527
        %v917 = vmul.f32 %v916, %v899
        %v918 = vmul.f32 %v916, %v900
        %v919 = vadd.f32 %v891, %v917
        %v920 = vadd.f32 %v892, %v918
        %921 = vrot.lane.b32.xlu0 %v788, 16
        %v922 = vpop.permute.xlu0 %921
        %923 = vrot.lane.b32.xlu0 %v792, 16
        %v924 = vpop.permute.xlu0 %923
        %v925 = vsel %vm829, %v922, %v924
        %v926 = vsel %vm829, %v924, %v922
        %v927 = vmul.f32 %v926, %v836
        %v928 = vmul.f32 %v925, %v840
        %v929 = vstv %s528
        %v930 = vmul.f32 %v929, %v927
        %v931 = vmul.f32 %v929, %v928
        %v932 = vadd.f32 %v904, %v930
        %v933 = vadd.f32 %v905, %v931
        %v934 = vstv %s529
        %v935 = vmul.f32 %v934, %v927
        %v936 = vmul.f32 %v934, %v928
        %v937 = vadd.f32 %v909, %v935
        %v938 = vadd.f32 %v910, %v936
        %v939 = vstv %s530
        %v940 = vmul.f32 %v939, %v927
        %v941 = vmul.f32 %v939, %v928
        %v942 = vadd.f32 %v914, %v940
        %v943 = vadd.f32 %v915, %v941
        %v944 = vstv %s531
        %v945 = vmul.f32 %v944, %v927
        %v946 = vmul.f32 %v944, %v928
        %v947 = vadd.f32 %v919, %v945
        %v948 = vadd.f32 %v920, %v946
        %s949 = scalar_lea.vmem [#allocation6], 2
        %v950 = vld [vmem:[%s949] ss:$8 sm:$0x3]
        %951 = vrot.lane.b32.xlu0 %v653, 15
        %v952 = vpop.permute.xlu0 %951
        %953 = vrot.lane.b32.xlu0 %v657, 15
        %v954 = vpop.permute.xlu0 %953
        %vm955 = vcmp.lt.s32.totalorder %v665, 15
        %v956 = vsel %vm955, %v952, %v954
        %v957 = vsel %vm955, %v954, %v952
        %v959 = vlaneseq
        %v960 = vshrl.u32 %v959, 7
        %v961 = vsub.s32 0, %v960
        %v962 = vrot.slane %v950, %v961
        %v963 = vlaneseq
        %v964 = vshrl.u32 %v963, 7
        %v965 = vsub.s32 1, %v964
        %v966 = vrot.slane %v950, %v965
        %v969 = vmul.f32 %v957, %v962
        %v970 = vmul.f32 %v956, %v966
        %v971 = vstv %s532
        %v972 = vmul.f32 %v971, %v969
        %v973 = vmul.f32 %v971, %v970
        %v974 = vadd.f32 %v932, %v972
        %v975 = vadd.f32 %v933, %v973
        %v976 = vstv %s533
        %v977 = vmul.f32 %v976, %v969
        %v978 = vmul.f32 %v976, %v970
        %v979 = vadd.f32 %v937, %v977
        %v980 = vadd.f32 %v938, %v978
        %v981 = vstv %s534
        %v982 = vmul.f32 %v981, %v969
        %v983 = vmul.f32 %v981, %v970
        %v984 = vadd.f32 %v942, %v982
        %v985 = vadd.f32 %v943, %v983
        %v986 = vstv %s535
        %v987 = vmul.f32 %v986, %v969
        %v988 = vmul.f32 %v986, %v970
        %v989 = vadd.f32 %v947, %v987
        %v990 = vadd.f32 %v948, %v988
        %991 = vrot.lane.b32.xlu0 %v710, 15
        %v992 = vpop.permute.xlu0 %991
        %993 = vrot.lane.b32.xlu0 %v714, 15
        %v994 = vpop.permute.xlu0 %993
        %v995 = vsel %vm955, %v992, %v994
        %v996 = vsel %vm955, %v994, %v992
        %v997 = vmul.f32 %v996, %v962
        %v998 = vmul.f32 %v995, %v966
        %v999 = vstv %s536
        %v1000 = vmul.f32 %v999, %v997
        %v1001 = vmul.f32 %v999, %v998
        %v1002 = vadd.f32 %v974, %v1000
        %v1003 = vadd.f32 %v975, %v1001
        %v1004 = vstv %s537
        %v1005 = vmul.f32 %v1004, %v997
        %v1006 = vmul.f32 %v1004, %v998
        %v1007 = vadd.f32 %v979, %v1005
        %v1008 = vadd.f32 %v980, %v1006
        %v1009 = vstv %s538
        %v1010 = vmul.f32 %v1009, %v997
        %v1011 = vmul.f32 %v1009, %v998
        %v1012 = vadd.f32 %v984, %v1010
        %v1013 = vadd.f32 %v985, %v1011
        %v1014 = vstv %s539
        %v1015 = vmul.f32 %v1014, %v997
        %v1016 = vmul.f32 %v1014, %v998
        %v1017 = vadd.f32 %v989, %v1015
        %v1018 = vadd.f32 %v990, %v1016
        %1019 = vrot.lane.b32.xlu0 %v749, 15
        %v1020 = vpop.permute.xlu0 %1019
        %1021 = vrot.lane.b32.xlu0 %v753, 15
        %v1022 = vpop.permute.xlu0 %1021
        %v1023 = vsel %vm955, %v1020, %v1022
        %v1024 = vsel %vm955, %v1022, %v1020
        %v1025 = vmul.f32 %v1024, %v962
        %v1026 = vmul.f32 %v1023, %v966
        %v1027 = vstv %s540
        %v1028 = vmul.f32 %v1027, %v1025
        %v1029 = vmul.f32 %v1027, %v1026
        %v1030 = vadd.f32 %v1002, %v1028
        %v1031 = vadd.f32 %v1003, %v1029
        %v1032 = vstv %s541
        %v1033 = vmul.f32 %v1032, %v1025
        %v1034 = vmul.f32 %v1032, %v1026
        %v1035 = vadd.f32 %v1007, %v1033
        %v1036 = vadd.f32 %v1008, %v1034
        %v1037 = vstv %s542
        %v1038 = vmul.f32 %v1037, %v1025
        %v1039 = vmul.f32 %v1037, %v1026
        %v1040 = vadd.f32 %v1012, %v1038
        %v1041 = vadd.f32 %v1013, %v1039
        %v1042 = vstv %s543
        %v1043 = vmul.f32 %v1042, %v1025
        %v1044 = vmul.f32 %v1042, %v1026
        %v1045 = vadd.f32 %v1017, %v1043
        %v1046 = vadd.f32 %v1018, %v1044
        %1047 = vrot.lane.b32.xlu0 %v788, 15
        %v1048 = vpop.permute.xlu0 %1047
        %1049 = vrot.lane.b32.xlu0 %v792, 15
        %v1050 = vpop.permute.xlu0 %1049
        %v1051 = vsel %vm955, %v1048, %v1050
        %v1052 = vsel %vm955, %v1050, %v1048
        %v1053 = vmul.f32 %v1052, %v962
        %v1054 = vmul.f32 %v1051, %v966
        %v1055 = vstv %s544
        %v1056 = vmul.f32 %v1055, %v1053
        %v1057 = vmul.f32 %v1055, %v1054
        %v1058 = vadd.f32 %v1030, %v1056
        %v1059 = vadd.f32 %v1031, %v1057
        %v1060 = vstv %s545
        %v1061 = vmul.f32 %v1060, %v1053
        %v1062 = vmul.f32 %v1060, %v1054
        %v1063 = vadd.f32 %v1035, %v1061
        %v1064 = vadd.f32 %v1036, %v1062
        %v1065 = vstv %s546
        %v1066 = vmul.f32 %v1065, %v1053
        %v1067 = vmul.f32 %v1065, %v1054
        %v1068 = vadd.f32 %v1040, %v1066
        %v1069 = vadd.f32 %v1041, %v1067
        %v1070 = vstv %s547
        %v1071 = vmul.f32 %v1070, %v1053
        %v1072 = vmul.f32 %v1070, %v1054
        %v1073 = vadd.f32 %v1045, %v1071
        %v1074 = vadd.f32 %v1046, %v1072
        %s1075 = scalar_lea.vmem [#allocation6], 3
        %v1076 = vld [vmem:[%s1075] ss:$8 sm:$0x3]
        %1077 = vrot.lane.b32.xlu0 %v653, 1
        %v1078 = vpop.permute.xlu0 %1077
        %1079 = vrot.lane.b32.xlu0 %v657, 1
        %v1080 = vpop.permute.xlu0 %1079
        %vm1081 = vcmp.lt.s32.totalorder %v665, 1
        %v1082 = vsel %vm1081, %v1078, %v1080
        %v1083 = vsel %vm1081, %v1080, %v1078
        %v1085 = vlaneseq
        %v1086 = vshrl.u32 %v1085, 7
        %v1087 = vsub.s32 0, %v1086
        %v1088 = vrot.slane %v1076, %v1087
        %v1089 = vlaneseq
        %v1090 = vshrl.u32 %v1089, 7
        %v1091 = vsub.s32 1, %v1090
        %v1092 = vrot.slane %v1076, %v1091
        %v1095 = vmul.f32 %v1083, %v1088
        %v1096 = vmul.f32 %v1082, %v1092
        %v1097 = vstv %s548
        %v1098 = vmul.f32 %v1097, %v1095
        %v1099 = vmul.f32 %v1097, %v1096
        %v1100 = vadd.f32 %v1058, %v1098
        %v1101 = vadd.f32 %v1059, %v1099
        %v1102 = vstv %s549
        %v1103 = vmul.f32 %v1102, %v1095
        %v1104 = vmul.f32 %v1102, %v1096
        %v1105 = vadd.f32 %v1063, %v1103
        %v1106 = vadd.f32 %v1064, %v1104
        %v1107 = vstv %s550
        %v1108 = vmul.f32 %v1107, %v1095
        %v1109 = vmul.f32 %v1107, %v1096
        %v1110 = vadd.f32 %v1068, %v1108
        %v1111 = vadd.f32 %v1069, %v1109
        %v1112 = vstv %s551
        %v1113 = vmul.f32 %v1112, %v1095
        %v1114 = vmul.f32 %v1112, %v1096
        %v1115 = vadd.f32 %v1073, %v1113
        %v1116 = vadd.f32 %v1074, %v1114
        %1117 = vrot.lane.b32.xlu0 %v710, 1
        %v1118 = vpop.permute.xlu0 %1117
        %1119 = vrot.lane.b32.xlu0 %v714, 1
        %v1120 = vpop.permute.xlu0 %1119
        %v1121 = vsel %vm1081, %v1118, %v1120
        %v1122 = vsel %vm1081, %v1120, %v1118
        %v1123 = vmul.f32 %v1122, %v1088
        %v1124 = vmul.f32 %v1121, %v1092
        %v1125 = vstv %s552
        %v1126 = vmul.f32 %v1125, %v1123
        %v1127 = vmul.f32 %v1125, %v1124
        %v1128 = vadd.f32 %v1100, %v1126
        %v1129 = vadd.f32 %v1101, %v1127
        %v1130 = vstv %s553
        %v1131 = vmul.f32 %v1130, %v1123
        %v1132 = vmul.f32 %v1130, %v1124
        %v1133 = vadd.f32 %v1105, %v1131
        %v1134 = vadd.f32 %v1106, %v1132
        %v1135 = vstv %s554
        %v1136 = vmul.f32 %v1135, %v1123
        %v1137 = vmul.f32 %v1135, %v1124
        %v1138 = vadd.f32 %v1110, %v1136
        %v1139 = vadd.f32 %v1111, %v1137
        %v1140 = vstv %s555
        %v1141 = vmul.f32 %v1140, %v1123
        %v1142 = vmul.f32 %v1140, %v1124
        %v1143 = vadd.f32 %v1115, %v1141
        %v1144 = vadd.f32 %v1116, %v1142
        %1145 = vrot.lane.b32.xlu0 %v749, 1
        %v1146 = vpop.permute.xlu0 %1145
        %1147 = vrot.lane.b32.xlu0 %v753, 1
        %v1148 = vpop.permute.xlu0 %1147
        %v1149 = vsel %vm1081, %v1146, %v1148
        %v1150 = vsel %vm1081, %v1148, %v1146
        %v1151 = vmul.f32 %v1150, %v1088
        %v1152 = vmul.f32 %v1149, %v1092
        %v1153 = vstv %s556
        %v1154 = vmul.f32 %v1153, %v1151
        %v1155 = vmul.f32 %v1153, %v1152
        %v1156 = vadd.f32 %v1128, %v1154
        %v1157 = vadd.f32 %v1129, %v1155
        %v1158 = vstv %s557
        %v1159 = vmul.f32 %v1158, %v1151
        %v1160 = vmul.f32 %v1158, %v1152
        %v1161 = vadd.f32 %v1133, %v1159
        %v1162 = vadd.f32 %v1134, %v1160
        %v1163 = vstv %s558
        %v1164 = vmul.f32 %v1163, %v1151
        %v1165 = vmul.f32 %v1163, %v1152
        %v1166 = vadd.f32 %v1138, %v1164
        %v1167 = vadd.f32 %v1139, %v1165
        %v1168 = vstv %s559
        %v1169 = vmul.f32 %v1168, %v1151
        %v1170 = vmul.f32 %v1168, %v1152
        %v1171 = vadd.f32 %v1143, %v1169
        %v1172 = vadd.f32 %v1144, %v1170
        %1173 = vrot.lane.b32.xlu0 %v788, 1
        %v1174 = vpop.permute.xlu0 %1173
        %1175 = vrot.lane.b32.xlu0 %v792, 1
        %v1176 = vpop.permute.xlu0 %1175
        %v1177 = vsel %vm1081, %v1174, %v1176
        %v1178 = vsel %vm1081, %v1176, %v1174
        %v1179 = vmul.f32 %v1178, %v1088
        %v1180 = vmul.f32 %v1177, %v1092
        %v1181 = vstv %s560
        %v1182 = vmul.f32 %v1181, %v1179
        %v1183 = vmul.f32 %v1181, %v1180
        %v1184 = vadd.f32 %v1156, %v1182
        %v1185 = vadd.f32 %v1157, %v1183
        %v1186 = vstv %s561
        %v1187 = vmul.f32 %v1186, %v1179
        %v1188 = vmul.f32 %v1186, %v1180
        %v1189 = vadd.f32 %v1161, %v1187
        %v1190 = vadd.f32 %v1162, %v1188
        %v1191 = vstv %s562
        %v1192 = vmul.f32 %v1191, %v1179
        %v1193 = vmul.f32 %v1191, %v1180
        %v1194 = vadd.f32 %v1166, %v1192
        %v1195 = vadd.f32 %v1167, %v1193
        %v1196 = vstv %s563
        %v1197 = vmul.f32 %v1196, %v1179
        %v1198 = vmul.f32 %v1196, %v1180
        %v1199 = vadd.f32 %v1171, %v1197
        %v1200 = vadd.f32 %v1172, %v1198
        %v1201 = vstv %s564
        %v1202 = vmul.f32 %v1201, %v493
        %v1204 = vlaneseq
        %v1205 = vshrl.u32 %v1204, 7
        %v1206 = vsub.s32 0, %v1205
        %v1207 = vrot.slane %v1202, %v1206
        %v1208 = vlaneseq
        %v1209 = vshrl.u32 %v1208, 7
        %v1210 = vsub.s32 1, %v1209
        %v1211 = vrot.slane %v1202, %v1210
        %v1214 = vadd.f32 %v1184, %v1207
        %v1215 = vadd.f32 %v1185, %v1211
        %v1216 = vstv %s565
        %v1217 = vmul.f32 %v1216, %v493
        %v1219 = vlaneseq
        %v1220 = vshrl.u32 %v1219, 7
        %v1221 = vsub.s32 0, %v1220
        %v1222 = vrot.slane %v1217, %v1221
        %v1223 = vlaneseq
        %v1224 = vshrl.u32 %v1223, 7
        %v1225 = vsub.s32 1, %v1224
        %v1226 = vrot.slane %v1217, %v1225
        %v1229 = vadd.f32 %v1189, %v1222
        %v1230 = vadd.f32 %v1190, %v1226
        %v1231 = vstv %s566
        %v1232 = vmul.f32 %v1231, %v493
        %v1234 = vlaneseq
        %v1235 = vshrl.u32 %v1234, 7
        %v1236 = vsub.s32 0, %v1235
        %v1237 = vrot.slane %v1232, %v1236
        %v1238 = vlaneseq
        %v1239 = vshrl.u32 %v1238, 7
        %v1240 = vsub.s32 1, %v1239
        %v1241 = vrot.slane %v1232, %v1240
        %v1244 = vadd.f32 %v1194, %v1237
        %v1245 = vadd.f32 %v1195, %v1241
        %v1246 = vstv %s567
        %v1247 = vmul.f32 %v1246, %v493
        %v1249 = vlaneseq
        %v1250 = vshrl.u32 %v1249, 7
        %v1251 = vsub.s32 0, %v1250
        %v1252 = vrot.slane %v1247, %v1251
        %v1253 = vlaneseq
        %v1254 = vshrl.u32 %v1253, 7
        %v1255 = vsub.s32 1, %v1254
        %v1256 = vrot.slane %v1247, %v1255
        %v1259 = vadd.f32 %v1199, %v1252
        %v1260 = vadd.f32 %v1200, %v1256
        %v1261 = vstv %s568
        %v1262 = vmul.f32 %v1261, %v495
        %v1264 = vlaneseq
        %v1265 = vshrl.u32 %v1264, 7
        %v1266 = vsub.s32 0, %v1265
        %v1267 = vrot.slane %v1262, %v1266
        %v1268 = vlaneseq
        %v1269 = vshrl.u32 %v1268, 7
        %v1270 = vsub.s32 1, %v1269
        %v1271 = vrot.slane %v1262, %v1270
        %v1274 = vadd.f32 %v1214, %v1267
        %v1275 = vadd.f32 %v1215, %v1271
        %v1276 = vstv %s569
        %v1277 = vmul.f32 %v1276, %v495
        %v1279 = vlaneseq
        %v1280 = vshrl.u32 %v1279, 7
        %v1281 = vsub.s32 0, %v1280
        %v1282 = vrot.slane %v1277, %v1281
        %v1283 = vlaneseq
        %v1284 = vshrl.u32 %v1283, 7
        %v1285 = vsub.s32 1, %v1284
        %v1286 = vrot.slane %v1277, %v1285
        %v1289 = vadd.f32 %v1229, %v1282
        %v1290 = vadd.f32 %v1230, %v1286
        %v1291 = vstv %s570
        %v1292 = vmul.f32 %v1291, %v495
        %v1294 = vlaneseq
        %v1295 = vshrl.u32 %v1294, 7
        %v1296 = vsub.s32 0, %v1295
        %v1297 = vrot.slane %v1292, %v1296
        %v1298 = vlaneseq
        %v1299 = vshrl.u32 %v1298, 7
        %v1300 = vsub.s32 1, %v1299
        %v1301 = vrot.slane %v1292, %v1300
        %v1304 = vadd.f32 %v1244, %v1297
        %v1305 = vadd.f32 %v1245, %v1301
        %v1306 = vstv %s571
        %v1307 = vmul.f32 %v1306, %v495
        %v1309 = vlaneseq
        %v1310 = vshrl.u32 %v1309, 7
        %v1311 = vsub.s32 0, %v1310
        %v1312 = vrot.slane %v1307, %v1311
        %v1313 = vlaneseq
        %v1314 = vshrl.u32 %v1313, 7
        %v1315 = vsub.s32 1, %v1314
        %v1316 = vrot.slane %v1307, %v1315
        %v1319 = vadd.f32 %v1259, %v1312
        %v1320 = vadd.f32 %v1260, %v1316
        %v1321 = vstv %s572
        %v1322 = vmul.f32 %v1321, %v497
        %v1324 = vlaneseq
        %v1325 = vshrl.u32 %v1324, 7
        %v1326 = vsub.s32 0, %v1325
        %v1327 = vrot.slane %v1322, %v1326
        %v1328 = vlaneseq
        %v1329 = vshrl.u32 %v1328, 7
        %v1330 = vsub.s32 1, %v1329
        %v1331 = vrot.slane %v1322, %v1330
        %v1334 = vadd.f32 %v1274, %v1327
        %v1335 = vadd.f32 %v1275, %v1331
        %v1336 = vstv %s573
        %v1337 = vmul.f32 %v1336, %v497
        %v1339 = vlaneseq
        %v1340 = vshrl.u32 %v1339, 7
        %v1341 = vsub.s32 0, %v1340
        %v1342 = vrot.slane %v1337, %v1341
        %v1343 = vlaneseq
        %v1344 = vshrl.u32 %v1343, 7
        %v1345 = vsub.s32 1, %v1344
        %v1346 = vrot.slane %v1337, %v1345
        %v1349 = vadd.f32 %v1289, %v1342
        %v1350 = vadd.f32 %v1290, %v1346
        %v1351 = vstv %s574
        %v1352 = vmul.f32 %v1351, %v497
        %v1354 = vlaneseq
        %v1355 = vshrl.u32 %v1354, 7
        %v1356 = vsub.s32 0, %v1355
        %v1357 = vrot.slane %v1352, %v1356
        %v1358 = vlaneseq
        %v1359 = vshrl.u32 %v1358, 7
        %v1360 = vsub.s32 1, %v1359
        %v1361 = vrot.slane %v1352, %v1360
        %v1364 = vadd.f32 %v1304, %v1357
        %v1365 = vadd.f32 %v1305, %v1361
        %v1366 = vstv %s575
        %v1367 = vmul.f32 %v1366, %v497
        %v1369 = vlaneseq
        %v1370 = vshrl.u32 %v1369, 7
        %v1371 = vsub.s32 0, %v1370
        %v1372 = vrot.slane %v1367, %v1371
        %v1373 = vlaneseq
        %v1374 = vshrl.u32 %v1373, 7
        %v1375 = vsub.s32 1, %v1374
        %v1376 = vrot.slane %v1367, %v1375
        %v1379 = vadd.f32 %v1319, %v1372
        %v1380 = vadd.f32 %v1320, %v1376
        %v1381 = vstv %s576
        %v1382 = vmul.f32 %v1381, %v499
        %v1384 = vlaneseq
        %v1385 = vshrl.u32 %v1384, 7
        %v1386 = vsub.s32 0, %v1385
        %v1387 = vrot.slane %v1382, %v1386
        %v1388 = vlaneseq
        %v1389 = vshrl.u32 %v1388, 7
        %v1390 = vsub.s32 1, %v1389
        %v1391 = vrot.slane %v1382, %v1390
        %v1394 = vadd.f32 %v1334, %v1387
        %v1395 = vadd.f32 %v1335, %v1391
        %v1396 = vstv %s577
        %v1397 = vmul.f32 %v1396, %v499
        %v1399 = vlaneseq
        %v1400 = vshrl.u32 %v1399, 7
        %v1401 = vsub.s32 0, %v1400
        %v1402 = vrot.slane %v1397, %v1401
        %v1403 = vlaneseq
        %v1404 = vshrl.u32 %v1403, 7
        %v1405 = vsub.s32 1, %v1404
        %v1406 = vrot.slane %v1397, %v1405
        %v1409 = vadd.f32 %v1349, %v1402
        %v1410 = vadd.f32 %v1350, %v1406
        %v1411 = vstv %s578
        %v1412 = vmul.f32 %v1411, %v499
        %v1414 = vlaneseq
        %v1415 = vshrl.u32 %v1414, 7
        %v1416 = vsub.s32 0, %v1415
        %v1417 = vrot.slane %v1412, %v1416
        %v1418 = vlaneseq
        %v1419 = vshrl.u32 %v1418, 7
        %v1420 = vsub.s32 1, %v1419
        %v1421 = vrot.slane %v1412, %v1420
        %v1424 = vadd.f32 %v1364, %v1417
        %v1425 = vadd.f32 %v1365, %v1421
        %v1426 = vstv %s579
        %v1427 = vmul.f32 %v1426, %v499
        %v1429 = vlaneseq
        %v1430 = vshrl.u32 %v1429, 7
        %v1431 = vsub.s32 0, %v1430
        %v1432 = vrot.slane %v1427, %v1431
        %v1433 = vlaneseq
        %v1434 = vshrl.u32 %v1433, 7
        %v1435 = vsub.s32 1, %v1434
        %v1436 = vrot.slane %v1427, %v1435
        %v1439 = vadd.f32 %v1379, %v1432
        %v1440 = vadd.f32 %v1380, %v1436
        %s1441 = scalar_lea.vmem [#allocation6], 5
        %v1442 = vld [vmem:[%s1441] ss:$8 sm:$0x3]
        %1443 = vrot.lane.b32.xlu0 %v653, 127
        %v1444 = vpop.permute.xlu0 %1443
        %1445 = vrot.lane.b32.xlu0 %v657, 127
        %v1446 = vpop.permute.xlu0 %1445
        %vm1447 = vcmp.lt.s32.totalorder %v665, 127
        %v1448 = vsel %vm1447, %v1444, %v1446
        %v1449 = vsel %vm1447, %v1446, %v1444
        %v1451 = vlaneseq
        %v1452 = vshrl.u32 %v1451, 7
        %v1453 = vsub.s32 0, %v1452
        %v1454 = vrot.slane %v1442, %v1453
        %v1455 = vlaneseq
        %v1456 = vshrl.u32 %v1455, 7
        %v1457 = vsub.s32 1, %v1456
        %v1458 = vrot.slane %v1442, %v1457
        %v1461 = vmul.f32 %v1448, %v1454
        %v1462 = vmul.f32 %v1449, %v1458
        %v1463 = vstv %s580
        %v1464 = vmul.f32 %v1463, %v1461
        %v1465 = vmul.f32 %v1463, %v1462
        %v1466 = vadd.f32 %v1394, %v1464
        %v1467 = vadd.f32 %v1395, %v1465
        %v1468 = vstv %s581
        %v1469 = vmul.f32 %v1468, %v1461
        %v1470 = vmul.f32 %v1468, %v1462
        %v1471 = vadd.f32 %v1409, %v1469
        %v1472 = vadd.f32 %v1410, %v1470
        %v1473 = vstv %s582
        %v1474 = vmul.f32 %v1473, %v1461
        %v1475 = vmul.f32 %v1473, %v1462
        %v1476 = vadd.f32 %v1424, %v1474
        %v1477 = vadd.f32 %v1425, %v1475
        %v1478 = vstv %s583
        %v1479 = vmul.f32 %v1478, %v1461
        %v1480 = vmul.f32 %v1478, %v1462
        %v1481 = vadd.f32 %v1439, %v1479
        %v1482 = vadd.f32 %v1440, %v1480
        %1483 = vrot.lane.b32.xlu0 %v710, 127
        %v1484 = vpop.permute.xlu0 %1483
        %1485 = vrot.lane.b32.xlu0 %v714, 127
        %v1486 = vpop.permute.xlu0 %1485
        %v1487 = vsel %vm1447, %v1484, %v1486
        %v1488 = vsel %vm1447, %v1486, %v1484
        %v1489 = vmul.f32 %v1487, %v1454
        %v1490 = vmul.f32 %v1488, %v1458
        %v1491 = vstv %s584
        %v1492 = vmul.f32 %v1491, %v1489
        %v1493 = vmul.f32 %v1491, %v1490
        %v1494 = vadd.f32 %v1466, %v1492
        %v1495 = vadd.f32 %v1467, %v1493
        %v1496 = vstv %s585
        %v1497 = vmul.f32 %v1496, %v1489
        %v1498 = vmul.f32 %v1496, %v1490
        %v1499 = vadd.f32 %v1471, %v1497
        %v1500 = vadd.f32 %v1472, %v1498
        %v1501 = vstv %s586
        %v1502 = vmul.f32 %v1501, %v1489
        %v1503 = vmul.f32 %v1501, %v1490
        %v1504 = vadd.f32 %v1476, %v1502
        %v1505 = vadd.f32 %v1477, %v1503
        %v1506 = vstv %s587
        %v1507 = vmul.f32 %v1506, %v1489
        %v1508 = vmul.f32 %v1506, %v1490
        %v1509 = vadd.f32 %v1481, %v1507
        %v1510 = vadd.f32 %v1482, %v1508
        %1511 = vrot.lane.b32.xlu0 %v749, 127
        %v1512 = vpop.permute.xlu0 %1511
        %1513 = vrot.lane.b32.xlu0 %v753, 127
        %v1514 = vpop.permute.xlu0 %1513
        %v1515 = vsel %vm1447, %v1512, %v1514
        %v1516 = vsel %vm1447, %v1514, %v1512
        %v1517 = vmul.f32 %v1515, %v1454
        %v1518 = vmul.f32 %v1516, %v1458
        %v1519 = vstv %s588
        %v1520 = vmul.f32 %v1519, %v1517
        %v1521 = vmul.f32 %v1519, %v1518
        %v1522 = vadd.f32 %v1494, %v1520
        %v1523 = vadd.f32 %v1495, %v1521
        %v1524 = vstv %s589
        %v1525 = vmul.f32 %v1524, %v1517
        %v1526 = vmul.f32 %v1524, %v1518
        %v1527 = vadd.f32 %v1499, %v1525
        %v1528 = vadd.f32 %v1500, %v1526
        %v1529 = vstv %s590
        %v1530 = vmul.f32 %v1529, %v1517
        %v1531 = vmul.f32 %v1529, %v1518
        %v1532 = vadd.f32 %v1504, %v1530
        %v1533 = vadd.f32 %v1505, %v1531
        %v1534 = vstv %s591
        %v1535 = vmul.f32 %v1534, %v1517
        %v1536 = vmul.f32 %v1534, %v1518
        %v1537 = vadd.f32 %v1509, %v1535
        %v1538 = vadd.f32 %v1510, %v1536
        %1539 = vrot.lane.b32.xlu0 %v788, 127
        %v1540 = vpop.permute.xlu0 %1539
        %1541 = vrot.lane.b32.xlu0 %v792, 127
        %v1542 = vpop.permute.xlu0 %1541
        %v1543 = vsel %vm1447, %v1540, %v1542
        %v1544 = vsel %vm1447, %v1542, %v1540
        %v1545 = vmul.f32 %v1543, %v1454
        %v1546 = vmul.f32 %v1544, %v1458
        %v1547 = vstv %s592
        %v1548 = vmul.f32 %v1547, %v1545
        %v1549 = vmul.f32 %v1547, %v1546
        %v1550 = vadd.f32 %v1522, %v1548
        %v1551 = vadd.f32 %v1523, %v1549
        %v1552 = vstv %s593
        %v1553 = vmul.f32 %v1552, %v1545
        %v1554 = vmul.f32 %v1552, %v1546
        %v1555 = vadd.f32 %v1527, %v1553
        %v1556 = vadd.f32 %v1528, %v1554
        %v1557 = vstv %s594
        %v1558 = vmul.f32 %v1557, %v1545
        %v1559 = vmul.f32 %v1557, %v1546
        %v1560 = vadd.f32 %v1532, %v1558
        %v1561 = vadd.f32 %v1533, %v1559
        %v1562 = vstv %s595
        %v1563 = vmul.f32 %v1562, %v1545
        %v1564 = vmul.f32 %v1562, %v1546
        %v1565 = vadd.f32 %v1537, %v1563
        %v1566 = vadd.f32 %v1538, %v1564
        %s1567 = scalar_lea.vmem [#allocation6], 6
        %v1568 = vld [vmem:[%s1567] ss:$8 sm:$0x3]
        %1569 = vrot.lane.b32.xlu0 %v653, 113
        %v1570 = vpop.permute.xlu0 %1569
        %1571 = vrot.lane.b32.xlu0 %v657, 113
        %v1572 = vpop.permute.xlu0 %1571
        %vm1573 = vcmp.lt.s32.totalorder %v665, 113
        %v1574 = vsel %vm1573, %v1570, %v1572
        %v1575 = vsel %vm1573, %v1572, %v1570
        %v1577 = vlaneseq
        %v1578 = vshrl.u32 %v1577, 7
        %v1579 = vsub.s32 0, %v1578
        %v1580 = vrot.slane %v1568, %v1579
        %v1581 = vlaneseq
        %v1582 = vshrl.u32 %v1581, 7
        %v1583 = vsub.s32 1, %v1582
        %v1584 = vrot.slane %v1568, %v1583
        %v1587 = vmul.f32 %v1574, %v1580
        %v1588 = vmul.f32 %v1575, %v1584
        %v1589 = vstv %s596
        %v1590 = vmul.f32 %v1589, %v1587
        %v1591 = vmul.f32 %v1589, %v1588
        %v1592 = vadd.f32 %v1550, %v1590
        %v1593 = vadd.f32 %v1551, %v1591
        %v1594 = vstv %s597
        %v1595 = vmul.f32 %v1594, %v1587
        %v1596 = vmul.f32 %v1594, %v1588
        %v1597 = vadd.f32 %v1555, %v1595
        %v1598 = vadd.f32 %v1556, %v1596
        %v1599 = vstv %s598
        %v1600 = vmul.f32 %v1599, %v1587
        %v1601 = vmul.f32 %v1599, %v1588
        %v1602 = vadd.f32 %v1560, %v1600
        %v1603 = vadd.f32 %v1561, %v1601
        %v1604 = vstv %s599
        %v1605 = vmul.f32 %v1604, %v1587
        %v1606 = vmul.f32 %v1604, %v1588
        %v1607 = vadd.f32 %v1565, %v1605
        %v1608 = vadd.f32 %v1566, %v1606
        %1609 = vrot.lane.b32.xlu0 %v710, 113
        %v1610 = vpop.permute.xlu0 %1609
        %1611 = vrot.lane.b32.xlu0 %v714, 113
        %v1612 = vpop.permute.xlu0 %1611
        %v1613 = vsel %vm1573, %v1610, %v1612
        %v1614 = vsel %vm1573, %v1612, %v1610
        %v1615 = vmul.f32 %v1613, %v1580
        %v1616 = vmul.f32 %v1614, %v1584
        %v1617 = vstv %s600
        %v1618 = vmul.f32 %v1617, %v1615
        %v1619 = vmul.f32 %v1617, %v1616
        %v1620 = vadd.f32 %v1592, %v1618
        %v1621 = vadd.f32 %v1593, %v1619
        %v1622 = vstv %s601
        %v1623 = vmul.f32 %v1622, %v1615
        %v1624 = vmul.f32 %v1622, %v1616
        %v1625 = vadd.f32 %v1597, %v1623
        %v1626 = vadd.f32 %v1598, %v1624
        %v1627 = vstv %s602
        %v1628 = vmul.f32 %v1627, %v1615
        %v1629 = vmul.f32 %v1627, %v1616
        %v1630 = vadd.f32 %v1602, %v1628
        %v1631 = vadd.f32 %v1603, %v1629
        %v1632 = vstv %s603
        %v1633 = vmul.f32 %v1632, %v1615
        %v1634 = vmul.f32 %v1632, %v1616
        %v1635 = vadd.f32 %v1607, %v1633
        %v1636 = vadd.f32 %v1608, %v1634
        %1637 = vrot.lane.b32.xlu0 %v749, 113
        %v1638 = vpop.permute.xlu0 %1637
        %1639 = vrot.lane.b32.xlu0 %v753, 113
        %v1640 = vpop.permute.xlu0 %1639
        %v1641 = vsel %vm1573, %v1638, %v1640
        %v1642 = vsel %vm1573, %v1640, %v1638
        %v1643 = vmul.f32 %v1641, %v1580
        %v1644 = vmul.f32 %v1642, %v1584
        %v1645 = vstv %s604
        %v1646 = vmul.f32 %v1645, %v1643
        %v1647 = vmul.f32 %v1645, %v1644
        %v1648 = vadd.f32 %v1620, %v1646
        %v1649 = vadd.f32 %v1621, %v1647
        %v1650 = vstv %s605
        %v1651 = vmul.f32 %v1650, %v1643
        %v1652 = vmul.f32 %v1650, %v1644
        %v1653 = vadd.f32 %v1625, %v1651
        %v1654 = vadd.f32 %v1626, %v1652
        %v1655 = vstv %s606
        %v1656 = vmul.f32 %v1655, %v1643
        %v1657 = vmul.f32 %v1655, %v1644
        %v1658 = vadd.f32 %v1630, %v1656
        %v1659 = vadd.f32 %v1631, %v1657
        %v1660 = vstv %s607
        %v1661 = vmul.f32 %v1660, %v1643
        %v1662 = vmul.f32 %v1660, %v1644
        %v1663 = vadd.f32 %v1635, %v1661
        %v1664 = vadd.f32 %v1636, %v1662
        %1665 = vrot.lane.b32.xlu0 %v788, 113
        %v1666 = vpop.permute.xlu0 %1665
        %1667 = vrot.lane.b32.xlu0 %v792, 113
        %v1668 = vpop.permute.xlu0 %1667
        %v1669 = vsel %vm1573, %v1666, %v1668
        %v1670 = vsel %vm1573, %v1668, %v1666
        %v1671 = vmul.f32 %v1669, %v1580
        %v1672 = vmul.f32 %v1670, %v1584
        %v1673 = vstv %s608
        %v1674 = vmul.f32 %v1673, %v1671
        %v1675 = vmul.f32 %v1673, %v1672
        %v1676 = vadd.f32 %v1648, %v1674
        %v1677 = vadd.f32 %v1649, %v1675
        %v1678 = vstv %s609
        %v1679 = vmul.f32 %v1678, %v1671
        %v1680 = vmul.f32 %v1678, %v1672
        %v1681 = vadd.f32 %v1653, %v1679
        %v1682 = vadd.f32 %v1654, %v1680
        %v1683 = vstv %s610
        %v1684 = vmul.f32 %v1683, %v1671
        %v1685 = vmul.f32 %v1683, %v1672
        %v1686 = vadd.f32 %v1658, %v1684
        %v1687 = vadd.f32 %v1659, %v1685
        %v1688 = vstv %s611
        %v1689 = vmul.f32 %v1688, %v1671
        %v1690 = vmul.f32 %v1688, %v1672
        %v1691 = vadd.f32 %v1663, %v1689
        %v1692 = vadd.f32 %v1664, %v1690
        %s1693 = scalar_lea.vmem [#allocation6], 7
        %v1694 = vld [vmem:[%s1693] ss:$8 sm:$0x3]
        %1695 = vrot.lane.b32.xlu0 %v653, 112
        %v1696 = vpop.permute.xlu0 %1695
        %1697 = vrot.lane.b32.xlu0 %v657, 112
        %v1698 = vpop.permute.xlu0 %1697
        %vm1699 = vcmp.lt.s32.totalorder %v665, 112
        %v1700 = vsel %vm1699, %v1696, %v1698
        %v1701 = vsel %vm1699, %v1698, %v1696
        %v1703 = vlaneseq
        %v1704 = vshrl.u32 %v1703, 7
        %v1705 = vsub.s32 0, %v1704
        %v1706 = vrot.slane %v1694, %v1705
        %v1707 = vlaneseq
        %v1708 = vshrl.u32 %v1707, 7
        %v1709 = vsub.s32 1, %v1708
        %v1710 = vrot.slane %v1694, %v1709
        %v1713 = vmul.f32 %v1700, %v1706
        %v1714 = vmul.f32 %v1701, %v1710
        %v1715 = vstv %s612
        %v1716 = vmul.f32 %v1715, %v1713
        %v1717 = vmul.f32 %v1715, %v1714
        %v1718 = vadd.f32 %v1676, %v1716
        %v1719 = vadd.f32 %v1677, %v1717
        %v1720 = vstv %s613
        %v1721 = vmul.f32 %v1720, %v1713
        %v1722 = vmul.f32 %v1720, %v1714
        %v1723 = vadd.f32 %v1681, %v1721
        %v1724 = vadd.f32 %v1682, %v1722
        %v1725 = vstv %s614
        %v1726 = vmul.f32 %v1725, %v1713
        %v1727 = vmul.f32 %v1725, %v1714
        %v1728 = vadd.f32 %v1686, %v1726
        %v1729 = vadd.f32 %v1687, %v1727
        %v1730 = vstv %s615
        %v1731 = vmul.f32 %v1730, %v1713
        %v1732 = vmul.f32 %v1730, %v1714
        %v1733 = vadd.f32 %v1691, %v1731
        %v1734 = vadd.f32 %v1692, %v1732
        %1735 = vrot.lane.b32.xlu0 %v710, 112
        %v1736 = vpop.permute.xlu0 %1735
        %1737 = vrot.lane.b32.xlu0 %v714, 112
        %v1738 = vpop.permute.xlu0 %1737
        %v1739 = vsel %vm1699, %v1736, %v1738
        %v1740 = vsel %vm1699, %v1738, %v1736
        %v1741 = vmul.f32 %v1739, %v1706
        %v1742 = vmul.f32 %v1740, %v1710
        %v1743 = vstv %s616
        %v1744 = vmul.f32 %v1743, %v1741
        %v1745 = vmul.f32 %v1743, %v1742
        %v1746 = vadd.f32 %v1718, %v1744
        %v1747 = vadd.f32 %v1719, %v1745
        %v1748 = vstv %s617
        %v1749 = vmul.f32 %v1748, %v1741
        %v1750 = vmul.f32 %v1748, %v1742
        %v1751 = vadd.f32 %v1723, %v1749
        %v1752 = vadd.f32 %v1724, %v1750
        %v1753 = vstv %s618
        %v1754 = vmul.f32 %v1753, %v1741
        %v1755 = vmul.f32 %v1753, %v1742
        %v1756 = vadd.f32 %v1728, %v1754
        %v1757 = vadd.f32 %v1729, %v1755
        %v1758 = vstv %s619
        %v1759 = vmul.f32 %v1758, %v1741
        %v1760 = vmul.f32 %v1758, %v1742
        %v1761 = vadd.f32 %v1733, %v1759
        %v1762 = vadd.f32 %v1734, %v1760
        %1763 = vrot.lane.b32.xlu0 %v749, 112
        %v1764 = vpop.permute.xlu0 %1763
        %1765 = vrot.lane.b32.xlu0 %v753, 112
        %v1766 = vpop.permute.xlu0 %1765
        %v1767 = vsel %vm1699, %v1764, %v1766
        %v1768 = vsel %vm1699, %v1766, %v1764
        %v1769 = vmul.f32 %v1767, %v1706
        %v1770 = vmul.f32 %v1768, %v1710
        %v1771 = vstv %s620
        %v1772 = vmul.f32 %v1771, %v1769
        %v1773 = vmul.f32 %v1771, %v1770
        %v1774 = vadd.f32 %v1746, %v1772
        %v1775 = vadd.f32 %v1747, %v1773
        %v1776 = vstv %s621
        %v1777 = vmul.f32 %v1776, %v1769
        %v1778 = vmul.f32 %v1776, %v1770
        %v1779 = vadd.f32 %v1751, %v1777
        %v1780 = vadd.f32 %v1752, %v1778
        %v1781 = vstv %s622
        %v1782 = vmul.f32 %v1781, %v1769
        %v1783 = vmul.f32 %v1781, %v1770
        %v1784 = vadd.f32 %v1756, %v1782
        %v1785 = vadd.f32 %v1757, %v1783
        %v1786 = vstv %s623
        %v1787 = vmul.f32 %v1786, %v1769
        %v1788 = vmul.f32 %v1786, %v1770
        %v1789 = vadd.f32 %v1761, %v1787
        %v1790 = vadd.f32 %v1762, %v1788
        %1791 = vrot.lane.b32.xlu0 %v788, 112
        %v1792 = vpop.permute.xlu0 %1791
        %1793 = vrot.lane.b32.xlu0 %v792, 112
        %v1794 = vpop.permute.xlu0 %1793
        %v1795 = vsel %vm1699, %v1792, %v1794
        %v1796 = vsel %vm1699, %v1794, %v1792
        %v1797 = vmul.f32 %v1795, %v1706
        %v1798 = vmul.f32 %v1796, %v1710
        %v1799 = vstv %s624
        %v1800 = vmul.f32 %v1799, %v1797
        %v1801 = vmul.f32 %v1799, %v1798
        %v1802 = vadd.f32 %v1774, %v1800
        %v1803 = vadd.f32 %v1775, %v1801
        %v1804 = vstv %s625
        %v1805 = vmul.f32 %v1804, %v1797
        %v1806 = vmul.f32 %v1804, %v1798
        %v1807 = vadd.f32 %v1779, %v1805
        %v1808 = vadd.f32 %v1780, %v1806
        %v1809 = vstv %s626
        %v1810 = vmul.f32 %v1809, %v1797
        %v1811 = vmul.f32 %v1809, %v1798
        %v1812 = vadd.f32 %v1784, %v1810
        %v1813 = vadd.f32 %v1785, %v1811
        %v1814 = vstv %s627
        %v1815 = vmul.f32 %v1814, %v1797
        %v1816 = vmul.f32 %v1814, %v1798
        %v1817 = vadd.f32 %v1789, %v1815
        %v1818 = vadd.f32 %v1790, %v1816
        %s1819 = scalar_lea.vmem [#allocation6], 16
        %v1820 = vld [vmem:[%s1819] ss:$8 sm:$0x3]
        %1821 = vrot.lane.b32.xlu0 %v653, 111
        %v1822 = vpop.permute.xlu0 %1821
        %1823 = vrot.lane.b32.xlu0 %v657, 111
        %v1824 = vpop.permute.xlu0 %1823
        %vm1825 = vcmp.lt.s32.totalorder %v665, 111
        %v1826 = vsel %vm1825, %v1822, %v1824
        %v1827 = vsel %vm1825, %v1824, %v1822
        %v1829 = vlaneseq
        %v1830 = vshrl.u32 %v1829, 7
        %v1831 = vsub.s32 0, %v1830
        %v1832 = vrot.slane %v1820, %v1831
        %v1833 = vlaneseq
        %v1834 = vshrl.u32 %v1833, 7
        %v1835 = vsub.s32 1, %v1834
        %v1836 = vrot.slane %v1820, %v1835
        %v1839 = vmul.f32 %v1826, %v1832
        %v1840 = vmul.f32 %v1827, %v1836
        %v1841 = vstv %s628
        %v1842 = vmul.f32 %v1841, %v1839
        %v1843 = vmul.f32 %v1841, %v1840
        %v1844 = vadd.f32 %v1802, %v1842
        %v1845 = vadd.f32 %v1803, %v1843
        %v1846 = vstv %s629
        %v1847 = vmul.f32 %v1846, %v1839
        %v1848 = vmul.f32 %v1846, %v1840
        %v1849 = vadd.f32 %v1807, %v1847
        %v1850 = vadd.f32 %v1808, %v1848
        %v1851 = vstv %s630
        %v1852 = vmul.f32 %v1851, %v1839
        %v1853 = vmul.f32 %v1851, %v1840
        %v1854 = vadd.f32 %v1812, %v1852
        %v1855 = vadd.f32 %v1813, %v1853
        %v1856 = vstv %s631
        %v1857 = vmul.f32 %v1856, %v1839
        %v1858 = vmul.f32 %v1856, %v1840
        %v1859 = vadd.f32 %v1817, %v1857
        %v1860 = vadd.f32 %v1818, %v1858
        %1861 = vrot.lane.b32.xlu0 %v710, 111
        %v1862 = vpop.permute.xlu0 %1861
        %1863 = vrot.lane.b32.xlu0 %v714, 111
        %v1864 = vpop.permute.xlu0 %1863
        %v1865 = vsel %vm1825, %v1862, %v1864
        %v1866 = vsel %vm1825, %v1864, %v1862
        %v1867 = vmul.f32 %v1865, %v1832
        %v1868 = vmul.f32 %v1866, %v1836
        %v1869 = vstv %s632
        %v1870 = vmul.f32 %v1869, %v1867
        %v1871 = vmul.f32 %v1869, %v1868
        %v1872 = vadd.f32 %v1844, %v1870
        %v1873 = vadd.f32 %v1845, %v1871
        %v1874 = vstv %s633
        %v1875 = vmul.f32 %v1874, %v1867
        %v1876 = vmul.f32 %v1874, %v1868
        %v1877 = vadd.f32 %v1849, %v1875
        %v1878 = vadd.f32 %v1850, %v1876
        %v1879 = vstv %s634
        %v1880 = vmul.f32 %v1879, %v1867
        %v1881 = vmul.f32 %v1879, %v1868
        %v1882 = vadd.f32 %v1854, %v1880
        %v1883 = vadd.f32 %v1855, %v1881
        %v1884 = vstv %s635
        %v1885 = vmul.f32 %v1884, %v1867
        %v1886 = vmul.f32 %v1884, %v1868
        %v1887 = vadd.f32 %v1859, %v1885
        %v1888 = vadd.f32 %v1860, %v1886
        %1889 = vrot.lane.b32.xlu0 %v749, 111
        %v1890 = vpop.permute.xlu0 %1889
        %1891 = vrot.lane.b32.xlu0 %v753, 111
        %v1892 = vpop.permute.xlu0 %1891
        %v1893 = vsel %vm1825, %v1890, %v1892
        %v1894 = vsel %vm1825, %v1892, %v1890
        %v1895 = vmul.f32 %v1893, %v1832
        %v1896 = vmul.f32 %v1894, %v1836
        %v1897 = vstv %s636
        %v1898 = vmul.f32 %v1897, %v1895
        %v1899 = vmul.f32 %v1897, %v1896
        %v1900 = vadd.f32 %v1872, %v1898
        %v1901 = vadd.f32 %v1873, %v1899
        %v1902 = vstv %s637
        %v1903 = vmul.f32 %v1902, %v1895
        %v1904 = vmul.f32 %v1902, %v1896
        %v1905 = vadd.f32 %v1877, %v1903
        %v1906 = vadd.f32 %v1878, %v1904
        %v1907 = vstv %s638
        %v1908 = vmul.f32 %v1907, %v1895
        %v1909 = vmul.f32 %v1907, %v1896
        %v1910 = vadd.f32 %v1882, %v1908
        %v1911 = vadd.f32 %v1883, %v1909
        %v1912 = vstv %s639
        %v1913 = vmul.f32 %v1912, %v1895
        %v1914 = vmul.f32 %v1912, %v1896
        %v1915 = vadd.f32 %v1887, %v1913
        %v1916 = vadd.f32 %v1888, %v1914
        %1917 = vrot.lane.b32.xlu0 %v788, 111
        %v1918 = vpop.permute.xlu0 %1917
        %1919 = vrot.lane.b32.xlu0 %v792, 111
        %v1920 = vpop.permute.xlu0 %1919
        %v1921 = vsel %vm1825, %v1918, %v1920
        %v1922 = vsel %vm1825, %v1920, %v1918
        %v1923 = vmul.f32 %v1921, %v1832
        %v1924 = vmul.f32 %v1922, %v1836
        %v1925 = vstv %s640
        %v1926 = vmul.f32 %v1925, %v1923
        %v1927 = vmul.f32 %v1925, %v1924
        %v1928 = vadd.f32 %v1900, %v1926
        %v1929 = vadd.f32 %v1901, %v1927
        %v1930 = vstv %s641
        %v1931 = vmul.f32 %v1930, %v1923
        %v1932 = vmul.f32 %v1930, %v1924
        %v1933 = vadd.f32 %v1905, %v1931
        %v1934 = vadd.f32 %v1906, %v1932
        %v1935 = vstv %s642
        %v1936 = vmul.f32 %v1935, %v1923
        %v1937 = vmul.f32 %v1935, %v1924
        %v1938 = vadd.f32 %v1910, %v1936
        %v1939 = vadd.f32 %v1911, %v1937
        %v1940 = vstv %s643
        %v1941 = vmul.f32 %v1940, %v1923
        %v1942 = vmul.f32 %v1940, %v1924
        %v1943 = vadd.f32 %v1915, %v1941
        %v1944 = vadd.f32 %v1916, %v1942
        %vm1945 = vcmp.ge.f32.partialorder %v1928, 0.0
        %vm1946 = vcmp.ge.f32.partialorder %v1929, 0.0
        %v1947 = vmul.f32 %v1928, 0.1
        %v1948 = vmul.f32 %v1929, 0.1
        %v1949 = vsel %vm1945, %v1928, %v1947
        %v1950 = vsel %vm1946, %v1929, %v1948
        %vm1951 = vcmp.ge.f32.partialorder %v1933, 0.0
        %vm1952 = vcmp.ge.f32.partialorder %v1934, 0.0
        %v1953 = vmul.f32 %v1933, 0.1
        %v1954 = vmul.f32 %v1934, 0.1
        %v1955 = vsel %vm1951, %v1933, %v1953
        %v1956 = vsel %vm1952, %v1934, %v1954
        %vm1957 = vcmp.ge.f32.partialorder %v1938, 0.0
        %vm1958 = vcmp.ge.f32.partialorder %v1939, 0.0
        %v1959 = vmul.f32 %v1938, 0.1
        %v1960 = vmul.f32 %v1939, 0.1
        %v1961 = vsel %vm1957, %v1938, %v1959
        %v1962 = vsel %vm1958, %v1939, %v1960
        %vm1963 = vcmp.ge.f32.partialorder %v1943, 0.0
        %vm1964 = vcmp.ge.f32.partialorder %v1944, 0.0
        %v1965 = vmul.f32 %v1943, 0.1
        %v1966 = vmul.f32 %v1944, 0.1
        %v1967 = vsel %vm1963, %v1943, %v1965
        %v1968 = vsel %vm1964, %v1944, %v1966
        %s1969 = sld [smem:[#allocation11]]
        %s1970 = sld [smem:[#allocation11 + $0x1]]
        %s1971 = sld [smem:[#allocation11 + $0x2]]
        %s1972 = sld [smem:[#allocation11 + $0x3]]
        %s1973 = sld [smem:[#allocation11 + $0x4]]
        %s1974 = sld [smem:[#allocation11 + $0x5]]
        %s1975 = sld [smem:[#allocation11 + $0x6]]
        %s1976 = sld [smem:[#allocation11 + $0x7]]
        %s1977 = sld [smem:[#allocation11 + $0x8]]
        %s1978 = sld [smem:[#allocation11 + $0x9]]
        %s1979 = sld [smem:[#allocation11 + $0xa]]
        %s1980 = sld [smem:[#allocation11 + $0xb]]
        %s1981 = sld [smem:[#allocation11 + $0xc]]
        %s1982 = sld [smem:[#allocation11 + $0xd]]
        %s1983 = sld [smem:[#allocation11 + $0xe]]
        %s1984 = sld [smem:[#allocation11 + $0xf]]
        %s1985 = sld [smem:[#allocation11 + $0x10]]
        %s1986 = sld [smem:[#allocation11 + $0x11]]
        %s1987 = sld [smem:[#allocation11 + $0x12]]
        %s1988 = sld [smem:[#allocation11 + $0x13]]
        %s1989 = sld [smem:[#allocation11 + $0x14]]
        %s1990 = sld [smem:[#allocation11 + $0x15]]
        %s1991 = sld [smem:[#allocation11 + $0x16]]
        %s1992 = sld [smem:[#allocation11 + $0x17]]
        %s1993 = sld [smem:[#allocation11 + $0x18]]
        %s1994 = sld [smem:[#allocation11 + $0x19]]
        %s1995 = sld [smem:[#allocation11 + $0x1a]]
        %s1996 = sld [smem:[#allocation11 + $0x1b]]
        %s1997 = sld [smem:[#allocation11 + $0x1c]]
        %s1998 = sld [smem:[#allocation11 + $0x1d]]
        %s1999 = sld [smem:[#allocation11 + $0x1e]]
        %s2000 = sld [smem:[#allocation11 + $0x1f]]
        %s2001 = sld [smem:[#allocation11 + $0x20]]
        %s2002 = sld [smem:[#allocation11 + $0x21]]
        %s2003 = sld [smem:[#allocation11 + $0x22]]
        %s2004 = sld [smem:[#allocation11 + $0x23]]
        %s2005 = sld [smem:[#allocation11 + $0x24]]
        %s2006 = sld [smem:[#allocation11 + $0x25]]
        %s2007 = sld [smem:[#allocation11 + $0x26]]
        %s2008 = sld [smem:[#allocation11 + $0x27]]
        %s2009 = sld [smem:[#allocation11 + $0x28]]
        %s2010 = sld [smem:[#allocation11 + $0x29]]
        %s2011 = sld [smem:[#allocation11 + $0x2a]]
        %s2012 = sld [smem:[#allocation11 + $0x2b]]
        %s2013 = sld [smem:[#allocation11 + $0x2c]]
        %s2014 = sld [smem:[#allocation11 + $0x2d]]
        %s2015 = sld [smem:[#allocation11 + $0x2e]]
        %s2016 = sld [smem:[#allocation11 + $0x2f]]
        %s2017 = sld [smem:[#allocation11 + $0x30]]
        %s2018 = sld [smem:[#allocation11 + $0x31]]
        %s2019 = sld [smem:[#allocation11 + $0x32]]
        %s2020 = sld [smem:[#allocation11 + $0x33]]
        %s2021 = sld [smem:[#allocation11 + $0x34]]
        %s2022 = sld [smem:[#allocation11 + $0x35]]
        %s2023 = sld [smem:[#allocation11 + $0x36]]
        %s2024 = sld [smem:[#allocation11 + $0x37]]
        %s2025 = sld [smem:[#allocation11 + $0x38]]
        %s2026 = sld [smem:[#allocation11 + $0x39]]
        %s2027 = sld [smem:[#allocation11 + $0x3a]]
        %s2028 = sld [smem:[#allocation11 + $0x3b]]
        %s2029 = sld [smem:[#allocation11 + $0x3c]]
        %s2030 = sld [smem:[#allocation11 + $0x3d]]
        %s2031 = sld [smem:[#allocation11 + $0x3e]]
        %s2032 = sld [smem:[#allocation11 + $0x3f]]
        %s2033 = sld [smem:[#allocation11 + $0x40]]
        %s2034 = sld [smem:[#allocation11 + $0x41]]
        %s2035 = sld [smem:[#allocation11 + $0x42]]
        %s2036 = sld [smem:[#allocation11 + $0x43]]
        %s2037 = sld [smem:[#allocation11 + $0x44]]
        %s2038 = sld [smem:[#allocation11 + $0x45]]
        %s2039 = sld [smem:[#allocation11 + $0x46]]
        %s2040 = sld [smem:[#allocation11 + $0x47]]
        %s2041 = sld [smem:[#allocation11 + $0x48]]
        %s2042 = sld [smem:[#allocation11 + $0x49]]
        %s2043 = sld [smem:[#allocation11 + $0x4a]]
        %s2044 = sld [smem:[#allocation11 + $0x4b]]
        %s2045 = sld [smem:[#allocation11 + $0x4c]]
        %s2046 = sld [smem:[#allocation11 + $0x4d]]
        %s2047 = sld [smem:[#allocation11 + $0x4e]]
        %s2048 = sld [smem:[#allocation11 + $0x4f]]
        %s2049 = sld [smem:[#allocation11 + $0x50]]
        %s2050 = sld [smem:[#allocation11 + $0x51]]
        %s2051 = sld [smem:[#allocation11 + $0x52]]
        %s2052 = sld [smem:[#allocation11 + $0x53]]
        %s2053 = sld [smem:[#allocation11 + $0x54]]
        %s2054 = sld [smem:[#allocation11 + $0x55]]
        %s2055 = sld [smem:[#allocation11 + $0x56]]
        %s2056 = sld [smem:[#allocation11 + $0x57]]
        %s2057 = sld [smem:[#allocation11 + $0x58]]
        %s2058 = sld [smem:[#allocation11 + $0x59]]
        %s2059 = sld [smem:[#allocation11 + $0x5a]]
        %s2060 = sld [smem:[#allocation11 + $0x5b]]
        %s2061 = sld [smem:[#allocation11 + $0x5c]]
        %s2062 = sld [smem:[#allocation11 + $0x5d]]
        %s2063 = sld [smem:[#allocation11 + $0x5e]]
        %s2064 = sld [smem:[#allocation11 + $0x5f]]
        %s2065 = sld [smem:[#allocation11 + $0x60]]
        %s2066 = sld [smem:[#allocation11 + $0x61]]
        %s2067 = sld [smem:[#allocation11 + $0x62]]
        %s2068 = sld [smem:[#allocation11 + $0x63]]
        %s2069 = sld [smem:[#allocation11 + $0x64]]
        %s2070 = sld [smem:[#allocation11 + $0x65]]
        %s2071 = sld [smem:[#allocation11 + $0x66]]
        %s2072 = sld [smem:[#allocation11 + $0x67]]
        %s2073 = sld [smem:[#allocation11 + $0x68]]
        %s2074 = sld [smem:[#allocation11 + $0x69]]
        %s2075 = sld [smem:[#allocation11 + $0x6a]]
        %s2076 = sld [smem:[#allocation11 + $0x6b]]
        %s2077 = sld [smem:[#allocation11 + $0x6c]]
        %s2078 = sld [smem:[#allocation11 + $0x6d]]
        %s2079 = sld [smem:[#allocation11 + $0x6e]]
        %s2080 = sld [smem:[#allocation11 + $0x6f]]
        %s2081 = sld [smem:[#allocation11 + $0x70]]
        %s2082 = sld [smem:[#allocation11 + $0x71]]
        %s2083 = sld [smem:[#allocation11 + $0x72]]
        %s2084 = sld [smem:[#allocation11 + $0x73]]
        %s2085 = sld [smem:[#allocation11 + $0x74]]
        %s2086 = sld [smem:[#allocation11 + $0x75]]
        %s2087 = sld [smem:[#allocation11 + $0x76]]
        %s2088 = sld [smem:[#allocation11 + $0x77]]
        %s2089 = sld [smem:[#allocation11 + $0x78]]
        %s2090 = sld [smem:[#allocation11 + $0x79]]
        %s2091 = sld [smem:[#allocation11 + $0x7a]]
        %s2092 = sld [smem:[#allocation11 + $0x7b]]
        %s2093 = sld [smem:[#allocation11 + $0x7c]]
        %s2094 = sld [smem:[#allocation11 + $0x7d]]
        %s2095 = sld [smem:[#allocation11 + $0x7e]]
        %s2096 = sld [smem:[#allocation11 + $0x7f]]
        %s2097 = sld [smem:[#allocation11 + $0x80]]
        %s2098 = sld [smem:[#allocation11 + $0x81]]
        %s2099 = sld [smem:[#allocation11 + $0x82]]
        %s2100 = sld [smem:[#allocation11 + $0x83]]
        %s2101 = sld [smem:[#allocation11 + $0x84]]
        %s2102 = sld [smem:[#allocation11 + $0x85]]
        %s2103 = sld [smem:[#allocation11 + $0x86]]
        %s2104 = sld [smem:[#allocation11 + $0x87]]
        %s2105 = sld [smem:[#allocation11 + $0x88]]
        %s2106 = sld [smem:[#allocation11 + $0x89]]
        %s2107 = sld [smem:[#allocation11 + $0x8a]]
        %s2108 = sld [smem:[#allocation11 + $0x8b]]
        %s2109 = sld [smem:[#allocation11 + $0x8c]]
        %s2110 = sld [smem:[#allocation11 + $0x8d]]
        %s2111 = sld [smem:[#allocation11 + $0x8e]]
        %s2112 = sld [smem:[#allocation11 + $0x8f]]
        %s2113 = sld [smem:[#allocation12]]
        %s2114 = sld [smem:[#allocation12 + $0x1]]
        %s2115 = sld [smem:[#allocation12 + $0x2]]
        %s2116 = sld [smem:[#allocation12 + $0x3]]
        %2117 = vrot.lane.b32.xlu0 %v1949, 17
        %v2118 = vpop.permute.xlu0 %2117
        %2119 = vrot.lane.b32.xlu0 %v1950, 17
        %v2120 = vpop.permute.xlu0 %2119
        %v2121 = vsel %vm666, %v2118, %v2120
        %v2122 = vsel %vm666, %v2120, %v2118
        %v2123 = vmul.f32 %v2122, %v673
        %v2124 = vmul.f32 %v2121, %v677
        %v2125 = vstv %s1969
        %v2126 = vmul.f32 %v2125, %v2123
        %v2127 = vmul.f32 %v2125, %v2124
        %v2128 = vstv %s2113
        %v2129 = vadd.f32 %v2126, %v2128
        %v2130 = vadd.f32 %v2127, %v2128
        %v2131 = vstv %s1970
        %v2132 = vmul.f32 %v2131, %v2123
        %v2133 = vmul.f32 %v2131, %v2124
        %v2134 = vstv %s2114
        %v2135 = vadd.f32 %v2132, %v2134
        %v2136 = vadd.f32 %v2133, %v2134
        %v2137 = vstv %s1971
        %v2138 = vmul.f32 %v2137, %v2123
        %v2139 = vmul.f32 %v2137, %v2124
        %v2140 = vstv %s2115
        %v2141 = vadd.f32 %v2138, %v2140
        %v2142 = vadd.f32 %v2139, %v2140
        %v2143 = vstv %s1972
        %v2144 = vmul.f32 %v2143, %v2123
        %v2145 = vmul.f32 %v2143, %v2124
        %v2146 = vstv %s2116
        %v2147 = vadd.f32 %v2144, %v2146
        %v2148 = vadd.f32 %v2145, %v2146
        %2149 = vrot.lane.b32.xlu0 %v1955, 17
        %v2150 = vpop.permute.xlu0 %2149
        %2151 = vrot.lane.b32.xlu0 %v1956, 17
        %v2152 = vpop.permute.xlu0 %2151
        %v2153 = vsel %vm666, %v2150, %v2152
        %v2154 = vsel %vm666, %v2152, %v2150
        %v2155 = vmul.f32 %v2154, %v673
        %v2156 = vmul.f32 %v2153, %v677
        %v2157 = vstv %s1973
        %v2158 = vmul.f32 %v2157, %v2155
        %v2159 = vmul.f32 %v2157, %v2156
        %v2160 = vadd.f32 %v2129, %v2158
        %v2161 = vadd.f32 %v2130, %v2159
        %v2162 = vstv %s1974
        %v2163 = vmul.f32 %v2162, %v2155
        %v2164 = vmul.f32 %v2162, %v2156
        %v2165 = vadd.f32 %v2135, %v2163
        %v2166 = vadd.f32 %v2136, %v2164
        %v2167 = vstv %s1975
        %v2168 = vmul.f32 %v2167, %v2155
        %v2169 = vmul.f32 %v2167, %v2156
        %v2170 = vadd.f32 %v2141, %v2168
        %v2171 = vadd.f32 %v2142, %v2169
        %v2172 = vstv %s1976
        %v2173 = vmul.f32 %v2172, %v2155
        %v2174 = vmul.f32 %v2172, %v2156
        %v2175 = vadd.f32 %v2147, %v2173
        %v2176 = vadd.f32 %v2148, %v2174
        %2177 = vrot.lane.b32.xlu0 %v1961, 17
        %v2178 = vpop.permute.xlu0 %2177
        %2179 = vrot.lane.b32.xlu0 %v1962, 17
        %v2180 = vpop.permute.xlu0 %2179
        %v2181 = vsel %vm666, %v2178, %v2180
        %v2182 = vsel %vm666, %v2180, %v2178
        %v2183 = vmul.f32 %v2182, %v673
        %v2184 = vmul.f32 %v2181, %v677
        %v2185 = vstv %s1977
        %v2186 = vmul.f32 %v2185, %v2183
        %v2187 = vmul.f32 %v2185, %v2184
        %v2188 = vadd.f32 %v2160, %v2186
        %v2189 = vadd.f32 %v2161, %v2187
        %v2190 = vstv %s1978
        %v2191 = vmul.f32 %v2190, %v2183
        %v2192 = vmul.f32 %v2190, %v2184
        %v2193 = vadd.f32 %v2165, %v2191
        %v2194 = vadd.f32 %v2166, %v2192
        %v2195 = vstv %s1979
        %v2196 = vmul.f32 %v2195, %v2183
        %v2197 = vmul.f32 %v2195, %v2184
        %v2198 = vadd.f32 %v2170, %v2196
        %v2199 = vadd.f32 %v2171, %v2197
        %v2200 = vstv %s1980
        %v2201 = vmul.f32 %v2200, %v2183
        %v2202 = vmul.f32 %v2200, %v2184
        %v2203 = vadd.f32 %v2175, %v2201
        %v2204 = vadd.f32 %v2176, %v2202
        %2205 = vrot.lane.b32.xlu0 %v1967, 17
        %v2206 = vpop.permute.xlu0 %2205
        %2207 = vrot.lane.b32.xlu0 %v1968, 17
        %v2208 = vpop.permute.xlu0 %2207
        %v2209 = vsel %vm666, %v2206, %v2208
        %v2210 = vsel %vm666, %v2208, %v2206
        %v2211 = vmul.f32 %v2210, %v673
        %v2212 = vmul.f32 %v2209, %v677
        %v2213 = vstv %s1981
        %v2214 = vmul.f32 %v2213, %v2211
        %v2215 = vmul.f32 %v2213, %v2212
        %v2216 = vadd.f32 %v2188, %v2214
        %v2217 = vadd.f32 %v2189, %v2215
        %v2218 = vstv %s1982
        %v2219 = vmul.f32 %v2218, %v2211
        %v2220 = vmul.f32 %v2218, %v2212
        %v2221 = vadd.f32 %v2193, %v2219
        %v2222 = vadd.f32 %v2194, %v2220
        %v2223 = vstv %s1983
        %v2224 = vmul.f32 %v2223, %v2211
        %v2225 = vmul.f32 %v2223, %v2212
        %v2226 = vadd.f32 %v2198, %v2224
        %v2227 = vadd.f32 %v2199, %v2225
        %v2228 = vstv %s1984
        %v2229 = vmul.f32 %v2228, %v2211
        %v2230 = vmul.f32 %v2228, %v2212
        %v2231 = vadd.f32 %v2203, %v2229
        %v2232 = vadd.f32 %v2204, %v2230
        %2233 = vrot.lane.b32.xlu0 %v1949, 16
        %v2234 = vpop.permute.xlu0 %2233
        %2235 = vrot.lane.b32.xlu0 %v1950, 16
        %v2236 = vpop.permute.xlu0 %2235
        %v2237 = vsel %vm829, %v2234, %v2236
        %v2238 = vsel %vm829, %v2236, %v2234
        %v2239 = vmul.f32 %v2238, %v836
        %v2240 = vmul.f32 %v2237, %v840
        %v2241 = vstv %s1985
        %v2242 = vmul.f32 %v2241, %v2239
        %v2243 = vmul.f32 %v2241, %v2240
        %v2244 = vadd.f32 %v2216, %v2242
        %v2245 = vadd.f32 %v2217, %v2243
        %v2246 = vstv %s1986
        %v2247 = vmul.f32 %v2246, %v2239
        %v2248 = vmul.f32 %v2246, %v2240
        %v2249 = vadd.f32 %v2221, %v2247
        %v2250 = vadd.f32 %v2222, %v2248
        %v2251 = vstv %s1987
        %v2252 = vmul.f32 %v2251, %v2239
        %v2253 = vmul.f32 %v2251, %v2240
        %v2254 = vadd.f32 %v2226, %v2252
        %v2255 = vadd.f32 %v2227, %v2253
        %v2256 = vstv %s1988
        %v2257 = vmul.f32 %v2256, %v2239
        %v2258 = vmul.f32 %v2256, %v2240
        %v2259 = vadd.f32 %v2231, %v2257
        %v2260 = vadd.f32 %v2232, %v2258
        %2261 = vrot.lane.b32.xlu0 %v1955, 16
        %v2262 = vpop.permute.xlu0 %2261
        %2263 = vrot.lane.b32.xlu0 %v1956, 16
        %v2264 = vpop.permute.xlu0 %2263
        %v2265 = vsel %vm829, %v2262, %v2264
        %v2266 = vsel %vm829, %v2264, %v2262
        %v2267 = vmul.f32 %v2266, %v836
        %v2268 = vmul.f32 %v2265, %v840
        %v2269 = vstv %s1989
        %v2270 = vmul.f32 %v2269, %v2267
        %v2271 = vmul.f32 %v2269, %v2268
        %v2272 = vadd.f32 %v2244, %v2270
        %v2273 = vadd.f32 %v2245, %v2271
        %v2274 = vstv %s1990
        %v2275 = vmul.f32 %v2274, %v2267
        %v2276 = vmul.f32 %v2274, %v2268
        %v2277 = vadd.f32 %v2249, %v2275
        %v2278 = vadd.f32 %v2250, %v2276
        %v2279 = vstv %s1991
        %v2280 = vmul.f32 %v2279, %v2267
        %v2281 = vmul.f32 %v2279, %v2268
        %v2282 = vadd.f32 %v2254, %v2280
        %v2283 = vadd.f32 %v2255, %v2281
        %v2284 = vstv %s1992
        %v2285 = vmul.f32 %v2284, %v2267
        %v2286 = vmul.f32 %v2284, %v2268
        %v2287 = vadd.f32 %v2259, %v2285
        %v2288 = vadd.f32 %v2260, %v2286
        %2289 = vrot.lane.b32.xlu0 %v1961, 16
        %v2290 = vpop.permute.xlu0 %2289
        %2291 = vrot.lane.b32.xlu0 %v1962, 16
        %v2292 = vpop.permute.xlu0 %2291
        %v2293 = vsel %vm829, %v2290, %v2292
        %v2294 = vsel %vm829, %v2292, %v2290
        %v2295 = vmul.f32 %v2294, %v836
        %v2296 = vmul.f32 %v2293, %v840
        %v2297 = vstv %s1993
        %v2298 = vmul.f32 %v2297, %v2295
        %v2299 = vmul.f32 %v2297, %v2296
        %v2300 = vadd.f32 %v2272, %v2298
        %v2301 = vadd.f32 %v2273, %v2299
        %v2302 = vstv %s1994
        %v2303 = vmul.f32 %v2302, %v2295
        %v2304 = vmul.f32 %v2302, %v2296
        %v2305 = vadd.f32 %v2277, %v2303
        %v2306 = vadd.f32 %v2278, %v2304
        %v2307 = vstv %s1995
        %v2308 = vmul.f32 %v2307, %v2295
        %v2309 = vmul.f32 %v2307, %v2296
        %v2310 = vadd.f32 %v2282, %v2308
        %v2311 = vadd.f32 %v2283, %v2309
        %v2312 = vstv %s1996
        %v2313 = vmul.f32 %v2312, %v2295
        %v2314 = vmul.f32 %v2312, %v2296
        %v2315 = vadd.f32 %v2287, %v2313
        %v2316 = vadd.f32 %v2288, %v2314
        %2317 = vrot.lane.b32.xlu0 %v1967, 16
        %v2318 = vpop.permute.xlu0 %2317
        %2319 = vrot.lane.b32.xlu0 %v1968, 16
        %v2320 = vpop.permute.xlu0 %2319
        %v2321 = vsel %vm829, %v2318, %v2320
        %v2322 = vsel %vm829, %v2320, %v2318
        %v2323 = vmul.f32 %v2322, %v836
        %v2324 = vmul.f32 %v2321, %v840
        %v2325 = vstv %s1997
        %v2326 = vmul.f32 %v2325, %v2323
        %v2327 = vmul.f32 %v2325, %v2324
        %v2328 = vadd.f32 %v2300, %v2326
        %v2329 = vadd.f32 %v2301, %v2327
        %v2330 = vstv %s1998
        %v2331 = vmul.f32 %v2330, %v2323
        %v2332 = vmul.f32 %v2330, %v2324
        %v2333 = vadd.f32 %v2305, %v2331
        %v2334 = vadd.f32 %v2306, %v2332
        %v2335 = vstv %s1999
        %v2336 = vmul.f32 %v2335, %v2323
        %v2337 = vmul.f32 %v2335, %v2324
        %v2338 = vadd.f32 %v2310, %v2336
        %v2339 = vadd.f32 %v2311, %v2337
        %v2340 = vstv %s2000
        %v2341 = vmul.f32 %v2340, %v2323
        %v2342 = vmul.f32 %v2340, %v2324
        %v2343 = vadd.f32 %v2315, %v2341
        %v2344 = vadd.f32 %v2316, %v2342
        %2345 = vrot.lane.b32.xlu0 %v1949, 15
        %v2346 = vpop.permute.xlu0 %2345
        %2347 = vrot.lane.b32.xlu0 %v1950, 15
        %v2348 = vpop.permute.xlu0 %2347
        %v2349 = vsel %vm955, %v2346, %v2348
        %v2350 = vsel %vm955, %v2348, %v2346
        %v2351 = vmul.f32 %v2350, %v962
        %v2352 = vmul.f32 %v2349, %v966
        %v2353 = vstv %s2001
        %v2354 = vmul.f32 %v2353, %v2351
        %v2355 = vmul.f32 %v2353, %v2352
        %v2356 = vadd.f32 %v2328, %v2354
        %v2357 = vadd.f32 %v2329, %v2355
        %v2358 = vstv %s2002
        %v2359 = vmul.f32 %v2358, %v2351
        %v2360 = vmul.f32 %v2358, %v2352
        %v2361 = vadd.f32 %v2333, %v2359
        %v2362 = vadd.f32 %v2334, %v2360
        %v2363 = vstv %s2003
        %v2364 = vmul.f32 %v2363, %v2351
        %v2365 = vmul.f32 %v2363, %v2352
        %v2366 = vadd.f32 %v2338, %v2364
        %v2367 = vadd.f32 %v2339, %v2365
        %v2368 = vstv %s2004
        %v2369 = vmul.f32 %v2368, %v2351
        %v2370 = vmul.f32 %v2368, %v2352
        %v2371 = vadd.f32 %v2343, %v2369
        %v2372 = vadd.f32 %v2344, %v2370
        %2373 = vrot.lane.b32.xlu0 %v1955, 15
        %v2374 = vpop.permute.xlu0 %2373
        %2375 = vrot.lane.b32.xlu0 %v1956, 15
        %v2376 = vpop.permute.xlu0 %2375
        %v2377 = vsel %vm955, %v2374, %v2376
        %v2378 = vsel %vm955, %v2376, %v2374
        %v2379 = vmul.f32 %v2378, %v962
        %v2380 = vmul.f32 %v2377, %v966
        %v2381 = vstv %s2005
        %v2382 = vmul.f32 %v2381, %v2379
        %v2383 = vmul.f32 %v2381, %v2380
        %v2384 = vadd.f32 %v2356, %v2382
        %v2385 = vadd.f32 %v2357, %v2383
        %v2386 = vstv %s2006
        %v2387 = vmul.f32 %v2386, %v2379
        %v2388 = vmul.f32 %v2386, %v2380
        %v2389 = vadd.f32 %v2361, %v2387
        %v2390 = vadd.f32 %v2362, %v2388
        %v2391 = vstv %s2007
        %v2392 = vmul.f32 %v2391, %v2379
        %v2393 = vmul.f32 %v2391, %v2380
        %v2394 = vadd.f32 %v2366, %v2392
        %v2395 = vadd.f32 %v2367, %v2393
        %v2396 = vstv %s2008
        %v2397 = vmul.f32 %v2396, %v2379
        %v2398 = vmul.f32 %v2396, %v2380
        %v2399 = vadd.f32 %v2371, %v2397
        %v2400 = vadd.f32 %v2372, %v2398
        %2401 = vrot.lane.b32.xlu0 %v1961, 15
        %v2402 = vpop.permute.xlu0 %2401
        %2403 = vrot.lane.b32.xlu0 %v1962, 15
        %v2404 = vpop.permute.xlu0 %2403
        %v2405 = vsel %vm955, %v2402, %v2404
        %v2406 = vsel %vm955, %v2404, %v2402
        %v2407 = vmul.f32 %v2406, %v962
        %v2408 = vmul.f32 %v2405, %v966
        %v2409 = vstv %s2009
        %v2410 = vmul.f32 %v2409, %v2407
        %v2411 = vmul.f32 %v2409, %v2408
        %v2412 = vadd.f32 %v2384, %v2410
        %v2413 = vadd.f32 %v2385, %v2411
        %v2414 = vstv %s2010
        %v2415 = vmul.f32 %v2414, %v2407
        %v2416 = vmul.f32 %v2414, %v2408
        %v2417 = vadd.f32 %v2389, %v2415
        %v2418 = vadd.f32 %v2390, %v2416
        %v2419 = vstv %s2011
        %v2420 = vmul.f32 %v2419, %v2407
        %v2421 = vmul.f32 %v2419, %v2408
        %v2422 = vadd.f32 %v2394, %v2420
        %v2423 = vadd.f32 %v2395, %v2421
        %v2424 = vstv %s2012
        %v2425 = vmul.f32 %v2424, %v2407
        %v2426 = vmul.f32 %v2424, %v2408
        %v2427 = vadd.f32 %v2399, %v2425
        %v2428 = vadd.f32 %v2400, %v2426
        %2429 = vrot.lane.b32.xlu0 %v1967, 15
        %v2430 = vpop.permute.xlu0 %2429
        %2431 = vrot.lane.b32.xlu0 %v1968, 15
        %v2432 = vpop.permute.xlu0 %2431
        %v2433 = vsel %vm955, %v2430, %v2432
        %v2434 = vsel %vm955, %v2432, %v2430
        %v2435 = vmul.f32 %v2434, %v962
        %v2436 = vmul.f32 %v2433, %v966
        %v2437 = vstv %s2013
        %v2438 = vmul.f32 %v2437, %v2435
        %v2439 = vmul.f32 %v2437, %v2436
        %v2440 = vadd.f32 %v2412, %v2438
        %v2441 = vadd.f32 %v2413, %v2439
        %v2442 = vstv %s2014
        %v2443 = vmul.f32 %v2442, %v2435
        %v2444 = vmul.f32 %v2442, %v2436
        %v2445 = vadd.f32 %v2417, %v2443
        %v2446 = vadd.f32 %v2418, %v2444
        %v2447 = vstv %s2015
        %v2448 = vmul.f32 %v2447, %v2435
        %v2449 = vmul.f32 %v2447, %v2436
        %v2450 = vadd.f32 %v2422, %v2448
        %v2451 = vadd.f32 %v2423, %v2449
        %v2452 = vstv %s2016
        %v2453 = vmul.f32 %v2452, %v2435
        %v2454 = vmul.f32 %v2452, %v2436
        %v2455 = vadd.f32 %v2427, %v2453
        %v2456 = vadd.f32 %v2428, %v2454
        %2457 = vrot.lane.b32.xlu0 %v1949, 1
        %v2458 = vpop.permute.xlu0 %2457
        %2459 = vrot.lane.b32.xlu0 %v1950, 1
        %v2460 = vpop.permute.xlu0 %2459
        %v2461 = vsel %vm1081, %v2458, %v2460
        %v2462 = vsel %vm1081, %v2460, %v2458
        %v2463 = vmul.f32 %v2462, %v1088
        %v2464 = vmul.f32 %v2461, %v1092
        %v2465 = vstv %s2017
        %v2466 = vmul.f32 %v2465, %v2463
        %v2467 = vmul.f32 %v2465, %v2464
        %v2468 = vadd.f32 %v2440, %v2466
        %v2469 = vadd.f32 %v2441, %v2467
        %v2470 = vstv %s2018
        %v2471 = vmul.f32 %v2470, %v2463
        %v2472 = vmul.f32 %v2470, %v2464
        %v2473 = vadd.f32 %v2445, %v2471
        %v2474 = vadd.f32 %v2446, %v2472
        %v2475 = vstv %s2019
        %v2476 = vmul.f32 %v2475, %v2463
        %v2477 = vmul.f32 %v2475, %v2464
        %v2478 = vadd.f32 %v2450, %v2476
        %v2479 = vadd.f32 %v2451, %v2477
        %v2480 = vstv %s2020
        %v2481 = vmul.f32 %v2480, %v2463
        %v2482 = vmul.f32 %v2480, %v2464
        %v2483 = vadd.f32 %v2455, %v2481
        %v2484 = vadd.f32 %v2456, %v2482
        %2485 = vrot.lane.b32.xlu0 %v1955, 1
        %v2486 = vpop.permute.xlu0 %2485
        %2487 = vrot.lane.b32.xlu0 %v1956, 1
        %v2488 = vpop.permute.xlu0 %2487
        %v2489 = vsel %vm1081, %v2486, %v2488
        %v2490 = vsel %vm1081, %v2488, %v2486
        %v2491 = vmul.f32 %v2490, %v1088
        %v2492 = vmul.f32 %v2489, %v1092
        %v2493 = vstv %s2021
        %v2494 = vmul.f32 %v2493, %v2491
        %v2495 = vmul.f32 %v2493, %v2492
        %v2496 = vadd.f32 %v2468, %v2494
        %v2497 = vadd.f32 %v2469, %v2495
        %v2498 = vstv %s2022
        %v2499 = vmul.f32 %v2498, %v2491
        %v2500 = vmul.f32 %v2498, %v2492
        %v2501 = vadd.f32 %v2473, %v2499
        %v2502 = vadd.f32 %v2474, %v2500
        %v2503 = vstv %s2023
        %v2504 = vmul.f32 %v2503, %v2491
        %v2505 = vmul.f32 %v2503, %v2492
        %v2506 = vadd.f32 %v2478, %v2504
        %v2507 = vadd.f32 %v2479, %v2505
        %v2508 = vstv %s2024
        %v2509 = vmul.f32 %v2508, %v2491
        %v2510 = vmul.f32 %v2508, %v2492
        %v2511 = vadd.f32 %v2483, %v2509
        %v2512 = vadd.f32 %v2484, %v2510
        %2513 = vrot.lane.b32.xlu0 %v1961, 1
        %v2514 = vpop.permute.xlu0 %2513
        %2515 = vrot.lane.b32.xlu0 %v1962, 1
        %v2516 = vpop.permute.xlu0 %2515
        %v2517 = vsel %vm1081, %v2514, %v2516
        %v2518 = vsel %vm1081, %v2516, %v2514
        %v2519 = vmul.f32 %v2518, %v1088
        %v2520 = vmul.f32 %v2517, %v1092
        %v2521 = vstv %s2025
        %v2522 = vmul.f32 %v2521, %v2519
        %v2523 = vmul.f32 %v2521, %v2520
        %v2524 = vadd.f32 %v2496, %v2522
        %v2525 = vadd.f32 %v2497, %v2523
        %v2526 = vstv %s2026
        %v2527 = vmul.f32 %v2526, %v2519
        %v2528 = vmul.f32 %v2526, %v2520
        %v2529 = vadd.f32 %v2501, %v2527
        %v2530 = vadd.f32 %v2502, %v2528
        %v2531 = vstv %s2027
        %v2532 = vmul.f32 %v2531, %v2519
        %v2533 = vmul.f32 %v2531, %v2520
        %v2534 = vadd.f32 %v2506, %v2532
        %v2535 = vadd.f32 %v2507, %v2533
        %v2536 = vstv %s2028
        %v2537 = vmul.f32 %v2536, %v2519
        %v2538 = vmul.f32 %v2536, %v2520
        %v2539 = vadd.f32 %v2511, %v2537
        %v2540 = vadd.f32 %v2512, %v2538
        %2541 = vrot.lane.b32.xlu0 %v1967, 1
        %v2542 = vpop.permute.xlu0 %2541
        %2543 = vrot.lane.b32.xlu0 %v1968, 1
        %v2544 = vpop.permute.xlu0 %2543
        %v2545 = vsel %vm1081, %v2542, %v2544
        %v2546 = vsel %vm1081, %v2544, %v2542
        %v2547 = vmul.f32 %v2546, %v1088
        %v2548 = vmul.f32 %v2545, %v1092
        %v2549 = vstv %s2029
        %v2550 = vmul.f32 %v2549, %v2547
        %v2551 = vmul.f32 %v2549, %v2548
        %v2552 = vadd.f32 %v2524, %v2550
        %v2553 = vadd.f32 %v2525, %v2551
        %v2554 = vstv %s2030
        %v2555 = vmul.f32 %v2554, %v2547
        %v2556 = vmul.f32 %v2554, %v2548
        %v2557 = vadd.f32 %v2529, %v2555
        %v2558 = vadd.f32 %v2530, %v2556
        %v2559 = vstv %s2031
        %v2560 = vmul.f32 %v2559, %v2547
        %v2561 = vmul.f32 %v2559, %v2548
        %v2562 = vadd.f32 %v2534, %v2560
        %v2563 = vadd.f32 %v2535, %v2561
        %v2564 = vstv %s2032
        %v2565 = vmul.f32 %v2564, %v2547
        %v2566 = vmul.f32 %v2564, %v2548
        %v2567 = vadd.f32 %v2539, %v2565
        %v2568 = vadd.f32 %v2540, %v2566
        %v2569 = vstv %s2033
        %v2570 = vmul.f32 %v2569, %v1949
        %v2571 = vmul.f32 %v2569, %v1950
        %v2572 = vadd.f32 %v2552, %v2570
        %v2573 = vadd.f32 %v2553, %v2571
        %v2574 = vstv %s2034
        %v2575 = vmul.f32 %v2574, %v1949
        %v2576 = vmul.f32 %v2574, %v1950
        %v2577 = vadd.f32 %v2557, %v2575
        %v2578 = vadd.f32 %v2558, %v2576
        %v2579 = vstv %s2035
        %v2580 = vmul.f32 %v2579, %v1949
        %v2581 = vmul.f32 %v2579, %v1950
        %v2582 = vadd.f32 %v2562, %v2580
        %v2583 = vadd.f32 %v2563, %v2581
        %v2584 = vstv %s2036
        %v2585 = vmul.f32 %v2584, %v1949
        %v2586 = vmul.f32 %v2584, %v1950
        %v2587 = vadd.f32 %v2567, %v2585
        %v2588 = vadd.f32 %v2568, %v2586
        %v2589 = vstv %s2037
        %v2590 = vmul.f32 %v2589, %v1955
        %v2591 = vmul.f32 %v2589, %v1956
        %v2592 = vadd.f32 %v2572, %v2590
        %v2593 = vadd.f32 %v2573, %v2591
        %v2594 = vstv %s2038
        %v2595 = vmul.f32 %v2594, %v1955
        %v2596 = vmul.f32 %v2594, %v1956
        %v2597 = vadd.f32 %v2577, %v2595
        %v2598 = vadd.f32 %v2578, %v2596
        %v2599 = vstv %s2039
        %v2600 = vmul.f32 %v2599, %v1955
        %v2601 = vmul.f32 %v2599, %v1956
        %v2602 = vadd.f32 %v2582, %v2600
        %v2603 = vadd.f32 %v2583, %v2601
        %v2604 = vstv %s2040
        %v2605 = vmul.f32 %v2604, %v1955
        %v2606 = vmul.f32 %v2604, %v1956
        %v2607 = vadd.f32 %v2587, %v2605
        %v2608 = vadd.f32 %v2588, %v2606
        %v2609 = vstv %s2041
        %v2610 = vmul.f32 %v2609, %v1961
        %v2611 = vmul.f32 %v2609, %v1962
        %v2612 = vadd.f32 %v2592, %v2610
        %v2613 = vadd.f32 %v2593, %v2611
        %v2614 = vstv %s2042
        %v2615 = vmul.f32 %v2614, %v1961
        %v2616 = vmul.f32 %v2614, %v1962
        %v2617 = vadd.f32 %v2597, %v2615
        %v2618 = vadd.f32 %v2598, %v2616
        %v2619 = vstv %s2043
        %v2620 = vmul.f32 %v2619, %v1961
        %v2621 = vmul.f32 %v2619, %v1962
        %v2622 = vadd.f32 %v2602, %v2620
        %v2623 = vadd.f32 %v2603, %v2621
        %v2624 = vstv %s2044
        %v2625 = vmul.f32 %v2624, %v1961
        %v2626 = vmul.f32 %v2624, %v1962
        %v2627 = vadd.f32 %v2607, %v2625
        %v2628 = vadd.f32 %v2608, %v2626
        %v2629 = vstv %s2045
        %v2630 = vmul.f32 %v2629, %v1967
        %v2631 = vmul.f32 %v2629, %v1968
        %v2632 = vadd.f32 %v2612, %v2630
        %v2633 = vadd.f32 %v2613, %v2631
        %v2634 = vstv %s2046
        %v2635 = vmul.f32 %v2634, %v1967
        %v2636 = vmul.f32 %v2634, %v1968
        %v2637 = vadd.f32 %v2617, %v2635
        %v2638 = vadd.f32 %v2618, %v2636
        %v2639 = vstv %s2047
        %v2640 = vmul.f32 %v2639, %v1967
        %v2641 = vmul.f32 %v2639, %v1968
        %v2642 = vadd.f32 %v2622, %v2640
        %v2643 = vadd.f32 %v2623, %v2641
        %v2644 = vstv %s2048
        %v2645 = vmul.f32 %v2644, %v1967
        %v2646 = vmul.f32 %v2644, %v1968
        %v2647 = vadd.f32 %v2627, %v2645
        %v2648 = vadd.f32 %v2628, %v2646
        %2649 = vrot.lane.b32.xlu0 %v1949, 127
        %v2650 = vpop.permute.xlu0 %2649
        %2651 = vrot.lane.b32.xlu0 %v1950, 127
        %v2652 = vpop.permute.xlu0 %2651
        %v2653 = vsel %vm1447, %v2650, %v2652
        %v2654 = vsel %vm1447, %v2652, %v2650
        %v2655 = vmul.f32 %v2653, %v1454
        %v2656 = vmul.f32 %v2654, %v1458
        %v2657 = vstv %s2049
        %v2658 = vmul.f32 %v2657, %v2655
        %v2659 = vmul.f32 %v2657, %v2656
        %v2660 = vadd.f32 %v2632, %v2658
        %v2661 = vadd.f32 %v2633, %v2659
        %v2662 = vstv %s2050
        %v2663 = vmul.f32 %v2662, %v2655
        %v2664 = vmul.f32 %v2662, %v2656
        %v2665 = vadd.f32 %v2637, %v2663
        %v2666 = vadd.f32 %v2638, %v2664
        %v2667 = vstv %s2051
        %v2668 = vmul.f32 %v2667, %v2655
        %v2669 = vmul.f32 %v2667, %v2656
        %v2670 = vadd.f32 %v2642, %v2668
        %v2671 = vadd.f32 %v2643, %v2669
        %v2672 = vstv %s2052
        %v2673 = vmul.f32 %v2672, %v2655
        %v2674 = vmul.f32 %v2672, %v2656
        %v2675 = vadd.f32 %v2647, %v2673
        %v2676 = vadd.f32 %v2648, %v2674
        %2677 = vrot.lane.b32.xlu0 %v1955, 127
        %v2678 = vpop.permute.xlu0 %2677
        %2679 = vrot.lane.b32.xlu0 %v1956, 127
        %v2680 = vpop.permute.xlu0 %2679
        %v2681 = vsel %vm1447, %v2678, %v2680
        %v2682 = vsel %vm1447, %v2680, %v2678
        %v2683 = vmul.f32 %v2681, %v1454
        %v2684 = vmul.f32 %v2682, %v1458
        %v2685 = vstv %s2053
        %v2686 = vmul.f32 %v2685, %v2683
        %v2687 = vmul.f32 %v2685, %v2684
        %v2688 = vadd.f32 %v2660, %v2686
        %v2689 = vadd.f32 %v2661, %v2687
        %v2690 = vstv %s2054
        %v2691 = vmul.f32 %v2690, %v2683
        %v2692 = vmul.f32 %v2690, %v2684
        %v2693 = vadd.f32 %v2665, %v2691
        %v2694 = vadd.f32 %v2666, %v2692
        %v2695 = vstv %s2055
        %v2696 = vmul.f32 %v2695, %v2683
        %v2697 = vmul.f32 %v2695, %v2684
        %v2698 = vadd.f32 %v2670, %v2696
        %v2699 = vadd.f32 %v2671, %v2697
        %v2700 = vstv %s2056
        %v2701 = vmul.f32 %v2700, %v2683
        %v2702 = vmul.f32 %v2700, %v2684
        %v2703 = vadd.f32 %v2675, %v2701
        %v2704 = vadd.f32 %v2676, %v2702
        %2705 = vrot.lane.b32.xlu0 %v1961, 127
        %v2706 = vpop.permute.xlu0 %2705
        %2707 = vrot.lane.b32.xlu0 %v1962, 127
        %v2708 = vpop.permute.xlu0 %2707
        %v2709 = vsel %vm1447, %v2706, %v2708
        %v2710 = vsel %vm1447, %v2708, %v2706
        %v2711 = vmul.f32 %v2709, %v1454
        %v2712 = vmul.f32 %v2710, %v1458
        %v2713 = vstv %s2057
        %v2714 = vmul.f32 %v2713, %v2711
        %v2715 = vmul.f32 %v2713, %v2712
        %v2716 = vadd.f32 %v2688, %v2714
        %v2717 = vadd.f32 %v2689, %v2715
        %v2718 = vstv %s2058
        %v2719 = vmul.f32 %v2718, %v2711
        %v2720 = vmul.f32 %v2718, %v2712
        %v2721 = vadd.f32 %v2693, %v2719
        %v2722 = vadd.f32 %v2694, %v2720
        %v2723 = vstv %s2059
        %v2724 = vmul.f32 %v2723, %v2711
        %v2725 = vmul.f32 %v2723, %v2712
        %v2726 = vadd.f32 %v2698, %v2724
        %v2727 = vadd.f32 %v2699, %v2725
        %v2728 = vstv %s2060
        %v2729 = vmul.f32 %v2728, %v2711
        %v2730 = vmul.f32 %v2728, %v2712
        %v2731 = vadd.f32 %v2703, %v2729
        %v2732 = vadd.f32 %v2704, %v2730
        %2733 = vrot.lane.b32.xlu0 %v1967, 127
        %v2734 = vpop.permute.xlu0 %2733
        %2735 = vrot.lane.b32.xlu0 %v1968, 127
        %v2736 = vpop.permute.xlu0 %2735
        %v2737 = vsel %vm1447, %v2734, %v2736
        %v2738 = vsel %vm1447, %v2736, %v2734
        %v2739 = vmul.f32 %v2737, %v1454
        %v2740 = vmul.f32 %v2738, %v1458
        %v2741 = vstv %s2061
        %v2742 = vmul.f32 %v2741, %v2739
        %v2743 = vmul.f32 %v2741, %v2740
        %v2744 = vadd.f32 %v2716, %v2742
        %v2745 = vadd.f32 %v2717, %v2743
        %v2746 = vstv %s2062
        %v2747 = vmul.f32 %v2746, %v2739
        %v2748 = vmul.f32 %v2746, %v2740
        %v2749 = vadd.f32 %v2721, %v2747
        %v2750 = vadd.f32 %v2722, %v2748
        %v2751 = vstv %s2063
        %v2752 = vmul.f32 %v2751, %v2739
        %v2753 = vmul.f32 %v2751, %v2740
        %v2754 = vadd.f32 %v2726, %v2752
        %v2755 = vadd.f32 %v2727, %v2753
        %v2756 = vstv %s2064
        %v2757 = vmul.f32 %v2756, %v2739
        %v2758 = vmul.f32 %v2756, %v2740
        %v2759 = vadd.f32 %v2731, %v2757
        %v2760 = vadd.f32 %v2732, %v2758
        %2761 = vrot.lane.b32.xlu0 %v1949, 113
        %v2762 = vpop.permute.xlu0 %2761
        %2763 = vrot.lane.b32.xlu0 %v1950, 113
        %v2764 = vpop.permute.xlu0 %2763
        %v2765 = vsel %vm1573, %v2762, %v2764
        %v2766 = vsel %vm1573, %v2764, %v2762
        %v2767 = vmul.f32 %v2765, %v1580
        %v2768 = vmul.f32 %v2766, %v1584
        %v2769 = vstv %s2065
        %v2770 = vmul.f32 %v2769, %v2767
        %v2771 = vmul.f32 %v2769, %v2768
        %v2772 = vadd.f32 %v2744, %v2770
        %v2773 = vadd.f32 %v2745, %v2771
        %v2774 = vstv %s2066
        %v2775 = vmul.f32 %v2774, %v2767
        %v2776 = vmul.f32 %v2774, %v2768
        %v2777 = vadd.f32 %v2749, %v2775
        %v2778 = vadd.f32 %v2750, %v2776
        %v2779 = vstv %s2067
        %v2780 = vmul.f32 %v2779, %v2767
        %v2781 = vmul.f32 %v2779, %v2768
        %v2782 = vadd.f32 %v2754, %v2780
        %v2783 = vadd.f32 %v2755, %v2781
        %v2784 = vstv %s2068
        %v2785 = vmul.f32 %v2784, %v2767
        %v2786 = vmul.f32 %v2784, %v2768
        %v2787 = vadd.f32 %v2759, %v2785
        %v2788 = vadd.f32 %v2760, %v2786
        %2789 = vrot.lane.b32.xlu0 %v1955, 113
        %v2790 = vpop.permute.xlu0 %2789
        %2791 = vrot.lane.b32.xlu0 %v1956, 113
        %v2792 = vpop.permute.xlu0 %2791
        %v2793 = vsel %vm1573, %v2790, %v2792
        %v2794 = vsel %vm1573, %v2792, %v2790
        %v2795 = vmul.f32 %v2793, %v1580
        %v2796 = vmul.f32 %v2794, %v1584
        %v2797 = vstv %s2069
        %v2798 = vmul.f32 %v2797, %v2795
        %v2799 = vmul.f32 %v2797, %v2796
        %v2800 = vadd.f32 %v2772, %v2798
        %v2801 = vadd.f32 %v2773, %v2799
        %v2802 = vstv %s2070
        %v2803 = vmul.f32 %v2802, %v2795
        %v2804 = vmul.f32 %v2802, %v2796
        %v2805 = vadd.f32 %v2777, %v2803
        %v2806 = vadd.f32 %v2778, %v2804
        %v2807 = vstv %s2071
        %v2808 = vmul.f32 %v2807, %v2795
        %v2809 = vmul.f32 %v2807, %v2796
        %v2810 = vadd.f32 %v2782, %v2808
        %v2811 = vadd.f32 %v2783, %v2809
        %v2812 = vstv %s2072
        %v2813 = vmul.f32 %v2812, %v2795
        %v2814 = vmul.f32 %v2812, %v2796
        %v2815 = vadd.f32 %v2787, %v2813
        %v2816 = vadd.f32 %v2788, %v2814
        %2817 = vrot.lane.b32.xlu0 %v1961, 113
        %v2818 = vpop.permute.xlu0 %2817
        %2819 = vrot.lane.b32.xlu0 %v1962, 113
        %v2820 = vpop.permute.xlu0 %2819
        %v2821 = vsel %vm1573, %v2818, %v2820
        %v2822 = vsel %vm1573, %v2820, %v2818
        %v2823 = vmul.f32 %v2821, %v1580
        %v2824 = vmul.f32 %v2822, %v1584
        %v2825 = vstv %s2073
        %v2826 = vmul.f32 %v2825, %v2823
        %v2827 = vmul.f32 %v2825, %v2824
        %v2828 = vadd.f32 %v2800, %v2826
        %v2829 = vadd.f32 %v2801, %v2827
        %v2830 = vstv %s2074
        %v2831 = vmul.f32 %v2830, %v2823
        %v2832 = vmul.f32 %v2830, %v2824
        %v2833 = vadd.f32 %v2805, %v2831
        %v2834 = vadd.f32 %v2806, %v2832
        %v2835 = vstv %s2075
        %v2836 = vmul.f32 %v2835, %v2823
        %v2837 = vmul.f32 %v2835, %v2824
        %v2838 = vadd.f32 %v2810, %v2836
        %v2839 = vadd.f32 %v2811, %v2837
        %v2840 = vstv %s2076
        %v2841 = vmul.f32 %v2840, %v2823
        %v2842 = vmul.f32 %v2840, %v2824
        %v2843 = vadd.f32 %v2815, %v2841
        %v2844 = vadd.f32 %v2816, %v2842
        %2845 = vrot.lane.b32.xlu0 %v1967, 113
        %v2846 = vpop.permute.xlu0 %2845
        %2847 = vrot.lane.b32.xlu0 %v1968, 113
        %v2848 = vpop.permute.xlu0 %2847
        %v2849 = vsel %vm1573, %v2846, %v2848
        %v2850 = vsel %vm1573, %v2848, %v2846
        %v2851 = vmul.f32 %v2849, %v1580
        %v2852 = vmul.f32 %v2850, %v1584
        %v2853 = vstv %s2077
        %v2854 = vmul.f32 %v2853, %v2851
        %v2855 = vmul.f32 %v2853, %v2852
        %v2856 = vadd.f32 %v2828, %v2854
        %v2857 = vadd.f32 %v2829, %v2855
        %v2858 = vstv %s2078
        %v2859 = vmul.f32 %v2858, %v2851
        %v2860 = vmul.f32 %v2858, %v2852
        %v2861 = vadd.f32 %v2833, %v2859
        %v2862 = vadd.f32 %v2834, %v2860
        %v2863 = vstv %s2079
        %v2864 = vmul.f32 %v2863, %v2851
        %v2865 = vmul.f32 %v2863, %v2852
        %v2866 = vadd.f32 %v2838, %v2864
        %v2867 = vadd.f32 %v2839, %v2865
        %v2868 = vstv %s2080
        %v2869 = vmul.f32 %v2868, %v2851
        %v2870 = vmul.f32 %v2868, %v2852
        %v2871 = vadd.f32 %v2843, %v2869
        %v2872 = vadd.f32 %v2844, %v2870
        %2873 = vrot.lane.b32.xlu0 %v1949, 112
        %v2874 = vpop.permute.xlu0 %2873
        %2875 = vrot.lane.b32.xlu0 %v1950, 112
        %v2876 = vpop.permute.xlu0 %2875
        %v2877 = vsel %vm1699, %v2874, %v2876
        %v2878 = vsel %vm1699, %v2876, %v2874
        %v2879 = vmul.f32 %v2877, %v1706
        %v2880 = vmul.f32 %v2878, %v1710
        %v2881 = vstv %s2081
        %v2882 = vmul.f32 %v2881, %v2879
        %v2883 = vmul.f32 %v2881, %v2880
        %v2884 = vadd.f32 %v2856, %v2882
        %v2885 = vadd.f32 %v2857, %v2883
        %v2886 = vstv %s2082
        %v2887 = vmul.f32 %v2886, %v2879
        %v2888 = vmul.f32 %v2886, %v2880
        %v2889 = vadd.f32 %v2861, %v2887
        %v2890 = vadd.f32 %v2862, %v2888
        %v2891 = vstv %s2083
        %v2892 = vmul.f32 %v2891, %v2879
        %v2893 = vmul.f32 %v2891, %v2880
        %v2894 = vadd.f32 %v2866, %v2892
        %v2895 = vadd.f32 %v2867, %v2893
        %v2896 = vstv %s2084
        %v2897 = vmul.f32 %v2896, %v2879
        %v2898 = vmul.f32 %v2896, %v2880
        %v2899 = vadd.f32 %v2871, %v2897
        %v2900 = vadd.f32 %v2872, %v2898
        %2901 = vrot.lane.b32.xlu0 %v1955, 112
        %v2902 = vpop.permute.xlu0 %2901
        %2903 = vrot.lane.b32.xlu0 %v1956, 112
        %v2904 = vpop.permute.xlu0 %2903
        %v2905 = vsel %vm1699, %v2902, %v2904
        %v2906 = vsel %vm1699, %v2904, %v2902
        %v2907 = vmul.f32 %v2905, %v1706
        %v2908 = vmul.f32 %v2906, %v1710
        %v2909 = vstv %s2085
        %v2910 = vmul.f32 %v2909, %v2907
        %v2911 = vmul.f32 %v2909, %v2908
        %v2912 = vadd.f32 %v2884, %v2910
        %v2913 = vadd.f32 %v2885, %v2911
        %v2914 = vstv %s2086
        %v2915 = vmul.f32 %v2914, %v2907
        %v2916 = vmul.f32 %v2914, %v2908
        %v2917 = vadd.f32 %v2889, %v2915
        %v2918 = vadd.f32 %v2890, %v2916
        %v2919 = vstv %s2087
        %v2920 = vmul.f32 %v2919, %v2907
        %v2921 = vmul.f32 %v2919, %v2908
        %v2922 = vadd.f32 %v2894, %v2920
        %v2923 = vadd.f32 %v2895, %v2921
        %v2924 = vstv %s2088
        %v2925 = vmul.f32 %v2924, %v2907
        %v2926 = vmul.f32 %v2924, %v2908
        %v2927 = vadd.f32 %v2899, %v2925
        %v2928 = vadd.f32 %v2900, %v2926
        %2929 = vrot.lane.b32.xlu0 %v1961, 112
        %v2930 = vpop.permute.xlu0 %2929
        %2931 = vrot.lane.b32.xlu0 %v1962, 112
        %v2932 = vpop.permute.xlu0 %2931
        %v2933 = vsel %vm1699, %v2930, %v2932
        %v2934 = vsel %vm1699, %v2932, %v2930
        %v2935 = vmul.f32 %v2933, %v1706
        %v2936 = vmul.f32 %v2934, %v1710
        %v2937 = vstv %s2089
        %v2938 = vmul.f32 %v2937, %v2935
        %v2939 = vmul.f32 %v2937, %v2936
        %v2940 = vadd.f32 %v2912, %v2938
        %v2941 = vadd.f32 %v2913, %v2939
        %v2942 = vstv %s2090
        %v2943 = vmul.f32 %v2942, %v2935
        %v2944 = vmul.f32 %v2942, %v2936
        %v2945 = vadd.f32 %v2917, %v2943
        %v2946 = vadd.f32 %v2918, %v2944
        %v2947 = vstv %s2091
        %v2948 = vmul.f32 %v2947, %v2935
        %v2949 = vmul.f32 %v2947, %v2936
        %v2950 = vadd.f32 %v2922, %v2948
        %v2951 = vadd.f32 %v2923, %v2949
        %v2952 = vstv %s2092
        %v2953 = vmul.f32 %v2952, %v2935
        %v2954 = vmul.f32 %v2952, %v2936
        %v2955 = vadd.f32 %v2927, %v2953
        %v2956 = vadd.f32 %v2928, %v2954
        %2957 = vrot.lane.b32.xlu0 %v1967, 112
        %v2958 = vpop.permute.xlu0 %2957
        %2959 = vrot.lane.b32.xlu0 %v1968, 112
        %v2960 = vpop.permute.xlu0 %2959
        %v2961 = vsel %vm1699, %v2958, %v2960
        %v2962 = vsel %vm1699, %v2960, %v2958
        %v2963 = vmul.f32 %v2961, %v1706
        %v2964 = vmul.f32 %v2962, %v1710
        %v2965 = vstv %s2093
        %v2966 = vmul.f32 %v2965, %v2963
        %v2967 = vmul.f32 %v2965, %v2964
        %v2968 = vadd.f32 %v2940, %v2966
        %v2969 = vadd.f32 %v2941, %v2967
        %v2970 = vstv %s2094
        %v2971 = vmul.f32 %v2970, %v2963
        %v2972 = vmul.f32 %v2970, %v2964
        %v2973 = vadd.f32 %v2945, %v2971
        %v2974 = vadd.f32 %v2946, %v2972
        %v2975 = vstv %s2095
        %v2976 = vmul.f32 %v2975, %v2963
        %v2977 = vmul.f32 %v2975, %v2964
        %v2978 = vadd.f32 %v2950, %v2976
        %v2979 = vadd.f32 %v2951, %v2977
        %v2980 = vstv %s2096
        %v2981 = vmul.f32 %v2980, %v2963
        %v2982 = vmul.f32 %v2980, %v2964
        %v2983 = vadd.f32 %v2955, %v2981
        %v2984 = vadd.f32 %v2956, %v2982
        %2985 = vrot.lane.b32.xlu0 %v1949, 111
        %v2986 = vpop.permute.xlu0 %2985
        %2987 = vrot.lane.b32.xlu0 %v1950, 111
        %v2988 = vpop.permute.xlu0 %2987
        %v2989 = vsel %vm1825, %v2986, %v2988
        %v2990 = vsel %vm1825, %v2988, %v2986
        %v2991 = vmul.f32 %v2989, %v1832
        %v2992 = vmul.f32 %v2990, %v1836
        %v2993 = vstv %s2097
        %v2994 = vmul.f32 %v2993, %v2991
        %v2995 = vmul.f32 %v2993, %v2992
        %v2996 = vadd.f32 %v2968, %v2994
        %v2997 = vadd.f32 %v2969, %v2995
        %v2998 = vstv %s2098
        %v2999 = vmul.f32 %v2998, %v2991
        %v3000 = vmul.f32 %v2998, %v2992
        %v3001 = vadd.f32 %v2973, %v2999
        %v3002 = vadd.f32 %v2974, %v3000
        %v3003 = vstv %s2099
        %v3004 = vmul.f32 %v3003, %v2991
        %v3005 = vmul.f32 %v3003, %v2992
        %v3006 = vadd.f32 %v2978, %v3004
        %v3007 = vadd.f32 %v2979, %v3005
        %v3008 = vstv %s2100
        %v3009 = vmul.f32 %v3008, %v2991
        %v3010 = vmul.f32 %v3008, %v2992
        %v3011 = vadd.f32 %v2983, %v3009
        %v3012 = vadd.f32 %v2984, %v3010
        %3013 = vrot.lane.b32.xlu0 %v1955, 111
        %v3014 = vpop.permute.xlu0 %3013
        %3015 = vrot.lane.b32.xlu0 %v1956, 111
        %v3016 = vpop.permute.xlu0 %3015
        %v3017 = vsel %vm1825, %v3014, %v3016
        %v3018 = vsel %vm1825, %v3016, %v3014
        %v3019 = vmul.f32 %v3017, %v1832
        %v3020 = vmul.f32 %v3018, %v1836
        %v3021 = vstv %s2101
        %v3022 = vmul.f32 %v3021, %v3019
        %v3023 = vmul.f32 %v3021, %v3020
        %v3024 = vadd.f32 %v2996, %v3022
        %v3025 = vadd.f32 %v2997, %v3023
        %v3026 = vstv %s2102
        %v3027 = vmul.f32 %v3026, %v3019
        %v3028 = vmul.f32 %v3026, %v3020
        %v3029 = vadd.f32 %v3001, %v3027
        %v3030 = vadd.f32 %v3002, %v3028
        %v3031 = vstv %s2103
        %v3032 = vmul.f32 %v3031, %v3019
        %v3033 = vmul.f32 %v3031, %v3020
        %v3034 = vadd.f32 %v3006, %v3032
        %v3035 = vadd.f32 %v3007, %v3033
        %v3036 = vstv %s2104
        %v3037 = vmul.f32 %v3036, %v3019
        %v3038 = vmul.f32 %v3036, %v3020
        %v3039 = vadd.f32 %v3011, %v3037
        %v3040 = vadd.f32 %v3012, %v3038
        %3041 = vrot.lane.b32.xlu0 %v1961, 111
        %v3042 = vpop.permute.xlu0 %3041
        %3043 = vrot.lane.b32.xlu0 %v1962, 111
        %v3044 = vpop.permute.xlu0 %3043
        %v3045 = vsel %vm1825, %v3042, %v3044
        %v3046 = vsel %vm1825, %v3044, %v3042
        %v3047 = vmul.f32 %v3045, %v1832
        %v3048 = vmul.f32 %v3046, %v1836
        %v3049 = vstv %s2105
        %v3050 = vmul.f32 %v3049, %v3047
        %v3051 = vmul.f32 %v3049, %v3048
        %v3052 = vadd.f32 %v3024, %v3050
        %v3053 = vadd.f32 %v3025, %v3051
        %v3054 = vstv %s2106
        %v3055 = vmul.f32 %v3054, %v3047
        %v3056 = vmul.f32 %v3054, %v3048
        %v3057 = vadd.f32 %v3029, %v3055
        %v3058 = vadd.f32 %v3030, %v3056
        %v3059 = vstv %s2107
        %v3060 = vmul.f32 %v3059, %v3047
        %v3061 = vmul.f32 %v3059, %v3048
        %v3062 = vadd.f32 %v3034, %v3060
        %v3063 = vadd.f32 %v3035, %v3061
        %v3064 = vstv %s2108
        %v3065 = vmul.f32 %v3064, %v3047
        %v3066 = vmul.f32 %v3064, %v3048
        %v3067 = vadd.f32 %v3039, %v3065
        %v3068 = vadd.f32 %v3040, %v3066
        %3069 = vrot.lane.b32.xlu0 %v1967, 111
        %v3070 = vpop.permute.xlu0 %3069
        %3071 = vrot.lane.b32.xlu0 %v1968, 111
        %v3072 = vpop.permute.xlu0 %3071
        %v3073 = vsel %vm1825, %v3070, %v3072
        %v3074 = vsel %vm1825, %v3072, %v3070
        %v3075 = vmul.f32 %v3073, %v1832
        %v3076 = vmul.f32 %v3074, %v1836
        %v3077 = vstv %s2109
        %v3078 = vmul.f32 %v3077, %v3075
        %v3079 = vmul.f32 %v3077, %v3076
        %v3080 = vadd.f32 %v3052, %v3078
        %v3081 = vadd.f32 %v3053, %v3079
        %v3082 = vstv %s2110
        %v3083 = vmul.f32 %v3082, %v3075
        %v3084 = vmul.f32 %v3082, %v3076
        %v3085 = vadd.f32 %v3057, %v3083
        %v3086 = vadd.f32 %v3058, %v3084
        %v3087 = vstv %s2111
        %v3088 = vmul.f32 %v3087, %v3075
        %v3089 = vmul.f32 %v3087, %v3076
        %v3090 = vadd.f32 %v3062, %v3088
        %v3091 = vadd.f32 %v3063, %v3089
        %v3092 = vstv %s2112
        %v3093 = vmul.f32 %v3092, %v3075
        %v3094 = vmul.f32 %v3092, %v3076
        %v3095 = vadd.f32 %v3067, %v3093
        %v3096 = vadd.f32 %v3068, %v3094
        %vm3097 = vcmp.ge.f32.partialorder %v3080, 0.0
        %vm3098 = vcmp.ge.f32.partialorder %v3081, 0.0
        %v3099 = vmul.f32 %v3080, 0.1
        %v3100 = vmul.f32 %v3081, 0.1
        %v3101 = vsel %vm3097, %v3080, %v3099
        %v3102 = vsel %vm3098, %v3081, %v3100
        %vm3103 = vcmp.ge.f32.partialorder %v3085, 0.0
        %vm3104 = vcmp.ge.f32.partialorder %v3086, 0.0
        %v3105 = vmul.f32 %v3085, 0.1
        %v3106 = vmul.f32 %v3086, 0.1
        %v3107 = vsel %vm3103, %v3085, %v3105
        %v3108 = vsel %vm3104, %v3086, %v3106
        %vm3109 = vcmp.ge.f32.partialorder %v3090, 0.0
        %vm3110 = vcmp.ge.f32.partialorder %v3091, 0.0
        %v3111 = vmul.f32 %v3090, 0.1
        %v3112 = vmul.f32 %v3091, 0.1
        %v3113 = vsel %vm3109, %v3090, %v3111
        %v3114 = vsel %vm3110, %v3091, %v3112
        %vm3115 = vcmp.ge.f32.partialorder %v3095, 0.0
        %vm3116 = vcmp.ge.f32.partialorder %v3096, 0.0
        %v3117 = vmul.f32 %v3095, 0.1
        %v3118 = vmul.f32 %v3096, 0.1
        %v3119 = vsel %vm3115, %v3095, %v3117
        %v3120 = vsel %vm3116, %v3096, %v3118
        %s3121 = sld [smem:[#allocation14]]
        %s3122 = sld [smem:[#allocation14 + $0x1]]
        %s3123 = sld [smem:[#allocation14 + $0x2]]
        %s3124 = sld [smem:[#allocation14 + $0x3]]
        %s3125 = sld [smem:[#allocation14 + $0x4]]
        %s3126 = sld [smem:[#allocation14 + $0x5]]
        %s3127 = sld [smem:[#allocation14 + $0x6]]
        %s3128 = sld [smem:[#allocation14 + $0x7]]
        %s3129 = sld [smem:[#allocation14 + $0x8]]
        %s3130 = sld [smem:[#allocation14 + $0x9]]
        %s3131 = sld [smem:[#allocation14 + $0xa]]
        %s3132 = sld [smem:[#allocation14 + $0xb]]
        %s3133 = sld [smem:[#allocation14 + $0xc]]
        %s3134 = sld [smem:[#allocation14 + $0xd]]
        %s3135 = sld [smem:[#allocation14 + $0xe]]
        %s3136 = sld [smem:[#allocation14 + $0xf]]
        %s3137 = sld [smem:[#allocation14 + $0x10]]
        %s3138 = sld [smem:[#allocation14 + $0x11]]
        %s3139 = sld [smem:[#allocation14 + $0x12]]
        %s3140 = sld [smem:[#allocation14 + $0x13]]
        %s3141 = sld [smem:[#allocation14 + $0x14]]
        %s3142 = sld [smem:[#allocation14 + $0x15]]
        %s3143 = sld [smem:[#allocation14 + $0x16]]
        %s3144 = sld [smem:[#allocation14 + $0x17]]
        %s3145 = sld [smem:[#allocation14 + $0x18]]
        %s3146 = sld [smem:[#allocation14 + $0x19]]
        %s3147 = sld [smem:[#allocation14 + $0x1a]]
        %s3148 = sld [smem:[#allocation14 + $0x1b]]
        %s3149 = sld [smem:[#allocation14 + $0x1c]]
        %s3150 = sld [smem:[#allocation14 + $0x1d]]
        %s3151 = sld [smem:[#allocation14 + $0x1e]]
        %s3152 = sld [smem:[#allocation14 + $0x1f]]
        %s3153 = sld [smem:[#allocation14 + $0x20]]
        %s3154 = sld [smem:[#allocation14 + $0x21]]
        %s3155 = sld [smem:[#allocation14 + $0x22]]
        %s3156 = sld [smem:[#allocation14 + $0x23]]
        %s3157 = sld [smem:[#allocation14 + $0x24]]
        %s3158 = sld [smem:[#allocation14 + $0x25]]
        %s3159 = sld [smem:[#allocation14 + $0x26]]
        %s3160 = sld [smem:[#allocation14 + $0x27]]
        %s3161 = sld [smem:[#allocation14 + $0x28]]
        %s3162 = sld [smem:[#allocation14 + $0x29]]
        %s3163 = sld [smem:[#allocation14 + $0x2a]]
        %s3164 = sld [smem:[#allocation14 + $0x2b]]
        %s3165 = sld [smem:[#allocation14 + $0x2c]]
        %s3166 = sld [smem:[#allocation14 + $0x2d]]
        %s3167 = sld [smem:[#allocation14 + $0x2e]]
        %s3168 = sld [smem:[#allocation14 + $0x2f]]
        %s3169 = sld [smem:[#allocation14 + $0x30]]
        %s3170 = sld [smem:[#allocation14 + $0x31]]
        %s3171 = sld [smem:[#allocation14 + $0x32]]
        %s3172 = sld [smem:[#allocation14 + $0x33]]
        %s3173 = sld [smem:[#allocation14 + $0x34]]
        %s3174 = sld [smem:[#allocation14 + $0x35]]
        %s3175 = sld [smem:[#allocation14 + $0x36]]
        %s3176 = sld [smem:[#allocation14 + $0x37]]
        %s3177 = sld [smem:[#allocation14 + $0x38]]
        %s3178 = sld [smem:[#allocation14 + $0x39]]
        %s3179 = sld [smem:[#allocation14 + $0x3a]]
        %s3180 = sld [smem:[#allocation14 + $0x3b]]
        %s3181 = sld [smem:[#allocation14 + $0x3c]]
        %s3182 = sld [smem:[#allocation14 + $0x3d]]
        %s3183 = sld [smem:[#allocation14 + $0x3e]]
        %s3184 = sld [smem:[#allocation14 + $0x3f]]
        %s3185 = sld [smem:[#allocation14 + $0x40]]
        %s3186 = sld [smem:[#allocation14 + $0x41]]
        %s3187 = sld [smem:[#allocation14 + $0x42]]
        %s3188 = sld [smem:[#allocation14 + $0x43]]
        %s3189 = sld [smem:[#allocation14 + $0x44]]
        %s3190 = sld [smem:[#allocation14 + $0x45]]
        %s3191 = sld [smem:[#allocation14 + $0x46]]
        %s3192 = sld [smem:[#allocation14 + $0x47]]
        %s3193 = sld [smem:[#allocation14 + $0x48]]
        %s3194 = sld [smem:[#allocation14 + $0x49]]
        %s3195 = sld [smem:[#allocation14 + $0x4a]]
        %s3196 = sld [smem:[#allocation14 + $0x4b]]
        %s3197 = sld [smem:[#allocation14 + $0x4c]]
        %s3198 = sld [smem:[#allocation14 + $0x4d]]
        %s3199 = sld [smem:[#allocation14 + $0x4e]]
        %s3200 = sld [smem:[#allocation14 + $0x4f]]
        %s3201 = sld [smem:[#allocation14 + $0x50]]
        %s3202 = sld [smem:[#allocation14 + $0x51]]
        %s3203 = sld [smem:[#allocation14 + $0x52]]
        %s3204 = sld [smem:[#allocation14 + $0x53]]
        %s3205 = sld [smem:[#allocation14 + $0x54]]
        %s3206 = sld [smem:[#allocation14 + $0x55]]
        %s3207 = sld [smem:[#allocation14 + $0x56]]
        %s3208 = sld [smem:[#allocation14 + $0x57]]
        %s3209 = sld [smem:[#allocation14 + $0x58]]
        %s3210 = sld [smem:[#allocation14 + $0x59]]
        %s3211 = sld [smem:[#allocation14 + $0x5a]]
        %s3212 = sld [smem:[#allocation14 + $0x5b]]
        %s3213 = sld [smem:[#allocation14 + $0x5c]]
        %s3214 = sld [smem:[#allocation14 + $0x5d]]
        %s3215 = sld [smem:[#allocation14 + $0x5e]]
        %s3216 = sld [smem:[#allocation14 + $0x5f]]
        %s3217 = sld [smem:[#allocation14 + $0x60]]
        %s3218 = sld [smem:[#allocation14 + $0x61]]
        %s3219 = sld [smem:[#allocation14 + $0x62]]
        %s3220 = sld [smem:[#allocation14 + $0x63]]
        %s3221 = sld [smem:[#allocation14 + $0x64]]
        %s3222 = sld [smem:[#allocation14 + $0x65]]
        %s3223 = sld [smem:[#allocation14 + $0x66]]
        %s3224 = sld [smem:[#allocation14 + $0x67]]
        %s3225 = sld [smem:[#allocation14 + $0x68]]
        %s3226 = sld [smem:[#allocation14 + $0x69]]
        %s3227 = sld [smem:[#allocation14 + $0x6a]]
        %s3228 = sld [smem:[#allocation14 + $0x6b]]
        %s3229 = sld [smem:[#allocation14 + $0x6c]]
        %s3230 = sld [smem:[#allocation14 + $0x6d]]
        %s3231 = sld [smem:[#allocation14 + $0x6e]]
        %s3232 = sld [smem:[#allocation14 + $0x6f]]
        %s3233 = sld [smem:[#allocation14 + $0x70]]
        %s3234 = sld [smem:[#allocation14 + $0x71]]
        %s3235 = sld [smem:[#allocation14 + $0x72]]
        %s3236 = sld [smem:[#allocation14 + $0x73]]
        %s3237 = sld [smem:[#allocation14 + $0x74]]
        %s3238 = sld [smem:[#allocation14 + $0x75]]
        %s3239 = sld [smem:[#allocation14 + $0x76]]
        %s3240 = sld [smem:[#allocation14 + $0x77]]
        %s3241 = sld [smem:[#allocation14 + $0x78]]
        %s3242 = sld [smem:[#allocation14 + $0x79]]
        %s3243 = sld [smem:[#allocation14 + $0x7a]]
        %s3244 = sld [smem:[#allocation14 + $0x7b]]
        %s3245 = sld [smem:[#allocation14 + $0x7c]]
        %s3246 = sld [smem:[#allocation14 + $0x7d]]
        %s3247 = sld [smem:[#allocation14 + $0x7e]]
        %s3248 = sld [smem:[#allocation14 + $0x7f]]
        %s3249 = sld [smem:[#allocation14 + $0x80]]
        %s3250 = sld [smem:[#allocation14 + $0x81]]
        %s3251 = sld [smem:[#allocation14 + $0x82]]
        %s3252 = sld [smem:[#allocation14 + $0x83]]
        %s3253 = sld [smem:[#allocation14 + $0x84]]
        %s3254 = sld [smem:[#allocation14 + $0x85]]
        %s3255 = sld [smem:[#allocation14 + $0x86]]
        %s3256 = sld [smem:[#allocation14 + $0x87]]
        %s3257 = sld [smem:[#allocation14 + $0x88]]
        %s3258 = sld [smem:[#allocation14 + $0x89]]
        %s3259 = sld [smem:[#allocation14 + $0x8a]]
        %s3260 = sld [smem:[#allocation14 + $0x8b]]
        %s3261 = sld [smem:[#allocation14 + $0x8c]]
        %s3262 = sld [smem:[#allocation14 + $0x8d]]
        %s3263 = sld [smem:[#allocation14 + $0x8e]]
        %s3264 = sld [smem:[#allocation14 + $0x8f]]
        %s3265 = sld [smem:[#allocation15]]
        %s3266 = sld [smem:[#allocation15 + $0x1]]
        %s3267 = sld [smem:[#allocation15 + $0x2]]
        %s3268 = sld [smem:[#allocation15 + $0x3]]
        %3269 = vrot.lane.b32.xlu0 %v3101, 17
        %v3270 = vpop.permute.xlu0 %3269
        %3271 = vrot.lane.b32.xlu0 %v3102, 17
        %v3272 = vpop.permute.xlu0 %3271
        %v3273 = vsel %vm666, %v3270, %v3272
        %v3274 = vsel %vm666, %v3272, %v3270
        %v3275 = vmul.f32 %v3274, %v673
        %v3276 = vmul.f32 %v3273, %v677
        %v3277 = vstv %s3121
        %v3278 = vmul.f32 %v3277, %v3275
        %v3279 = vmul.f32 %v3277, %v3276
        %v3280 = vstv %s3265
        %v3281 = vadd.f32 %v3278, %v3280
        %v3282 = vadd.f32 %v3279, %v3280
        %v3283 = vstv %s3122
        %v3284 = vmul.f32 %v3283, %v3275
        %v3285 = vmul.f32 %v3283, %v3276
        %v3286 = vstv %s3266
        %v3287 = vadd.f32 %v3284, %v3286
        %v3288 = vadd.f32 %v3285, %v3286
        %v3289 = vstv %s3123
        %v3290 = vmul.f32 %v3289, %v3275
        %v3291 = vmul.f32 %v3289, %v3276
        %v3292 = vstv %s3267
        %v3293 = vadd.f32 %v3290, %v3292
        %v3294 = vadd.f32 %v3291, %v3292
        %v3295 = vstv %s3124
        %v3296 = vmul.f32 %v3295, %v3275
        %v3297 = vmul.f32 %v3295, %v3276
        %v3298 = vstv %s3268
        %v3299 = vadd.f32 %v3296, %v3298
        %v3300 = vadd.f32 %v3297, %v3298
        %3301 = vrot.lane.b32.xlu0 %v3107, 17
        %v3302 = vpop.permute.xlu0 %3301
        %3303 = vrot.lane.b32.xlu0 %v3108, 17
        %v3304 = vpop.permute.xlu0 %3303
        %v3305 = vsel %vm666, %v3302, %v3304
        %v3306 = vsel %vm666, %v3304, %v3302
        %v3307 = vmul.f32 %v3306, %v673
        %v3308 = vmul.f32 %v3305, %v677
        %v3309 = vstv %s3125
        %v3310 = vmul.f32 %v3309, %v3307
        %v3311 = vmul.f32 %v3309, %v3308
        %v3312 = vadd.f32 %v3281, %v3310
        %v3313 = vadd.f32 %v3282, %v3311
        %v3314 = vstv %s3126
        %v3315 = vmul.f32 %v3314, %v3307
        %v3316 = vmul.f32 %v3314, %v3308
        %v3317 = vadd.f32 %v3287, %v3315
        %v3318 = vadd.f32 %v3288, %v3316
        %v3319 = vstv %s3127
        %v3320 = vmul.f32 %v3319, %v3307
        %v3321 = vmul.f32 %v3319, %v3308
        %v3322 = vadd.f32 %v3293, %v3320
        %v3323 = vadd.f32 %v3294, %v3321
        %v3324 = vstv %s3128
        %v3325 = vmul.f32 %v3324, %v3307
        %v3326 = vmul.f32 %v3324, %v3308
        %v3327 = vadd.f32 %v3299, %v3325
        %v3328 = vadd.f32 %v3300, %v3326
        %3329 = vrot.lane.b32.xlu0 %v3113, 17
        %v3330 = vpop.permute.xlu0 %3329
        %3331 = vrot.lane.b32.xlu0 %v3114, 17
        %v3332 = vpop.permute.xlu0 %3331
        %v3333 = vsel %vm666, %v3330, %v3332
        %v3334 = vsel %vm666, %v3332, %v3330
        %v3335 = vmul.f32 %v3334, %v673
        %v3336 = vmul.f32 %v3333, %v677
        %v3337 = vstv %s3129
        %v3338 = vmul.f32 %v3337, %v3335
        %v3339 = vmul.f32 %v3337, %v3336
        %v3340 = vadd.f32 %v3312, %v3338
        %v3341 = vadd.f32 %v3313, %v3339
        %v3342 = vstv %s3130
        %v3343 = vmul.f32 %v3342, %v3335
        %v3344 = vmul.f32 %v3342, %v3336
        %v3345 = vadd.f32 %v3317, %v3343
        %v3346 = vadd.f32 %v3318, %v3344
        %v3347 = vstv %s3131
        %v3348 = vmul.f32 %v3347, %v3335
        %v3349 = vmul.f32 %v3347, %v3336
        %v3350 = vadd.f32 %v3322, %v3348
        %v3351 = vadd.f32 %v3323, %v3349
        %v3352 = vstv %s3132
        %v3353 = vmul.f32 %v3352, %v3335
        %v3354 = vmul.f32 %v3352, %v3336
        %v3355 = vadd.f32 %v3327, %v3353
        %v3356 = vadd.f32 %v3328, %v3354
        %3357 = vrot.lane.b32.xlu0 %v3119, 17
        %v3358 = vpop.permute.xlu0 %3357
        %3359 = vrot.lane.b32.xlu0 %v3120, 17
        %v3360 = vpop.permute.xlu0 %3359
        %v3361 = vsel %vm666, %v3358, %v3360
        %v3362 = vsel %vm666, %v3360, %v3358
        %v3363 = vmul.f32 %v3362, %v673
        %v3364 = vmul.f32 %v3361, %v677
        %v3365 = vstv %s3133
        %v3366 = vmul.f32 %v3365, %v3363
        %v3367 = vmul.f32 %v3365, %v3364
        %v3368 = vadd.f32 %v3340, %v3366
        %v3369 = vadd.f32 %v3341, %v3367
        %v3370 = vstv %s3134
        %v3371 = vmul.f32 %v3370, %v3363
        %v3372 = vmul.f32 %v3370, %v3364
        %v3373 = vadd.f32 %v3345, %v3371
        %v3374 = vadd.f32 %v3346, %v3372
        %v3375 = vstv %s3135
        %v3376 = vmul.f32 %v3375, %v3363
        %v3377 = vmul.f32 %v3375, %v3364
        %v3378 = vadd.f32 %v3350, %v3376
        %v3379 = vadd.f32 %v3351, %v3377
        %v3380 = vstv %s3136
        %v3381 = vmul.f32 %v3380, %v3363
        %v3382 = vmul.f32 %v3380, %v3364
        %v3383 = vadd.f32 %v3355, %v3381
        %v3384 = vadd.f32 %v3356, %v3382
        %3385 = vrot.lane.b32.xlu0 %v3101, 16
        %v3386 = vpop.permute.xlu0 %3385
        %3387 = vrot.lane.b32.xlu0 %v3102, 16
        %v3388 = vpop.permute.xlu0 %3387
        %v3389 = vsel %vm829, %v3386, %v3388
        %v3390 = vsel %vm829, %v3388, %v3386
        %v3391 = vmul.f32 %v3390, %v836
        %v3392 = vmul.f32 %v3389, %v840
        %v3393 = vstv %s3137
        %v3394 = vmul.f32 %v3393, %v3391
        %v3395 = vmul.f32 %v3393, %v3392
        %v3396 = vadd.f32 %v3368, %v3394
        %v3397 = vadd.f32 %v3369, %v3395
        %v3398 = vstv %s3138
        %v3399 = vmul.f32 %v3398, %v3391
        %v3400 = vmul.f32 %v3398, %v3392
        %v3401 = vadd.f32 %v3373, %v3399
        %v3402 = vadd.f32 %v3374, %v3400
        %v3403 = vstv %s3139
        %v3404 = vmul.f32 %v3403, %v3391
        %v3405 = vmul.f32 %v3403, %v3392
        %v3406 = vadd.f32 %v3378, %v3404
        %v3407 = vadd.f32 %v3379, %v3405
        %v3408 = vstv %s3140
        %v3409 = vmul.f32 %v3408, %v3391
        %v3410 = vmul.f32 %v3408, %v3392
        %v3411 = vadd.f32 %v3383, %v3409
        %v3412 = vadd.f32 %v3384, %v3410
        %3413 = vrot.lane.b32.xlu0 %v3107, 16
        %v3414 = vpop.permute.xlu0 %3413
        %3415 = vrot.lane.b32.xlu0 %v3108, 16
        %v3416 = vpop.permute.xlu0 %3415
        %v3417 = vsel %vm829, %v3414, %v3416
        %v3418 = vsel %vm829, %v3416, %v3414
        %v3419 = vmul.f32 %v3418, %v836
        %v3420 = vmul.f32 %v3417, %v840
        %v3421 = vstv %s3141
        %v3422 = vmul.f32 %v3421, %v3419
        %v3423 = vmul.f32 %v3421, %v3420
        %v3424 = vadd.f32 %v3396, %v3422
        %v3425 = vadd.f32 %v3397, %v3423
        %v3426 = vstv %s3142
        %v3427 = vmul.f32 %v3426, %v3419
        %v3428 = vmul.f32 %v3426, %v3420
        %v3429 = vadd.f32 %v3401, %v3427
        %v3430 = vadd.f32 %v3402, %v3428
        %v3431 = vstv %s3143
        %v3432 = vmul.f32 %v3431, %v3419
        %v3433 = vmul.f32 %v3431, %v3420
        %v3434 = vadd.f32 %v3406, %v3432
        %v3435 = vadd.f32 %v3407, %v3433
        %v3436 = vstv %s3144
        %v3437 = vmul.f32 %v3436, %v3419
        %v3438 = vmul.f32 %v3436, %v3420
        %v3439 = vadd.f32 %v3411, %v3437
        %v3440 = vadd.f32 %v3412, %v3438
        %3441 = vrot.lane.b32.xlu0 %v3113, 16
        %v3442 = vpop.permute.xlu0 %3441
        %3443 = vrot.lane.b32.xlu0 %v3114, 16
        %v3444 = vpop.permute.xlu0 %3443
        %v3445 = vsel %vm829, %v3442, %v3444
        %v3446 = vsel %vm829, %v3444, %v3442
        %v3447 = vmul.f32 %v3446, %v836
        %v3448 = vmul.f32 %v3445, %v840
        %v3449 = vstv %s3145
        %v3450 = vmul.f32 %v3449, %v3447
        %v3451 = vmul.f32 %v3449, %v3448
        %v3452 = vadd.f32 %v3424, %v3450
        %v3453 = vadd.f32 %v3425, %v3451
        %v3454 = vstv %s3146
        %v3455 = vmul.f32 %v3454, %v3447
        %v3456 = vmul.f32 %v3454, %v3448
        %v3457 = vadd.f32 %v3429, %v3455
        %v3458 = vadd.f32 %v3430, %v3456
        %v3459 = vstv %s3147
        %v3460 = vmul.f32 %v3459, %v3447
        %v3461 = vmul.f32 %v3459, %v3448
        %v3462 = vadd.f32 %v3434, %v3460
        %v3463 = vadd.f32 %v3435, %v3461
        %v3464 = vstv %s3148
        %v3465 = vmul.f32 %v3464, %v3447
        %v3466 = vmul.f32 %v3464, %v3448
        %v3467 = vadd.f32 %v3439, %v3465
        %v3468 = vadd.f32 %v3440, %v3466
        %3469 = vrot.lane.b32.xlu0 %v3119, 16
        %v3470 = vpop.permute.xlu0 %3469
        %3471 = vrot.lane.b32.xlu0 %v3120, 16
        %v3472 = vpop.permute.xlu0 %3471
        %v3473 = vsel %vm829, %v3470, %v3472
        %v3474 = vsel %vm829, %v3472, %v3470
        %v3475 = vmul.f32 %v3474, %v836
        %v3476 = vmul.f32 %v3473, %v840
        %v3477 = vstv %s3149
        %v3478 = vmul.f32 %v3477, %v3475
        %v3479 = vmul.f32 %v3477, %v3476
        %v3480 = vadd.f32 %v3452, %v3478
        %v3481 = vadd.f32 %v3453, %v3479
        %v3482 = vstv %s3150
        %v3483 = vmul.f32 %v3482, %v3475
        %v3484 = vmul.f32 %v3482, %v3476
        %v3485 = vadd.f32 %v3457, %v3483
        %v3486 = vadd.f32 %v3458, %v3484
        %v3487 = vstv %s3151
        %v3488 = vmul.f32 %v3487, %v3475
        %v3489 = vmul.f32 %v3487, %v3476
        %v3490 = vadd.f32 %v3462, %v3488
        %v3491 = vadd.f32 %v3463, %v3489
        %v3492 = vstv %s3152
        %v3493 = vmul.f32 %v3492, %v3475
        %v3494 = vmul.f32 %v3492, %v3476
        %v3495 = vadd.f32 %v3467, %v3493
        %v3496 = vadd.f32 %v3468, %v3494
        %3497 = vrot.lane.b32.xlu0 %v3101, 15
        %v3498 = vpop.permute.xlu0 %3497
        %3499 = vrot.lane.b32.xlu0 %v3102, 15
        %v3500 = vpop.permute.xlu0 %3499
        %v3501 = vsel %vm955, %v3498, %v3500
        %v3502 = vsel %vm955, %v3500, %v3498
        %v3503 = vmul.f32 %v3502, %v962
        %v3504 = vmul.f32 %v3501, %v966
        %v3505 = vstv %s3153
        %v3506 = vmul.f32 %v3505, %v3503
        %v3507 = vmul.f32 %v3505, %v3504
        %v3508 = vadd.f32 %v3480, %v3506
        %v3509 = vadd.f32 %v3481, %v3507
        %v3510 = vstv %s3154
        %v3511 = vmul.f32 %v3510, %v3503
        %v3512 = vmul.f32 %v3510, %v3504
        %v3513 = vadd.f32 %v3485, %v3511
        %v3514 = vadd.f32 %v3486, %v3512
        %v3515 = vstv %s3155
        %v3516 = vmul.f32 %v3515, %v3503
        %v3517 = vmul.f32 %v3515, %v3504
        %v3518 = vadd.f32 %v3490, %v3516
        %v3519 = vadd.f32 %v3491, %v3517
        %v3520 = vstv %s3156
        %v3521 = vmul.f32 %v3520, %v3503
        %v3522 = vmul.f32 %v3520, %v3504
        %v3523 = vadd.f32 %v3495, %v3521
        %v3524 = vadd.f32 %v3496, %v3522
        %3525 = vrot.lane.b32.xlu0 %v3107, 15
        %v3526 = vpop.permute.xlu0 %3525
        %3527 = vrot.lane.b32.xlu0 %v3108, 15
        %v3528 = vpop.permute.xlu0 %3527
        %v3529 = vsel %vm955, %v3526, %v3528
        %v3530 = vsel %vm955, %v3528, %v3526
        %v3531 = vmul.f32 %v3530, %v962
        %v3532 = vmul.f32 %v3529, %v966
        %v3533 = vstv %s3157
        %v3534 = vmul.f32 %v3533, %v3531
        %v3535 = vmul.f32 %v3533, %v3532
        %v3536 = vadd.f32 %v3508, %v3534
        %v3537 = vadd.f32 %v3509, %v3535
        %v3538 = vstv %s3158
        %v3539 = vmul.f32 %v3538, %v3531
        %v3540 = vmul.f32 %v3538, %v3532
        %v3541 = vadd.f32 %v3513, %v3539
        %v3542 = vadd.f32 %v3514, %v3540
        %v3543 = vstv %s3159
        %v3544 = vmul.f32 %v3543, %v3531
        %v3545 = vmul.f32 %v3543, %v3532
        %v3546 = vadd.f32 %v3518, %v3544
        %v3547 = vadd.f32 %v3519, %v3545
        %v3548 = vstv %s3160
        %v3549 = vmul.f32 %v3548, %v3531
        %v3550 = vmul.f32 %v3548, %v3532
        %v3551 = vadd.f32 %v3523, %v3549
        %v3552 = vadd.f32 %v3524, %v3550
        %3553 = vrot.lane.b32.xlu0 %v3113, 15
        %v3554 = vpop.permute.xlu0 %3553
        %3555 = vrot.lane.b32.xlu0 %v3114, 15
        %v3556 = vpop.permute.xlu0 %3555
        %v3557 = vsel %vm955, %v3554, %v3556
        %v3558 = vsel %vm955, %v3556, %v3554
        %v3559 = vmul.f32 %v3558, %v962
        %v3560 = vmul.f32 %v3557, %v966
        %v3561 = vstv %s3161
        %v3562 = vmul.f32 %v3561, %v3559
        %v3563 = vmul.f32 %v3561, %v3560
        %v3564 = vadd.f32 %v3536, %v3562
        %v3565 = vadd.f32 %v3537, %v3563
        %v3566 = vstv %s3162
        %v3567 = vmul.f32 %v3566, %v3559
        %v3568 = vmul.f32 %v3566, %v3560
        %v3569 = vadd.f32 %v3541, %v3567
        %v3570 = vadd.f32 %v3542, %v3568
        %v3571 = vstv %s3163
        %v3572 = vmul.f32 %v3571, %v3559
        %v3573 = vmul.f32 %v3571, %v3560
        %v3574 = vadd.f32 %v3546, %v3572
        %v3575 = vadd.f32 %v3547, %v3573
        %v3576 = vstv %s3164
        %v3577 = vmul.f32 %v3576, %v3559
        %v3578 = vmul.f32 %v3576, %v3560
        %v3579 = vadd.f32 %v3551, %v3577
        %v3580 = vadd.f32 %v3552, %v3578
        %3581 = vrot.lane.b32.xlu0 %v3119, 15
        %v3582 = vpop.permute.xlu0 %3581
        %3583 = vrot.lane.b32.xlu0 %v3120, 15
        %v3584 = vpop.permute.xlu0 %3583
        %v3585 = vsel %vm955, %v3582, %v3584
        %v3586 = vsel %vm955, %v3584, %v3582
        %v3587 = vmul.f32 %v3586, %v962
        %v3588 = vmul.f32 %v3585, %v966
        %v3589 = vstv %s3165
        %v3590 = vmul.f32 %v3589, %v3587
        %v3591 = vmul.f32 %v3589, %v3588
        %v3592 = vadd.f32 %v3564, %v3590
        %v3593 = vadd.f32 %v3565, %v3591
        %v3594 = vstv %s3166
        %v3595 = vmul.f32 %v3594, %v3587
        %v3596 = vmul.f32 %v3594, %v3588
        %v3597 = vadd.f32 %v3569, %v3595
        %v3598 = vadd.f32 %v3570, %v3596
        %v3599 = vstv %s3167
        %v3600 = vmul.f32 %v3599, %v3587
        %v3601 = vmul.f32 %v3599, %v3588
        %v3602 = vadd.f32 %v3574, %v3600
        %v3603 = vadd.f32 %v3575, %v3601
        %v3604 = vstv %s3168
        %v3605 = vmul.f32 %v3604, %v3587
        %v3606 = vmul.f32 %v3604, %v3588
        %v3607 = vadd.f32 %v3579, %v3605
        %v3608 = vadd.f32 %v3580, %v3606
        %3609 = vrot.lane.b32.xlu0 %v3101, 1
        %v3610 = vpop.permute.xlu0 %3609
        %3611 = vrot.lane.b32.xlu0 %v3102, 1
        %v3612 = vpop.permute.xlu0 %3611
        %v3613 = vsel %vm1081, %v3610, %v3612
        %v3614 = vsel %vm1081, %v3612, %v3610
        %v3615 = vmul.f32 %v3614, %v1088
        %v3616 = vmul.f32 %v3613, %v1092
        %v3617 = vstv %s3169
        %v3618 = vmul.f32 %v3617, %v3615
        %v3619 = vmul.f32 %v3617, %v3616
        %v3620 = vadd.f32 %v3592, %v3618
        %v3621 = vadd.f32 %v3593, %v3619
        %v3622 = vstv %s3170
        %v3623 = vmul.f32 %v3622, %v3615
        %v3624 = vmul.f32 %v3622, %v3616
        %v3625 = vadd.f32 %v3597, %v3623
        %v3626 = vadd.f32 %v3598, %v3624
        %v3627 = vstv %s3171
        %v3628 = vmul.f32 %v3627, %v3615
        %v3629 = vmul.f32 %v3627, %v3616
        %v3630 = vadd.f32 %v3602, %v3628
        %v3631 = vadd.f32 %v3603, %v3629
        %v3632 = vstv %s3172
        %v3633 = vmul.f32 %v3632, %v3615
        %v3634 = vmul.f32 %v3632, %v3616
        %v3635 = vadd.f32 %v3607, %v3633
        %v3636 = vadd.f32 %v3608, %v3634
        %3637 = vrot.lane.b32.xlu0 %v3107, 1
        %v3638 = vpop.permute.xlu0 %3637
        %3639 = vrot.lane.b32.xlu0 %v3108, 1
        %v3640 = vpop.permute.xlu0 %3639
        %v3641 = vsel %vm1081, %v3638, %v3640
        %v3642 = vsel %vm1081, %v3640, %v3638
        %v3643 = vmul.f32 %v3642, %v1088
        %v3644 = vmul.f32 %v3641, %v1092
        %v3645 = vstv %s3173
        %v3646 = vmul.f32 %v3645, %v3643
        %v3647 = vmul.f32 %v3645, %v3644
        %v3648 = vadd.f32 %v3620, %v3646
        %v3649 = vadd.f32 %v3621, %v3647
        %v3650 = vstv %s3174
        %v3651 = vmul.f32 %v3650, %v3643
        %v3652 = vmul.f32 %v3650, %v3644
        %v3653 = vadd.f32 %v3625, %v3651
        %v3654 = vadd.f32 %v3626, %v3652
        %v3655 = vstv %s3175
        %v3656 = vmul.f32 %v3655, %v3643
        %v3657 = vmul.f32 %v3655, %v3644
        %v3658 = vadd.f32 %v3630, %v3656
        %v3659 = vadd.f32 %v3631, %v3657
        %v3660 = vstv %s3176
        %v3661 = vmul.f32 %v3660, %v3643
        %v3662 = vmul.f32 %v3660, %v3644
        %v3663 = vadd.f32 %v3635, %v3661
        %v3664 = vadd.f32 %v3636, %v3662
        %3665 = vrot.lane.b32.xlu0 %v3113, 1
        %v3666 = vpop.permute.xlu0 %3665
        %3667 = vrot.lane.b32.xlu0 %v3114, 1
        %v3668 = vpop.permute.xlu0 %3667
        %v3669 = vsel %vm1081, %v3666, %v3668
        %v3670 = vsel %vm1081, %v3668, %v3666
        %v3671 = vmul.f32 %v3670, %v1088
        %v3672 = vmul.f32 %v3669, %v1092
        %v3673 = vstv %s3177
        %v3674 = vmul.f32 %v3673, %v3671
        %v3675 = vmul.f32 %v3673, %v3672
        %v3676 = vadd.f32 %v3648, %v3674
        %v3677 = vadd.f32 %v3649, %v3675
        %v3678 = vstv %s3178
        %v3679 = vmul.f32 %v3678, %v3671
        %v3680 = vmul.f32 %v3678, %v3672
        %v3681 = vadd.f32 %v3653, %v3679
        %v3682 = vadd.f32 %v3654, %v3680
        %v3683 = vstv %s3179
        %v3684 = vmul.f32 %v3683, %v3671
        %v3685 = vmul.f32 %v3683, %v3672
        %v3686 = vadd.f32 %v3658, %v3684
        %v3687 = vadd.f32 %v3659, %v3685
        %v3688 = vstv %s3180
        %v3689 = vmul.f32 %v3688, %v3671
        %v3690 = vmul.f32 %v3688, %v3672
        %v3691 = vadd.f32 %v3663, %v3689
        %v3692 = vadd.f32 %v3664, %v3690
        %3693 = vrot.lane.b32.xlu0 %v3119, 1
        %v3694 = vpop.permute.xlu0 %3693
        %3695 = vrot.lane.b32.xlu0 %v3120, 1
        %v3696 = vpop.permute.xlu0 %3695
        %v3697 = vsel %vm1081, %v3694, %v3696
        %v3698 = vsel %vm1081, %v3696, %v3694
        %v3699 = vmul.f32 %v3698, %v1088
        %v3700 = vmul.f32 %v3697, %v1092
        %v3701 = vstv %s3181
        %v3702 = vmul.f32 %v3701, %v3699
        %v3703 = vmul.f32 %v3701, %v3700
        %v3704 = vadd.f32 %v3676, %v3702
        %v3705 = vadd.f32 %v3677, %v3703
        %v3706 = vstv %s3182
        %v3707 = vmul.f32 %v3706, %v3699
        %v3708 = vmul.f32 %v3706, %v3700
        %v3709 = vadd.f32 %v3681, %v3707
        %v3710 = vadd.f32 %v3682, %v3708
        %v3711 = vstv %s3183
        %v3712 = vmul.f32 %v3711, %v3699
        %v3713 = vmul.f32 %v3711, %v3700
        %v3714 = vadd.f32 %v3686, %v3712
        %v3715 = vadd.f32 %v3687, %v3713
        %v3716 = vstv %s3184
        %v3717 = vmul.f32 %v3716, %v3699
        %v3718 = vmul.f32 %v3716, %v3700
        %v3719 = vadd.f32 %v3691, %v3717
        %v3720 = vadd.f32 %v3692, %v3718
        %v3721 = vstv %s3185
        %v3722 = vmul.f32 %v3721, %v3101
        %v3723 = vmul.f32 %v3721, %v3102
        %v3724 = vadd.f32 %v3704, %v3722
        %v3725 = vadd.f32 %v3705, %v3723
        %v3726 = vstv %s3186
        %v3727 = vmul.f32 %v3726, %v3101
        %v3728 = vmul.f32 %v3726, %v3102
        %v3729 = vadd.f32 %v3709, %v3727
        %v3730 = vadd.f32 %v3710, %v3728
        %v3731 = vstv %s3187
        %v3732 = vmul.f32 %v3731, %v3101
        %v3733 = vmul.f32 %v3731, %v3102
        %v3734 = vadd.f32 %v3714, %v3732
        %v3735 = vadd.f32 %v3715, %v3733
        %v3736 = vstv %s3188
        %v3737 = vmul.f32 %v3736, %v3101
        %v3738 = vmul.f32 %v3736, %v3102
        %v3739 = vadd.f32 %v3719, %v3737
        %v3740 = vadd.f32 %v3720, %v3738
        %v3741 = vstv %s3189
        %v3742 = vmul.f32 %v3741, %v3107
        %v3743 = vmul.f32 %v3741, %v3108
        %v3744 = vadd.f32 %v3724, %v3742
        %v3745 = vadd.f32 %v3725, %v3743
        %v3746 = vstv %s3190
        %v3747 = vmul.f32 %v3746, %v3107
        %v3748 = vmul.f32 %v3746, %v3108
        %v3749 = vadd.f32 %v3729, %v3747
        %v3750 = vadd.f32 %v3730, %v3748
        %v3751 = vstv %s3191
        %v3752 = vmul.f32 %v3751, %v3107
        %v3753 = vmul.f32 %v3751, %v3108
        %v3754 = vadd.f32 %v3734, %v3752
        %v3755 = vadd.f32 %v3735, %v3753
        %v3756 = vstv %s3192
        %v3757 = vmul.f32 %v3756, %v3107
        %v3758 = vmul.f32 %v3756, %v3108
        %v3759 = vadd.f32 %v3739, %v3757
        %v3760 = vadd.f32 %v3740, %v3758
        %v3761 = vstv %s3193
        %v3762 = vmul.f32 %v3761, %v3113
        %v3763 = vmul.f32 %v3761, %v3114
        %v3764 = vadd.f32 %v3744, %v3762
        %v3765 = vadd.f32 %v3745, %v3763
        %v3766 = vstv %s3194
        %v3767 = vmul.f32 %v3766, %v3113
        %v3768 = vmul.f32 %v3766, %v3114
        %v3769 = vadd.f32 %v3749, %v3767
        %v3770 = vadd.f32 %v3750, %v3768
        %v3771 = vstv %s3195
        %v3772 = vmul.f32 %v3771, %v3113
        %v3773 = vmul.f32 %v3771, %v3114
        %v3774 = vadd.f32 %v3754, %v3772
        %v3775 = vadd.f32 %v3755, %v3773
        %v3776 = vstv %s3196
        %v3777 = vmul.f32 %v3776, %v3113
        %v3778 = vmul.f32 %v3776, %v3114
        %v3779 = vadd.f32 %v3759, %v3777
        %v3780 = vadd.f32 %v3760, %v3778
        %v3781 = vstv %s3197
        %v3782 = vmul.f32 %v3781, %v3119
        %v3783 = vmul.f32 %v3781, %v3120
        %v3784 = vadd.f32 %v3764, %v3782
        %v3785 = vadd.f32 %v3765, %v3783
        %v3786 = vstv %s3198
        %v3787 = vmul.f32 %v3786, %v3119
        %v3788 = vmul.f32 %v3786, %v3120
        %v3789 = vadd.f32 %v3769, %v3787
        %v3790 = vadd.f32 %v3770, %v3788
        %v3791 = vstv %s3199
        %v3792 = vmul.f32 %v3791, %v3119
        %v3793 = vmul.f32 %v3791, %v3120
        %v3794 = vadd.f32 %v3774, %v3792
        %v3795 = vadd.f32 %v3775, %v3793
        %v3796 = vstv %s3200
        %v3797 = vmul.f32 %v3796, %v3119
        %v3798 = vmul.f32 %v3796, %v3120
        %v3799 = vadd.f32 %v3779, %v3797
        %v3800 = vadd.f32 %v3780, %v3798
        %3801 = vrot.lane.b32.xlu0 %v3101, 127
        %v3802 = vpop.permute.xlu0 %3801
        %3803 = vrot.lane.b32.xlu0 %v3102, 127
        %v3804 = vpop.permute.xlu0 %3803
        %v3805 = vsel %vm1447, %v3802, %v3804
        %v3806 = vsel %vm1447, %v3804, %v3802
        %v3807 = vmul.f32 %v3805, %v1454
        %v3808 = vmul.f32 %v3806, %v1458
        %v3809 = vstv %s3201
        %v3810 = vmul.f32 %v3809, %v3807
        %v3811 = vmul.f32 %v3809, %v3808
        %v3812 = vadd.f32 %v3784, %v3810
        %v3813 = vadd.f32 %v3785, %v3811
        %v3814 = vstv %s3202
        %v3815 = vmul.f32 %v3814, %v3807
        %v3816 = vmul.f32 %v3814, %v3808
        %v3817 = vadd.f32 %v3789, %v3815
        %v3818 = vadd.f32 %v3790, %v3816
        %v3819 = vstv %s3203
        %v3820 = vmul.f32 %v3819, %v3807
        %v3821 = vmul.f32 %v3819, %v3808
        %v3822 = vadd.f32 %v3794, %v3820
        %v3823 = vadd.f32 %v3795, %v3821
        %v3824 = vstv %s3204
        %v3825 = vmul.f32 %v3824, %v3807
        %v3826 = vmul.f32 %v3824, %v3808
        %v3827 = vadd.f32 %v3799, %v3825
        %v3828 = vadd.f32 %v3800, %v3826
        %3829 = vrot.lane.b32.xlu0 %v3107, 127
        %v3830 = vpop.permute.xlu0 %3829
        %3831 = vrot.lane.b32.xlu0 %v3108, 127
        %v3832 = vpop.permute.xlu0 %3831
        %v3833 = vsel %vm1447, %v3830, %v3832
        %v3834 = vsel %vm1447, %v3832, %v3830
        %v3835 = vmul.f32 %v3833, %v1454
        %v3836 = vmul.f32 %v3834, %v1458
        %v3837 = vstv %s3205
        %v3838 = vmul.f32 %v3837, %v3835
        %v3839 = vmul.f32 %v3837, %v3836
        %v3840 = vadd.f32 %v3812, %v3838
        %v3841 = vadd.f32 %v3813, %v3839
        %v3842 = vstv %s3206
        %v3843 = vmul.f32 %v3842, %v3835
        %v3844 = vmul.f32 %v3842, %v3836
        %v3845 = vadd.f32 %v3817, %v3843
        %v3846 = vadd.f32 %v3818, %v3844
        %v3847 = vstv %s3207
        %v3848 = vmul.f32 %v3847, %v3835
        %v3849 = vmul.f32 %v3847, %v3836
        %v3850 = vadd.f32 %v3822, %v3848
        %v3851 = vadd.f32 %v3823, %v3849
        %v3852 = vstv %s3208
        %v3853 = vmul.f32 %v3852, %v3835
        %v3854 = vmul.f32 %v3852, %v3836
        %v3855 = vadd.f32 %v3827, %v3853
        %v3856 = vadd.f32 %v3828, %v3854
        %3857 = vrot.lane.b32.xlu0 %v3113, 127
        %v3858 = vpop.permute.xlu0 %3857
        %3859 = vrot.lane.b32.xlu0 %v3114, 127
        %v3860 = vpop.permute.xlu0 %3859
        %v3861 = vsel %vm1447, %v3858, %v3860
        %v3862 = vsel %vm1447, %v3860, %v3858
        %v3863 = vmul.f32 %v3861, %v1454
        %v3864 = vmul.f32 %v3862, %v1458
        %v3865 = vstv %s3209
        %v3866 = vmul.f32 %v3865, %v3863
        %v3867 = vmul.f32 %v3865, %v3864
        %v3868 = vadd.f32 %v3840, %v3866
        %v3869 = vadd.f32 %v3841, %v3867
        %v3870 = vstv %s3210
        %v3871 = vmul.f32 %v3870, %v3863
        %v3872 = vmul.f32 %v3870, %v3864
        %v3873 = vadd.f32 %v3845, %v3871
        %v3874 = vadd.f32 %v3846, %v3872
        %v3875 = vstv %s3211
        %v3876 = vmul.f32 %v3875, %v3863
        %v3877 = vmul.f32 %v3875, %v3864
        %v3878 = vadd.f32 %v3850, %v3876
        %v3879 = vadd.f32 %v3851, %v3877
        %v3880 = vstv %s3212
        %v3881 = vmul.f32 %v3880, %v3863
        %v3882 = vmul.f32 %v3880, %v3864
        %v3883 = vadd.f32 %v3855, %v3881
        %v3884 = vadd.f32 %v3856, %v3882
        %3885 = vrot.lane.b32.xlu0 %v3119, 127
        %v3886 = vpop.permute.xlu0 %3885
        %3887 = vrot.lane.b32.xlu0 %v3120, 127
        %v3888 = vpop.permute.xlu0 %3887
        %v3889 = vsel %vm1447, %v3886, %v3888
        %v3890 = vsel %vm1447, %v3888, %v3886
        %v3891 = vmul.f32 %v3889, %v1454
        %v3892 = vmul.f32 %v3890, %v1458
        %v3893 = vstv %s3213
        %v3894 = vmul.f32 %v3893, %v3891
        %v3895 = vmul.f32 %v3893, %v3892
        %v3896 = vadd.f32 %v3868, %v3894
        %v3897 = vadd.f32 %v3869, %v3895
        %v3898 = vstv %s3214
        %v3899 = vmul.f32 %v3898, %v3891
        %v3900 = vmul.f32 %v3898, %v3892
        %v3901 = vadd.f32 %v3873, %v3899
        %v3902 = vadd.f32 %v3874, %v3900
        %v3903 = vstv %s3215
        %v3904 = vmul.f32 %v3903, %v3891
        %v3905 = vmul.f32 %v3903, %v3892
        %v3906 = vadd.f32 %v3878, %v3904
        %v3907 = vadd.f32 %v3879, %v3905
        %v3908 = vstv %s3216
        %v3909 = vmul.f32 %v3908, %v3891
        %v3910 = vmul.f32 %v3908, %v3892
        %v3911 = vadd.f32 %v3883, %v3909
        %v3912 = vadd.f32 %v3884, %v3910
        %3913 = vrot.lane.b32.xlu0 %v3101, 113
        %v3914 = vpop.permute.xlu0 %3913
        %3915 = vrot.lane.b32.xlu0 %v3102, 113
        %v3916 = vpop.permute.xlu0 %3915
        %v3917 = vsel %vm1573, %v3914, %v3916
        %v3918 = vsel %vm1573, %v3916, %v3914
        %v3919 = vmul.f32 %v3917, %v1580
        %v3920 = vmul.f32 %v3918, %v1584
        %v3921 = vstv %s3217
        %v3922 = vmul.f32 %v3921, %v3919
        %v3923 = vmul.f32 %v3921, %v3920
        %v3924 = vadd.f32 %v3896, %v3922
        %v3925 = vadd.f32 %v3897, %v3923
        %v3926 = vstv %s3218
        %v3927 = vmul.f32 %v3926, %v3919
        %v3928 = vmul.f32 %v3926, %v3920
        %v3929 = vadd.f32 %v3901, %v3927
        %v3930 = vadd.f32 %v3902, %v3928
        %v3931 = vstv %s3219
        %v3932 = vmul.f32 %v3931, %v3919
        %v3933 = vmul.f32 %v3931, %v3920
        %v3934 = vadd.f32 %v3906, %v3932
        %v3935 = vadd.f32 %v3907, %v3933
        %v3936 = vstv %s3220
        %v3937 = vmul.f32 %v3936, %v3919
        %v3938 = vmul.f32 %v3936, %v3920
        %v3939 = vadd.f32 %v3911, %v3937
        %v3940 = vadd.f32 %v3912, %v3938
        %3941 = vrot.lane.b32.xlu0 %v3107, 113
        %v3942 = vpop.permute.xlu0 %3941
        %3943 = vrot.lane.b32.xlu0 %v3108, 113
        %v3944 = vpop.permute.xlu0 %3943
        %v3945 = vsel %vm1573, %v3942, %v3944
        %v3946 = vsel %vm1573, %v3944, %v3942
        %v3947 = vmul.f32 %v3945, %v1580
        %v3948 = vmul.f32 %v3946, %v1584
        %v3949 = vstv %s3221
        %v3950 = vmul.f32 %v3949, %v3947
        %v3951 = vmul.f32 %v3949, %v3948
        %v3952 = vadd.f32 %v3924, %v3950
        %v3953 = vadd.f32 %v3925, %v3951
        %v3954 = vstv %s3222
        %v3955 = vmul.f32 %v3954, %v3947
        %v3956 = vmul.f32 %v3954, %v3948
        %v3957 = vadd.f32 %v3929, %v3955
        %v3958 = vadd.f32 %v3930, %v3956
        %v3959 = vstv %s3223
        %v3960 = vmul.f32 %v3959, %v3947
        %v3961 = vmul.f32 %v3959, %v3948
        %v3962 = vadd.f32 %v3934, %v3960
        %v3963 = vadd.f32 %v3935, %v3961
        %v3964 = vstv %s3224
        %v3965 = vmul.f32 %v3964, %v3947
        %v3966 = vmul.f32 %v3964, %v3948
        %v3967 = vadd.f32 %v3939, %v3965
        %v3968 = vadd.f32 %v3940, %v3966
        %3969 = vrot.lane.b32.xlu0 %v3113, 113
        %v3970 = vpop.permute.xlu0 %3969
        %3971 = vrot.lane.b32.xlu0 %v3114, 113
        %v3972 = vpop.permute.xlu0 %3971
        %v3973 = vsel %vm1573, %v3970, %v3972
        %v3974 = vsel %vm1573, %v3972, %v3970
        %v3975 = vmul.f32 %v3973, %v1580
        %v3976 = vmul.f32 %v3974, %v1584
        %v3977 = vstv %s3225
        %v3978 = vmul.f32 %v3977, %v3975
        %v3979 = vmul.f32 %v3977, %v3976
        %v3980 = vadd.f32 %v3952, %v3978
        %v3981 = vadd.f32 %v3953, %v3979
        %v3982 = vstv %s3226
        %v3983 = vmul.f32 %v3982, %v3975
        %v3984 = vmul.f32 %v3982, %v3976
        %v3985 = vadd.f32 %v3957, %v3983
        %v3986 = vadd.f32 %v3958, %v3984
        %v3987 = vstv %s3227
        %v3988 = vmul.f32 %v3987, %v3975
        %v3989 = vmul.f32 %v3987, %v3976
        %v3990 = vadd.f32 %v3962, %v3988
        %v3991 = vadd.f32 %v3963, %v3989
        %v3992 = vstv %s3228
        %v3993 = vmul.f32 %v3992, %v3975
        %v3994 = vmul.f32 %v3992, %v3976
        %v3995 = vadd.f32 %v3967, %v3993
        %v3996 = vadd.f32 %v3968, %v3994
        %3997 = vrot.lane.b32.xlu0 %v3119, 113
        %v3998 = vpop.permute.xlu0 %3997
        %3999 = vrot.lane.b32.xlu0 %v3120, 113
        %v4000 = vpop.permute.xlu0 %3999
        %v4001 = vsel %vm1573, %v3998, %v4000
        %v4002 = vsel %vm1573, %v4000, %v3998
        %v4003 = vmul.f32 %v4001, %v1580
        %v4004 = vmul.f32 %v4002, %v1584
        %v4005 = vstv %s3229
        %v4006 = vmul.f32 %v4005, %v4003
        %v4007 = vmul.f32 %v4005, %v4004
        %v4008 = vadd.f32 %v3980, %v4006
        %v4009 = vadd.f32 %v3981, %v4007
        %v4010 = vstv %s3230
        %v4011 = vmul.f32 %v4010, %v4003
        %v4012 = vmul.f32 %v4010, %v4004
        %v4013 = vadd.f32 %v3985, %v4011
        %v4014 = vadd.f32 %v3986, %v4012
        %v4015 = vstv %s3231
        %v4016 = vmul.f32 %v4015, %v4003
        %v4017 = vmul.f32 %v4015, %v4004
        %v4018 = vadd.f32 %v3990, %v4016
        %v4019 = vadd.f32 %v3991, %v4017
        %v4020 = vstv %s3232
        %v4021 = vmul.f32 %v4020, %v4003
        %v4022 = vmul.f32 %v4020, %v4004
        %v4023 = vadd.f32 %v3995, %v4021
        %v4024 = vadd.f32 %v3996, %v4022
        %4025 = vrot.lane.b32.xlu0 %v3101, 112
        %v4026 = vpop.permute.xlu0 %4025
        %4027 = vrot.lane.b32.xlu0 %v3102, 112
        %v4028 = vpop.permute.xlu0 %4027
        %v4029 = vsel %vm1699, %v4026, %v4028
        %v4030 = vsel %vm1699, %v4028, %v4026
        %v4031 = vmul.f32 %v4029, %v1706
        %v4032 = vmul.f32 %v4030, %v1710
        %v4033 = vstv %s3233
        %v4034 = vmul.f32 %v4033, %v4031
        %v4035 = vmul.f32 %v4033, %v4032
        %v4036 = vadd.f32 %v4008, %v4034
        %v4037 = vadd.f32 %v4009, %v4035
        %v4038 = vstv %s3234
        %v4039 = vmul.f32 %v4038, %v4031
        %v4040 = vmul.f32 %v4038, %v4032
        %v4041 = vadd.f32 %v4013, %v4039
        %v4042 = vadd.f32 %v4014, %v4040
        %v4043 = vstv %s3235
        %v4044 = vmul.f32 %v4043, %v4031
        %v4045 = vmul.f32 %v4043, %v4032
        %v4046 = vadd.f32 %v4018, %v4044
        %v4047 = vadd.f32 %v4019, %v4045
        %v4048 = vstv %s3236
        %v4049 = vmul.f32 %v4048, %v4031
        %v4050 = vmul.f32 %v4048, %v4032
        %v4051 = vadd.f32 %v4023, %v4049
        %v4052 = vadd.f32 %v4024, %v4050
        %4053 = vrot.lane.b32.xlu0 %v3107, 112
        %v4054 = vpop.permute.xlu0 %4053
        %4055 = vrot.lane.b32.xlu0 %v3108, 112
        %v4056 = vpop.permute.xlu0 %4055
        %v4057 = vsel %vm1699, %v4054, %v4056
        %v4058 = vsel %vm1699, %v4056, %v4054
        %v4059 = vmul.f32 %v4057, %v1706
        %v4060 = vmul.f32 %v4058, %v1710
        %v4061 = vstv %s3237
        %v4062 = vmul.f32 %v4061, %v4059
        %v4063 = vmul.f32 %v4061, %v4060
        %v4064 = vadd.f32 %v4036, %v4062
        %v4065 = vadd.f32 %v4037, %v4063
        %v4066 = vstv %s3238
        %v4067 = vmul.f32 %v4066, %v4059
        %v4068 = vmul.f32 %v4066, %v4060
        %v4069 = vadd.f32 %v4041, %v4067
        %v4070 = vadd.f32 %v4042, %v4068
        %v4071 = vstv %s3239
        %v4072 = vmul.f32 %v4071, %v4059
        %v4073 = vmul.f32 %v4071, %v4060
        %v4074 = vadd.f32 %v4046, %v4072
        %v4075 = vadd.f32 %v4047, %v4073
        %v4076 = vstv %s3240
        %v4077 = vmul.f32 %v4076, %v4059
        %v4078 = vmul.f32 %v4076, %v4060
        %v4079 = vadd.f32 %v4051, %v4077
        %v4080 = vadd.f32 %v4052, %v4078
        %4081 = vrot.lane.b32.xlu0 %v3113, 112
        %v4082 = vpop.permute.xlu0 %4081
        %4083 = vrot.lane.b32.xlu0 %v3114, 112
        %v4084 = vpop.permute.xlu0 %4083
        %v4085 = vsel %vm1699, %v4082, %v4084
        %v4086 = vsel %vm1699, %v4084, %v4082
        %v4087 = vmul.f32 %v4085, %v1706
        %v4088 = vmul.f32 %v4086, %v1710
        %v4089 = vstv %s3241
        %v4090 = vmul.f32 %v4089, %v4087
        %v4091 = vmul.f32 %v4089, %v4088
        %v4092 = vadd.f32 %v4064, %v4090
        %v4093 = vadd.f32 %v4065, %v4091
        %v4094 = vstv %s3242
        %v4095 = vmul.f32 %v4094, %v4087
        %v4096 = vmul.f32 %v4094, %v4088
        %v4097 = vadd.f32 %v4069, %v4095
        %v4098 = vadd.f32 %v4070, %v4096
        %v4099 = vstv %s3243
        %v4100 = vmul.f32 %v4099, %v4087
        %v4101 = vmul.f32 %v4099, %v4088
        %v4102 = vadd.f32 %v4074, %v4100
        %v4103 = vadd.f32 %v4075, %v4101
        %v4104 = vstv %s3244
        %v4105 = vmul.f32 %v4104, %v4087
        %v4106 = vmul.f32 %v4104, %v4088
        %v4107 = vadd.f32 %v4079, %v4105
        %v4108 = vadd.f32 %v4080, %v4106
        %4109 = vrot.lane.b32.xlu0 %v3119, 112
        %v4110 = vpop.permute.xlu0 %4109
        %4111 = vrot.lane.b32.xlu0 %v3120, 112
        %v4112 = vpop.permute.xlu0 %4111
        %v4113 = vsel %vm1699, %v4110, %v4112
        %v4114 = vsel %vm1699, %v4112, %v4110
        %v4115 = vmul.f32 %v4113, %v1706
        %v4116 = vmul.f32 %v4114, %v1710
        %v4117 = vstv %s3245
        %v4118 = vmul.f32 %v4117, %v4115
        %v4119 = vmul.f32 %v4117, %v4116
        %v4120 = vadd.f32 %v4092, %v4118
        %v4121 = vadd.f32 %v4093, %v4119
        %v4122 = vstv %s3246
        %v4123 = vmul.f32 %v4122, %v4115
        %v4124 = vmul.f32 %v4122, %v4116
        %v4125 = vadd.f32 %v4097, %v4123
        %v4126 = vadd.f32 %v4098, %v4124
        %v4127 = vstv %s3247
        %v4128 = vmul.f32 %v4127, %v4115
        %v4129 = vmul.f32 %v4127, %v4116
        %v4130 = vadd.f32 %v4102, %v4128
        %v4131 = vadd.f32 %v4103, %v4129
        %v4132 = vstv %s3248
        %v4133 = vmul.f32 %v4132, %v4115
        %v4134 = vmul.f32 %v4132, %v4116
        %v4135 = vadd.f32 %v4107, %v4133
        %v4136 = vadd.f32 %v4108, %v4134
        %4137 = vrot.lane.b32.xlu0 %v3101, 111
        %v4138 = vpop.permute.xlu0 %4137
        %4139 = vrot.lane.b32.xlu0 %v3102, 111
        %v4140 = vpop.permute.xlu0 %4139
        %v4141 = vsel %vm1825, %v4138, %v4140
        %v4142 = vsel %vm1825, %v4140, %v4138
        %v4143 = vmul.f32 %v4141, %v1832
        %v4144 = vmul.f32 %v4142, %v1836
        %v4145 = vstv %s3249
        %v4146 = vmul.f32 %v4145, %v4143
        %v4147 = vmul.f32 %v4145, %v4144
        %v4148 = vadd.f32 %v4120, %v4146
        %v4149 = vadd.f32 %v4121, %v4147
        %v4150 = vstv %s3250
        %v4151 = vmul.f32 %v4150, %v4143
        %v4152 = vmul.f32 %v4150, %v4144
        %v4153 = vadd.f32 %v4125, %v4151
        %v4154 = vadd.f32 %v4126, %v4152
        %v4155 = vstv %s3251
        %v4156 = vmul.f32 %v4155, %v4143
        %v4157 = vmul.f32 %v4155, %v4144
        %v4158 = vadd.f32 %v4130, %v4156
        %v4159 = vadd.f32 %v4131, %v4157
        %v4160 = vstv %s3252
        %v4161 = vmul.f32 %v4160, %v4143
        %v4162 = vmul.f32 %v4160, %v4144
        %v4163 = vadd.f32 %v4135, %v4161
        %v4164 = vadd.f32 %v4136, %v4162
        %4165 = vrot.lane.b32.xlu0 %v3107, 111
        %v4166 = vpop.permute.xlu0 %4165
        %4167 = vrot.lane.b32.xlu0 %v3108, 111
        %v4168 = vpop.permute.xlu0 %4167
        %v4169 = vsel %vm1825, %v4166, %v4168
        %v4170 = vsel %vm1825, %v4168, %v4166
        %v4171 = vmul.f32 %v4169, %v1832
        %v4172 = vmul.f32 %v4170, %v1836
        %v4173 = vstv %s3253
        %v4174 = vmul.f32 %v4173, %v4171
        %v4175 = vmul.f32 %v4173, %v4172
        %v4176 = vadd.f32 %v4148, %v4174
        %v4177 = vadd.f32 %v4149, %v4175
        %v4178 = vstv %s3254
        %v4179 = vmul.f32 %v4178, %v4171
        %v4180 = vmul.f32 %v4178, %v4172
        %v4181 = vadd.f32 %v4153, %v4179
        %v4182 = vadd.f32 %v4154, %v4180
        %v4183 = vstv %s3255
        %v4184 = vmul.f32 %v4183, %v4171
        %v4185 = vmul.f32 %v4183, %v4172
        %v4186 = vadd.f32 %v4158, %v4184
        %v4187 = vadd.f32 %v4159, %v4185
        %v4188 = vstv %s3256
        %v4189 = vmul.f32 %v4188, %v4171
        %v4190 = vmul.f32 %v4188, %v4172
        %v4191 = vadd.f32 %v4163, %v4189
        %v4192 = vadd.f32 %v4164, %v4190
        %4193 = vrot.lane.b32.xlu0 %v3113, 111
        %v4194 = vpop.permute.xlu0 %4193
        %4195 = vrot.lane.b32.xlu0 %v3114, 111
        %v4196 = vpop.permute.xlu0 %4195
        %v4197 = vsel %vm1825, %v4194, %v4196
        %v4198 = vsel %vm1825, %v4196, %v4194
        %v4199 = vmul.f32 %v4197, %v1832
        %v4200 = vmul.f32 %v4198, %v1836
        %v4201 = vstv %s3257
        %v4202 = vmul.f32 %v4201, %v4199
        %v4203 = vmul.f32 %v4201, %v4200
        %v4204 = vadd.f32 %v4176, %v4202
        %v4205 = vadd.f32 %v4177, %v4203
        %v4206 = vstv %s3258
        %v4207 = vmul.f32 %v4206, %v4199
        %v4208 = vmul.f32 %v4206, %v4200
        %v4209 = vadd.f32 %v4181, %v4207
        %v4210 = vadd.f32 %v4182, %v4208
        %v4211 = vstv %s3259
        %v4212 = vmul.f32 %v4211, %v4199
        %v4213 = vmul.f32 %v4211, %v4200
        %v4214 = vadd.f32 %v4186, %v4212
        %v4215 = vadd.f32 %v4187, %v4213
        %v4216 = vstv %s3260
        %v4217 = vmul.f32 %v4216, %v4199
        %v4218 = vmul.f32 %v4216, %v4200
        %v4219 = vadd.f32 %v4191, %v4217
        %v4220 = vadd.f32 %v4192, %v4218
        %4221 = vrot.lane.b32.xlu0 %v3119, 111
        %v4222 = vpop.permute.xlu0 %4221
        %4223 = vrot.lane.b32.xlu0 %v3120, 111
        %v4224 = vpop.permute.xlu0 %4223
        %v4225 = vsel %vm1825, %v4222, %v4224
        %v4226 = vsel %vm1825, %v4224, %v4222
        %v4227 = vmul.f32 %v4225, %v1832
        %v4228 = vmul.f32 %v4226, %v1836
        %v4229 = vstv %s3261
        %v4230 = vmul.f32 %v4229, %v4227
        %v4231 = vmul.f32 %v4229, %v4228
        %v4232 = vadd.f32 %v4204, %v4230
        %v4233 = vadd.f32 %v4205, %v4231
        %v4234 = vstv %s3262
        %v4235 = vmul.f32 %v4234, %v4227
        %v4236 = vmul.f32 %v4234, %v4228
        %v4237 = vadd.f32 %v4209, %v4235
        %v4238 = vadd.f32 %v4210, %v4236
        %v4239 = vstv %s3263
        %v4240 = vmul.f32 %v4239, %v4227
        %v4241 = vmul.f32 %v4239, %v4228
        %v4242 = vadd.f32 %v4214, %v4240
        %v4243 = vadd.f32 %v4215, %v4241
        %v4244 = vstv %s3264
        %v4245 = vmul.f32 %v4244, %v4227
        %v4246 = vmul.f32 %v4244, %v4228
        %v4247 = vadd.f32 %v4219, %v4245
        %v4248 = vadd.f32 %v4220, %v4246
        %vm4249 = vcmp.ge.f32.partialorder %v4232, 0.0
        %vm4250 = vcmp.ge.f32.partialorder %v4233, 0.0
        %v4251 = vmul.f32 %v4232, 0.1
        %v4252 = vmul.f32 %v4233, 0.1
        %v4253 = vsel %vm4249, %v4232, %v4251
        %v4254 = vsel %vm4250, %v4233, %v4252
        %vm4255 = vcmp.ge.f32.partialorder %v4253, 0.0
        %vm4256 = vcmp.ge.f32.partialorder %v4254, 0.0
        %v4257 = vmul.f32 %v4253, 0.1
        %v4258 = vmul.f32 %v4254, 0.1
        %v4259 = vsel %vm4255, %v4253, %v4257
        %v4260 = vsel %vm4256, %v4254, %v4258
        %vm4261 = vcmp.ge.f32.partialorder %v4237, 0.0
        %vm4262 = vcmp.ge.f32.partialorder %v4238, 0.0
        %v4263 = vmul.f32 %v4237, 0.1
        %v4264 = vmul.f32 %v4238, 0.1
        %v4265 = vsel %vm4261, %v4237, %v4263
        %v4266 = vsel %vm4262, %v4238, %v4264
        %vm4267 = vcmp.ge.f32.partialorder %v4265, 0.0
        %vm4268 = vcmp.ge.f32.partialorder %v4266, 0.0
        %v4269 = vmul.f32 %v4265, 0.1
        %v4270 = vmul.f32 %v4266, 0.1
        %v4271 = vsel %vm4267, %v4265, %v4269
        %v4272 = vsel %vm4268, %v4266, %v4270
        %vm4273 = vcmp.ge.f32.partialorder %v4242, 0.0
        %vm4274 = vcmp.ge.f32.partialorder %v4243, 0.0
        %v4275 = vmul.f32 %v4242, 0.1
        %v4276 = vmul.f32 %v4243, 0.1
        %v4277 = vsel %vm4273, %v4242, %v4275
        %v4278 = vsel %vm4274, %v4243, %v4276
        %vm4279 = vcmp.ge.f32.partialorder %v4277, 0.0
        %vm4280 = vcmp.ge.f32.partialorder %v4278, 0.0
        %v4281 = vmul.f32 %v4277, 0.1
        %v4282 = vmul.f32 %v4278, 0.1
        %v4283 = vsel %vm4279, %v4277, %v4281
        %v4284 = vsel %vm4280, %v4278, %v4282
        %vm4285 = vcmp.ge.f32.partialorder %v4247, 0.0
        %vm4286 = vcmp.ge.f32.partialorder %v4248, 0.0
        %v4287 = vmul.f32 %v4247, 0.1
        %v4288 = vmul.f32 %v4248, 0.1
        %v4289 = vsel %vm4285, %v4247, %v4287
        %v4290 = vsel %vm4286, %v4248, %v4288
        %vm4291 = vcmp.ge.f32.partialorder %v4289, 0.0
        %vm4292 = vcmp.ge.f32.partialorder %v4290, 0.0
        %v4293 = vmul.f32 %v4289, 0.1
        %v4294 = vmul.f32 %v4290, 0.1
        %v4295 = vsel %vm4291, %v4289, %v4293
        %v4296 = vsel %vm4292, %v4290, %v4294
        %s4297 = sld [smem:[#allocation17]]
        %s4298 = sld [smem:[#allocation17 + $0x1]]
        %s4299 = sld [smem:[#allocation17 + $0x2]]
        %s4300 = sld [smem:[#allocation17 + $0x3]]
        %s4301 = sld [smem:[#allocation17 + $0x4]]
        %s4302 = sld [smem:[#allocation17 + $0x5]]
        %s4303 = sld [smem:[#allocation17 + $0x6]]
        %s4304 = sld [smem:[#allocation17 + $0x7]]
        %s4305 = sld [smem:[#allocation17 + $0x8]]
        %s4306 = sld [smem:[#allocation17 + $0x9]]
        %s4307 = sld [smem:[#allocation17 + $0xa]]
        %s4308 = sld [smem:[#allocation17 + $0xb]]
        %s4309 = sld [smem:[#allocation17 + $0xc]]
        %s4310 = sld [smem:[#allocation17 + $0xd]]
        %s4311 = sld [smem:[#allocation17 + $0xe]]
        %s4312 = sld [smem:[#allocation17 + $0xf]]
        %s4313 = sld [smem:[#allocation17 + $0x10]]
        %s4314 = sld [smem:[#allocation17 + $0x11]]
        %s4315 = sld [smem:[#allocation17 + $0x12]]
        %s4316 = sld [smem:[#allocation17 + $0x13]]
        %s4317 = sld [smem:[#allocation17 + $0x14]]
        %s4318 = sld [smem:[#allocation17 + $0x15]]
        %s4319 = sld [smem:[#allocation17 + $0x16]]
        %s4320 = sld [smem:[#allocation17 + $0x17]]
        %s4321 = sld [smem:[#allocation17 + $0x18]]
        %s4322 = sld [smem:[#allocation17 + $0x19]]
        %s4323 = sld [smem:[#allocation17 + $0x1a]]
        %s4324 = sld [smem:[#allocation17 + $0x1b]]
        %s4325 = sld [smem:[#allocation17 + $0x1c]]
        %s4326 = sld [smem:[#allocation17 + $0x1d]]
        %s4327 = sld [smem:[#allocation17 + $0x1e]]
        %s4328 = sld [smem:[#allocation17 + $0x1f]]
        %s4329 = sld [smem:[#allocation17 + $0x20]]
        %s4330 = sld [smem:[#allocation17 + $0x21]]
        %s4331 = sld [smem:[#allocation17 + $0x22]]
        %s4332 = sld [smem:[#allocation17 + $0x23]]
        %s4333 = sld [smem:[#allocation17 + $0x24]]
        %s4334 = sld [smem:[#allocation17 + $0x25]]
        %s4335 = sld [smem:[#allocation17 + $0x26]]
        %s4336 = sld [smem:[#allocation17 + $0x27]]
        %s4337 = sld [smem:[#allocation17 + $0x28]]
        %s4338 = sld [smem:[#allocation17 + $0x29]]
        %s4339 = sld [smem:[#allocation17 + $0x2a]]
        %s4340 = sld [smem:[#allocation17 + $0x2b]]
        %s4341 = sld [smem:[#allocation17 + $0x2c]]
        %s4342 = sld [smem:[#allocation17 + $0x2d]]
        %s4343 = sld [smem:[#allocation17 + $0x2e]]
        %s4344 = sld [smem:[#allocation17 + $0x2f]]
        %s4345 = sld [smem:[#allocation17 + $0x30]]
        %s4346 = sld [smem:[#allocation17 + $0x31]]
        %s4347 = sld [smem:[#allocation17 + $0x32]]
        %s4348 = sld [smem:[#allocation17 + $0x33]]
        %s4349 = sld [smem:[#allocation17 + $0x34]]
        %s4350 = sld [smem:[#allocation17 + $0x35]]
        %s4351 = sld [smem:[#allocation17 + $0x36]]
        %s4352 = sld [smem:[#allocation17 + $0x37]]
        %s4353 = sld [smem:[#allocation17 + $0x38]]
        %s4354 = sld [smem:[#allocation17 + $0x39]]
        %s4355 = sld [smem:[#allocation17 + $0x3a]]
        %s4356 = sld [smem:[#allocation17 + $0x3b]]
        %s4357 = sld [smem:[#allocation17 + $0x3c]]
        %s4358 = sld [smem:[#allocation17 + $0x3d]]
        %s4359 = sld [smem:[#allocation17 + $0x3e]]
        %s4360 = sld [smem:[#allocation17 + $0x3f]]
        %s4361 = sld [smem:[#allocation17 + $0x40]]
        %s4362 = sld [smem:[#allocation17 + $0x41]]
        %s4363 = sld [smem:[#allocation17 + $0x42]]
        %s4364 = sld [smem:[#allocation17 + $0x43]]
        %s4365 = sld [smem:[#allocation17 + $0x44]]
        %s4366 = sld [smem:[#allocation17 + $0x45]]
        %s4367 = sld [smem:[#allocation17 + $0x46]]
        %s4368 = sld [smem:[#allocation17 + $0x47]]
        %s4369 = sld [smem:[#allocation17 + $0x48]]
        %s4370 = sld [smem:[#allocation17 + $0x49]]
        %s4371 = sld [smem:[#allocation17 + $0x4a]]
        %s4372 = sld [smem:[#allocation17 + $0x4b]]
        %s4373 = sld [smem:[#allocation17 + $0x4c]]
        %s4374 = sld [smem:[#allocation17 + $0x4d]]
        %s4375 = sld [smem:[#allocation17 + $0x4e]]
        %s4376 = sld [smem:[#allocation17 + $0x4f]]
        %s4377 = sld [smem:[#allocation17 + $0x50]]
        %s4378 = sld [smem:[#allocation17 + $0x51]]
        %s4379 = sld [smem:[#allocation17 + $0x52]]
        %s4380 = sld [smem:[#allocation17 + $0x53]]
        %s4381 = sld [smem:[#allocation17 + $0x54]]
        %s4382 = sld [smem:[#allocation17 + $0x55]]
        %s4383 = sld [smem:[#allocation17 + $0x56]]
        %s4384 = sld [smem:[#allocation17 + $0x57]]
        %s4385 = sld [smem:[#allocation17 + $0x58]]
        %s4386 = sld [smem:[#allocation17 + $0x59]]
        %s4387 = sld [smem:[#allocation17 + $0x5a]]
        %s4388 = sld [smem:[#allocation17 + $0x5b]]
        %s4389 = sld [smem:[#allocation17 + $0x5c]]
        %s4390 = sld [smem:[#allocation17 + $0x5d]]
        %s4391 = sld [smem:[#allocation17 + $0x5e]]
        %s4392 = sld [smem:[#allocation17 + $0x5f]]
        %s4393 = sld [smem:[#allocation17 + $0x60]]
        %s4394 = sld [smem:[#allocation17 + $0x61]]
        %s4395 = sld [smem:[#allocation17 + $0x62]]
        %s4396 = sld [smem:[#allocation17 + $0x63]]
        %s4397 = sld [smem:[#allocation17 + $0x64]]
        %s4398 = sld [smem:[#allocation17 + $0x65]]
        %s4399 = sld [smem:[#allocation17 + $0x66]]
        %s4400 = sld [smem:[#allocation17 + $0x67]]
        %s4401 = sld [smem:[#allocation17 + $0x68]]
        %s4402 = sld [smem:[#allocation17 + $0x69]]
        %s4403 = sld [smem:[#allocation17 + $0x6a]]
        %s4404 = sld [smem:[#allocation17 + $0x6b]]
        %s4405 = sld [smem:[#allocation17 + $0x6c]]
        %s4406 = sld [smem:[#allocation17 + $0x6d]]
        %s4407 = sld [smem:[#allocation17 + $0x6e]]
        %s4408 = sld [smem:[#allocation17 + $0x6f]]
        %s4409 = sld [smem:[#allocation17 + $0x70]]
        %s4410 = sld [smem:[#allocation17 + $0x71]]
        %s4411 = sld [smem:[#allocation17 + $0x72]]
        %s4412 = sld [smem:[#allocation17 + $0x73]]
        %s4413 = sld [smem:[#allocation17 + $0x74]]
        %s4414 = sld [smem:[#allocation17 + $0x75]]
        %s4415 = sld [smem:[#allocation17 + $0x76]]
        %s4416 = sld [smem:[#allocation17 + $0x77]]
        %s4417 = sld [smem:[#allocation17 + $0x78]]
        %s4418 = sld [smem:[#allocation17 + $0x79]]
        %s4419 = sld [smem:[#allocation17 + $0x7a]]
        %s4420 = sld [smem:[#allocation17 + $0x7b]]
        %s4421 = sld [smem:[#allocation17 + $0x7c]]
        %s4422 = sld [smem:[#allocation17 + $0x7d]]
        %s4423 = sld [smem:[#allocation17 + $0x7e]]
        %s4424 = sld [smem:[#allocation17 + $0x7f]]
        %s4425 = sld [smem:[#allocation17 + $0x80]]
        %s4426 = sld [smem:[#allocation17 + $0x81]]
        %s4427 = sld [smem:[#allocation17 + $0x82]]
        %s4428 = sld [smem:[#allocation17 + $0x83]]
        %s4429 = sld [smem:[#allocation17 + $0x84]]
        %s4430 = sld [smem:[#allocation17 + $0x85]]
        %s4431 = sld [smem:[#allocation17 + $0x86]]
        %s4432 = sld [smem:[#allocation17 + $0x87]]
        %s4433 = sld [smem:[#allocation17 + $0x88]]
        %s4434 = sld [smem:[#allocation17 + $0x89]]
        %s4435 = sld [smem:[#allocation17 + $0x8a]]
        %s4436 = sld [smem:[#allocation17 + $0x8b]]
        %s4437 = sld [smem:[#allocation17 + $0x8c]]
        %s4438 = sld [smem:[#allocation17 + $0x8d]]
        %s4439 = sld [smem:[#allocation17 + $0x8e]]
        %s4440 = sld [smem:[#allocation17 + $0x8f]]
        %s4441 = sld [smem:[#allocation18]]
        %s4442 = sld [smem:[#allocation18 + $0x1]]
        %s4443 = sld [smem:[#allocation18 + $0x2]]
        %s4444 = sld [smem:[#allocation18 + $0x3]]
        %4445 = vrot.lane.b32.xlu0 %v4259, 17
        %v4446 = vpop.permute.xlu0 %4445
        %4447 = vrot.lane.b32.xlu0 %v4260, 17
        %v4448 = vpop.permute.xlu0 %4447
        %v4449 = vsel %vm666, %v4446, %v4448
        %v4450 = vsel %vm666, %v4448, %v4446
        %v4451 = vmul.f32 %v4450, %v673
        %v4452 = vmul.f32 %v4449, %v677
        %v4453 = vstv %s4297
        %v4454 = vmul.f32 %v4453, %v4451
        %v4455 = vmul.f32 %v4453, %v4452
        %v4456 = vstv %s4441
        %v4457 = vadd.f32 %v4454, %v4456
        %v4458 = vadd.f32 %v4455, %v4456
        %v4459 = vstv %s4298
        %v4460 = vmul.f32 %v4459, %v4451
        %v4461 = vmul.f32 %v4459, %v4452
        %v4462 = vstv %s4442
        %v4463 = vadd.f32 %v4460, %v4462
        %v4464 = vadd.f32 %v4461, %v4462
        %v4465 = vstv %s4299
        %v4466 = vmul.f32 %v4465, %v4451
        %v4467 = vmul.f32 %v4465, %v4452
        %v4468 = vstv %s4443
        %v4469 = vadd.f32 %v4466, %v4468
        %v4470 = vadd.f32 %v4467, %v4468
        %v4471 = vstv %s4300
        %v4472 = vmul.f32 %v4471, %v4451
        %v4473 = vmul.f32 %v4471, %v4452
        %v4474 = vstv %s4444
        %v4475 = vadd.f32 %v4472, %v4474
        %v4476 = vadd.f32 %v4473, %v4474
        %4477 = vrot.lane.b32.xlu0 %v4271, 17
        %v4478 = vpop.permute.xlu0 %4477
        %4479 = vrot.lane.b32.xlu0 %v4272, 17
        %v4480 = vpop.permute.xlu0 %4479
        %v4481 = vsel %vm666, %v4478, %v4480
        %v4482 = vsel %vm666, %v4480, %v4478
        %v4483 = vmul.f32 %v4482, %v673
        %v4484 = vmul.f32 %v4481, %v677
        %v4485 = vstv %s4301
        %v4486 = vmul.f32 %v4485, %v4483
        %v4487 = vmul.f32 %v4485, %v4484
        %v4488 = vadd.f32 %v4457, %v4486
        %v4489 = vadd.f32 %v4458, %v4487
        %v4490 = vstv %s4302
        %v4491 = vmul.f32 %v4490, %v4483
        %v4492 = vmul.f32 %v4490, %v4484
        %v4493 = vadd.f32 %v4463, %v4491
        %v4494 = vadd.f32 %v4464, %v4492
        %v4495 = vstv %s4303
        %v4496 = vmul.f32 %v4495, %v4483
        %v4497 = vmul.f32 %v4495, %v4484
        %v4498 = vadd.f32 %v4469, %v4496
        %v4499 = vadd.f32 %v4470, %v4497
        %v4500 = vstv %s4304
        %v4501 = vmul.f32 %v4500, %v4483
        %v4502 = vmul.f32 %v4500, %v4484
        %v4503 = vadd.f32 %v4475, %v4501
        %v4504 = vadd.f32 %v4476, %v4502
        %4505 = vrot.lane.b32.xlu0 %v4283, 17
        %v4506 = vpop.permute.xlu0 %4505
        %4507 = vrot.lane.b32.xlu0 %v4284, 17
        %v4508 = vpop.permute.xlu0 %4507
        %v4509 = vsel %vm666, %v4506, %v4508
        %v4510 = vsel %vm666, %v4508, %v4506
        %v4511 = vmul.f32 %v4510, %v673
        %v4512 = vmul.f32 %v4509, %v677
        %v4513 = vstv %s4305
        %v4514 = vmul.f32 %v4513, %v4511
        %v4515 = vmul.f32 %v4513, %v4512
        %v4516 = vadd.f32 %v4488, %v4514
        %v4517 = vadd.f32 %v4489, %v4515
        %v4518 = vstv %s4306
        %v4519 = vmul.f32 %v4518, %v4511
        %v4520 = vmul.f32 %v4518, %v4512
        %v4521 = vadd.f32 %v4493, %v4519
        %v4522 = vadd.f32 %v4494, %v4520
        %v4523 = vstv %s4307
        %v4524 = vmul.f32 %v4523, %v4511
        %v4525 = vmul.f32 %v4523, %v4512
        %v4526 = vadd.f32 %v4498, %v4524
        %v4527 = vadd.f32 %v4499, %v4525
        %v4528 = vstv %s4308
        %v4529 = vmul.f32 %v4528, %v4511
        %v4530 = vmul.f32 %v4528, %v4512
        %v4531 = vadd.f32 %v4503, %v4529
        %v4532 = vadd.f32 %v4504, %v4530
        %4533 = vrot.lane.b32.xlu0 %v4295, 17
        %v4534 = vpop.permute.xlu0 %4533
        %4535 = vrot.lane.b32.xlu0 %v4296, 17
        %v4536 = vpop.permute.xlu0 %4535
        %v4537 = vsel %vm666, %v4534, %v4536
        %v4538 = vsel %vm666, %v4536, %v4534
        %v4539 = vmul.f32 %v4538, %v673
        %v4540 = vmul.f32 %v4537, %v677
        %v4541 = vstv %s4309
        %v4542 = vmul.f32 %v4541, %v4539
        %v4543 = vmul.f32 %v4541, %v4540
        %v4544 = vadd.f32 %v4516, %v4542
        %v4545 = vadd.f32 %v4517, %v4543
        %v4546 = vstv %s4310
        %v4547 = vmul.f32 %v4546, %v4539
        %v4548 = vmul.f32 %v4546, %v4540
        %v4549 = vadd.f32 %v4521, %v4547
        %v4550 = vadd.f32 %v4522, %v4548
        %v4551 = vstv %s4311
        %v4552 = vmul.f32 %v4551, %v4539
        %v4553 = vmul.f32 %v4551, %v4540
        %v4554 = vadd.f32 %v4526, %v4552
        %v4555 = vadd.f32 %v4527, %v4553
        %v4556 = vstv %s4312
        %v4557 = vmul.f32 %v4556, %v4539
        %v4558 = vmul.f32 %v4556, %v4540
        %v4559 = vadd.f32 %v4531, %v4557
        %v4560 = vadd.f32 %v4532, %v4558
        %4561 = vrot.lane.b32.xlu0 %v4259, 16
        %v4562 = vpop.permute.xlu0 %4561
        %4563 = vrot.lane.b32.xlu0 %v4260, 16
        %v4564 = vpop.permute.xlu0 %4563
        %v4565 = vsel %vm829, %v4562, %v4564
        %v4566 = vsel %vm829, %v4564, %v4562
        %v4567 = vmul.f32 %v4566, %v836
        %v4568 = vmul.f32 %v4565, %v840
        %v4569 = vstv %s4313
        %v4570 = vmul.f32 %v4569, %v4567
        %v4571 = vmul.f32 %v4569, %v4568
        %v4572 = vadd.f32 %v4544, %v4570
        %v4573 = vadd.f32 %v4545, %v4571
        %v4574 = vstv %s4314
        %v4575 = vmul.f32 %v4574, %v4567
        %v4576 = vmul.f32 %v4574, %v4568
        %v4577 = vadd.f32 %v4549, %v4575
        %v4578 = vadd.f32 %v4550, %v4576
        %v4579 = vstv %s4315
        %v4580 = vmul.f32 %v4579, %v4567
        %v4581 = vmul.f32 %v4579, %v4568
        %v4582 = vadd.f32 %v4554, %v4580
        %v4583 = vadd.f32 %v4555, %v4581
        %v4584 = vstv %s4316
        %v4585 = vmul.f32 %v4584, %v4567
        %v4586 = vmul.f32 %v4584, %v4568
        %v4587 = vadd.f32 %v4559, %v4585
        %v4588 = vadd.f32 %v4560, %v4586
        %4589 = vrot.lane.b32.xlu0 %v4271, 16
        %v4590 = vpop.permute.xlu0 %4589
        %4591 = vrot.lane.b32.xlu0 %v4272, 16
        %v4592 = vpop.permute.xlu0 %4591
        %v4593 = vsel %vm829, %v4590, %v4592
        %v4594 = vsel %vm829, %v4592, %v4590
        %v4595 = vmul.f32 %v4594, %v836
        %v4596 = vmul.f32 %v4593, %v840
        %v4597 = vstv %s4317
        %v4598 = vmul.f32 %v4597, %v4595
        %v4599 = vmul.f32 %v4597, %v4596
        %v4600 = vadd.f32 %v4572, %v4598
        %v4601 = vadd.f32 %v4573, %v4599
        %v4602 = vstv %s4318
        %v4603 = vmul.f32 %v4602, %v4595
        %v4604 = vmul.f32 %v4602, %v4596
        %v4605 = vadd.f32 %v4577, %v4603
        %v4606 = vadd.f32 %v4578, %v4604
        %v4607 = vstv %s4319
        %v4608 = vmul.f32 %v4607, %v4595
        %v4609 = vmul.f32 %v4607, %v4596
        %v4610 = vadd.f32 %v4582, %v4608
        %v4611 = vadd.f32 %v4583, %v4609
        %v4612 = vstv %s4320
        %v4613 = vmul.f32 %v4612, %v4595
        %v4614 = vmul.f32 %v4612, %v4596
        %v4615 = vadd.f32 %v4587, %v4613
        %v4616 = vadd.f32 %v4588, %v4614
        %4617 = vrot.lane.b32.xlu0 %v4283, 16
        %v4618 = vpop.permute.xlu0 %4617
        %4619 = vrot.lane.b32.xlu0 %v4284, 16
        %v4620 = vpop.permute.xlu0 %4619
        %v4621 = vsel %vm829, %v4618, %v4620
        %v4622 = vsel %vm829, %v4620, %v4618
        %v4623 = vmul.f32 %v4622, %v836
        %v4624 = vmul.f32 %v4621, %v840
        %v4625 = vstv %s4321
        %v4626 = vmul.f32 %v4625, %v4623
        %v4627 = vmul.f32 %v4625, %v4624
        %v4628 = vadd.f32 %v4600, %v4626
        %v4629 = vadd.f32 %v4601, %v4627
        %v4630 = vstv %s4322
        %v4631 = vmul.f32 %v4630, %v4623
        %v4632 = vmul.f32 %v4630, %v4624
        %v4633 = vadd.f32 %v4605, %v4631
        %v4634 = vadd.f32 %v4606, %v4632
        %v4635 = vstv %s4323
        %v4636 = vmul.f32 %v4635, %v4623
        %v4637 = vmul.f32 %v4635, %v4624
        %v4638 = vadd.f32 %v4610, %v4636
        %v4639 = vadd.f32 %v4611, %v4637
        %v4640 = vstv %s4324
        %v4641 = vmul.f32 %v4640, %v4623
        %v4642 = vmul.f32 %v4640, %v4624
        %v4643 = vadd.f32 %v4615, %v4641
        %v4644 = vadd.f32 %v4616, %v4642
        %4645 = vrot.lane.b32.xlu0 %v4295, 16
        %v4646 = vpop.permute.xlu0 %4645
        %4647 = vrot.lane.b32.xlu0 %v4296, 16
        %v4648 = vpop.permute.xlu0 %4647
        %v4649 = vsel %vm829, %v4646, %v4648
        %v4650 = vsel %vm829, %v4648, %v4646
        %v4651 = vmul.f32 %v4650, %v836
        %v4652 = vmul.f32 %v4649, %v840
        %v4653 = vstv %s4325
        %v4654 = vmul.f32 %v4653, %v4651
        %v4655 = vmul.f32 %v4653, %v4652
        %v4656 = vadd.f32 %v4628, %v4654
        %v4657 = vadd.f32 %v4629, %v4655
        %v4658 = vstv %s4326
        %v4659 = vmul.f32 %v4658, %v4651
        %v4660 = vmul.f32 %v4658, %v4652
        %v4661 = vadd.f32 %v4633, %v4659
        %v4662 = vadd.f32 %v4634, %v4660
        %v4663 = vstv %s4327
        %v4664 = vmul.f32 %v4663, %v4651
        %v4665 = vmul.f32 %v4663, %v4652
        %v4666 = vadd.f32 %v4638, %v4664
        %v4667 = vadd.f32 %v4639, %v4665
        %v4668 = vstv %s4328
        %v4669 = vmul.f32 %v4668, %v4651
        %v4670 = vmul.f32 %v4668, %v4652
        %v4671 = vadd.f32 %v4643, %v4669
        %v4672 = vadd.f32 %v4644, %v4670
        %4673 = vrot.lane.b32.xlu0 %v4259, 15
        %v4674 = vpop.permute.xlu0 %4673
        %4675 = vrot.lane.b32.xlu0 %v4260, 15
        %v4676 = vpop.permute.xlu0 %4675
        %v4677 = vsel %vm955, %v4674, %v4676
        %v4678 = vsel %vm955, %v4676, %v4674
        %v4679 = vmul.f32 %v4678, %v962
        %v4680 = vmul.f32 %v4677, %v966
        %v4681 = vstv %s4329
        %v4682 = vmul.f32 %v4681, %v4679
        %v4683 = vmul.f32 %v4681, %v4680
        %v4684 = vadd.f32 %v4656, %v4682
        %v4685 = vadd.f32 %v4657, %v4683
        %v4686 = vstv %s4330
        %v4687 = vmul.f32 %v4686, %v4679
        %v4688 = vmul.f32 %v4686, %v4680
        %v4689 = vadd.f32 %v4661, %v4687
        %v4690 = vadd.f32 %v4662, %v4688
        %v4691 = vstv %s4331
        %v4692 = vmul.f32 %v4691, %v4679
        %v4693 = vmul.f32 %v4691, %v4680
        %v4694 = vadd.f32 %v4666, %v4692
        %v4695 = vadd.f32 %v4667, %v4693
        %v4696 = vstv %s4332
        %v4697 = vmul.f32 %v4696, %v4679
        %v4698 = vmul.f32 %v4696, %v4680
        %v4699 = vadd.f32 %v4671, %v4697
        %v4700 = vadd.f32 %v4672, %v4698
        %4701 = vrot.lane.b32.xlu0 %v4271, 15
        %v4702 = vpop.permute.xlu0 %4701
        %4703 = vrot.lane.b32.xlu0 %v4272, 15
        %v4704 = vpop.permute.xlu0 %4703
        %v4705 = vsel %vm955, %v4702, %v4704
        %v4706 = vsel %vm955, %v4704, %v4702
        %v4707 = vmul.f32 %v4706, %v962
        %v4708 = vmul.f32 %v4705, %v966
        %v4709 = vstv %s4333
        %v4710 = vmul.f32 %v4709, %v4707
        %v4711 = vmul.f32 %v4709, %v4708
        %v4712 = vadd.f32 %v4684, %v4710
        %v4713 = vadd.f32 %v4685, %v4711
        %v4714 = vstv %s4334
        %v4715 = vmul.f32 %v4714, %v4707
        %v4716 = vmul.f32 %v4714, %v4708
        %v4717 = vadd.f32 %v4689, %v4715
        %v4718 = vadd.f32 %v4690, %v4716
        %v4719 = vstv %s4335
        %v4720 = vmul.f32 %v4719, %v4707
        %v4721 = vmul.f32 %v4719, %v4708
        %v4722 = vadd.f32 %v4694, %v4720
        %v4723 = vadd.f32 %v4695, %v4721
        %v4724 = vstv %s4336
        %v4725 = vmul.f32 %v4724, %v4707
        %v4726 = vmul.f32 %v4724, %v4708
        %v4727 = vadd.f32 %v4699, %v4725
        %v4728 = vadd.f32 %v4700, %v4726
        %4729 = vrot.lane.b32.xlu0 %v4283, 15
        %v4730 = vpop.permute.xlu0 %4729
        %4731 = vrot.lane.b32.xlu0 %v4284, 15
        %v4732 = vpop.permute.xlu0 %4731
        %v4733 = vsel %vm955, %v4730, %v4732
        %v4734 = vsel %vm955, %v4732, %v4730
        %v4735 = vmul.f32 %v4734, %v962
        %v4736 = vmul.f32 %v4733, %v966
        %v4737 = vstv %s4337
        %v4738 = vmul.f32 %v4737, %v4735
        %v4739 = vmul.f32 %v4737, %v4736
        %v4740 = vadd.f32 %v4712, %v4738
        %v4741 = vadd.f32 %v4713, %v4739
        %v4742 = vstv %s4338
        %v4743 = vmul.f32 %v4742, %v4735
        %v4744 = vmul.f32 %v4742, %v4736
        %v4745 = vadd.f32 %v4717, %v4743
        %v4746 = vadd.f32 %v4718, %v4744
        %v4747 = vstv %s4339
        %v4748 = vmul.f32 %v4747, %v4735
        %v4749 = vmul.f32 %v4747, %v4736
        %v4750 = vadd.f32 %v4722, %v4748
        %v4751 = vadd.f32 %v4723, %v4749
        %v4752 = vstv %s4340
        %v4753 = vmul.f32 %v4752, %v4735
        %v4754 = vmul.f32 %v4752, %v4736
        %v4755 = vadd.f32 %v4727, %v4753
        %v4756 = vadd.f32 %v4728, %v4754
        %4757 = vrot.lane.b32.xlu0 %v4295, 15
        %v4758 = vpop.permute.xlu0 %4757
        %4759 = vrot.lane.b32.xlu0 %v4296, 15
        %v4760 = vpop.permute.xlu0 %4759
        %v4761 = vsel %vm955, %v4758, %v4760
        %v4762 = vsel %vm955, %v4760, %v4758
        %v4763 = vmul.f32 %v4762, %v962
        %v4764 = vmul.f32 %v4761, %v966
        %v4765 = vstv %s4341
        %v4766 = vmul.f32 %v4765, %v4763
        %v4767 = vmul.f32 %v4765, %v4764
        %v4768 = vadd.f32 %v4740, %v4766
        %v4769 = vadd.f32 %v4741, %v4767
        %v4770 = vstv %s4342
        %v4771 = vmul.f32 %v4770, %v4763
        %v4772 = vmul.f32 %v4770, %v4764
        %v4773 = vadd.f32 %v4745, %v4771
        %v4774 = vadd.f32 %v4746, %v4772
        %v4775 = vstv %s4343
        %v4776 = vmul.f32 %v4775, %v4763
        %v4777 = vmul.f32 %v4775, %v4764
        %v4778 = vadd.f32 %v4750, %v4776
        %v4779 = vadd.f32 %v4751, %v4777
        %v4780 = vstv %s4344
        %v4781 = vmul.f32 %v4780, %v4763
        %v4782 = vmul.f32 %v4780, %v4764
        %v4783 = vadd.f32 %v4755, %v4781
        %v4784 = vadd.f32 %v4756, %v4782
        %4785 = vrot.lane.b32.xlu0 %v4259, 1
        %v4786 = vpop.permute.xlu0 %4785
        %4787 = vrot.lane.b32.xlu0 %v4260, 1
        %v4788 = vpop.permute.xlu0 %4787
        %v4789 = vsel %vm1081, %v4786, %v4788
        %v4790 = vsel %vm1081, %v4788, %v4786
        %v4791 = vmul.f32 %v4790, %v1088
        %v4792 = vmul.f32 %v4789, %v1092
        %v4793 = vstv %s4345
        %v4794 = vmul.f32 %v4793, %v4791
        %v4795 = vmul.f32 %v4793, %v4792
        %v4796 = vadd.f32 %v4768, %v4794
        %v4797 = vadd.f32 %v4769, %v4795
        %v4798 = vstv %s4346
        %v4799 = vmul.f32 %v4798, %v4791
        %v4800 = vmul.f32 %v4798, %v4792
        %v4801 = vadd.f32 %v4773, %v4799
        %v4802 = vadd.f32 %v4774, %v4800
        %v4803 = vstv %s4347
        %v4804 = vmul.f32 %v4803, %v4791
        %v4805 = vmul.f32 %v4803, %v4792
        %v4806 = vadd.f32 %v4778, %v4804
        %v4807 = vadd.f32 %v4779, %v4805
        %v4808 = vstv %s4348
        %v4809 = vmul.f32 %v4808, %v4791
        %v4810 = vmul.f32 %v4808, %v4792
        %v4811 = vadd.f32 %v4783, %v4809
        %v4812 = vadd.f32 %v4784, %v4810
        %4813 = vrot.lane.b32.xlu0 %v4271, 1
        %v4814 = vpop.permute.xlu0 %4813
        %4815 = vrot.lane.b32.xlu0 %v4272, 1
        %v4816 = vpop.permute.xlu0 %4815
        %v4817 = vsel %vm1081, %v4814, %v4816
        %v4818 = vsel %vm1081, %v4816, %v4814
        %v4819 = vmul.f32 %v4818, %v1088
        %v4820 = vmul.f32 %v4817, %v1092
        %v4821 = vstv %s4349
        %v4822 = vmul.f32 %v4821, %v4819
        %v4823 = vmul.f32 %v4821, %v4820
        %v4824 = vadd.f32 %v4796, %v4822
        %v4825 = vadd.f32 %v4797, %v4823
        %v4826 = vstv %s4350
        %v4827 = vmul.f32 %v4826, %v4819
        %v4828 = vmul.f32 %v4826, %v4820
        %v4829 = vadd.f32 %v4801, %v4827
        %v4830 = vadd.f32 %v4802, %v4828
        %v4831 = vstv %s4351
        %v4832 = vmul.f32 %v4831, %v4819
        %v4833 = vmul.f32 %v4831, %v4820
        %v4834 = vadd.f32 %v4806, %v4832
        %v4835 = vadd.f32 %v4807, %v4833
        %v4836 = vstv %s4352
        %v4837 = vmul.f32 %v4836, %v4819
        %v4838 = vmul.f32 %v4836, %v4820
        %v4839 = vadd.f32 %v4811, %v4837
        %v4840 = vadd.f32 %v4812, %v4838
        %4841 = vrot.lane.b32.xlu0 %v4283, 1
        %v4842 = vpop.permute.xlu0 %4841
        %4843 = vrot.lane.b32.xlu0 %v4284, 1
        %v4844 = vpop.permute.xlu0 %4843
        %v4845 = vsel %vm1081, %v4842, %v4844
        %v4846 = vsel %vm1081, %v4844, %v4842
        %v4847 = vmul.f32 %v4846, %v1088
        %v4848 = vmul.f32 %v4845, %v1092
        %v4849 = vstv %s4353
        %v4850 = vmul.f32 %v4849, %v4847
        %v4851 = vmul.f32 %v4849, %v4848
        %v4852 = vadd.f32 %v4824, %v4850
        %v4853 = vadd.f32 %v4825, %v4851
        %v4854 = vstv %s4354
        %v4855 = vmul.f32 %v4854, %v4847
        %v4856 = vmul.f32 %v4854, %v4848
        %v4857 = vadd.f32 %v4829, %v4855
        %v4858 = vadd.f32 %v4830, %v4856
        %v4859 = vstv %s4355
        %v4860 = vmul.f32 %v4859, %v4847
        %v4861 = vmul.f32 %v4859, %v4848
        %v4862 = vadd.f32 %v4834, %v4860
        %v4863 = vadd.f32 %v4835, %v4861
        %v4864 = vstv %s4356
        %v4865 = vmul.f32 %v4864, %v4847
        %v4866 = vmul.f32 %v4864, %v4848
        %v4867 = vadd.f32 %v4839, %v4865
        %v4868 = vadd.f32 %v4840, %v4866
        %4869 = vrot.lane.b32.xlu0 %v4295, 1
        %v4870 = vpop.permute.xlu0 %4869
        %4871 = vrot.lane.b32.xlu0 %v4296, 1
        %v4872 = vpop.permute.xlu0 %4871
        %v4873 = vsel %vm1081, %v4870, %v4872
        %v4874 = vsel %vm1081, %v4872, %v4870
        %v4875 = vmul.f32 %v4874, %v1088
        %v4876 = vmul.f32 %v4873, %v1092
        %v4877 = vstv %s4357
        %v4878 = vmul.f32 %v4877, %v4875
        %v4879 = vmul.f32 %v4877, %v4876
        %v4880 = vadd.f32 %v4852, %v4878
        %v4881 = vadd.f32 %v4853, %v4879
        %v4882 = vstv %s4358
        %v4883 = vmul.f32 %v4882, %v4875
        %v4884 = vmul.f32 %v4882, %v4876
        %v4885 = vadd.f32 %v4857, %v4883
        %v4886 = vadd.f32 %v4858, %v4884
        %v4887 = vstv %s4359
        %v4888 = vmul.f32 %v4887, %v4875
        %v4889 = vmul.f32 %v4887, %v4876
        %v4890 = vadd.f32 %v4862, %v4888
        %v4891 = vadd.f32 %v4863, %v4889
        %v4892 = vstv %s4360
        %v4893 = vmul.f32 %v4892, %v4875
        %v4894 = vmul.f32 %v4892, %v4876
        %v4895 = vadd.f32 %v4867, %v4893
        %v4896 = vadd.f32 %v4868, %v4894
        %v4897 = vstv %s4361
        %v4898 = vmul.f32 %v4897, %v4259
        %v4899 = vmul.f32 %v4897, %v4260
        %v4900 = vadd.f32 %v4880, %v4898
        %v4901 = vadd.f32 %v4881, %v4899
        %v4902 = vstv %s4362
        %v4903 = vmul.f32 %v4902, %v4259
        %v4904 = vmul.f32 %v4902, %v4260
        %v4905 = vadd.f32 %v4885, %v4903
        %v4906 = vadd.f32 %v4886, %v4904
        %v4907 = vstv %s4363
        %v4908 = vmul.f32 %v4907, %v4259
        %v4909 = vmul.f32 %v4907, %v4260
        %v4910 = vadd.f32 %v4890, %v4908
        %v4911 = vadd.f32 %v4891, %v4909
        %v4912 = vstv %s4364
        %v4913 = vmul.f32 %v4912, %v4259
        %v4914 = vmul.f32 %v4912, %v4260
        %v4915 = vadd.f32 %v4895, %v4913
        %v4916 = vadd.f32 %v4896, %v4914
        %v4917 = vstv %s4365
        %v4918 = vmul.f32 %v4917, %v4271
        %v4919 = vmul.f32 %v4917, %v4272
        %v4920 = vadd.f32 %v4900, %v4918
        %v4921 = vadd.f32 %v4901, %v4919
        %v4922 = vstv %s4366
        %v4923 = vmul.f32 %v4922, %v4271
        %v4924 = vmul.f32 %v4922, %v4272
        %v4925 = vadd.f32 %v4905, %v4923
        %v4926 = vadd.f32 %v4906, %v4924
        %v4927 = vstv %s4367
        %v4928 = vmul.f32 %v4927, %v4271
        %v4929 = vmul.f32 %v4927, %v4272
        %v4930 = vadd.f32 %v4910, %v4928
        %v4931 = vadd.f32 %v4911, %v4929
        %v4932 = vstv %s4368
        %v4933 = vmul.f32 %v4932, %v4271
        %v4934 = vmul.f32 %v4932, %v4272
        %v4935 = vadd.f32 %v4915, %v4933
        %v4936 = vadd.f32 %v4916, %v4934
        %v4937 = vstv %s4369
        %v4938 = vmul.f32 %v4937, %v4283
        %v4939 = vmul.f32 %v4937, %v4284
        %v4940 = vadd.f32 %v4920, %v4938
        %v4941 = vadd.f32 %v4921, %v4939
        %v4942 = vstv %s4370
        %v4943 = vmul.f32 %v4942, %v4283
        %v4944 = vmul.f32 %v4942, %v4284
        %v4945 = vadd.f32 %v4925, %v4943
        %v4946 = vadd.f32 %v4926, %v4944
        %v4947 = vstv %s4371
        %v4948 = vmul.f32 %v4947, %v4283
        %v4949 = vmul.f32 %v4947, %v4284
        %v4950 = vadd.f32 %v4930, %v4948
        %v4951 = vadd.f32 %v4931, %v4949
        %v4952 = vstv %s4372
        %v4953 = vmul.f32 %v4952, %v4283
        %v4954 = vmul.f32 %v4952, %v4284
        %v4955 = vadd.f32 %v4935, %v4953
        %v4956 = vadd.f32 %v4936, %v4954
        %v4957 = vstv %s4373
        %v4958 = vmul.f32 %v4957, %v4295
        %v4959 = vmul.f32 %v4957, %v4296
        %v4960 = vadd.f32 %v4940, %v4958
        %v4961 = vadd.f32 %v4941, %v4959
        %v4962 = vstv %s4374
        %v4963 = vmul.f32 %v4962, %v4295
        %v4964 = vmul.f32 %v4962, %v4296
        %v4965 = vadd.f32 %v4945, %v4963
        %v4966 = vadd.f32 %v4946, %v4964
        %v4967 = vstv %s4375
        %v4968 = vmul.f32 %v4967, %v4295
        %v4969 = vmul.f32 %v4967, %v4296
        %v4970 = vadd.f32 %v4950, %v4968
        %v4971 = vadd.f32 %v4951, %v4969
        %v4972 = vstv %s4376
        %v4973 = vmul.f32 %v4972, %v4295
        %v4974 = vmul.f32 %v4972, %v4296
        %v4975 = vadd.f32 %v4955, %v4973
        %v4976 = vadd.f32 %v4956, %v4974
        %4977 = vrot.lane.b32.xlu0 %v4259, 127
        %v4978 = vpop.permute.xlu0 %4977
        %4979 = vrot.lane.b32.xlu0 %v4260, 127
        %v4980 = vpop.permute.xlu0 %4979
        %v4981 = vsel %vm1447, %v4978, %v4980
        %v4982 = vsel %vm1447, %v4980, %v4978
        %v4983 = vmul.f32 %v4981, %v1454
        %v4984 = vmul.f32 %v4982, %v1458
        %v4985 = vstv %s4377
        %v4986 = vmul.f32 %v4985, %v4983
        %v4987 = vmul.f32 %v4985, %v4984
        %v4988 = vadd.f32 %v4960, %v4986
        %v4989 = vadd.f32 %v4961, %v4987
        %v4990 = vstv %s4378
        %v4991 = vmul.f32 %v4990, %v4983
        %v4992 = vmul.f32 %v4990, %v4984
        %v4993 = vadd.f32 %v4965, %v4991
        %v4994 = vadd.f32 %v4966, %v4992
        %v4995 = vstv %s4379
        %v4996 = vmul.f32 %v4995, %v4983
        %v4997 = vmul.f32 %v4995, %v4984
        %v4998 = vadd.f32 %v4970, %v4996
        %v4999 = vadd.f32 %v4971, %v4997
        %v5000 = vstv %s4380
        %v5001 = vmul.f32 %v5000, %v4983
        %v5002 = vmul.f32 %v5000, %v4984
        %v5003 = vadd.f32 %v4975, %v5001
        %v5004 = vadd.f32 %v4976, %v5002
        %5005 = vrot.lane.b32.xlu0 %v4271, 127
        %v5006 = vpop.permute.xlu0 %5005
        %5007 = vrot.lane.b32.xlu0 %v4272, 127
        %v5008 = vpop.permute.xlu0 %5007
        %v5009 = vsel %vm1447, %v5006, %v5008
        %v5010 = vsel %vm1447, %v5008, %v5006
        %v5011 = vmul.f32 %v5009, %v1454
        %v5012 = vmul.f32 %v5010, %v1458
        %v5013 = vstv %s4381
        %v5014 = vmul.f32 %v5013, %v5011
        %v5015 = vmul.f32 %v5013, %v5012
        %v5016 = vadd.f32 %v4988, %v5014
        %v5017 = vadd.f32 %v4989, %v5015
        %v5018 = vstv %s4382
        %v5019 = vmul.f32 %v5018, %v5011
        %v5020 = vmul.f32 %v5018, %v5012
        %v5021 = vadd.f32 %v4993, %v5019
        %v5022 = vadd.f32 %v4994, %v5020
        %v5023 = vstv %s4383
        %v5024 = vmul.f32 %v5023, %v5011
        %v5025 = vmul.f32 %v5023, %v5012
        %v5026 = vadd.f32 %v4998, %v5024
        %v5027 = vadd.f32 %v4999, %v5025
        %v5028 = vstv %s4384
        %v5029 = vmul.f32 %v5028, %v5011
        %v5030 = vmul.f32 %v5028, %v5012
        %v5031 = vadd.f32 %v5003, %v5029
        %v5032 = vadd.f32 %v5004, %v5030
        %5033 = vrot.lane.b32.xlu0 %v4283, 127
        %v5034 = vpop.permute.xlu0 %5033
        %5035 = vrot.lane.b32.xlu0 %v4284, 127
        %v5036 = vpop.permute.xlu0 %5035
        %v5037 = vsel %vm1447, %v5034, %v5036
        %v5038 = vsel %vm1447, %v5036, %v5034
        %v5039 = vmul.f32 %v5037, %v1454
        %v5040 = vmul.f32 %v5038, %v1458
        %v5041 = vstv %s4385
        %v5042 = vmul.f32 %v5041, %v5039
        %v5043 = vmul.f32 %v5041, %v5040
        %v5044 = vadd.f32 %v5016, %v5042
        %v5045 = vadd.f32 %v5017, %v5043
        %v5046 = vstv %s4386
        %v5047 = vmul.f32 %v5046, %v5039
        %v5048 = vmul.f32 %v5046, %v5040
        %v5049 = vadd.f32 %v5021, %v5047
        %v5050 = vadd.f32 %v5022, %v5048
        %v5051 = vstv %s4387
        %v5052 = vmul.f32 %v5051, %v5039
        %v5053 = vmul.f32 %v5051, %v5040
        %v5054 = vadd.f32 %v5026, %v5052
        %v5055 = vadd.f32 %v5027, %v5053
        %v5056 = vstv %s4388
        %v5057 = vmul.f32 %v5056, %v5039
        %v5058 = vmul.f32 %v5056, %v5040
        %v5059 = vadd.f32 %v5031, %v5057
        %v5060 = vadd.f32 %v5032, %v5058
        %5061 = vrot.lane.b32.xlu0 %v4295, 127
        %v5062 = vpop.permute.xlu0 %5061
        %5063 = vrot.lane.b32.xlu0 %v4296, 127
        %v5064 = vpop.permute.xlu0 %5063
        %v5065 = vsel %vm1447, %v5062, %v5064
        %v5066 = vsel %vm1447, %v5064, %v5062
        %v5067 = vmul.f32 %v5065, %v1454
        %v5068 = vmul.f32 %v5066, %v1458
        %v5069 = vstv %s4389
        %v5070 = vmul.f32 %v5069, %v5067
        %v5071 = vmul.f32 %v5069, %v5068
        %v5072 = vadd.f32 %v5044, %v5070
        %v5073 = vadd.f32 %v5045, %v5071
        %v5074 = vstv %s4390
        %v5075 = vmul.f32 %v5074, %v5067
        %v5076 = vmul.f32 %v5074, %v5068
        %v5077 = vadd.f32 %v5049, %v5075
        %v5078 = vadd.f32 %v5050, %v5076
        %v5079 = vstv %s4391
        %v5080 = vmul.f32 %v5079, %v5067
        %v5081 = vmul.f32 %v5079, %v5068
        %v5082 = vadd.f32 %v5054, %v5080
        %v5083 = vadd.f32 %v5055, %v5081
        %v5084 = vstv %s4392
        %v5085 = vmul.f32 %v5084, %v5067
        %v5086 = vmul.f32 %v5084, %v5068
        %v5087 = vadd.f32 %v5059, %v5085
        %v5088 = vadd.f32 %v5060, %v5086
        %5089 = vrot.lane.b32.xlu0 %v4259, 113
        %v5090 = vpop.permute.xlu0 %5089
        %5091 = vrot.lane.b32.xlu0 %v4260, 113
        %v5092 = vpop.permute.xlu0 %5091
        %v5093 = vsel %vm1573, %v5090, %v5092
        %v5094 = vsel %vm1573, %v5092, %v5090
        %v5095 = vmul.f32 %v5093, %v1580
        %v5096 = vmul.f32 %v5094, %v1584
        %v5097 = vstv %s4393
        %v5098 = vmul.f32 %v5097, %v5095
        %v5099 = vmul.f32 %v5097, %v5096
        %v5100 = vadd.f32 %v5072, %v5098
        %v5101 = vadd.f32 %v5073, %v5099
        %v5102 = vstv %s4394
        %v5103 = vmul.f32 %v5102, %v5095
        %v5104 = vmul.f32 %v5102, %v5096
        %v5105 = vadd.f32 %v5077, %v5103
        %v5106 = vadd.f32 %v5078, %v5104
        %v5107 = vstv %s4395
        %v5108 = vmul.f32 %v5107, %v5095
        %v5109 = vmul.f32 %v5107, %v5096
        %v5110 = vadd.f32 %v5082, %v5108
        %v5111 = vadd.f32 %v5083, %v5109
        %v5112 = vstv %s4396
        %v5113 = vmul.f32 %v5112, %v5095
        %v5114 = vmul.f32 %v5112, %v5096
        %v5115 = vadd.f32 %v5087, %v5113
        %v5116 = vadd.f32 %v5088, %v5114
        %5117 = vrot.lane.b32.xlu0 %v4271, 113
        %v5118 = vpop.permute.xlu0 %5117
        %5119 = vrot.lane.b32.xlu0 %v4272, 113
        %v5120 = vpop.permute.xlu0 %5119
        %v5121 = vsel %vm1573, %v5118, %v5120
        %v5122 = vsel %vm1573, %v5120, %v5118
        %v5123 = vmul.f32 %v5121, %v1580
        %v5124 = vmul.f32 %v5122, %v1584
        %v5125 = vstv %s4397
        %v5126 = vmul.f32 %v5125, %v5123
        %v5127 = vmul.f32 %v5125, %v5124
        %v5128 = vadd.f32 %v5100, %v5126
        %v5129 = vadd.f32 %v5101, %v5127
        %v5130 = vstv %s4398
        %v5131 = vmul.f32 %v5130, %v5123
        %v5132 = vmul.f32 %v5130, %v5124
        %v5133 = vadd.f32 %v5105, %v5131
        %v5134 = vadd.f32 %v5106, %v5132
        %v5135 = vstv %s4399
        %v5136 = vmul.f32 %v5135, %v5123
        %v5137 = vmul.f32 %v5135, %v5124
        %v5138 = vadd.f32 %v5110, %v5136
        %v5139 = vadd.f32 %v5111, %v5137
        %v5140 = vstv %s4400
        %v5141 = vmul.f32 %v5140, %v5123
        %v5142 = vmul.f32 %v5140, %v5124
        %v5143 = vadd.f32 %v5115, %v5141
        %v5144 = vadd.f32 %v5116, %v5142
        %5145 = vrot.lane.b32.xlu0 %v4283, 113
        %v5146 = vpop.permute.xlu0 %5145
        %5147 = vrot.lane.b32.xlu0 %v4284, 113
        %v5148 = vpop.permute.xlu0 %5147
        %v5149 = vsel %vm1573, %v5146, %v5148
        %v5150 = vsel %vm1573, %v5148, %v5146
        %v5151 = vmul.f32 %v5149, %v1580
        %v5152 = vmul.f32 %v5150, %v1584
        %v5153 = vstv %s4401
        %v5154 = vmul.f32 %v5153, %v5151
        %v5155 = vmul.f32 %v5153, %v5152
        %v5156 = vadd.f32 %v5128, %v5154
        %v5157 = vadd.f32 %v5129, %v5155
        %v5158 = vstv %s4402
        %v5159 = vmul.f32 %v5158, %v5151
        %v5160 = vmul.f32 %v5158, %v5152
        %v5161 = vadd.f32 %v5133, %v5159
        %v5162 = vadd.f32 %v5134, %v5160
        %v5163 = vstv %s4403
        %v5164 = vmul.f32 %v5163, %v5151
        %v5165 = vmul.f32 %v5163, %v5152
        %v5166 = vadd.f32 %v5138, %v5164
        %v5167 = vadd.f32 %v5139, %v5165
        %v5168 = vstv %s4404
        %v5169 = vmul.f32 %v5168, %v5151
        %v5170 = vmul.f32 %v5168, %v5152
        %v5171 = vadd.f32 %v5143, %v5169
        %v5172 = vadd.f32 %v5144, %v5170
        %5173 = vrot.lane.b32.xlu0 %v4295, 113
        %v5174 = vpop.permute.xlu0 %5173
        %5175 = vrot.lane.b32.xlu0 %v4296, 113
        %v5176 = vpop.permute.xlu0 %5175
        %v5177 = vsel %vm1573, %v5174, %v5176
        %v5178 = vsel %vm1573, %v5176, %v5174
        %v5179 = vmul.f32 %v5177, %v1580
        %v5180 = vmul.f32 %v5178, %v1584
        %v5181 = vstv %s4405
        %v5182 = vmul.f32 %v5181, %v5179
        %v5183 = vmul.f32 %v5181, %v5180
        %v5184 = vadd.f32 %v5156, %v5182
        %v5185 = vadd.f32 %v5157, %v5183
        %v5186 = vstv %s4406
        %v5187 = vmul.f32 %v5186, %v5179
        %v5188 = vmul.f32 %v5186, %v5180
        %v5189 = vadd.f32 %v5161, %v5187
        %v5190 = vadd.f32 %v5162, %v5188
        %v5191 = vstv %s4407
        %v5192 = vmul.f32 %v5191, %v5179
        %v5193 = vmul.f32 %v5191, %v5180
        %v5194 = vadd.f32 %v5166, %v5192
        %v5195 = vadd.f32 %v5167, %v5193
        %v5196 = vstv %s4408
        %v5197 = vmul.f32 %v5196, %v5179
        %v5198 = vmul.f32 %v5196, %v5180
        %v5199 = vadd.f32 %v5171, %v5197
        %v5200 = vadd.f32 %v5172, %v5198
        %5201 = vrot.lane.b32.xlu0 %v4259, 112
        %v5202 = vpop.permute.xlu0 %5201
        %5203 = vrot.lane.b32.xlu0 %v4260, 112
        %v5204 = vpop.permute.xlu0 %5203
        %v5205 = vsel %vm1699, %v5202, %v5204
        %v5206 = vsel %vm1699, %v5204, %v5202
        %v5207 = vmul.f32 %v5205, %v1706
        %v5208 = vmul.f32 %v5206, %v1710
        %v5209 = vstv %s4409
        %v5210 = vmul.f32 %v5209, %v5207
        %v5211 = vmul.f32 %v5209, %v5208
        %v5212 = vadd.f32 %v5184, %v5210
        %v5213 = vadd.f32 %v5185, %v5211
        %v5214 = vstv %s4410
        %v5215 = vmul.f32 %v5214, %v5207
        %v5216 = vmul.f32 %v5214, %v5208
        %v5217 = vadd.f32 %v5189, %v5215
        %v5218 = vadd.f32 %v5190, %v5216
        %v5219 = vstv %s4411
        %v5220 = vmul.f32 %v5219, %v5207
        %v5221 = vmul.f32 %v5219, %v5208
        %v5222 = vadd.f32 %v5194, %v5220
        %v5223 = vadd.f32 %v5195, %v5221
        %v5224 = vstv %s4412
        %v5225 = vmul.f32 %v5224, %v5207
        %v5226 = vmul.f32 %v5224, %v5208
        %v5227 = vadd.f32 %v5199, %v5225
        %v5228 = vadd.f32 %v5200, %v5226
        %5229 = vrot.lane.b32.xlu0 %v4271, 112
        %v5230 = vpop.permute.xlu0 %5229
        %5231 = vrot.lane.b32.xlu0 %v4272, 112
        %v5232 = vpop.permute.xlu0 %5231
        %v5233 = vsel %vm1699, %v5230, %v5232
        %v5234 = vsel %vm1699, %v5232, %v5230
        %v5235 = vmul.f32 %v5233, %v1706
        %v5236 = vmul.f32 %v5234, %v1710
        %v5237 = vstv %s4413
        %v5238 = vmul.f32 %v5237, %v5235
        %v5239 = vmul.f32 %v5237, %v5236
        %v5240 = vadd.f32 %v5212, %v5238
        %v5241 = vadd.f32 %v5213, %v5239
        %v5242 = vstv %s4414
        %v5243 = vmul.f32 %v5242, %v5235
        %v5244 = vmul.f32 %v5242, %v5236
        %v5245 = vadd.f32 %v5217, %v5243
        %v5246 = vadd.f32 %v5218, %v5244
        %v5247 = vstv %s4415
        %v5248 = vmul.f32 %v5247, %v5235
        %v5249 = vmul.f32 %v5247, %v5236
        %v5250 = vadd.f32 %v5222, %v5248
        %v5251 = vadd.f32 %v5223, %v5249
        %v5252 = vstv %s4416
        %v5253 = vmul.f32 %v5252, %v5235
        %v5254 = vmul.f32 %v5252, %v5236
        %v5255 = vadd.f32 %v5227, %v5253
        %v5256 = vadd.f32 %v5228, %v5254
        %5257 = vrot.lane.b32.xlu0 %v4283, 112
        %v5258 = vpop.permute.xlu0 %5257
        %5259 = vrot.lane.b32.xlu0 %v4284, 112
        %v5260 = vpop.permute.xlu0 %5259
        %v5261 = vsel %vm1699, %v5258, %v5260
        %v5262 = vsel %vm1699, %v5260, %v5258
        %v5263 = vmul.f32 %v5261, %v1706
        %v5264 = vmul.f32 %v5262, %v1710
        %v5265 = vstv %s4417
        %v5266 = vmul.f32 %v5265, %v5263
        %v5267 = vmul.f32 %v5265, %v5264
        %v5268 = vadd.f32 %v5240, %v5266
        %v5269 = vadd.f32 %v5241, %v5267
        %v5270 = vstv %s4418
        %v5271 = vmul.f32 %v5270, %v5263
        %v5272 = vmul.f32 %v5270, %v5264
        %v5273 = vadd.f32 %v5245, %v5271
        %v5274 = vadd.f32 %v5246, %v5272
        %v5275 = vstv %s4419
        %v5276 = vmul.f32 %v5275, %v5263
        %v5277 = vmul.f32 %v5275, %v5264
        %v5278 = vadd.f32 %v5250, %v5276
        %v5279 = vadd.f32 %v5251, %v5277
        %v5280 = vstv %s4420
        %v5281 = vmul.f32 %v5280, %v5263
        %v5282 = vmul.f32 %v5280, %v5264
        %v5283 = vadd.f32 %v5255, %v5281
        %v5284 = vadd.f32 %v5256, %v5282
        %5285 = vrot.lane.b32.xlu0 %v4295, 112
        %v5286 = vpop.permute.xlu0 %5285
        %5287 = vrot.lane.b32.xlu0 %v4296, 112
        %v5288 = vpop.permute.xlu0 %5287
        %v5289 = vsel %vm1699, %v5286, %v5288
        %v5290 = vsel %vm1699, %v5288, %v5286
        %v5291 = vmul.f32 %v5289, %v1706
        %v5292 = vmul.f32 %v5290, %v1710
        %v5293 = vstv %s4421
        %v5294 = vmul.f32 %v5293, %v5291
        %v5295 = vmul.f32 %v5293, %v5292
        %v5296 = vadd.f32 %v5268, %v5294
        %v5297 = vadd.f32 %v5269, %v5295
        %v5298 = vstv %s4422
        %v5299 = vmul.f32 %v5298, %v5291
        %v5300 = vmul.f32 %v5298, %v5292
        %v5301 = vadd.f32 %v5273, %v5299
        %v5302 = vadd.f32 %v5274, %v5300
        %v5303 = vstv %s4423
        %v5304 = vmul.f32 %v5303, %v5291
        %v5305 = vmul.f32 %v5303, %v5292
        %v5306 = vadd.f32 %v5278, %v5304
        %v5307 = vadd.f32 %v5279, %v5305
        %v5308 = vstv %s4424
        %v5309 = vmul.f32 %v5308, %v5291
        %v5310 = vmul.f32 %v5308, %v5292
        %v5311 = vadd.f32 %v5283, %v5309
        %v5312 = vadd.f32 %v5284, %v5310
        %5313 = vrot.lane.b32.xlu0 %v4259, 111
        %v5314 = vpop.permute.xlu0 %5313
        %5315 = vrot.lane.b32.xlu0 %v4260, 111
        %v5316 = vpop.permute.xlu0 %5315
        %v5317 = vsel %vm1825, %v5314, %v5316
        %v5318 = vsel %vm1825, %v5316, %v5314
        %v5319 = vmul.f32 %v5317, %v1832
        %v5320 = vmul.f32 %v5318, %v1836
        %v5321 = vstv %s4425
        %v5322 = vmul.f32 %v5321, %v5319
        %v5323 = vmul.f32 %v5321, %v5320
        %v5324 = vadd.f32 %v5296, %v5322
        %v5325 = vadd.f32 %v5297, %v5323
        %v5326 = vstv %s4426
        %v5327 = vmul.f32 %v5326, %v5319
        %v5328 = vmul.f32 %v5326, %v5320
        %v5329 = vadd.f32 %v5301, %v5327
        %v5330 = vadd.f32 %v5302, %v5328
        %v5331 = vstv %s4427
        %v5332 = vmul.f32 %v5331, %v5319
        %v5333 = vmul.f32 %v5331, %v5320
        %v5334 = vadd.f32 %v5306, %v5332
        %v5335 = vadd.f32 %v5307, %v5333
        %v5336 = vstv %s4428
        %v5337 = vmul.f32 %v5336, %v5319
        %v5338 = vmul.f32 %v5336, %v5320
        %v5339 = vadd.f32 %v5311, %v5337
        %v5340 = vadd.f32 %v5312, %v5338
        %5341 = vrot.lane.b32.xlu0 %v4271, 111
        %v5342 = vpop.permute.xlu0 %5341
        %5343 = vrot.lane.b32.xlu0 %v4272, 111
        %v5344 = vpop.permute.xlu0 %5343
        %v5345 = vsel %vm1825, %v5342, %v5344
        %v5346 = vsel %vm1825, %v5344, %v5342
        %v5347 = vmul.f32 %v5345, %v1832
        %v5348 = vmul.f32 %v5346, %v1836
        %v5349 = vstv %s4429
        %v5350 = vmul.f32 %v5349, %v5347
        %v5351 = vmul.f32 %v5349, %v5348
        %v5352 = vadd.f32 %v5324, %v5350
        %v5353 = vadd.f32 %v5325, %v5351
        %v5354 = vstv %s4430
        %v5355 = vmul.f32 %v5354, %v5347
        %v5356 = vmul.f32 %v5354, %v5348
        %v5357 = vadd.f32 %v5329, %v5355
        %v5358 = vadd.f32 %v5330, %v5356
        %v5359 = vstv %s4431
        %v5360 = vmul.f32 %v5359, %v5347
        %v5361 = vmul.f32 %v5359, %v5348
        %v5362 = vadd.f32 %v5334, %v5360
        %v5363 = vadd.f32 %v5335, %v5361
        %v5364 = vstv %s4432
        %v5365 = vmul.f32 %v5364, %v5347
        %v5366 = vmul.f32 %v5364, %v5348
        %v5367 = vadd.f32 %v5339, %v5365
        %v5368 = vadd.f32 %v5340, %v5366
        %5369 = vrot.lane.b32.xlu0 %v4283, 111
        %v5370 = vpop.permute.xlu0 %5369
        %5371 = vrot.lane.b32.xlu0 %v4284, 111
        %v5372 = vpop.permute.xlu0 %5371
        %v5373 = vsel %vm1825, %v5370, %v5372
        %v5374 = vsel %vm1825, %v5372, %v5370
        %v5375 = vmul.f32 %v5373, %v1832
        %v5376 = vmul.f32 %v5374, %v1836
        %v5377 = vstv %s4433
        %v5378 = vmul.f32 %v5377, %v5375
        %v5379 = vmul.f32 %v5377, %v5376
        %v5380 = vadd.f32 %v5352, %v5378
        %v5381 = vadd.f32 %v5353, %v5379
        %v5382 = vstv %s4434
        %v5383 = vmul.f32 %v5382, %v5375
        %v5384 = vmul.f32 %v5382, %v5376
        %v5385 = vadd.f32 %v5357, %v5383
        %v5386 = vadd.f32 %v5358, %v5384
        %v5387 = vstv %s4435
        %v5388 = vmul.f32 %v5387, %v5375
        %v5389 = vmul.f32 %v5387, %v5376
        %v5390 = vadd.f32 %v5362, %v5388
        %v5391 = vadd.f32 %v5363, %v5389
        %v5392 = vstv %s4436
        %v5393 = vmul.f32 %v5392, %v5375
        %v5394 = vmul.f32 %v5392, %v5376
        %v5395 = vadd.f32 %v5367, %v5393
        %v5396 = vadd.f32 %v5368, %v5394
        %5397 = vrot.lane.b32.xlu0 %v4295, 111
        %v5398 = vpop.permute.xlu0 %5397
        %5399 = vrot.lane.b32.xlu0 %v4296, 111
        %v5400 = vpop.permute.xlu0 %5399
        %v5401 = vsel %vm1825, %v5398, %v5400
        %v5402 = vsel %vm1825, %v5400, %v5398
        %v5403 = vmul.f32 %v5401, %v1832
        %v5404 = vmul.f32 %v5402, %v1836
        %v5405 = vstv %s4437
        %v5406 = vmul.f32 %v5405, %v5403
        %v5407 = vmul.f32 %v5405, %v5404
        %v5408 = vadd.f32 %v5380, %v5406
        %v5409 = vadd.f32 %v5381, %v5407
        %v5410 = vstv %s4438
        %v5411 = vmul.f32 %v5410, %v5403
        %v5412 = vmul.f32 %v5410, %v5404
        %v5413 = vadd.f32 %v5385, %v5411
        %v5414 = vadd.f32 %v5386, %v5412
        %v5415 = vstv %s4439
        %v5416 = vmul.f32 %v5415, %v5403
        %v5417 = vmul.f32 %v5415, %v5404
        %v5418 = vadd.f32 %v5390, %v5416
        %v5419 = vadd.f32 %v5391, %v5417
        %v5420 = vstv %s4440
        %v5421 = vmul.f32 %v5420, %v5403
        %v5422 = vmul.f32 %v5420, %v5404
        %v5423 = vadd.f32 %v5395, %v5421
        %v5424 = vadd.f32 %v5396, %v5422
        %v5425 = vsub.f32 0.0, %v5408
        %v5426 = vsub.f32 0.0, %v5409
        %v5427 = vmul.f32 %v5425, 1.442695
        %v5428 = vpow.pop %v5427
        %v5429 = vmul.f32 %v5426, 1.442695
        %v5430 = vpow.pop %v5429
        %v5431 = vadd.f32 %v5428, 1.0
        %v5432 = vadd.f32 %v5430, 1.0
        %v5433 = vrcp.pop %v5431
        %v5434 = vrcp.pop %v5432
        %v5435 = vmul.f32 %v5433, %v653
        %v5436 = vmul.f32 %v5434, %v657
        %v5439 = vcombine.low %v5435, %v5436
        %v5441 = vunpack.c.l.s4 1966171168
        %v5442 = vunpack.c.0.s8 %v5441
        %v5443 = vlaneseq
        %v5444 = vshrl.u32 %v5443, 7
        %v5445 = vsub.s32 %v5442, %v5444
        %v5446 = vrot.slane %v5439, %v5445
        %v5448 = vunpack.c.l.s4 1966171168
        %v5449 = vunpack.c.0.s8 %v5448
        %v5450 = vlaneseq
        %v5451 = vshrl.u32 %v5450, 7
        %v5452 = vsub.s32 %v5449, %v5451
        %v5453 = vrot.slane %v5446, %v5452
        %v5455 = vlaneseq
        %vm5456 = vcmp.ge.s32.totalorder %v5455, 0
        %vm5457 = vcmp.lt.s32.totalorder %v5455, 256
        %vm5458 = vmand %vm5456, %vm5457
        %5459 = vst.msk [vmem:[%s492] ss:$4 sm:$0x3] %vm5458, %v5453
        %v5460 = vsub.f32 0.0, %v5413
        %v5461 = vsub.f32 0.0, %v5414
        %v5462 = vmul.f32 %v5460, 1.442695
        %v5463 = vpow.pop %v5462
        %v5464 = vmul.f32 %v5461, 1.442695
        %v5465 = vpow.pop %v5464
        %v5466 = vadd.f32 %v5463, 1.0
        %v5467 = vadd.f32 %v5465, 1.0
        %v5468 = vrcp.pop %v5466
        %v5469 = vrcp.pop %v5467
        %v5470 = vmul.f32 %v5468, %v710
        %v5471 = vmul.f32 %v5469, %v714
        %v5474 = vcombine.low %v5470, %v5471
        %v5476 = vunpack.c.l.s4 1966171168
        %v5477 = vunpack.c.0.s8 %v5476
        %v5478 = vlaneseq
        %v5479 = vshrl.u32 %v5478, 7
        %v5480 = vsub.s32 %v5477, %v5479
        %v5481 = vrot.slane %v5474, %v5480
        %v5483 = vunpack.c.l.s4 1966171168
        %v5484 = vunpack.c.0.s8 %v5483
        %v5485 = vlaneseq
        %v5486 = vshrl.u32 %v5485, 7
        %v5487 = vsub.s32 %v5484, %v5486
        %v5488 = vrot.slane %v5481, %v5487
        %s5490 = scalar_lea.vmem %s492, 1 [#allocation20]
        %5491 = vst.msk [vmem:[%s5490] ss:$4 sm:$0x3] %vm5458, %v5488
        %v5492 = vsub.f32 0.0, %v5418
        %v5493 = vsub.f32 0.0, %v5419
        %v5494 = vmul.f32 %v5492, 1.442695
        %v5495 = vpow.pop %v5494
        %v5496 = vmul.f32 %v5493, 1.442695
        %v5497 = vpow.pop %v5496
        %v5498 = vadd.f32 %v5495, 1.0
        %v5499 = vadd.f32 %v5497, 1.0
        %v5500 = vrcp.pop %v5498
        %v5501 = vrcp.pop %v5499
        %v5502 = vmul.f32 %v5500, %v749
        %v5503 = vmul.f32 %v5501, %v753
        %v5506 = vcombine.low %v5502, %v5503
        %v5508 = vunpack.c.l.s4 1966171168
        %v5509 = vunpack.c.0.s8 %v5508
        %v5510 = vlaneseq
        %v5511 = vshrl.u32 %v5510, 7
        %v5512 = vsub.s32 %v5509, %v5511
        %v5513 = vrot.slane %v5506, %v5512
        %v5515 = vunpack.c.l.s4 1966171168
        %v5516 = vunpack.c.0.s8 %v5515
        %v5517 = vlaneseq
        %v5518 = vshrl.u32 %v5517, 7
        %v5519 = vsub.s32 %v5516, %v5518
        %v5520 = vrot.slane %v5513, %v5519
        %s5522 = scalar_lea.vmem %s492, 2 [#allocation20]
        %5523 = vst.msk [vmem:[%s5522] ss:$4 sm:$0x3] %vm5458, %v5520
        %v5524 = vsub.f32 0.0, %v5423
        %v5525 = vsub.f32 0.0, %v5424
        %v5526 = vmul.f32 %v5524, 1.442695
        %v5527 = vpow.pop %v5526
        %v5528 = vmul.f32 %v5525, 1.442695
        %v5529 = vpow.pop %v5528
        %v5530 = vadd.f32 %v5527, 1.0
        %v5531 = vadd.f32 %v5529, 1.0
        %v5532 = vrcp.pop %v5530
        %v5533 = vrcp.pop %v5531
        %v5534 = vmul.f32 %v5532, %v788
        %v5535 = vmul.f32 %v5533, %v792
        %v5538 = vcombine.low %v5534, %v5535
        %v5540 = vunpack.c.l.s4 1966171168
        %v5541 = vunpack.c.0.s8 %v5540
        %v5542 = vlaneseq
        %v5543 = vshrl.u32 %v5542, 7
        %v5544 = vsub.s32 %v5541, %v5543
        %v5545 = vrot.slane %v5538, %v5544
        %v5547 = vunpack.c.l.s4 1966171168
        %v5548 = vunpack.c.0.s8 %v5547
        %v5549 = vlaneseq
        %v5550 = vshrl.u32 %v5549, 7
        %v5551 = vsub.s32 %v5548, %v5550
        %v5552 = vrot.slane %v5545, %v5551
        %s5554 = scalar_lea.vmem %s492, 3 [#allocation20]
        %5555 = vst.msk [vmem:[%s5554] ss:$4 sm:$0x3] %vm5458, %v5552
        %s5556 = sand.u32 %s256, 1
        %s5557 = scalar_lea.sflag [#allocation4], %s5556
        %s5558 = sand.u32 %s256, 1
        %s5559 = smul.addr %s5558, 8
        %s5560 = scalar_lea.vmem [#allocation20], %s5559
        // Predicated region
        $region101: #{tpu_custom_call.1} parent=59 // pred_check
          %p5561 = pneg %p266
        $region102: #{tpu_custom_call.1} parent=59 // pred_check_branch
          %5563 = sbr.rel (%p5561) target = $region104
        $region103: #{tpu_custom_call.1} parent=59 // pred_region
          %s5565 = ssub.s32 128, 128
          %5566 = vsyncadd %s5557, %s5565
          %s5567 = smul.addr %s33, 2
          %s5568 = smul.addr %s5567, 64
          %s5569 = scalar_lea.hbm %s10, %s5568
          %s5571 = sshll.u32 %s5560, 4
          %s5572 = int_to_ptr.vmem [resolvable:$true] %s5571
          %5574 = dma.vmem_to_hbm [thread:$0]  %s5572, 128, %s5569, %s5557
        $region104: #{tpu_custom_call.1} parent=59 // pred_fallthru
          _
      $region60: #{tpu_custom_call.1} parent=5 // pred_fallthru
        _
      %p5575 = scmp.le.s32.totalorder 2, %s28
      // Predicated region
      $region105: #{tpu_custom_call.1} parent=5 // pred_check
        %p5576 = pneg %p5575
      $region106: #{tpu_custom_call.1} parent=5 // pred_check_branch
        %5578 = sbr.rel (%p5576) target = $region108
      $region107: #{tpu_custom_call.1} parent=5 // pred_region
        %s5579 = ssub.s32 %s28, 2
        // Predicated region
        $region109: #{tpu_custom_call.1} parent=107 // pred_check
          %p5580 = pneg %p272
        $region110: #{tpu_custom_call.1} parent=107 // pred_check_branch
          %5582 = sbr.rel (%p5580) target = $region112
        $region111: #{tpu_custom_call.1} parent=107 // pred_region
          %s5583 = sand.u32 %s257, 1
          %s5584 = scalar_lea.sflag [#allocation4], %s5583
          %s5585 = sand.u32 %s257, 1
          %s5586 = smul.addr %s5585, 8
          %s5587 = scalar_lea.vmem [#allocation20], %s5586
          %5588 = dma.done %s5584, 128
        $region112: #{tpu_custom_call.1} parent=107 // pred_fallthru
          _
      $region108: #{tpu_custom_call.1} parent=5 // pred_fallthru
        _
    $region6: #{tpu_custom_call.1} parent=1 // loop_footer
      %s32 = sadd.s32 1, %s28
    $region7: #{tpu_custom_call.1} parent=1 // loop_footer_branch
      %27 = sbr.rel target = $region3
    $region8: #{tpu_custom_call.1} parent=1 // loop_exit
      _
    %5589 = vsyncpa [#allocation3], 1
    %s5590 = scalar_lea.sflag [#allocation3], 1
    %5591 = vsyncpa %s5590, 1
    %5592 = vsyncpa [#allocation7], 1
    %5593 = vsyncpa [#allocation4], 1
    %s5594 = scalar_lea.sflag [#allocation4], 1
    %5595 = vsyncpa %s5594, 1
    %5596 = vsyncpa [#allocation5], 1
    %s5597 = scalar_lea.sflag [#allocation5], 1
    %5598 = vsyncpa %s5597, 1
    %5599 = vsyncpa [#allocation10], 1
    %5600 = vsyncpa [#allocation13], 1
    %5601 = vsyncpa [#allocation16], 1
    %5602 = vsyncpa [#allocation19], 1

</llo_original>
